<compile_context>
chip_gen: v7x
topology: tpu7x:2x2x1
jax: 0.10.0
libtpu: 0.0.40
codegen_flags: <defaults>
</compile_context>

<pallas_src>
import functools

import jax
import jax.numpy as jnp
from jax import lax
from jax.experimental import pallas as pl
from jax.experimental.pallas import tpu as pltpu


# ----------------------------------------------------------------------------
# Compiler params (shared): parallel batch axis + per-chip safe VMEM limit.
# ----------------------------------------------------------------------------
def _compiler_params():
    vmem_limit = None
    try:
        info = pltpu.get_tpu_info()
        # ~75% of physical VMEM: ~96 MiB on v5e/v6e, ~48 MiB on v7x.
        vmem_limit = int(info.vmem_capacity_bytes * 3 // 4)
    except Exception:  # unknown chip / query unavailable -> keep defaults
        vmem_limit = None
    return pltpu.CompilerParams(
        dimension_semantics=("parallel",),
        vmem_limit_bytes=vmem_limit,
    )


# ----------------------------------------------------------------------------
# Fused Dw denoiser (4 x conv3x3, im2col matmuls) + rhs = under + lam * Dw(x)
# ----------------------------------------------------------------------------
def _dw_rhs_kernel(lam_ref, x_ref, under_ref, tapmask_ref, *rest, H, W, n_conv):
    HW = H * W
    wb_refs = rest[:2 * n_conv]          # (w1, b1, w2, b2, ...)
    rhs_ref = rest[2 * n_conv]
    lam = lam_ref[0]                     # scalar from SMEM

    def conv3x3(h, w_ref, b_ref, relu):
        # h: (Cin, HW) channel-major f32.  Build the 9 shifted/masked taps and
        # stack them along the contraction axis (im2col) so the conv is a
        # single (Cout, 9*Cin) @ (9*Cin, HW) bf16 MXU matmul.
        taps = []
        for kh in range(3):
            for kw in range(3):
                tap = kh * 3 + kw
                d = (kh - 1) * W + (kw - 1)
                if d == 0:
                    taps.append(h)                        # center tap, mask = 1
                else:
                    # shift the flattened image by the tap offset (XLU roll)
                    # and zero positions that would read across the border.
                    p = pltpu.roll(h, shift=(-d) % HW, axis=1)
                    taps.append(p * tapmask_ref[tap:tap + 1, :])
        patch = jnp.concatenate(taps, axis=0).astype(jnp.bfloat16)  # (9*Cin, HW)
        acc = jnp.dot(w_ref[...], patch,                  # bf16 operands
                      preferred_element_type=jnp.float32)
        acc = acc + b_ref[...]                            # (Cout, 1) broadcast
        if relu:
            acc = jnp.maximum(acc, 0.0)
        return acc

    h = x_ref[0]                          # (2, HW) f32
    for idx in range(n_conv):
        h = conv3x3(h, wb_refs[2 * idx], wb_refs[2 * idx + 1],
                    relu=(idx < n_conv - 1))
    # fused epilogue: rhs = under_img + lam * Dw(x)
    rhs_ref[0] = under_ref[0] + lam * h


def dw_rhs(lam_arr, x_flat, under_flat, tapmasks, w_list, b_list, H, W):
    B = x_flat.shape[0]
    HW = H * W
    n_conv = len(w_list)
    in_specs = [
        pl.BlockSpec(memory_space=pltpu.MemorySpace.SMEM),       # lam
        pl.BlockSpec((1, 2, HW), lambda n: (n, 0, 0)),           # x
        pl.BlockSpec((1, 2, HW), lambda n: (n, 0, 0)),           # under_img
        pl.BlockSpec((9, HW), lambda n: (0, 0)),                 # tap border masks
    ]
    args = [lam_arr, x_flat, under_flat, tapmasks]
    for w2, b2 in zip(w_list, b_list):
        in_specs.append(pl.BlockSpec(w2.shape, lambda n: (0, 0)))
        in_specs.append(pl.BlockSpec(b2.shape, lambda n: (0, 0)))
        args.append(w2)
        args.append(b2)
    return pl.pallas_call(
        functools.partial(_dw_rhs_kernel, H=H, W=W, n_conv=n_conv),
        out_shape=jax.ShapeDtypeStruct((B, 2, HW), jnp.float32),
        grid=(B,),
        in_specs=in_specs,
        out_specs=pl.BlockSpec((1, 2, HW), lambda n: (n, 0, 0)),  # lane-dense
        compiler_params=_compiler_params(),
    )(*args)


# ----------------------------------------------------------------------------
# Conjugate-gradient data-consistency kernel (coil-batched bf16 DFT matmuls).
# ----------------------------------------------------------------------------
def _cg_kernel(lam_ref, rhs_ref, csm_r_ref, csm_i_ref, mask_t_ref,
               fr_ref, fi_ref, nfi_ref, out_ref, *, C, H, W, n_iter):
    lam = lam_ref[0]                      # scalar from SMEM

    frb = fr_ref[...]                     # real(F)   (H, H) bf16
    fib = fi_ref[...]                     # imag(F)          bf16
    nfib = nfi_ref[...]                   # -imag(F) (hoisted on host) bf16

    cr = csm_r_ref[0]                     # (C, H, W) coil maps, f32
    ci = csm_i_ref[0]
    mt = mask_t_ref[0]                    # (W, H) mask^T, f32

    rhs = rhs_ref[0]                      # (2, H, W)
    rr0 = rhs[0]
    ri0 = rhs[1]

    def cmm(ar, ai, br, bi):
        # 4-mult complex matmul; operands cast to bf16, f32 MXU accumulation.
        a_r = ar.astype(jnp.bfloat16)
        a_i = ai.astype(jnp.bfloat16)
        rr = (jnp.dot(a_r, br, preferred_element_type=jnp.float32)
              - jnp.dot(a_i, bi, preferred_element_type=jnp.float32))
        ri = (jnp.dot(a_r, bi, preferred_element_type=jnp.float32)
              + jnp.dot(a_i, br, preferred_element_type=jnp.float32))
        return rr, ri

    def coil_T(a, rows, cols):
        # (C*rows, cols) -> (C*cols, rows): batched per-coil XLU transpose;
        # the leading-dim split/merge reshapes are layout no-ops (rows, cols
        # multiples of 8).
        return jnp.transpose(a.reshape(C, rows, cols), (0, 2, 1)).reshape(C * cols, rows)

    def AtA(p_r, p_i):
        # p: (H, W) f32.  Returns A^H A p.  No concats: broadcast over coils.
        yr = (cr * p_r[None] - ci * p_i[None]).reshape(C * H, W)   # sens-expand
        yi = (cr * p_i[None] + ci * p_r[None]).reshape(C * H, W)
        # forward ortho FFT: DFT along W, then DFT along H via per-coil transpose.
        ar_, ai_ = cmm(yr, yi, frb, fib)                  # (C*H, W)
        atr = coil_T(ar_, H, W)                           # (C*W, H)
        ati = coil_T(ai_, H, W)
        ktr, kti = cmm(atr, ati, frb, fib)                # k-space (transposed)
        # undersampling mask (broadcast over coils, free reshapes).
        ktr = (ktr.reshape(C, W, H) * mt[None]).reshape(C * W, H)
        kti = (kti.reshape(C, W, H) * mt[None]).reshape(C * W, H)
        # inverse ortho FFT (conjugate DFT, -Fi precomputed on host).
        btr, bti = cmm(ktr, kti, frb, nfib)               # (C*W, H)
        br_ = coil_T(btr, W, H)                           # (C*H, W)
        bi_ = coil_T(bti, W, H)
        zr, zi = cmm(br_, bi_, frb, nfib)                 # (C*H, W)
        zr = zr.reshape(C, H, W)
        zi = zi.reshape(C, H, W)
        # sens-reduce: sum_c conj(s_c) * z_c  (single reduction over coils)
        acc_r = jnp.sum(cr * zr + ci * zi, axis=0)
        acc_i = jnp.sum(cr * zi - ci * zr, axis=0)
        return acc_r, acc_i

    x_r = jnp.zeros((H, W), jnp.float32)
    x_i = jnp.zeros((H, W), jnp.float32)
    r_r, r_i = rr0, ri0
    p_r, p_i = rr0, ri0
    rTr = jnp.sum(r_r * r_r + r_i * r_i, keepdims=True)   # (1, 1)
    eps = jnp.float32(1e-12)

    def body(_, carry):
        x_r, x_i, r_r, r_i, p_r, p_i, rTr = carry
        ar, ai = AtA(p_r, p_i)
        ar = ar + lam * p_r               # (A^H A + lam I) p
        ai = ai + lam * p_i
        pAp = jnp.sum(p_r * ar + p_i * ai, keepdims=True)
        alpha = jnp.where(pAp > eps, rTr / pAp, jnp.zeros_like(rTr))
        x_r = x_r + alpha * p_r
        x_i = x_i + alpha * p_i
        r_r = r_r - alpha * ar
        r_i = r_i - alpha * ai
        rTr_new = jnp.sum(r_r * r_r + r_i * r_i, keepdims=True)
        beta = jnp.where(rTr > eps, rTr_new / rTr, jnp.zeros_like(rTr))
        p_r = r_r + beta * p_r
        p_i = r_i + beta * p_i
        return (x_r, x_i, r_r, r_i, p_r, p_i, rTr_new)

    x_r, x_i, *_ = lax.fori_loop(0, n_iter, body,
                                 (x_r, x_i, r_r, r_i, p_r, p_i, rTr))
    # write directly in the module's (B, 2, H, W) layout
    out_ref[0, 0, :, :] = x_r
    out_ref[0, 1, :, :] = x_i


def cg_solve(lam_arr, rhs, csm_r, csm_i, mask_t, frb, fib, nfib,
             *, C, H, W, n_iter):
    B = rhs.shape[0]
    kernel = functools.partial(_cg_kernel, C=C, H=H, W=W, n_iter=n_iter)
    return pl.pallas_call(
        kernel,
        out_shape=jax.ShapeDtypeStruct((B, 2, H, W), jnp.float32),
        grid=(B,),
        in_specs=[
            pl.BlockSpec(memory_space=pltpu.MemorySpace.SMEM),     # lam
            pl.BlockSpec((1, 2, H, W), lambda b: (b, 0, 0, 0)),    # rhs
            pl.BlockSpec((1, C, H, W), lambda b: (b, 0, 0, 0)),    # csm real
            pl.BlockSpec((1, C, H, W), lambda b: (b, 0, 0, 0)),    # csm imag
            pl.BlockSpec((1, W, H), lambda b: (b, 0, 0)),          # mask^T
            pl.BlockSpec((H, H), lambda b: (0, 0)),                # Fr  (bf16)
            pl.BlockSpec((H, H), lambda b: (0, 0)),                # Fi  (bf16)
            pl.BlockSpec((H, H), lambda b: (0, 0)),                # -Fi (bf16)
        ],
        out_specs=pl.BlockSpec((1, 2, H, W), lambda b: (b, 0, 0, 0)),
        compiler_params=_compiler_params(),
    )(lam_arr, rhs, csm_r, csm_i, mask_t, frb, fib, nfib)


# ----------------------------------------------------------------------------
# Host-side helpers
# ----------------------------------------------------------------------------
def _dft_matrices(N):
    n = jnp.arange(N, dtype=jnp.float32)
    ang = -2.0 * jnp.pi * jnp.outer(n, n) / N
    scale = 1.0 / jnp.sqrt(jnp.float32(N))
    return (jnp.cos(ang) * scale).astype(jnp.float32), \
           (jnp.sin(ang) * scale).astype(jnp.float32)


def _tap_masks(H, W):
    # mask[tap, i*W+j] = 1 if the 3x3 tap (kh, kw) reads in-bounds at (i, j).
    i = jnp.arange(H)[:, None]
    j = jnp.arange(W)[None, :]
    masks = []
    for kh in range(3):
        for kw in range(3):
            dh, dw = kh - 1, kw - 1
            m = ((i + dh >= 0) & (i + dh < H) & (j + dw >= 0) & (j + dw < W))
            masks.append(m.astype(jnp.float32).reshape(H * W))
    return jnp.stack(masks)                      # (9, H*W)


# ----------------------------------------------------------------------------
# MoDL forward
# ----------------------------------------------------------------------------
def modl_forward(conv_params, lam, under_img, csm_r, csm_i, under_mask,
                 num_layers=2, n_cg_iter=10):
    B, two, H, W = under_img.shape
    assert two == 2 and H == W, "square images / 2 channels (real, imag) assumed"
    C = csm_r.shape[1]
    HW = H * W

    lam_arr = jnp.reshape(lam, (1,)).astype(jnp.float32)
    under_flat = under_img.reshape(B, 2, HW)                     # free reshape
    mask_t = jnp.transpose(under_mask.astype(jnp.float32), (0, 2, 1))  # (B, W, H)

    fr, fi = _dft_matrices(H)
    frb = fr.astype(jnp.bfloat16)                # bf16 MXU operands
    fib = fi.astype(jnp.bfloat16)
    nfib = (-fi).astype(jnp.bfloat16)            # conjugate imag hoisted to host
    tapmasks = _tap_masks(H, W)

    # (3,3,Cin,Cout) -> (Cout, 9*Cin) bf16 for the im2col matmul; bias (Cout,1) f32.
    w_list, b_list = [], []
    for w, b in conv_params:
        cin, cout = w.shape[2], w.shape[3]
        w2 = jnp.transpose(w.reshape(9, cin, cout), (2, 0, 1)).reshape(cout, 9 * cin)
        w_list.append(w2.astype(jnp.bfloat16))
        b_list.append(b.reshape(cout, 1).astype(jnp.float32))

    x = under_img
    for _ in range(num_layers):
        rhs_flat = dw_rhs(lam_arr, x.reshape(B, 2, HW), under_flat,
                          tapmasks, w_list, b_list, H, W)        # Dw + rhs fused
        rhs = rhs_flat.reshape(B, 2, H, W)                       # free reshape
        x = cg_solve(lam_arr, rhs, csm_r, csm_i, mask_t,
                     frb, fib, nfib, C=C, H=H, W=W, n_iter=n_cg_iter)
    return x


def init_params(key, in_ch=2, out_ch=2, hidden=32, n_conv=4):
    chans = [in_ch] + [hidden] * (n_conv - 1) + [out_ch]
    params = []
    for i in range(n_conv):
        key, sub = jax.random.split(key)
        w = jax.random.normal(sub, (3, 3, chans[i], chans[i + 1]), jnp.float32) * 0.05
        b = jnp.zeros((chans[i + 1],), jnp.float32)
        params.append((w, b))
    lam = jnp.float32(0.05)                      # nn.Parameter([0.05])
    return params, lam


if __name__ == "__main__":
    B, COILS, H, W = 2, 4, 16, 16
    IN_CH = OUT_CH = 2
    NUM_LAYERS = 2

    key = jax.random.PRNGKey(0)
    kp, k1, k2, k3, k4 = jax.random.split(key, 5)

    conv_params, lam = init_params(kp, IN_CH, OUT_CH, hidden=32, n_conv=4)

    under_img = jax.random.normal(k1, (B, IN_CH, H, W), jnp.float32)
    csm_r = jax.random.normal(k2, (B, COILS, H, W), jnp.float32) * 0.5
    csm_i = jax.random.normal(k3, (B, COILS, H, W), jnp.float32) * 0.5
    under_mask = (jax.random.uniform(k4, (B, H, W)) < 0.4).astype(jnp.float32)

    fwd = jax.jit(functools.partial(modl_forward,
                                    num_layers=NUM_LAYERS, n_cg_iter=10))
    out = fwd(conv_params, lam, under_img, csm_r, csm_i, under_mask)
    out = jax.block_until_ready(out)
    assert out.shape == (B, 2, H, W) and out.dtype == jnp.float32
    assert bool(jnp.all(jnp.isfinite(out)))
    print("KERNEL_OK")
</pallas_src>

<mosaic_0001>
module attributes {stable_mosaic.version = 11 : i64} {
  func.func @_dw_rhs_kernel(%arg0: i32, %arg1: memref<1xf32, #tpu.memory_space<smem>>, %arg2: memref<1x2x256xf32, #tpu.memory_space<vmem>>, %arg3: memref<1x2x256xf32, #tpu.memory_space<vmem>>, %arg4: memref<9x256xf32, #tpu.memory_space<vmem>>, %arg5: memref<32x18xbf16, #tpu.memory_space<vmem>>, %arg6: memref<32x1xf32, #tpu.memory_space<vmem>>, %arg7: memref<32x288xbf16, #tpu.memory_space<vmem>>, %arg8: memref<32x1xf32, #tpu.memory_space<vmem>>, %arg9: memref<32x288xbf16, #tpu.memory_space<vmem>>, %arg10: memref<32x1xf32, #tpu.memory_space<vmem>>, %arg11: memref<2x288xbf16, #tpu.memory_space<vmem>>, %arg12: memref<2x1xf32, #tpu.memory_space<vmem>>, %arg13: memref<1x2x256xf32, #tpu.memory_space<vmem>>) attributes {dimension_semantics = [#tpu.dimension_semantics<parallel>], iteration_bounds = array<i64: 2>, scalar_prefetch = 0 : i64, scratch_operands = 0 : i64, tpu.core_type = #tpu.core_type<tc>, window_params = [{transform_indices = @transform_0, window_bounds = array<i64: 1>}, {transform_indices = @transform_1, window_bounds = array<i64: 1, 2, 256>}, {transform_indices = @transform_2, window_bounds = array<i64: 1, 2, 256>}, {pipeline_mode = #tpu.pipeline_mode<synchronous>, transform_indices = @transform_3, window_bounds = array<i64: 9, 256>}, {pipeline_mode = #tpu.pipeline_mode<synchronous>, transform_indices = @transform_4, window_bounds = array<i64: 32, 18>}, {pipeline_mode = #tpu.pipeline_mode<synchronous>, transform_indices = @transform_5, window_bounds = array<i64: 32, 1>}, {pipeline_mode = #tpu.pipeline_mode<synchronous>, transform_indices = @transform_6, window_bounds = array<i64: 32, 288>}, {pipeline_mode = #tpu.pipeline_mode<synchronous>, transform_indices = @transform_7, window_bounds = array<i64: 32, 1>}, {pipeline_mode = #tpu.pipeline_mode<synchronous>, transform_indices = @transform_8, window_bounds = array<i64: 32, 288>}, {pipeline_mode = #tpu.pipeline_mode<synchronous>, transform_indices = @transform_9, window_bounds = array<i64: 32, 1>}, {pipeline_mode = #tpu.pipeline_mode<synchronous>, transform_indices = @transform_10, window_bounds = array<i64: 2, 288>}, {pipeline_mode = #tpu.pipeline_mode<synchronous>, transform_indices = @transform_11, window_bounds = array<i64: 2, 1>}, {transform_indices = @transform_12, window_bounds = array<i64: 1, 2, 256>}]} {
    %c0 = arith.constant 0 : index
    %0 = memref.load %arg1[%c0] : memref<1xf32, #tpu.memory_space<smem>>
    %c0_0 = arith.constant 0 : index
    %c0_1 = arith.constant 0 : index
    %c0_2 = arith.constant 0 : index
    %1 = vector.load %arg2[%c0_0, %c0_1, %c0_2] : memref<1x2x256xf32, #tpu.memory_space<vmem>>, vector<1x2x256xf32>
    %2 = vector.shape_cast %1 : vector<1x2x256xf32> to vector<2x256xf32>
    %c17_i32 = arith.constant 17 : i32
    %3 = tpu.dynamic_rotate %2 by %c17_i32 dim 1 : vector<2x256xf32>, i32 -> vector<2x256xf32>
    %c0_3 = arith.constant 0 : index
    %c0_4 = arith.constant 0 : index
    %4 = vector.load %arg4[%c0_3, %c0_4] : memref<9x256xf32, #tpu.memory_space<vmem>>, vector<1x256xf32>
    %5 = vector.broadcast %4 : vector<1x256xf32> to vector<2x256xf32>
    %6 = arith.mulf %3, %5 : vector<2x256xf32>
    %c16_i32 = arith.constant 16 : i32
    %7 = tpu.dynamic_rotate %2 by %c16_i32 dim 1 : vector<2x256xf32>, i32 -> vector<2x256xf32>
    %c1 = arith.constant 1 : index
    %c0_5 = arith.constant 0 : index
    %8 = vector.load %arg4[%c1, %c0_5] : memref<9x256xf32, #tpu.memory_space<vmem>>, vector<1x256xf32>
    %9 = vector.broadcast %8 : vector<1x256xf32> to vector<2x256xf32>
    %10 = arith.mulf %7, %9 : vector<2x256xf32>
    %c15_i32 = arith.constant 15 : i32
    %11 = tpu.dynamic_rotate %2 by %c15_i32 dim 1 : vector<2x256xf32>, i32 -> vector<2x256xf32>
    %c2 = arith.constant 2 : index
    %c0_6 = arith.constant 0 : index
    %12 = vector.load %arg4[%c2, %c0_6] : memref<9x256xf32, #tpu.memory_space<vmem>>, vector<1x256xf32>
    %13 = vector.broadcast %12 : vector<1x256xf32> to vector<2x256xf32>
    %14 = arith.mulf %11, %13 : vector<2x256xf32>
    %c1_i32 = arith.constant 1 : i32
    %15 = tpu.dynamic_rotate %2 by %c1_i32 dim 1 : vector<2x256xf32>, i32 -> vector<2x256xf32>
    %c3 = arith.constant 3 : index
    %c0_7 = arith.constant 0 : index
    %16 = vector.load %arg4[%c3, %c0_7] : memref<9x256xf32, #tpu.memory_space<vmem>>, vector<1x256xf32>
    %17 = vector.broadcast %16 : vector<1x256xf32> to vector<2x256xf32>
    %18 = arith.mulf %15, %17 : vector<2x256xf32>
    %c255_i32 = arith.constant 255 : i32
    %19 = tpu.dynamic_rotate %2 by %c255_i32 dim 1 : vector<2x256xf32>, i32 -> vector<2x256xf32>
    %c5 = arith.constant 5 : index
    %c0_8 = arith.constant 0 : index
    %20 = vector.load %arg4[%c5, %c0_8] : memref<9x256xf32, #tpu.memory_space<vmem>>, vector<1x256xf32>
    %21 = vector.broadcast %20 : vector<1x256xf32> to vector<2x256xf32>
    %22 = arith.mulf %19, %21 : vector<2x256xf32>
    %c241_i32 = arith.constant 241 : i32
    %23 = tpu.dynamic_rotate %2 by %c241_i32 dim 1 : vector<2x256xf32>, i32 -> vector<2x256xf32>
    %c6 = arith.constant 6 : index
    %c0_9 = arith.constant 0 : index
    %24 = vector.load %arg4[%c6, %c0_9] : memref<9x256xf32, #tpu.memory_space<vmem>>, vector<1x256xf32>
    %25 = vector.broadcast %24 : vector<1x256xf32> to vector<2x256xf32>
    %26 = arith.mulf %23, %25 : vector<2x256xf32>
    %c240_i32 = arith.constant 240 : i32
    %27 = tpu.dynamic_rotate %2 by %c240_i32 dim 1 : vector<2x256xf32>, i32 -> vector<2x256xf32>
    %c7 = arith.constant 7 : index
    %c0_10 = arith.constant 0 : index
    %28 = vector.load %arg4[%c7, %c0_10] : memref<9x256xf32, #tpu.memory_space<vmem>>, vector<1x256xf32>
    %29 = vector.broadcast %28 : vector<1x256xf32> to vector<2x256xf32>
    %30 = arith.mulf %27, %29 : vector<2x256xf32>
    %c239_i32 = arith.constant 239 : i32
    %31 = tpu.dynamic_rotate %2 by %c239_i32 dim 1 : vector<2x256xf32>, i32 -> vector<2x256xf32>
    %c8 = arith.constant 8 : index
    %c0_11 = arith.constant 0 : index
    %32 = vector.load %arg4[%c8, %c0_11] : memref<9x256xf32, #tpu.memory_space<vmem>>, vector<1x256xf32>
    %33 = vector.broadcast %32 : vector<1x256xf32> to vector<2x256xf32>
    %34 = arith.mulf %31, %33 : vector<2x256xf32>
    %35 = tpu.concatenate %6, %10, %14, %18, %2, %22, %26, %30, %34 in 0 : vector<2x256xf32>, vector<2x256xf32>, vector<2x256xf32>, vector<2x256xf32>, vector<2x256xf32>, vector<2x256xf32>, vector<2x256xf32>, vector<2x256xf32>, vector<2x256xf32> -> vector<18x256xf32>
    %36 = arith.truncf %35 : vector<18x256xf32> to vector<18x256xbf16>
    %c0_12 = arith.constant 0 : index
    %c0_13 = arith.constant 0 : index
    %37 = vector.load %arg5[%c0_12, %c0_13] : memref<32x18xbf16, #tpu.memory_space<vmem>>, vector<32x18xbf16>
    %cst = arith.constant dense<0.000000e+00> : vector<32x256xf32>
    %38 = tpu.matmul %37, %36, %cst {dimension_numbers = #tpu.dot_dimension_numbers<[1], [0], [0], [1], [0, 0, 1, 1], [], []>} : vector<32x18xbf16>, vector<18x256xbf16>, vector<32x256xf32> -> vector<32x256xf32>
    %c0_14 = arith.constant 0 : index
    %c0_15 = arith.constant 0 : index
    %39 = vector.load %arg6[%c0_14, %c0_15] : memref<32x1xf32, #tpu.memory_space<vmem>>, vector<32x1xf32>
    %40 = vector.broadcast %39 : vector<32x1xf32> to vector<32x256xf32>
    %41 = arith.addf %38, %40 : vector<32x256xf32>
    %cst_16 = arith.constant 0.000000e+00 : f32
    %42 = vector.broadcast %cst_16 : f32 to vector<32x256xf32>
    %43 = arith.maximumf %41, %42 : vector<32x256xf32>
    %c17_i32_17 = arith.constant 17 : i32
    %44 = tpu.dynamic_rotate %43 by %c17_i32_17 dim 1 : vector<32x256xf32>, i32 -> vector<32x256xf32>
    %c0_18 = arith.constant 0 : index
    %c0_19 = arith.constant 0 : index
    %45 = vector.load %arg4[%c0_18, %c0_19] : memref<9x256xf32, #tpu.memory_space<vmem>>, vector<1x256xf32>
    %46 = vector.broadcast %45 : vector<1x256xf32> to vector<32x256xf32>
    %47 = arith.mulf %44, %46 : vector<32x256xf32>
    %c16_i32_20 = arith.constant 16 : i32
    %48 = tpu.dynamic_rotate %43 by %c16_i32_20 dim 1 : vector<32x256xf32>, i32 -> vector<32x256xf32>
    %c1_21 = arith.constant 1 : index
    %c0_22 = arith.constant 0 : index
    %49 = vector.load %arg4[%c1_21, %c0_22] : memref<9x256xf32, #tpu.memory_space<vmem>>, vector<1x256xf32>
    %50 = vector.broadcast %49 : vector<1x256xf32> to vector<32x256xf32>
    %51 = arith.mulf %48, %50 : vector<32x256xf32>
    %c15_i32_23 = arith.constant 15 : i32
    %52 = tpu.dynamic_rotate %43 by %c15_i32_23 dim 1 : vector<32x256xf32>, i32 -> vector<32x256xf32>
    %c2_24 = arith.constant 2 : index
    %c0_25 = arith.constant 0 : index
    %53 = vector.load %arg4[%c2_24, %c0_25] : memref<9x256xf32, #tpu.memory_space<vmem>>, vector<1x256xf32>
    %54 = vector.broadcast %53 : vector<1x256xf32> to vector<32x256xf32>
    %55 = arith.mulf %52, %54 : vector<32x256xf32>
    %c1_i32_26 = arith.constant 1 : i32
    %56 = tpu.dynamic_rotate %43 by %c1_i32_26 dim 1 : vector<32x256xf32>, i32 -> vector<32x256xf32>
    %c3_27 = arith.constant 3 : index
    %c0_28 = arith.constant 0 : index
    %57 = vector.load %arg4[%c3_27, %c0_28] : memref<9x256xf32, #tpu.memory_space<vmem>>, vector<1x256xf32>
    %58 = vector.broadcast %57 : vector<1x256xf32> to vector<32x256xf32>
    %59 = arith.mulf %56, %58 : vector<32x256xf32>
    %c255_i32_29 = arith.constant 255 : i32
    %60 = tpu.dynamic_rotate %43 by %c255_i32_29 dim 1 : vector<32x256xf32>, i32 -> vector<32x256xf32>
    %c5_30 = arith.constant 5 : index
    %c0_31 = arith.constant 0 : index
    %61 = vector.load %arg4[%c5_30, %c0_31] : memref<9x256xf32, #tpu.memory_space<vmem>>, vector<1x256xf32>
    %62 = vector.broadcast %61 : vector<1x256xf32> to vector<32x256xf32>
    %63 = arith.mulf %60, %62 : vector<32x256xf32>
    %c241_i32_32 = arith.constant 241 : i32
    %64 = tpu.dynamic_rotate %43 by %c241_i32_32 dim 1 : vector<32x256xf32>, i32 -> vector<32x256xf32>
    %c6_33 = arith.constant 6 : index
    %c0_34 = arith.constant 0 : index
    %65 = vector.load %arg4[%c6_33, %c0_34] : memref<9x256xf32, #tpu.memory_space<vmem>>, vector<1x256xf32>
    %66 = vector.broadcast %65 : vector<1x256xf32> to vector<32x256xf32>
    %67 = arith.mulf %64, %66 : vector<32x256xf32>
    %c240_i32_35 = arith.constant 240 : i32
    %68 = tpu.dynamic_rotate %43 by %c240_i32_35 dim 1 : vector<32x256xf32>, i32 -> vector<32x256xf32>
    %c7_36 = arith.constant 7 : index
    %c0_37 = arith.constant 0 : index
    %69 = vector.load %arg4[%c7_36, %c0_37] : memref<9x256xf32, #tpu.memory_space<vmem>>, vector<1x256xf32>
    %70 = vector.broadcast %69 : vector<1x256xf32> to vector<32x256xf32>
    %71 = arith.mulf %68, %70 : vector<32x256xf32>
    %c239_i32_38 = arith.constant 239 : i32
    %72 = tpu.dynamic_rotate %43 by %c239_i32_38 dim 1 : vector<32x256xf32>, i32 -> vector<32x256xf32>
    %c8_39 = arith.constant 8 : index
    %c0_40 = arith.constant 0 : index
    %73 = vector.load %arg4[%c8_39, %c0_40] : memref<9x256xf32, #tpu.memory_space<vmem>>, vector<1x256xf32>
    %74 = vector.broadcast %73 : vector<1x256xf32> to vector<32x256xf32>
    %75 = arith.mulf %72, %74 : vector<32x256xf32>
    %76 = tpu.concatenate %47, %51, %55, %59, %43, %63, %67, %71, %75 in 0 : vector<32x256xf32>, vector<32x256xf32>, vector<32x256xf32>, vector<32x256xf32>, vector<32x256xf32>, vector<32x256xf32>, vector<32x256xf32>, vector<32x256xf32>, vector<32x256xf32> -> vector<288x256xf32>
    %77 = arith.truncf %76 : vector<288x256xf32> to vector<288x256xbf16>
    %c0_41 = arith.constant 0 : index
    %c0_42 = arith.constant 0 : index
    %78 = vector.load %arg7[%c0_41, %c0_42] : memref<32x288xbf16, #tpu.memory_space<vmem>>, vector<32x288xbf16>
    %cst_43 = arith.constant dense<0.000000e+00> : vector<32x256xf32>
    %79 = tpu.matmul %78, %77, %cst_43 {dimension_numbers = #tpu.dot_dimension_numbers<[1], [0], [0], [1], [0, 0, 1, 1], [], []>} : vector<32x288xbf16>, vector<288x256xbf16>, vector<32x256xf32> -> vector<32x256xf32>
    %c0_44 = arith.constant 0 : index
    %c0_45 = arith.constant 0 : index
    %80 = vector.load %arg8[%c0_44, %c0_45] : memref<32x1xf32, #tpu.memory_space<vmem>>, vector<32x1xf32>
    %81 = vector.broadcast %80 : vector<32x1xf32> to vector<32x256xf32>
    %82 = arith.addf %79, %81 : vector<32x256xf32>
    %cst_46 = arith.constant 0.000000e+00 : f32
    %83 = vector.broadcast %cst_46 : f32 to vector<32x256xf32>
    %84 = arith.maximumf %82, %83 : vector<32x256xf32>
    %c17_i32_47 = arith.constant 17 : i32
    %85 = tpu.dynamic_rotate %84 by %c17_i32_47 dim 1 : vector<32x256xf32>, i32 -> vector<32x256xf32>
    %c0_48 = arith.constant 0 : index
    %c0_49 = arith.constant 0 : index
    %86 = vector.load %arg4[%c0_48, %c0_49] : memref<9x256xf32, #tpu.memory_space<vmem>>, vector<1x256xf32>
    %87 = vector.broadcast %86 : vector<1x256xf32> to vector<32x256xf32>
    %88 = arith.mulf %85, %87 : vector<32x256xf32>
    %c16_i32_50 = arith.constant 16 : i32
    %89 = tpu.dynamic_rotate %84 by %c16_i32_50 dim 1 : vector<32x256xf32>, i32 -> vector<32x256xf32>
    %c1_51 = arith.constant 1 : index
    %c0_52 = arith.constant 0 : index
    %90 = vector.load %arg4[%c1_51, %c0_52] : memref<9x256xf32, #tpu.memory_space<vmem>>, vector<1x256xf32>
    %91 = vector.broadcast %90 : vector<1x256xf32> to vector<32x256xf32>
    %92 = arith.mulf %89, %91 : vector<32x256xf32>
    %c15_i32_53 = arith.constant 15 : i32
    %93 = tpu.dynamic_rotate %84 by %c15_i32_53 dim 1 : vector<32x256xf32>, i32 -> vector<32x256xf32>
    %c2_54 = arith.constant 2 : index
    %c0_55 = arith.constant 0 : index
    %94 = vector.load %arg4[%c2_54, %c0_55] : memref<9x256xf32, #tpu.memory_space<vmem>>, vector<1x256xf32>
    %95 = vector.broadcast %94 : vector<1x256xf32> to vector<32x256xf32>
    %96 = arith.mulf %93, %95 : vector<32x256xf32>
    %c1_i32_56 = arith.constant 1 : i32
    %97 = tpu.dynamic_rotate %84 by %c1_i32_56 dim 1 : vector<32x256xf32>, i32 -> vector<32x256xf32>
    %c3_57 = arith.constant 3 : index
    %c0_58 = arith.constant 0 : index
    %98 = vector.load %arg4[%c3_57, %c0_58] : memref<9x256xf32, #tpu.memory_space<vmem>>, vector<1x256xf32>
    %99 = vector.broadcast %98 : vector<1x256xf32> to vector<32x256xf32>
    %100 = arith.mulf %97, %99 : vector<32x256xf32>
    %c255_i32_59 = arith.constant 255 : i32
    %101 = tpu.dynamic_rotate %84 by %c255_i32_59 dim 1 : vector<32x256xf32>, i32 -> vector<32x256xf32>
    %c5_60 = arith.constant 5 : index
    %c0_61 = arith.constant 0 : index
    %102 = vector.load %arg4[%c5_60, %c0_61] : memref<9x256xf32, #tpu.memory_space<vmem>>, vector<1x256xf32>
    %103 = vector.broadcast %102 : vector<1x256xf32> to vector<32x256xf32>
    %104 = arith.mulf %101, %103 : vector<32x256xf32>
    %c241_i32_62 = arith.constant 241 : i32
    %105 = tpu.dynamic_rotate %84 by %c241_i32_62 dim 1 : vector<32x256xf32>, i32 -> vector<32x256xf32>
    %c6_63 = arith.constant 6 : index
    %c0_64 = arith.constant 0 : index
    %106 = vector.load %arg4[%c6_63, %c0_64] : memref<9x256xf32, #tpu.memory_space<vmem>>, vector<1x256xf32>
    %107 = vector.broadcast %106 : vector<1x256xf32> to vector<32x256xf32>
    %108 = arith.mulf %105, %107 : vector<32x256xf32>
    %c240_i32_65 = arith.constant 240 : i32
    %109 = tpu.dynamic_rotate %84 by %c240_i32_65 dim 1 : vector<32x256xf32>, i32 -> vector<32x256xf32>
    %c7_66 = arith.constant 7 : index
    %c0_67 = arith.constant 0 : index
    %110 = vector.load %arg4[%c7_66, %c0_67] : memref<9x256xf32, #tpu.memory_space<vmem>>, vector<1x256xf32>
    %111 = vector.broadcast %110 : vector<1x256xf32> to vector<32x256xf32>
    %112 = arith.mulf %109, %111 : vector<32x256xf32>
    %c239_i32_68 = arith.constant 239 : i32
    %113 = tpu.dynamic_rotate %84 by %c239_i32_68 dim 1 : vector<32x256xf32>, i32 -> vector<32x256xf32>
    %c8_69 = arith.constant 8 : index
    %c0_70 = arith.constant 0 : index
    %114 = vector.load %arg4[%c8_69, %c0_70] : memref<9x256xf32, #tpu.memory_space<vmem>>, vector<1x256xf32>
    %115 = vector.broadcast %114 : vector<1x256xf32> to vector<32x256xf32>
    %116 = arith.mulf %113, %115 : vector<32x256xf32>
    %117 = tpu.concatenate %88, %92, %96, %100, %84, %104, %108, %112, %116 in 0 : vector<32x256xf32>, vector<32x256xf32>, vector<32x256xf32>, vector<32x256xf32>, vector<32x256xf32>, vector<32x256xf32>, vector<32x256xf32>, vector<32x256xf32>, vector<32x256xf32> -> vector<288x256xf32>
    %118 = arith.truncf %117 : vector<288x256xf32> to vector<288x256xbf16>
    %c0_71 = arith.constant 0 : index
    %c0_72 = arith.constant 0 : index
    %119 = vector.load %arg9[%c0_71, %c0_72] : memref<32x288xbf16, #tpu.memory_space<vmem>>, vector<32x288xbf16>
    %cst_73 = arith.constant dense<0.000000e+00> : vector<32x256xf32>
    %120 = tpu.matmul %119, %118, %cst_73 {dimension_numbers = #tpu.dot_dimension_numbers<[1], [0], [0], [1], [0, 0, 1, 1], [], []>} : vector<32x288xbf16>, vector<288x256xbf16>, vector<32x256xf32> -> vector<32x256xf32>
    %c0_74 = arith.constant 0 : index
    %c0_75 = arith.constant 0 : index
    %121 = vector.load %arg10[%c0_74, %c0_75] : memref<32x1xf32, #tpu.memory_space<vmem>>, vector<32x1xf32>
    %122 = vector.broadcast %121 : vector<32x1xf32> to vector<32x256xf32>
    %123 = arith.addf %120, %122 : vector<32x256xf32>
    %cst_76 = arith.constant 0.000000e+00 : f32
    %124 = vector.broadcast %cst_76 : f32 to vector<32x256xf32>
    %125 = arith.maximumf %123, %124 : vector<32x256xf32>
    %c17_i32_77 = arith.constant 17 : i32
    %126 = tpu.dynamic_rotate %125 by %c17_i32_77 dim 1 : vector<32x256xf32>, i32 -> vector<32x256xf32>
    %c0_78 = arith.constant 0 : index
    %c0_79 = arith.constant 0 : index
    %127 = vector.load %arg4[%c0_78, %c0_79] : memref<9x256xf32, #tpu.memory_space<vmem>>, vector<1x256xf32>
    %128 = vector.broadcast %127 : vector<1x256xf32> to vector<32x256xf32>
    %129 = arith.mulf %126, %128 : vector<32x256xf32>
    %c16_i32_80 = arith.constant 16 : i32
    %130 = tpu.dynamic_rotate %125 by %c16_i32_80 dim 1 : vector<32x256xf32>, i32 -> vector<32x256xf32>
    %c1_81 = arith.constant 1 : index
    %c0_82 = arith.constant 0 : index
    %131 = vector.load %arg4[%c1_81, %c0_82] : memref<9x256xf32, #tpu.memory_space<vmem>>, vector<1x256xf32>
    %132 = vector.broadcast %131 : vector<1x256xf32> to vector<32x256xf32>
    %133 = arith.mulf %130, %132 : vector<32x256xf32>
    %c15_i32_83 = arith.constant 15 : i32
    %134 = tpu.dynamic_rotate %125 by %c15_i32_83 dim 1 : vector<32x256xf32>, i32 -> vector<32x256xf32>
    %c2_84 = arith.constant 2 : index
    %c0_85 = arith.constant 0 : index
    %135 = vector.load %arg4[%c2_84, %c0_85] : memref<9x256xf32, #tpu.memory_space<vmem>>, vector<1x256xf32>
    %136 = vector.broadcast %135 : vector<1x256xf32> to vector<32x256xf32>
    %137 = arith.mulf %134, %136 : vector<32x256xf32>
    %c1_i32_86 = arith.constant 1 : i32
    %138 = tpu.dynamic_rotate %125 by %c1_i32_86 dim 1 : vector<32x256xf32>, i32 -> vector<32x256xf32>
    %c3_87 = arith.constant 3 : index
    %c0_88 = arith.constant 0 : index
    %139 = vector.load %arg4[%c3_87, %c0_88] : memref<9x256xf32, #tpu.memory_space<vmem>>, vector<1x256xf32>
    %140 = vector.broadcast %139 : vector<1x256xf32> to vector<32x256xf32>
    %141 = arith.mulf %138, %140 : vector<32x256xf32>
    %c255_i32_89 = arith.constant 255 : i32
    %142 = tpu.dynamic_rotate %125 by %c255_i32_89 dim 1 : vector<32x256xf32>, i32 -> vector<32x256xf32>
    %c5_90 = arith.constant 5 : index
    %c0_91 = arith.constant 0 : index
    %143 = vector.load %arg4[%c5_90, %c0_91] : memref<9x256xf32, #tpu.memory_space<vmem>>, vector<1x256xf32>
    %144 = vector.broadcast %143 : vector<1x256xf32> to vector<32x256xf32>
    %145 = arith.mulf %142, %144 : vector<32x256xf32>
    %c241_i32_92 = arith.constant 241 : i32
    %146 = tpu.dynamic_rotate %125 by %c241_i32_92 dim 1 : vector<32x256xf32>, i32 -> vector<32x256xf32>
    %c6_93 = arith.constant 6 : index
    %c0_94 = arith.constant 0 : index
    %147 = vector.load %arg4[%c6_93, %c0_94] : memref<9x256xf32, #tpu.memory_space<vmem>>, vector<1x256xf32>
    %148 = vector.broadcast %147 : vector<1x256xf32> to vector<32x256xf32>
    %149 = arith.mulf %146, %148 : vector<32x256xf32>
    %c240_i32_95 = arith.constant 240 : i32
    %150 = tpu.dynamic_rotate %125 by %c240_i32_95 dim 1 : vector<32x256xf32>, i32 -> vector<32x256xf32>
    %c7_96 = arith.constant 7 : index
    %c0_97 = arith.constant 0 : index
    %151 = vector.load %arg4[%c7_96, %c0_97] : memref<9x256xf32, #tpu.memory_space<vmem>>, vector<1x256xf32>
    %152 = vector.broadcast %151 : vector<1x256xf32> to vector<32x256xf32>
    %153 = arith.mulf %150, %152 : vector<32x256xf32>
    %c239_i32_98 = arith.constant 239 : i32
    %154 = tpu.dynamic_rotate %125 by %c239_i32_98 dim 1 : vector<32x256xf32>, i32 -> vector<32x256xf32>
    %c8_99 = arith.constant 8 : index
    %c0_100 = arith.constant 0 : index
    %155 = vector.load %arg4[%c8_99, %c0_100] : memref<9x256xf32, #tpu.memory_space<vmem>>, vector<1x256xf32>
    %156 = vector.broadcast %155 : vector<1x256xf32> to vector<32x256xf32>
    %157 = arith.mulf %154, %156 : vector<32x256xf32>
    %158 = tpu.concatenate %129, %133, %137, %141, %125, %145, %149, %153, %157 in 0 : vector<32x256xf32>, vector<32x256xf32>, vector<32x256xf32>, vector<32x256xf32>, vector<32x256xf32>, vector<32x256xf32>, vector<32x256xf32>, vector<32x256xf32>, vector<32x256xf32> -> vector<288x256xf32>
    %159 = arith.truncf %158 : vector<288x256xf32> to vector<288x256xbf16>
    %c0_101 = arith.constant 0 : index
    %c0_102 = arith.constant 0 : index
    %160 = vector.load %arg11[%c0_101, %c0_102] : memref<2x288xbf16, #tpu.memory_space<vmem>>, vector<2x288xbf16>
    %cst_103 = arith.constant dense<0.000000e+00> : vector<2x256xf32>
    %161 = tpu.matmul %160, %159, %cst_103 {dimension_numbers = #tpu.dot_dimension_numbers<[1], [0], [0], [1], [0, 0, 1, 1], [], []>} : vector<2x288xbf16>, vector<288x256xbf16>, vector<2x256xf32> -> vector<2x256xf32>
    %c0_104 = arith.constant 0 : index
    %c0_105 = arith.constant 0 : index
    %162 = vector.load %arg12[%c0_104, %c0_105] : memref<2x1xf32, #tpu.memory_space<vmem>>, vector<2x1xf32>
    %163 = vector.broadcast %162 : vector<2x1xf32> to vector<2x256xf32>
    %164 = arith.addf %161, %163 : vector<2x256xf32>
    %c0_106 = arith.constant 0 : index
    %c0_107 = arith.constant 0 : index
    %c0_108 = arith.constant 0 : index
    %165 = vector.load %arg3[%c0_106, %c0_107, %c0_108] : memref<1x2x256xf32, #tpu.memory_space<vmem>>, vector<1x2x256xf32>
    %166 = vector.shape_cast %165 : vector<1x2x256xf32> to vector<2x256xf32>
    %167 = vector.broadcast %0 : f32 to vector<2x256xf32>
    %168 = arith.mulf %167, %164 : vector<2x256xf32>
    %169 = arith.addf %166, %168 : vector<2x256xf32>
    %c0_109 = arith.constant 0 : index
    %c0_110 = arith.constant 0 : index
    %c0_111 = arith.constant 0 : index
    %170 = vector.load %arg13[%c0_109, %c0_110, %c0_111] : memref<1x2x256xf32, #tpu.memory_space<vmem>>, vector<1x2x256xf32>
    %171 = vector.shape_cast %170 : vector<1x2x256xf32> to vector<2x256xf32>
    %172 = vector.shape_cast %169 : vector<2x256xf32> to vector<1x2x256xf32>
    tpu.vector_store %arg13[%c0_109, %c0_110, %c0_111], %172 {strides = array<i32>} : memref<1x2x256xf32, #tpu.memory_space<vmem>>, vector<1x2x256xf32>,
    return
  }
  func.func @transform_0(%arg0: i32) -> i32 {
    %c0_i32 = arith.constant 0 : i32
    %c0_i32_0 = arith.constant 0 : i32
    return %c0_i32 : i32
  }
  func.func @transform_1(%arg0: i32) -> (i32, i32, i32) {
    %c0_i32 = arith.constant 0 : i32
    %c0_i32_0 = arith.constant 0 : i32
    %c0_i32_1 = arith.constant 0 : i32
    return %arg0, %c0_i32, %c0_i32_0 : i32, i32, i32
  }
  func.func @transform_2(%arg0: i32) -> (i32, i32, i32) {
    %c0_i32 = arith.constant 0 : i32
    %c0_i32_0 = arith.constant 0 : i32
    %c0_i32_1 = arith.constant 0 : i32
    return %arg0, %c0_i32, %c0_i32_0 : i32, i32, i32
  }
  func.func @transform_3(%arg0: i32) -> (i32, i32) {
    %c0_i32 = arith.constant 0 : i32
    %c0_i32_0 = arith.constant 0 : i32
    %c0_i32_1 = arith.constant 0 : i32
    return %c0_i32, %c0_i32_0 : i32, i32
  }
  func.func @transform_4(%arg0: i32) -> (i32, i32) {
    %c0_i32 = arith.constant 0 : i32
    %c0_i32_0 = arith.constant 0 : i32
    %c0_i32_1 = arith.constant 0 : i32
    return %c0_i32, %c0_i32_0 : i32, i32
  }
  func.func @transform_5(%arg0: i32) -> (i32, i32) {
    %c0_i32 = arith.constant 0 : i32
    %c0_i32_0 = arith.constant 0 : i32
    %c0_i32_1 = arith.constant 0 : i32
    return %c0_i32, %c0_i32_0 : i32, i32
  }
  func.func @transform_6(%arg0: i32) -> (i32, i32) {
    %c0_i32 = arith.constant 0 : i32
    %c0_i32_0 = arith.constant 0 : i32
    %c0_i32_1 = arith.constant 0 : i32
    return %c0_i32, %c0_i32_0 : i32, i32
  }
  func.func @transform_7(%arg0: i32) -> (i32, i32) {
    %c0_i32 = arith.constant 0 : i32
    %c0_i32_0 = arith.constant 0 : i32
    %c0_i32_1 = arith.constant 0 : i32
    return %c0_i32, %c0_i32_0 : i32, i32
  }
  func.func @transform_8(%arg0: i32) -> (i32, i32) {
    %c0_i32 = arith.constant 0 : i32
    %c0_i32_0 = arith.constant 0 : i32
    %c0_i32_1 = arith.constant 0 : i32
    return %c0_i32, %c0_i32_0 : i32, i32
  }
  func.func @transform_9(%arg0: i32) -> (i32, i32) {
    %c0_i32 = arith.constant 0 : i32
    %c0_i32_0 = arith.constant 0 : i32
    %c0_i32_1 = arith.constant 0 : i32
    return %c0_i32, %c0_i32_0 : i32, i32
  }
  func.func @transform_10(%arg0: i32) -> (i32, i32) {
    %c0_i32 = arith.constant 0 : i32
    %c0_i32_0 = arith.constant 0 : i32
    %c0_i32_1 = arith.constant 0 : i32
    return %c0_i32, %c0_i32_0 : i32, i32
  }
  func.func @transform_11(%arg0: i32) -> (i32, i32) {
    %c0_i32 = arith.constant 0 : i32
    %c0_i32_0 = arith.constant 0 : i32
    %c0_i32_1 = arith.constant 0 : i32
    return %c0_i32, %c0_i32_0 : i32, i32
  }
  func.func @transform_12(%arg0: i32) -> (i32, i32, i32) {
    %c0_i32 = arith.constant 0 : i32
    %c0_i32_0 = arith.constant 0 : i32
    %c0_i32_1 = arith.constant 0 : i32
    return %arg0, %c0_i32, %c0_i32_0 : i32, i32, i32
  }
}

module attributes {stable_mosaic.version = 11 : i64} {
  func.func @_cg_kernel(%arg0: i32, %arg1: memref<1xf32, #tpu.memory_space<smem>>, %arg2: memref<1x2x16x16xf32, #tpu.memory_space<vmem>>, %arg3: memref<1x4x16x16xf32, #tpu.memory_space<vmem>>, %arg4: memref<1x4x16x16xf32, #tpu.memory_space<vmem>>, %arg5: memref<1x16x16xf32, #tpu.memory_space<vmem>>, %arg6: memref<16x16xbf16, #tpu.memory_space<vmem>>, %arg7: memref<16x16xbf16, #tpu.memory_space<vmem>>, %arg8: memref<16x16xbf16, #tpu.memory_space<vmem>>, %arg9: memref<1x2x16x16xf32, #tpu.memory_space<vmem>>) attributes {dimension_semantics = [#tpu.dimension_semantics<parallel>], iteration_bounds = array<i64: 2>, scalar_prefetch = 0 : i64, scratch_operands = 0 : i64, tpu.core_type = #tpu.core_type<tc>, window_params = [{transform_indices = @transform_0, window_bounds = array<i64: 1>}, {transform_indices = @transform_1, window_bounds = array<i64: 1, 2, 16, 16>}, {transform_indices = @transform_2, window_bounds = array<i64: 1, 4, 16, 16>}, {transform_indices = @transform_3, window_bounds = array<i64: 1, 4, 16, 16>}, {transform_indices = @transform_4, window_bounds = array<i64: 1, 16, 16>}, {pipeline_mode = #tpu.pipeline_mode<synchronous>, transform_indices = @transform_5, window_bounds = array<i64: 16, 16>}, {pipeline_mode = #tpu.pipeline_mode<synchronous>, transform_indices = @transform_6, window_bounds = array<i64: 16, 16>}, {pipeline_mode = #tpu.pipeline_mode<synchronous>, transform_indices = @transform_7, window_bounds = array<i64: 16, 16>}, {transform_indices = @transform_8, window_bounds = array<i64: 1, 2, 16, 16>}]} {
    %c0 = arith.constant 0 : index
    %0 = memref.load %arg1[%c0] : memref<1xf32, #tpu.memory_space<smem>>
    %c0_0 = arith.constant 0 : index
    %c0_1 = arith.constant 0 : index
    %1 = vector.load %arg6[%c0_0, %c0_1] : memref<16x16xbf16, #tpu.memory_space<vmem>>, vector<16x16xbf16>
    %c0_2 = arith.constant 0 : index
    %c0_3 = arith.constant 0 : index
    %2 = vector.load %arg7[%c0_2, %c0_3] : memref<16x16xbf16, #tpu.memory_space<vmem>>, vector<16x16xbf16>
    %c0_4 = arith.constant 0 : index
    %c0_5 = arith.constant 0 : index
    %3 = vector.load %arg8[%c0_4, %c0_5] : memref<16x16xbf16, #tpu.memory_space<vmem>>, vector<16x16xbf16>
    %c0_6 = arith.constant 0 : index
    %c0_7 = arith.constant 0 : index
    %c0_8 = arith.constant 0 : index
    %c0_9 = arith.constant 0 : index
    %4 = vector.load %arg3[%c0_6, %c0_7, %c0_8, %c0_9] : memref<1x4x16x16xf32, #tpu.memory_space<vmem>>, vector<1x4x16x16xf32>
    %5 = vector.shape_cast %4 : vector<1x4x16x16xf32> to vector<4x16x16xf32>
    %c0_10 = arith.constant 0 : index
    %c0_11 = arith.constant 0 : index
    %c0_12 = arith.constant 0 : index
    %c0_13 = arith.constant 0 : index
    %6 = vector.load %arg4[%c0_10, %c0_11, %c0_12, %c0_13] : memref<1x4x16x16xf32, #tpu.memory_space<vmem>>, vector<1x4x16x16xf32>
    %7 = vector.shape_cast %6 : vector<1x4x16x16xf32> to vector<4x16x16xf32>
    %c0_14 = arith.constant 0 : index
    %c0_15 = arith.constant 0 : index
    %c0_16 = arith.constant 0 : index
    %8 = vector.load %arg5[%c0_14, %c0_15, %c0_16] : memref<1x16x16xf32, #tpu.memory_space<vmem>>, vector<1x16x16xf32>
    %9 = vector.shape_cast %8 : vector<1x16x16xf32> to vector<16x16xf32>
    %c0_17 = arith.constant 0 : index
    %c0_18 = arith.constant 0 : index
    %c0_19 = arith.constant 0 : index
    %c0_20 = arith.constant 0 : index
    %10 = vector.load %arg2[%c0_17, %c0_18, %c0_19, %c0_20] : memref<1x2x16x16xf32, #tpu.memory_space<vmem>>, vector<1x2x16x16xf32>
    %11 = vector.shape_cast %10 : vector<1x2x16x16xf32> to vector<2x16x16xf32>
    %12 = vector.extract_strided_slice %11 {offsets = [0, 0, 0], sizes = [1, 16, 16], strides = [1, 1, 1]} : vector<2x16x16xf32> to vector<1x16x16xf32>
    %13 = vector.shape_cast %12 : vector<1x16x16xf32> to vector<16x16xf32>
    %14 = vector.extract_strided_slice %11 {offsets = [1, 0, 0], sizes = [1, 16, 16], strides = [1, 1, 1]} : vector<2x16x16xf32> to vector<1x16x16xf32>
    %15 = vector.shape_cast %14 : vector<1x16x16xf32> to vector<16x16xf32>
    %cst = arith.constant 0.000000e+00 : f32
    %16 = vector.broadcast %cst : f32 to vector<16x16xf32>
    %cst_21 = arith.constant 0.000000e+00 : f32
    %17 = vector.broadcast %cst_21 : f32 to vector<16x16xf32>
    %18 = arith.mulf %13, %13 : vector<16x16xf32>
    %19 = arith.mulf %15, %15 : vector<16x16xf32>
    %20 = arith.addf %18, %19 : vector<16x16xf32>
    %21 = vector.shape_cast %20 : vector<16x16xf32> to vector<1x16x16xf32>
    %cst_22 = arith.constant dense<0.000000e+00> : vector<1xf32>
    %22 = vector.multi_reduction <add>, %21, %cst_22 [1, 2] : vector<1x16x16xf32> to vector<1xf32>
    %23 = vector.shape_cast %22 : vector<1xf32> to vector<1x1x1xf32>
    %24 = vector.extract %23[0, 0, 0] : f32 from vector<1x1x1xf32>
    %25 = vector.broadcast %24 : f32 to vector<1x1xf32>
    %cst_23 = arith.constant 9.99999996E-13 : f32
    %c0_i32 = arith.constant 0 : i32
    %c10_i32 = arith.constant 10 : i32
    %26 = arith.addi %c0_i32, %c10_i32 : i32
    %c1_i32 = arith.constant 1 : i32
    %27:7 = scf.for %arg10 = %c0_i32 to %26 step %c1_i32 iter_args(%arg11 = %16, %arg12 = %17, %arg13 = %13, %arg14 = %15, %arg15 = %13, %arg16 = %15, %arg17 = %25) -> (vector<16x16xf32>, vector<16x16xf32>, vector<16x16xf32>, vector<16x16xf32>, vector<16x16xf32>, vector<16x16xf32>, vector<1x1xf32>)  : i32 {
      %34 = vector.shape_cast %arg15 : vector<16x16xf32> to vector<1x16x16xf32>
      %35 = vector.broadcast %34 : vector<1x16x16xf32> to vector<4x16x16xf32>
      %36 = arith.mulf %5, %35 : vector<4x16x16xf32>
      %37 = vector.shape_cast %arg16 : vector<16x16xf32> to vector<1x16x16xf32>
      %38 = vector.broadcast %37 : vector<1x16x16xf32> to vector<4x16x16xf32>
      %39 = arith.mulf %7, %38 : vector<4x16x16xf32>
      %40 = arith.subf %36, %39 : vector<4x16x16xf32>
      %41 = vector.shape_cast %40 : vector<4x16x16xf32> to vector<64x16xf32>
      %42 = vector.shape_cast %arg16 : vector<16x16xf32> to vector<1x16x16xf32>
      %43 = vector.broadcast %42 : vector<1x16x16xf32> to vector<4x16x16xf32>
      %44 = arith.mulf %5, %43 : vector<4x16x16xf32>
      %45 = vector.shape_cast %arg15 : vector<16x16xf32> to vector<1x16x16xf32>
      %46 = vector.broadcast %45 : vector<1x16x16xf32> to vector<4x16x16xf32>
      %47 = arith.mulf %7, %46 : vector<4x16x16xf32>
      %48 = arith.addf %44, %47 : vector<4x16x16xf32>
      %49 = vector.shape_cast %48 : vector<4x16x16xf32> to vector<64x16xf32>
      %50 = arith.truncf %41 : vector<64x16xf32> to vector<64x16xbf16>
      %51 = arith.truncf %49 : vector<64x16xf32> to vector<64x16xbf16>
      %cst_31 = arith.constant dense<0.000000e+00> : vector<64x16xf32>
      %52 = tpu.matmul %50, %1, %cst_31 {dimension_numbers = #tpu.dot_dimension_numbers<[1], [0], [0], [1], [0, 0, 1, 1], [], []>} : vector<64x16xbf16>, vector<16x16xbf16>, vector<64x16xf32> -> vector<64x16xf32>
      %cst_32 = arith.constant dense<0.000000e+00> : vector<64x16xf32>
      %53 = tpu.matmul %51, %2, %cst_32 {dimension_numbers = #tpu.dot_dimension_numbers<[1], [0], [0], [1], [0, 0, 1, 1], [], []>} : vector<64x16xbf16>, vector<16x16xbf16>, vector<64x16xf32> -> vector<64x16xf32>
      %54 = arith.subf %52, %53 : vector<64x16xf32>
      %cst_33 = arith.constant dense<0.000000e+00> : vector<64x16xf32>
      %55 = tpu.matmul %50, %2, %cst_33 {dimension_numbers = #tpu.dot_dimension_numbers<[1], [0], [0], [1], [0, 0, 1, 1], [], []>} : vector<64x16xbf16>, vector<16x16xbf16>, vector<64x16xf32> -> vector<64x16xf32>
      %cst_34 = arith.constant dense<0.000000e+00> : vector<64x16xf32>
      %56 = tpu.matmul %51, %1, %cst_34 {dimension_numbers = #tpu.dot_dimension_numbers<[1], [0], [0], [1], [0, 0, 1, 1], [], []>} : vector<64x16xbf16>, vector<16x16xbf16>, vector<64x16xf32> -> vector<64x16xf32>
      %57 = arith.addf %55, %56 : vector<64x16xf32>
      %58 = vector.shape_cast %54 : vector<64x16xf32> to vector<4x16x16xf32>
      %59 = tpu.transpose %58, [0, 2, 1] : vector<4x16x16xf32> -> vector<4x16x16xf32>
      %60 = vector.shape_cast %59 : vector<4x16x16xf32> to vector<64x16xf32>
      %61 = vector.shape_cast %57 : vector<64x16xf32> to vector<4x16x16xf32>
      %62 = tpu.transpose %61, [0, 2, 1] : vector<4x16x16xf32> -> vector<4x16x16xf32>
      %63 = vector.shape_cast %62 : vector<4x16x16xf32> to vector<64x16xf32>
      %64 = arith.truncf %60 : vector<64x16xf32> to vector<64x16xbf16>
      %65 = arith.truncf %63 : vector<64x16xf32> to vector<64x16xbf16>
      %cst_35 = arith.constant dense<0.000000e+00> : vector<64x16xf32>
      %66 = tpu.matmul %64, %1, %cst_35 {dimension_numbers = #tpu.dot_dimension_numbers<[1], [0], [0], [1], [0, 0, 1, 1], [], []>} : vector<64x16xbf16>, vector<16x16xbf16>, vector<64x16xf32> -> vector<64x16xf32>
      %cst_36 = arith.constant dense<0.000000e+00> : vector<64x16xf32>
      %67 = tpu.matmul %65, %2, %cst_36 {dimension_numbers = #tpu.dot_dimension_numbers<[1], [0], [0], [1], [0, 0, 1, 1], [], []>} : vector<64x16xbf16>, vector<16x16xbf16>, vector<64x16xf32> -> vector<64x16xf32>
      %68 = arith.subf %66, %67 : vector<64x16xf32>
      %cst_37 = arith.constant dense<0.000000e+00> : vector<64x16xf32>
      %69 = tpu.matmul %64, %2, %cst_37 {dimension_numbers = #tpu.dot_dimension_numbers<[1], [0], [0], [1], [0, 0, 1, 1], [], []>} : vector<64x16xbf16>, vector<16x16xbf16>, vector<64x16xf32> -> vector<64x16xf32>
      %cst_38 = arith.constant dense<0.000000e+00> : vector<64x16xf32>
      %70 = tpu.matmul %65, %1, %cst_38 {dimension_numbers = #tpu.dot_dimension_numbers<[1], [0], [0], [1], [0, 0, 1, 1], [], []>} : vector<64x16xbf16>, vector<16x16xbf16>, vector<64x16xf32> -> vector<64x16xf32>
      %71 = arith.addf %69, %70 : vector<64x16xf32>
      %72 = vector.shape_cast %68 : vector<64x16xf32> to vector<4x16x16xf32>
      %73 = vector.shape_cast %9 : vector<16x16xf32> to vector<1x16x16xf32>
      %74 = vector.broadcast %73 : vector<1x16x16xf32> to vector<4x16x16xf32>
      %75 = arith.mulf %72, %74 : vector<4x16x16xf32>
      %76 = vector.shape_cast %75 : vector<4x16x16xf32> to vector<64x16xf32>
      %77 = vector.shape_cast %71 : vector<64x16xf32> to vector<4x16x16xf32>
      %78 = vector.shape_cast %9 : vector<16x16xf32> to vector<1x16x16xf32>
      %79 = vector.broadcast %78 : vector<1x16x16xf32> to vector<4x16x16xf32>
      %80 = arith.mulf %77, %79 : vector<4x16x16xf32>
      %81 = vector.shape_cast %80 : vector<4x16x16xf32> to vector<64x16xf32>
      %82 = arith.truncf %76 : vector<64x16xf32> to vector<64x16xbf16>
      %83 = arith.truncf %81 : vector<64x16xf32> to vector<64x16xbf16>
      %cst_39 = arith.constant dense<0.000000e+00> : vector<64x16xf32>
      %84 = tpu.matmul %82, %1, %cst_39 {dimension_numbers = #tpu.dot_dimension_numbers<[1], [0], [0], [1], [0, 0, 1, 1], [], []>} : vector<64x16xbf16>, vector<16x16xbf16>, vector<64x16xf32> -> vector<64x16xf32>
      %cst_40 = arith.constant dense<0.000000e+00> : vector<64x16xf32>
      %85 = tpu.matmul %83, %3, %cst_40 {dimension_numbers = #tpu.dot_dimension_numbers<[1], [0], [0], [1], [0, 0, 1, 1], [], []>} : vector<64x16xbf16>, vector<16x16xbf16>, vector<64x16xf32> -> vector<64x16xf32>
      %86 = arith.subf %84, %85 : vector<64x16xf32>
      %cst_41 = arith.constant dense<0.000000e+00> : vector<64x16xf32>
      %87 = tpu.matmul %82, %3, %cst_41 {dimension_numbers = #tpu.dot_dimension_numbers<[1], [0], [0], [1], [0, 0, 1, 1], [], []>} : vector<64x16xbf16>, vector<16x16xbf16>, vector<64x16xf32> -> vector<64x16xf32>
      %cst_42 = arith.constant dense<0.000000e+00> : vector<64x16xf32>
      %88 = tpu.matmul %83, %1, %cst_42 {dimension_numbers = #tpu.dot_dimension_numbers<[1], [0], [0], [1], [0, 0, 1, 1], [], []>} : vector<64x16xbf16>, vector<16x16xbf16>, vector<64x16xf32> -> vector<64x16xf32>
      %89 = arith.addf %87, %88 : vector<64x16xf32>
      %90 = vector.shape_cast %86 : vector<64x16xf32> to vector<4x16x16xf32>
      %91 = tpu.transpose %90, [0, 2, 1] : vector<4x16x16xf32> -> vector<4x16x16xf32>
      %92 = vector.shape_cast %91 : vector<4x16x16xf32> to vector<64x16xf32>
      %93 = vector.shape_cast %89 : vector<64x16xf32> to vector<4x16x16xf32>
      %94 = tpu.transpose %93, [0, 2, 1] : vector<4x16x16xf32> -> vector<4x16x16xf32>
      %95 = vector.shape_cast %94 : vector<4x16x16xf32> to vector<64x16xf32>
      %96 = arith.truncf %92 : vector<64x16xf32> to vector<64x16xbf16>
      %97 = arith.truncf %95 : vector<64x16xf32> to vector<64x16xbf16>
      %cst_43 = arith.constant dense<0.000000e+00> : vector<64x16xf32>
      %98 = tpu.matmul %96, %1, %cst_43 {dimension_numbers = #tpu.dot_dimension_numbers<[1], [0], [0], [1], [0, 0, 1, 1], [], []>} : vector<64x16xbf16>, vector<16x16xbf16>, vector<64x16xf32> -> vector<64x16xf32>
      %cst_44 = arith.constant dense<0.000000e+00> : vector<64x16xf32>
      %99 = tpu.matmul %97, %3, %cst_44 {dimension_numbers = #tpu.dot_dimension_numbers<[1], [0], [0], [1], [0, 0, 1, 1], [], []>} : vector<64x16xbf16>, vector<16x16xbf16>, vector<64x16xf32> -> vector<64x16xf32>
      %100 = arith.subf %98, %99 : vector<64x16xf32>
      %cst_45 = arith.constant dense<0.000000e+00> : vector<64x16xf32>
      %101 = tpu.matmul %96, %3, %cst_45 {dimension_numbers = #tpu.dot_dimension_numbers<[1], [0], [0], [1], [0, 0, 1, 1], [], []>} : vector<64x16xbf16>, vector<16x16xbf16>, vector<64x16xf32> -> vector<64x16xf32>
      %cst_46 = arith.constant dense<0.000000e+00> : vector<64x16xf32>
      %102 = tpu.matmul %97, %1, %cst_46 {dimension_numbers = #tpu.dot_dimension_numbers<[1], [0], [0], [1], [0, 0, 1, 1], [], []>} : vector<64x16xbf16>, vector<16x16xbf16>, vector<64x16xf32> -> vector<64x16xf32>
      %103 = arith.addf %101, %102 : vector<64x16xf32>
      %104 = vector.shape_cast %100 : vector<64x16xf32> to vector<4x16x16xf32>
      %105 = vector.shape_cast %103 : vector<64x16xf32> to vector<4x16x16xf32>
      %106 = arith.mulf %5, %104 : vector<4x16x16xf32>
      %107 = arith.mulf %7, %105 : vector<4x16x16xf32>
      %108 = arith.addf %106, %107 : vector<4x16x16xf32>
      %cst_47 = arith.constant dense<0.000000e+00> : vector<16x16xf32>
      %109 = vector.multi_reduction <add>, %108, %cst_47 [0] : vector<4x16x16xf32> to vector<16x16xf32>
      %110 = arith.mulf %5, %105 : vector<4x16x16xf32>
      %111 = arith.mulf %7, %104 : vector<4x16x16xf32>
      %112 = arith.subf %110, %111 : vector<4x16x16xf32>
      %cst_48 = arith.constant dense<0.000000e+00> : vector<16x16xf32>
      %113 = vector.multi_reduction <add>, %112, %cst_48 [0] : vector<4x16x16xf32> to vector<16x16xf32>
      %114 = vector.broadcast %0 : f32 to vector<16x16xf32>
      %115 = arith.mulf %114, %arg15 : vector<16x16xf32>
      %116 = arith.addf %109, %115 : vector<16x16xf32>
      %117 = vector.broadcast %0 : f32 to vector<16x16xf32>
      %118 = arith.mulf %117, %arg16 : vector<16x16xf32>
      %119 = arith.addf %113, %118 : vector<16x16xf32>
      %120 = arith.mulf %arg15, %116 : vector<16x16xf32>
      %121 = arith.mulf %arg16, %119 : vector<16x16xf32>
      %122 = arith.addf %120, %121 : vector<16x16xf32>
      %123 = vector.shape_cast %122 : vector<16x16xf32> to vector<1x16x16xf32>
      %cst_49 = arith.constant dense<0.000000e+00> : vector<1xf32>
      %124 = vector.multi_reduction <add>, %123, %cst_49 [1, 2] : vector<1x16x16xf32> to vector<1xf32>
      %125 = vector.shape_cast %124 : vector<1xf32> to vector<1x1x1xf32>
      %126 = vector.extract %125[0, 0, 0] : f32 from vector<1x1x1xf32>
      %127 = vector.broadcast %126 : f32 to vector<1x1xf32>
      %128 = vector.broadcast %cst_23 : f32 to vector<1x1xf32>
      %129 = arith.cmpf ogt, %127, %128 : vector<1x1xf32>
      %130 = arith.divf %arg17, %127 : vector<1x1xf32>
      %cst_50 = arith.constant 0.000000e+00 : f32
      %131 = vector.broadcast %cst_50 : f32 to vector<1x1xf32>
      %132 = arith.select %129, %130, %131 : vector<1x1xi1>, vector<1x1xf32>
      %133 = vector.broadcast %132 : vector<1x1xf32> to vector<16x16xf32>
      %134 = arith.mulf %133, %arg15 : vector<16x16xf32>
      %135 = arith.addf %arg11, %134 : vector<16x16xf32>
      %136 = vector.broadcast %132 : vector<1x1xf32> to vector<16x16xf32>
      %137 = arith.mulf %136, %arg16 : vector<16x16xf32>
      %138 = arith.addf %arg12, %137 : vector<16x16xf32>
      %139 = vector.broadcast %132 : vector<1x1xf32> to vector<16x16xf32>
      %140 = arith.mulf %139, %116 : vector<16x16xf32>
      %141 = arith.subf %arg13, %140 : vector<16x16xf32>
      %142 = vector.broadcast %132 : vector<1x1xf32> to vector<16x16xf32>
      %143 = arith.mulf %142, %119 : vector<16x16xf32>
      %144 = arith.subf %arg14, %143 : vector<16x16xf32>
      %145 = arith.mulf %141, %141 : vector<16x16xf32>
      %146 = arith.mulf %144, %144 : vector<16x16xf32>
      %147 = arith.addf %145, %146 : vector<16x16xf32>
      %148 = vector.shape_cast %147 : vector<16x16xf32> to vector<1x16x16xf32>
      %cst_51 = arith.constant dense<0.000000e+00> : vector<1xf32>
      %149 = vector.multi_reduction <add>, %148, %cst_51 [1, 2] : vector<1x16x16xf32> to vector<1xf32>
      %150 = vector.shape_cast %149 : vector<1xf32> to vector<1x1x1xf32>
      %151 = vector.extract %150[0, 0, 0] : f32 from vector<1x1x1xf32>
      %152 = vector.broadcast %151 : f32 to vector<1x1xf32>
      %153 = vector.broadcast %cst_23 : f32 to vector<1x1xf32>
      %154 = arith.cmpf ogt, %arg17, %153 : vector<1x1xf32>
      %155 = arith.divf %152, %arg17 : vector<1x1xf32>
      %cst_52 = arith.constant 0.000000e+00 : f32
      %156 = vector.broadcast %cst_52 : f32 to vector<1x1xf32>
      %157 = arith.select %154, %155, %156 : vector<1x1xi1>, vector<1x1xf32>
      %158 = vector.broadcast %157 : vector<1x1xf32> to vector<16x16xf32>
      %159 = arith.mulf %158, %arg15 : vector<16x16xf32>
      %160 = arith.addf %141, %159 : vector<16x16xf32>
      %161 = vector.broadcast %157 : vector<1x1xf32> to vector<16x16xf32>
      %162 = arith.mulf %161, %arg16 : vector<16x16xf32>
      %163 = arith.addf %144, %162 : vector<16x16xf32>
      scf.yield %135, %138, %141, %144, %160, %163, %152 : vector<16x16xf32>, vector<16x16xf32>, vector<16x16xf32>, vector<16x16xf32>, vector<16x16xf32>, vector<16x16xf32>, vector<1x1xf32>
    }
    %c0_24 = arith.constant 0 : index
    %c0_25 = arith.constant 0 : index
    %c0_26 = arith.constant 0 : index
    %c0_27 = arith.constant 0 : index
    %28 = vector.load %arg9[%c0_24, %c0_25, %c0_26, %c0_27] : memref<1x2x16x16xf32, #tpu.memory_space<vmem>>, vector<1x1x16x16xf32>
    %29 = vector.shape_cast %28 : vector<1x1x16x16xf32> to vector<16x16xf32>
    %30 = vector.shape_cast %27#0 : vector<16x16xf32> to vector<1x1x16x16xf32>
    tpu.vector_store %arg9[%c0_24, %c0_25, %c0_26, %c0_27], %30 {strides = array<i32>} : memref<1x2x16x16xf32, #tpu.memory_space<vmem>>, vector<1x1x16x16xf32>,
    %c0_28 = arith.constant 0 : index
    %c1 = arith.constant 1 : index
    %c0_29 = arith.constant 0 : index
    %c0_30 = arith.constant 0 : index
    %31 = vector.load %arg9[%c0_28, %c1, %c0_29, %c0_30] : memref<1x2x16x16xf32, #tpu.memory_space<vmem>>, vector<1x1x16x16xf32>
    %32 = vector.shape_cast %31 : vector<1x1x16x16xf32> to vector<16x16xf32>
    %33 = vector.shape_cast %27#1 : vector<16x16xf32> to vector<1x1x16x16xf32>
    tpu.vector_store %arg9[%c0_28, %c1, %c0_29, %c0_30], %33 {strides = array<i32>} : memref<1x2x16x16xf32, #tpu.memory_space<vmem>>, vector<1x1x16x16xf32>,
    return
  }
  func.func @transform_0(%arg0: i32) -> i32 {
    %c0_i32 = arith.constant 0 : i32
    %c0_i32_0 = arith.constant 0 : i32
    return %c0_i32 : i32
  }
  func.func @transform_1(%arg0: i32) -> (i32, i32, i32, i32) {
    %c0_i32 = arith.constant 0 : i32
    %c0_i32_0 = arith.constant 0 : i32
    %c0_i32_1 = arith.constant 0 : i32
    %c0_i32_2 = arith.constant 0 : i32
    return %arg0, %c0_i32, %c0_i32_0, %c0_i32_1 : i32, i32, i32, i32
  }
  func.func @transform_2(%arg0: i32) -> (i32, i32, i32, i32) {
    %c0_i32 = arith.constant 0 : i32
    %c0_i32_0 = arith.constant 0 : i32
    %c0_i32_1 = arith.constant 0 : i32
    %c0_i32_2 = arith.constant 0 : i32
    return %arg0, %c0_i32, %c0_i32_0, %c0_i32_1 : i32, i32, i32, i32
  }
  func.func @transform_3(%arg0: i32) -> (i32, i32, i32, i32) {
    %c0_i32 = arith.constant 0 : i32
    %c0_i32_0 = arith.constant 0 : i32
    %c0_i32_1 = arith.constant 0 : i32
    %c0_i32_2 = arith.constant 0 : i32
    return %arg0, %c0_i32, %c0_i32_0, %c0_i32_1 : i32, i32, i32, i32
  }
  func.func @transform_4(%arg0: i32) -> (i32, i32, i32) {
    %c0_i32 = arith.constant 0 : i32
    %c0_i32_0 = arith.constant 0 : i32
    %c0_i32_1 = arith.constant 0 : i32
    return %arg0, %c0_i32, %c0_i32_0 : i32, i32, i32
  }
  func.func @transform_5(%arg0: i32) -> (i32, i32) {
    %c0_i32 = arith.constant 0 : i32
    %c0_i32_0 = arith.constant 0 : i32
    %c0_i32_1 = arith.constant 0 : i32
    return %c0_i32, %c0_i32_0 : i32, i32
  }
  func.func @transform_6(%arg0: i32) -> (i32, i32) {
    %c0_i32 = arith.constant 0 : i32
    %c0_i32_0 = arith.constant 0 : i32
    %c0_i32_1 = arith.constant 0 : i32
    return %c0_i32, %c0_i32_0 : i32, i32
  }
  func.func @transform_7(%arg0: i32) -> (i32, i32) {
    %c0_i32 = arith.constant 0 : i32
    %c0_i32_0 = arith.constant 0 : i32
    %c0_i32_1 = arith.constant 0 : i32
    return %c0_i32, %c0_i32_0 : i32, i32
  }
  func.func @transform_8(%arg0: i32) -> (i32, i32, i32, i32) {
    %c0_i32 = arith.constant 0 : i32
    %c0_i32_0 = arith.constant 0 : i32
    %c0_i32_1 = arith.constant 0 : i32
    %c0_i32_2 = arith.constant 0 : i32
    return %arg0, %c0_i32, %c0_i32_0, %c0_i32_1 : i32, i32, i32, i32
  }
}

module attributes {stable_mosaic.version = 11 : i64} {
  func.func @_cg_kernel(%arg0: i32, %arg1: memref<1xf32, #tpu.memory_space<smem>>, %arg2: memref<1x2x16x16xf32, #tpu.memory_space<vmem>>, %arg3: memref<1x4x16x16xf32, #tpu.memory_space<vmem>>, %arg4: memref<1x4x16x16xf32, #tpu.memory_space<vmem>>, %arg5: memref<1x16x16xf32, #tpu.memory_space<vmem>>, %arg6: memref<16x16xbf16, #tpu.memory_space<vmem>>, %arg7: memref<16x16xbf16, #tpu.memory_space<vmem>>, %arg8: memref<16x16xbf16, #tpu.memory_space<vmem>>, %arg9: memref<1x2x16x16xf32, #tpu.memory_space<vmem>>) attributes {dimension_semantics = [#tpu.dimension_semantics<parallel>], iteration_bounds = array<i64: 2>, scalar_prefetch = 0 : i64, scratch_operands = 0 : i64, tpu.core_type = #tpu.core_type<tc>, window_params = [{transform_indices = @transform_0, window_bounds = array<i64: 1>}, {transform_indices = @transform_1, window_bounds = array<i64: 1, 2, 16, 16>}, {transform_indices = @transform_2, window_bounds = array<i64: 1, 4, 16, 16>}, {transform_indices = @transform_3, window_bounds = array<i64: 1, 4, 16, 16>}, {transform_indices = @transform_4, window_bounds = array<i64: 1, 16, 16>}, {pipeline_mode = #tpu.pipeline_mode<synchronous>, transform_indices = @transform_5, window_bounds = array<i64: 16, 16>}, {pipeline_mode = #tpu.pipeline_mode<synchronous>, transform_indices = @transform_6, window_bounds = array<i64: 16, 16>}, {pipeline_mode = #tpu.pipeline_mode<synchronous>, transform_indices = @transform_7, window_bounds = array<i64: 16, 16>}, {transform_indices = @transform_8, window_bounds = array<i64: 1, 2, 16, 16>}]} {
    %c0 = arith.constant 0 : index
    %0 = memref.load %arg1[%c0] : memref<1xf32, #tpu.memory_space<smem>>
    %c0_0 = arith.constant 0 : index
    %c0_1 = arith.constant 0 : index
    %1 = vector.load %arg6[%c0_0, %c0_1] : memref<16x16xbf16, #tpu.memory_space<vmem>>, vector<16x16xbf16>
    %c0_2 = arith.constant 0 : index
    %c0_3 = arith.constant 0 : index
    %2 = vector.load %arg7[%c0_2, %c0_3] : memref<16x16xbf16, #tpu.memory_space<vmem>>, vector<16x16xbf16>
    %c0_4 = arith.constant 0 : index
    %c0_5 = arith.constant 0 : index
    %3 = vector.load %arg8[%c0_4, %c0_5] : memref<16x16xbf16, #tpu.memory_space<vmem>>, vector<16x16xbf16>
    %c0_6 = arith.constant 0 : index
    %c0_7 = arith.constant 0 : index
    %c0_8 = arith.constant 0 : index
    %c0_9 = arith.constant 0 : index
    %4 = vector.load %arg3[%c0_6, %c0_7, %c0_8, %c0_9] : memref<1x4x16x16xf32, #tpu.memory_space<vmem>>, vector<1x4x16x16xf32>
    %5 = vector.shape_cast %4 : vector<1x4x16x16xf32> to vector<4x16x16xf32>
    %c0_10 = arith.constant 0 : index
    %c0_11 = arith.constant 0 : index
    %c0_12 = arith.constant 0 : index
    %c0_13 = arith.constant 0 : index
    %6 = vector.load %arg4[%c0_10, %c0_11, %c0_12, %c0_13] : memref<1x4x16x16xf32, #tpu.memory_space<vmem>>, vector<1x4x16x16xf32>
    %7 = vector.shape_cast %6 : vector<1x4x16x16xf32> to vector<4x16x16xf32>
    %c0_14 = arith.constant 0 : index
    %c0_15 = arith.constant 0 : index
    %c0_16 = arith.constant 0 : index
    %8 = vector.load %arg5[%c0_14, %c0_15, %c0_16] : memref<1x16x16xf32, #tpu.memory_space<vmem>>, vector<1x16x16xf32>
    %9 = vector.shape_cast %8 : vector<1x16x16xf32> to vector<16x16xf32>
    %c0_17 = arith.constant 0 : index
    %c0_18 = arith.constant 0 : index
    %c0_19 = arith.constant 0 : index
    %c0_20 = arith.constant 0 : index
    %10 = vector.load %arg2[%c0_17, %c0_18, %c0_19, %c0_20] : memref<1x2x16x16xf32, #tpu.memory_space<vmem>>, vector<1x2x16x16xf32>
    %11 = vector.shape_cast %10 : vector<1x2x16x16xf32> to vector<2x16x16xf32>
    %12 = vector.extract_strided_slice %11 {offsets = [0, 0, 0], sizes = [1, 16, 16], strides = [1, 1, 1]} : vector<2x16x16xf32> to vector<1x16x16xf32>
    %13 = vector.shape_cast %12 : vector<1x16x16xf32> to vector<16x16xf32>
    %14 = vector.extract_strided_slice %11 {offsets = [1, 0, 0], sizes = [1, 16, 16], strides = [1, 1, 1]} : vector<2x16x16xf32> to vector<1x16x16xf32>
    %15 = vector.shape_cast %14 : vector<1x16x16xf32> to vector<16x16xf32>
    %cst = arith.constant 0.000000e+00 : f32
    %16 = vector.broadcast %cst : f32 to vector<16x16xf32>
    %cst_21 = arith.constant 0.000000e+00 : f32
    %17 = vector.broadcast %cst_21 : f32 to vector<16x16xf32>
    %18 = arith.mulf %13, %13 : vector<16x16xf32>
    %19 = arith.mulf %15, %15 : vector<16x16xf32>
    %20 = arith.addf %18, %19 : vector<16x16xf32>
    %21 = vector.shape_cast %20 : vector<16x16xf32> to vector<1x16x16xf32>
    %cst_22 = arith.constant dense<0.000000e+00> : vector<1xf32>
    %22 = vector.multi_reduction <add>, %21, %cst_22 [1, 2] : vector<1x16x16xf32> to vector<1xf32>
    %23 = vector.shape_cast %22 : vector<1xf32> to vector<1x1x1xf32>
    %24 = vector.extract %23[0, 0, 0] : f32 from vector<1x1x1xf32>
    %25 = vector.broadcast %24 : f32 to vector<1x1xf32>
    %cst_23 = arith.constant 9.99999996E-13 : f32
    %c0_i32 = arith.constant 0 : i32
    %c10_i32 = arith.constant 10 : i32
    %26 = arith.addi %c0_i32, %c10_i32 : i32
    %c1_i32 = arith.constant 1 : i32
    %27:7 = scf.for %arg10 = %c0_i32 to %26 step %c1_i32 iter_args(%arg11 = %16, %arg12 = %17, %arg13 = %13, %arg14 = %15, %arg15 = %13, %arg16 = %15, %arg17 = %25) -> (vector<16x16xf32>, vector<16x16xf32>, vector<16x16xf32>, vector<16x16xf32>, vector<16x16xf32>, vector<16x16xf32>, vector<1x1xf32>)  : i32 {
      %34 = vector.shape_cast %arg15 : vector<16x16xf32> to vector<1x16x16xf32>
      %35 = vector.broadcast %34 : vector<1x16x16xf32> to vector<4x16x16xf32>
      %36 = arith.mulf %5, %35 : vector<4x16x16xf32>
      %37 = vector.shape_cast %arg16 : vector<16x16xf32> to vector<1x16x16xf32>
      %38 = vector.broadcast %37 : vector<1x16x16xf32> to vector<4x16x16xf32>
      %39 = arith.mulf %7, %38 : vector<4x16x16xf32>
      %40 = arith.subf %36, %39 : vector<4x16x16xf32>
      %41 = vector.shape_cast %40 : vector<4x16x16xf32> to vector<64x16xf32>
      %42 = vector.shape_cast %arg16 : vector<16x16xf32> to vector<1x16x16xf32>
      %43 = vector.broadcast %42 : vector<1x16x16xf32> to vector<4x16x16xf32>
      %44 = arith.mulf %5, %43 : vector<4x16x16xf32>
      %45 = vector.shape_cast %arg15 : vector<16x16xf32> to vector<1x16x16xf32>
      %46 = vector.broadcast %45 : vector<1x16x16xf32> to vector<4x16x16xf32>
      %47 = arith.mulf %7, %46 : vector<4x16x16xf32>
      %48 = arith.addf %44, %47 : vector<4x16x16xf32>
      %49 = vector.shape_cast %48 : vector<4x16x16xf32> to vector<64x16xf32>
      %50 = arith.truncf %41 : vector<64x16xf32> to vector<64x16xbf16>
      %51 = arith.truncf %49 : vector<64x16xf32> to vector<64x16xbf16>
      %cst_31 = arith.constant dense<0.000000e+00> : vector<64x16xf32>
      %52 = tpu.matmul %50, %1, %cst_31 {dimension_numbers = #tpu.dot_dimension_numbers<[1], [0], [0], [1], [0, 0, 1, 1], [], []>} : vector<64x16xbf16>, vector<16x16xbf16>, vector<64x16xf32> -> vector<64x16xf32>
      %cst_32 = arith.constant dense<0.000000e+00> : vector<64x16xf32>
      %53 = tpu.matmul %51, %2, %cst_32 {dimension_numbers = #tpu.dot_dimension_numbers<[1], [0], [0], [1], [0, 0, 1, 1], [], []>} : vector<64x16xbf16>, vector<16x16xbf16>, vector<64x16xf32> -> vector<64x16xf32>
      %54 = arith.subf %52, %53 : vector<64x16xf32>
      %cst_33 = arith.constant dense<0.000000e+00> : vector<64x16xf32>
      %55 = tpu.matmul %50, %2, %cst_33 {dimension_numbers = #tpu.dot_dimension_numbers<[1], [0], [0], [1], [0, 0, 1, 1], [], []>} : vector<64x16xbf16>, vector<16x16xbf16>, vector<64x16xf32> -> vector<64x16xf32>
      %cst_34 = arith.constant dense<0.000000e+00> : vector<64x16xf32>
      %56 = tpu.matmul %51, %1, %cst_34 {dimension_numbers = #tpu.dot_dimension_numbers<[1], [0], [0], [1], [0, 0, 1, 1], [], []>} : vector<64x16xbf16>, vector<16x16xbf16>, vector<64x16xf32> -> vector<64x16xf32>
      %57 = arith.addf %55, %56 : vector<64x16xf32>
      %58 = vector.shape_cast %54 : vector<64x16xf32> to vector<4x16x16xf32>
      %59 = tpu.transpose %58, [0, 2, 1] : vector<4x16x16xf32> -> vector<4x16x16xf32>
      %60 = vector.shape_cast %59 : vector<4x16x16xf32> to vector<64x16xf32>
      %61 = vector.shape_cast %57 : vector<64x16xf32> to vector<4x16x16xf32>
      %62 = tpu.transpose %61, [0, 2, 1] : vector<4x16x16xf32> -> vector<4x16x16xf32>
      %63 = vector.shape_cast %62 : vector<4x16x16xf32> to vector<64x16xf32>
      %64 = arith.truncf %60 : vector<64x16xf32> to vector<64x16xbf16>
      %65 = arith.truncf %63 : vector<64x16xf32> to vector<64x16xbf16>
      %cst_35 = arith.constant dense<0.000000e+00> : vector<64x16xf32>
      %66 = tpu.matmul %64, %1, %cst_35 {dimension_numbers = #tpu.dot_dimension_numbers<[1], [0], [0], [1], [0, 0, 1, 1], [], []>} : vector<64x16xbf16>, vector<16x16xbf16>, vector<64x16xf32> -> vector<64x16xf32>
      %cst_36 = arith.constant dense<0.000000e+00> : vector<64x16xf32>
      %67 = tpu.matmul %65, %2, %cst_36 {dimension_numbers = #tpu.dot_dimension_numbers<[1], [0], [0], [1], [0, 0, 1, 1], [], []>} : vector<64x16xbf16>, vector<16x16xbf16>, vector<64x16xf32> -> vector<64x16xf32>
      %68 = arith.subf %66, %67 : vector<64x16xf32>
      %cst_37 = arith.constant dense<0.000000e+00> : vector<64x16xf32>
      %69 = tpu.matmul %64, %2, %cst_37 {dimension_numbers = #tpu.dot_dimension_numbers<[1], [0], [0], [1], [0, 0, 1, 1], [], []>} : vector<64x16xbf16>, vector<16x16xbf16>, vector<64x16xf32> -> vector<64x16xf32>
      %cst_38 = arith.constant dense<0.000000e+00> : vector<64x16xf32>
      %70 = tpu.matmul %65, %1, %cst_38 {dimension_numbers = #tpu.dot_dimension_numbers<[1], [0], [0], [1], [0, 0, 1, 1], [], []>} : vector<64x16xbf16>, vector<16x16xbf16>, vector<64x16xf32> -> vector<64x16xf32>
      %71 = arith.addf %69, %70 : vector<64x16xf32>
      %72 = vector.shape_cast %68 : vector<64x16xf32> to vector<4x16x16xf32>
      %73 = vector.shape_cast %9 : vector<16x16xf32> to vector<1x16x16xf32>
      %74 = vector.broadcast %73 : vector<1x16x16xf32> to vector<4x16x16xf32>
      %75 = arith.mulf %72, %74 : vector<4x16x16xf32>
      %76 = vector.shape_cast %75 : vector<4x16x16xf32> to vector<64x16xf32>
      %77 = vector.shape_cast %71 : vector<64x16xf32> to vector<4x16x16xf32>
      %78 = vector.shape_cast %9 : vector<16x16xf32> to vector<1x16x16xf32>
      %79 = vector.broadcast %78 : vector<1x16x16xf32> to vector<4x16x16xf32>
      %80 = arith.mulf %77, %79 : vector<4x16x16xf32>
      %81 = vector.shape_cast %80 : vector<4x16x16xf32> to vector<64x16xf32>
      %82 = arith.truncf %76 : vector<64x16xf32> to vector<64x16xbf16>
      %83 = arith.truncf %81 : vector<64x16xf32> to vector<64x16xbf16>
      %cst_39 = arith.constant dense<0.000000e+00> : vector<64x16xf32>
      %84 = tpu.matmul %82, %1, %cst_39 {dimension_numbers = #tpu.dot_dimension_numbers<[1], [0], [0], [1], [0, 0, 1, 1], [], []>} : vector<64x16xbf16>, vector<16x16xbf16>, vector<64x16xf32> -> vector<64x16xf32>
      %cst_40 = arith.constant dense<0.000000e+00> : vector<64x16xf32>
      %85 = tpu.matmul %83, %3, %cst_40 {dimension_numbers = #tpu.dot_dimension_numbers<[1], [0], [0], [1], [0, 0, 1, 1], [], []>} : vector<64x16xbf16>, vector<16x16xbf16>, vector<64x16xf32> -> vector<64x16xf32>
      %86 = arith.subf %84, %85 : vector<64x16xf32>
      %cst_41 = arith.constant dense<0.000000e+00> : vector<64x16xf32>
      %87 = tpu.matmul %82, %3, %cst_41 {dimension_numbers = #tpu.dot_dimension_numbers<[1], [0], [0], [1], [0, 0, 1, 1], [], []>} : vector<64x16xbf16>, vector<16x16xbf16>, vector<64x16xf32> -> vector<64x16xf32>
      %cst_42 = arith.constant dense<0.000000e+00> : vector<64x16xf32>
      %88 = tpu.matmul %83, %1, %cst_42 {dimension_numbers = #tpu.dot_dimension_numbers<[1], [0], [0], [1], [0, 0, 1, 1], [], []>} : vector<64x16xbf16>, vector<16x16xbf16>, vector<64x16xf32> -> vector<64x16xf32>
      %89 = arith.addf %87, %88 : vector<64x16xf32>
      %90 = vector.shape_cast %86 : vector<64x16xf32> to vector<4x16x16xf32>
      %91 = tpu.transpose %90, [0, 2, 1] : vector<4x16x16xf32> -> vector<4x16x16xf32>
      %92 = vector.shape_cast %91 : vector<4x16x16xf32> to vector<64x16xf32>
      %93 = vector.shape_cast %89 : vector<64x16xf32> to vector<4x16x16xf32>
      %94 = tpu.transpose %93, [0, 2, 1] : vector<4x16x16xf32> -> vector<4x16x16xf32>
      %95 = vector.shape_cast %94 : vector<4x16x16xf32> to vector<64x16xf32>
      %96 = arith.truncf %92 : vector<64x16xf32> to vector<64x16xbf16>
      %97 = arith.truncf %95 : vector<64x16xf32> to vector<64x16xbf16>
      %cst_43 = arith.constant dense<0.000000e+00> : vector<64x16xf32>
      %98 = tpu.matmul %96, %1, %cst_43 {dimension_numbers = #tpu.dot_dimension_numbers<[1], [0], [0], [1], [0, 0, 1, 1], [], []>} : vector<64x16xbf16>, vector<16x16xbf16>, vector<64x16xf32> -> vector<64x16xf32>
      %cst_44 = arith.constant dense<0.000000e+00> : vector<64x16xf32>
      %99 = tpu.matmul %97, %3, %cst_44 {dimension_numbers = #tpu.dot_dimension_numbers<[1], [0], [0], [1], [0, 0, 1, 1], [], []>} : vector<64x16xbf16>, vector<16x16xbf16>, vector<64x16xf32> -> vector<64x16xf32>
      %100 = arith.subf %98, %99 : vector<64x16xf32>
      %cst_45 = arith.constant dense<0.000000e+00> : vector<64x16xf32>
      %101 = tpu.matmul %96, %3, %cst_45 {dimension_numbers = #tpu.dot_dimension_numbers<[1], [0], [0], [1], [0, 0, 1, 1], [], []>} : vector<64x16xbf16>, vector<16x16xbf16>, vector<64x16xf32> -> vector<64x16xf32>
      %cst_46 = arith.constant dense<0.000000e+00> : vector<64x16xf32>
      %102 = tpu.matmul %97, %1, %cst_46 {dimension_numbers = #tpu.dot_dimension_numbers<[1], [0], [0], [1], [0, 0, 1, 1], [], []>} : vector<64x16xbf16>, vector<16x16xbf16>, vector<64x16xf32> -> vector<64x16xf32>
      %103 = arith.addf %101, %102 : vector<64x16xf32>
      %104 = vector.shape_cast %100 : vector<64x16xf32> to vector<4x16x16xf32>
      %105 = vector.shape_cast %103 : vector<64x16xf32> to vector<4x16x16xf32>
      %106 = arith.mulf %5, %104 : vector<4x16x16xf32>
      %107 = arith.mulf %7, %105 : vector<4x16x16xf32>
      %108 = arith.addf %106, %107 : vector<4x16x16xf32>
      %cst_47 = arith.constant dense<0.000000e+00> : vector<16x16xf32>
      %109 = vector.multi_reduction <add>, %108, %cst_47 [0] : vector<4x16x16xf32> to vector<16x16xf32>
      %110 = arith.mulf %5, %105 : vector<4x16x16xf32>
      %111 = arith.mulf %7, %104 : vector<4x16x16xf32>
      %112 = arith.subf %110, %111 : vector<4x16x16xf32>
      %cst_48 = arith.constant dense<0.000000e+00> : vector<16x16xf32>
      %113 = vector.multi_reduction <add>, %112, %cst_48 [0] : vector<4x16x16xf32> to vector<16x16xf32>
      %114 = vector.broadcast %0 : f32 to vector<16x16xf32>
      %115 = arith.mulf %114, %arg15 : vector<16x16xf32>
      %116 = arith.addf %109, %115 : vector<16x16xf32>
      %117 = vector.broadcast %0 : f32 to vector<16x16xf32>
      %118 = arith.mulf %117, %arg16 : vector<16x16xf32>
      %119 = arith.addf %113, %118 : vector<16x16xf32>
      %120 = arith.mulf %arg15, %116 : vector<16x16xf32>
      %121 = arith.mulf %arg16, %119 : vector<16x16xf32>
      %122 = arith.addf %120, %121 : vector<16x16xf32>
      %123 = vector.shape_cast %122 : vector<16x16xf32> to vector<1x16x16xf32>
      %cst_49 = arith.constant dense<0.000000e+00> : vector<1xf32>
      %124 = vector.multi_reduction <add>, %123, %cst_49 [1, 2] : vector<1x16x16xf32> to vector<1xf32>
      %125 = vector.shape_cast %124 : vector<1xf32> to vector<1x1x1xf32>
      %126 = vector.extract %125[0, 0, 0] : f32 from vector<1x1x1xf32>
      %127 = vector.broadcast %126 : f32 to vector<1x1xf32>
      %128 = vector.broadcast %cst_23 : f32 to vector<1x1xf32>
      %129 = arith.cmpf ogt, %127, %128 : vector<1x1xf32>
      %130 = arith.divf %arg17, %127 : vector<1x1xf32>
      %cst_50 = arith.constant 0.000000e+00 : f32
      %131 = vector.broadcast %cst_50 : f32 to vector<1x1xf32>
      %132 = arith.select %129, %130, %131 : vector<1x1xi1>, vector<1x1xf32>
      %133 = vector.broadcast %132 : vector<1x1xf32> to vector<16x16xf32>
      %134 = arith.mulf %133, %arg15 : vector<16x16xf32>
      %135 = arith.addf %arg11, %134 : vector<16x16xf32>
      %136 = vector.broadcast %132 : vector<1x1xf32> to vector<16x16xf32>
      %137 = arith.mulf %136, %arg16 : vector<16x16xf32>
      %138 = arith.addf %arg12, %137 : vector<16x16xf32>
      %139 = vector.broadcast %132 : vector<1x1xf32> to vector<16x16xf32>
      %140 = arith.mulf %139, %116 : vector<16x16xf32>
      %141 = arith.subf %arg13, %140 : vector<16x16xf32>
      %142 = vector.broadcast %132 : vector<1x1xf32> to vector<16x16xf32>
      %143 = arith.mulf %142, %119 : vector<16x16xf32>
      %144 = arith.subf %arg14, %143 : vector<16x16xf32>
      %145 = arith.mulf %141, %141 : vector<16x16xf32>
      %146 = arith.mulf %144, %144 : vector<16x16xf32>
      %147 = arith.addf %145, %146 : vector<16x16xf32>
      %148 = vector.shape_cast %147 : vector<16x16xf32> to vector<1x16x16xf32>
      %cst_51 = arith.constant dense<0.000000e+00> : vector<1xf32>
      %149 = vector.multi_reduction <add>, %148, %cst_51 [1, 2] : vector<1x16x16xf32> to vector<1xf32>
      %150 = vector.shape_cast %149 : vector<1xf32> to vector<1x1x1xf32>
      %151 = vector.extract %150[0, 0, 0] : f32 from vector<1x1x1xf32>
      %152 = vector.broadcast %151 : f32 to vector<1x1xf32>
      %153 = vector.broadcast %cst_23 : f32 to vector<1x1xf32>
      %154 = arith.cmpf ogt, %arg17, %153 : vector<1x1xf32>
      %155 = arith.divf %152, %arg17 : vector<1x1xf32>
      %cst_52 = arith.constant 0.000000e+00 : f32
      %156 = vector.broadcast %cst_52 : f32 to vector<1x1xf32>
      %157 = arith.select %154, %155, %156 : vector<1x1xi1>, vector<1x1xf32>
      %158 = vector.broadcast %157 : vector<1x1xf32> to vector<16x16xf32>
      %159 = arith.mulf %158, %arg15 : vector<16x16xf32>
      %160 = arith.addf %141, %159 : vector<16x16xf32>
      %161 = vector.broadcast %157 : vector<1x1xf32> to vector<16x16xf32>
      %162 = arith.mulf %161, %arg16 : vector<16x16xf32>
      %163 = arith.addf %144, %162 : vector<16x16xf32>
      scf.yield %135, %138, %141, %144, %160, %163, %152 : vector<16x16xf32>, vector<16x16xf32>, vector<16x16xf32>, vector<16x16xf32>, vector<16x16xf32>, vector<16x16xf32>, vector<1x1xf32>
    }
    %c0_24 = arith.constant 0 : index
    %c0_25 = arith.constant 0 : index
    %c0_26 = arith.constant 0 : index
    %c0_27 = arith.constant 0 : index
    %28 = vector.load %arg9[%c0_24, %c0_25, %c0_26, %c0_27] : memref<1x2x16x16xf32, #tpu.memory_space<vmem>>, vector<1x1x16x16xf32>
    %29 = vector.shape_cast %28 : vector<1x1x16x16xf32> to vector<16x16xf32>
    %30 = vector.shape_cast %27#0 : vector<16x16xf32> to vector<1x1x16x16xf32>
    tpu.vector_store %arg9[%c0_24, %c0_25, %c0_26, %c0_27], %30 {strides = array<i32>} : memref<1x2x16x16xf32, #tpu.memory_space<vmem>>, vector<1x1x16x16xf32>,
    %c0_28 = arith.constant 0 : index
    %c1 = arith.constant 1 : index
    %c0_29 = arith.constant 0 : index
    %c0_30 = arith.constant 0 : index
    %31 = vector.load %arg9[%c0_28, %c1, %c0_29, %c0_30] : memref<1x2x16x16xf32, #tpu.memory_space<vmem>>, vector<1x1x16x16xf32>
    %32 = vector.shape_cast %31 : vector<1x1x16x16xf32> to vector<16x16xf32>
    %33 = vector.shape_cast %27#1 : vector<16x16xf32> to vector<1x1x16x16xf32>
    tpu.vector_store %arg9[%c0_28, %c1, %c0_29, %c0_30], %33 {strides = array<i32>} : memref<1x2x16x16xf32, #tpu.memory_space<vmem>>, vector<1x1x16x16xf32>,
    return
  }
  func.func @transform_0(%arg0: i32) -> i32 {
    %c0_i32 = arith.constant 0 : i32
    %c0_i32_0 = arith.constant 0 : i32
    return %c0_i32 : i32
  }
  func.func @transform_1(%arg0: i32) -> (i32, i32, i32, i32) {
    %c0_i32 = arith.constant 0 : i32
    %c0_i32_0 = arith.constant 0 : i32
    %c0_i32_1 = arith.constant 0 : i32
    %c0_i32_2 = arith.constant 0 : i32
    return %arg0, %c0_i32, %c0_i32_0, %c0_i32_1 : i32, i32, i32, i32
  }
  func.func @transform_2(%arg0: i32) -> (i32, i32, i32, i32) {
    %c0_i32 = arith.constant 0 : i32
    %c0_i32_0 = arith.constant 0 : i32
    %c0_i32_1 = arith.constant 0 : i32
    %c0_i32_2 = arith.constant 0 : i32
    return %arg0, %c0_i32, %c0_i32_0, %c0_i32_1 : i32, i32, i32, i32
  }
  func.func @transform_3(%arg0: i32) -> (i32, i32, i32, i32) {
    %c0_i32 = arith.constant 0 : i32
    %c0_i32_0 = arith.constant 0 : i32
    %c0_i32_1 = arith.constant 0 : i32
    %c0_i32_2 = arith.constant 0 : i32
    return %arg0, %c0_i32, %c0_i32_0, %c0_i32_1 : i32, i32, i32, i32
  }
  func.func @transform_4(%arg0: i32) -> (i32, i32, i32) {
    %c0_i32 = arith.constant 0 : i32
    %c0_i32_0 = arith.constant 0 : i32
    %c0_i32_1 = arith.constant 0 : i32
    return %arg0, %c0_i32, %c0_i32_0 : i32, i32, i32
  }
  func.func @transform_5(%arg0: i32) -> (i32, i32) {
    %c0_i32 = arith.constant 0 : i32
    %c0_i32_0 = arith.constant 0 : i32
    %c0_i32_1 = arith.constant 0 : i32
    return %c0_i32, %c0_i32_0 : i32, i32
  }
  func.func @transform_6(%arg0: i32) -> (i32, i32) {
    %c0_i32 = arith.constant 0 : i32
    %c0_i32_0 = arith.constant 0 : i32
    %c0_i32_1 = arith.constant 0 : i32
    return %c0_i32, %c0_i32_0 : i32, i32
  }
  func.func @transform_7(%arg0: i32) -> (i32, i32) {
    %c0_i32 = arith.constant 0 : i32
    %c0_i32_0 = arith.constant 0 : i32
    %c0_i32_1 = arith.constant 0 : i32
    return %c0_i32, %c0_i32_0 : i32, i32
  }
  func.func @transform_8(%arg0: i32) -> (i32, i32, i32, i32) {
    %c0_i32 = arith.constant 0 : i32
    %c0_i32_0 = arith.constant 0 : i32
    %c0_i32_1 = arith.constant 0 : i32
    %c0_i32_2 = arith.constant 0 : i32
    return %arg0, %c0_i32, %c0_i32_0, %c0_i32_1 : i32, i32, i32, i32
  }
}

</mosaic_0001>

<llo_original>
// kernel: modl_forward.4
$region0: #{modl_forward.4}
  #allocation0 [shape = 'u32[]', space=smem, size = 0x4, offset = 0x4, fixed_abs, tag = 'smem constant byte address 0x4 - core index']
  #allocation1 [shape = 'u32[144,128]{1,0:T(1,128)}', space=vmem, size = 0x12000, scoped, tag = 'internal scratch']
  #allocation2 [shape = 'f32[1]{0:T(128)S(6)}', space=smem, size = 0x200, scoped, tag = 'scoped memory for modl_forward.4']
  %s0 = inlined_call_operand.<no memory space> [shape: f32[1], index: 0, kind: input, shape index: {}]
  %s1 = inlined_call_operand.vmem [shape: f32[2,2,256], index: 1, kind: input, shape index: {}, may-alias: {1,2}]
  %s2 = inlined_call_operand.vmem [shape: f32[2,2,256], index: 2, kind: input, shape index: {}, may-alias: {1,2}]
  %s3 = inlined_call_operand.vmem [shape: f32[9,256], index: 3, kind: input, shape index: {}]
  %s4 = inlined_call_operand.vmem [shape: bf16[32,18], index: 4, kind: input, shape index: {}]
  %s5 = inlined_call_operand.vmem [shape: f32[32,1], index: 5, kind: input, shape index: {}]
  %s6 = inlined_call_operand.vmem [shape: bf16[32,288], index: 6, kind: input, shape index: {}]
  %s7 = inlined_call_operand.vmem [shape: f32[32,1], index: 7, kind: input, shape index: {}]
  %s8 = inlined_call_operand.vmem [shape: bf16[32,288], index: 8, kind: input, shape index: {}]
  %s9 = inlined_call_operand.vmem [shape: f32[32,1], index: 9, kind: input, shape index: {}]
  %s10 = inlined_call_operand.vmem [shape: bf16[2,288], index: 10, kind: input, shape index: {}]
  %s11 = inlined_call_operand.vmem [shape: f32[2,1], index: 11, kind: input, shape index: {}]
  %s12 = inlined_call_operand.vmem [shape: f32[2,2,256], index: 12, kind: output, shape index: {}]
  %s13 = sld [smem:[#allocation0]]
  $region81: #{modl_forward.4} parent=0
    _
  %s15 = ssub.s32 1, %s13
  %s16 = scalar_select 0, %s15, %s13
  %17 = sst [smem:[#allocation2]] %s0
  loop: start=0, step=1, limit=4
  $region2: #{modl_forward.4} parent=0 // loop_pre_header
    _
  $region3: #{modl_forward.4} parent=0 // loop_header
    %s19 = sphi 0, %s23
    %p20 = scmp.ge.s32.totalorder %s19, 4
    %s27 = sphi 0, %s27
    %s29 = sphi 0, %s27
    %s30 = sphi 0, %s29
    %s44 = sphi 0, %s30
    %s50 = sphi 0, %s52
    %s53 = sphi 0, %s50
    %s54 = sphi 0, %s53
    %s70 = sphi 0, %s54
    %s76 = sphi 0, %s78
    %s79 = sphi 0, %s76
    %s80 = sphi 0, %s79
    %s96 = sphi 0, %s80
    %s100 = sphi 0, %s100
    %s102 = sphi 0, %s100
    %s103 = sphi 0, %s102
    %s117 = sphi 0, %s103
    %s121 = sphi 0, %s121
    %s123 = sphi 0, %s121
    %s124 = sphi 0, %s123
    %s138 = sphi 0, %s124
    %s142 = sphi 0, %s142
    %s144 = sphi 0, %s142
    %s145 = sphi 0, %s144
    %s159 = sphi 0, %s145
    %s163 = sphi 0, %s163
    %s165 = sphi 0, %s163
    %s166 = sphi 0, %s165
    %s180 = sphi 0, %s166
    %s184 = sphi 0, %s184
    %s186 = sphi 0, %s184
    %s187 = sphi 0, %s186
    %s201 = sphi 0, %s187
    %s205 = sphi 0, %s205
    %s207 = sphi 0, %s205
    %s208 = sphi 0, %s207
    %s222 = sphi 0, %s208
    %s226 = sphi 0, %s226
    %s228 = sphi 0, %s226
    %s229 = sphi 0, %s228
    %s243 = sphi 0, %s229
    %s247 = sphi 0, %s247
    %s249 = sphi 0, %s247
    %s250 = sphi 0, %s249
    %s264 = sphi 0, %s250
    %s268 = sphi 0, %s268
    %s270 = sphi 0, %s268
    %s271 = sphi 0, %s270
    %s285 = sphi 0, %s271
    %s291 = sphi 0, %s293
    %s294 = sphi 0, %s291
    %s295 = sphi 0, %s294
    %s311 = sphi 0, %s295
  $region4: #{modl_forward.4} parent=0 // loop_header_branch
    %22 = sbr.rel (%p20) target = $region8
  $region5: #{modl_forward.4} parent=0 // loop_body
    %s24 = ssub.s32 %s19, 1
    %s25 = ssub.s32 %s19, 2
    %s26 = sadd.s32 %s19, 1
    %s28 = sadd.s32 %s27, 1
    %p31 = scmp.eq.s32.totalorder %s19, 1
    %p32 = scmp.ne.s32.totalorder %s27, %s29
    %p33 = scmp.eq.s32.totalorder %s19, 0
    %p34 = por %p32, %p33
    %p35 = scmp.ne.s32.totalorder %s27, %s29
    %p36 = scmp.eq.s32.totalorder %s24, 1
    %p37 = por %p35, %p36
    %p38 = scmp.ne.s32.totalorder %s29, %s30
    %p39 = scmp.eq.s32.totalorder %s24, 0
    %p40 = por %p38, %p39
    %p41 = scmp.ne.s32.totalorder %s29, %s30
    %p42 = scmp.eq.s32.totalorder %s25, 1
    %p43 = por %p41, %p42
    %p45 = scmp.ne.s32.totalorder %s30, %s44
    %p46 = scmp.eq.s32.totalorder %s25, 0
    %p47 = por %p45, %p46
    %s48 = ssub.s32 %s19, %s26
    %p49 = scmp.eq.s32.totalorder %s48, 0
    %s51 = sadd.s32 %s50, 1
    %s52 = scalar_select %p49, %s50, %s51
    %p55 = pneg %p49
    %p56 = scmp.eq.s32.totalorder %s19, 1
    %p57 = por %p55, %p56
    %p58 = scmp.ne.s32.totalorder %s50, %s53
    %p59 = scmp.eq.s32.totalorder %s19, 0
    %p60 = por %p58, %p59
    %p61 = scmp.ne.s32.totalorder %s50, %s53
    %p62 = scmp.eq.s32.totalorder %s24, 1
    %p63 = por %p61, %p62
    %p64 = scmp.ne.s32.totalorder %s53, %s54
    %p65 = scmp.eq.s32.totalorder %s24, 0
    %p66 = por %p64, %p65
    %p67 = scmp.ne.s32.totalorder %s53, %s54
    %p68 = scmp.eq.s32.totalorder %s25, 1
    %p69 = por %p67, %p68
    %p71 = scmp.ne.s32.totalorder %s54, %s70
    %p72 = scmp.eq.s32.totalorder %s25, 0
    %p73 = por %p71, %p72
    %s74 = ssub.s32 %s19, %s26
    %p75 = scmp.eq.s32.totalorder %s74, 0
    %s77 = sadd.s32 %s76, 1
    %s78 = scalar_select %p75, %s76, %s77
    %p81 = pneg %p75
    %p82 = scmp.eq.s32.totalorder %s19, 1
    %p83 = por %p81, %p82
    %p84 = scmp.ne.s32.totalorder %s76, %s79
    %p85 = scmp.eq.s32.totalorder %s19, 0
    %p86 = por %p84, %p85
    %p87 = scmp.ne.s32.totalorder %s76, %s79
    %p88 = scmp.eq.s32.totalorder %s24, 1
    %p89 = por %p87, %p88
    %p90 = scmp.ne.s32.totalorder %s79, %s80
    %p91 = scmp.eq.s32.totalorder %s24, 0
    %p92 = por %p90, %p91
    %p93 = scmp.ne.s32.totalorder %s79, %s80
    %p94 = scmp.eq.s32.totalorder %s25, 1
    %p95 = por %p93, %p94
    %p97 = scmp.ne.s32.totalorder %s80, %s96
    %p98 = scmp.eq.s32.totalorder %s25, 0
    %p99 = por %p97, %p98
    %s101 = sadd.s32 %s100, 1
    %p104 = scmp.eq.s32.totalorder %s19, 1
    %p105 = scmp.ne.s32.totalorder %s100, %s102
    %p106 = scmp.eq.s32.totalorder %s19, 0
    %p107 = por %p105, %p106
    %p108 = scmp.ne.s32.totalorder %s100, %s102
    %p109 = scmp.eq.s32.totalorder %s24, 1
    %p110 = por %p108, %p109
    %p111 = scmp.ne.s32.totalorder %s102, %s103
    %p112 = scmp.eq.s32.totalorder %s24, 0
    %p113 = por %p111, %p112
    %p114 = scmp.ne.s32.totalorder %s102, %s103
    %p115 = scmp.eq.s32.totalorder %s25, 1
    %p116 = por %p114, %p115
    %p118 = scmp.ne.s32.totalorder %s103, %s117
    %p119 = scmp.eq.s32.totalorder %s25, 0
    %p120 = por %p118, %p119
    %s122 = sadd.s32 %s121, 1
    %p125 = scmp.eq.s32.totalorder %s19, 1
    %p126 = scmp.ne.s32.totalorder %s121, %s123
    %p127 = scmp.eq.s32.totalorder %s19, 0
    %p128 = por %p126, %p127
    %p129 = scmp.ne.s32.totalorder %s121, %s123
    %p130 = scmp.eq.s32.totalorder %s24, 1
    %p131 = por %p129, %p130
    %p132 = scmp.ne.s32.totalorder %s123, %s124
    %p133 = scmp.eq.s32.totalorder %s24, 0
    %p134 = por %p132, %p133
    %p135 = scmp.ne.s32.totalorder %s123, %s124
    %p136 = scmp.eq.s32.totalorder %s25, 1
    %p137 = por %p135, %p136
    %p139 = scmp.ne.s32.totalorder %s124, %s138
    %p140 = scmp.eq.s32.totalorder %s25, 0
    %p141 = por %p139, %p140
    %s143 = sadd.s32 %s142, 1
    %p146 = scmp.eq.s32.totalorder %s19, 1
    %p147 = scmp.ne.s32.totalorder %s142, %s144
    %p148 = scmp.eq.s32.totalorder %s19, 0
    %p149 = por %p147, %p148
    %p150 = scmp.ne.s32.totalorder %s142, %s144
    %p151 = scmp.eq.s32.totalorder %s24, 1
    %p152 = por %p150, %p151
    %p153 = scmp.ne.s32.totalorder %s144, %s145
    %p154 = scmp.eq.s32.totalorder %s24, 0
    %p155 = por %p153, %p154
    %p156 = scmp.ne.s32.totalorder %s144, %s145
    %p157 = scmp.eq.s32.totalorder %s25, 1
    %p158 = por %p156, %p157
    %p160 = scmp.ne.s32.totalorder %s145, %s159
    %p161 = scmp.eq.s32.totalorder %s25, 0
    %p162 = por %p160, %p161
    %s164 = sadd.s32 %s163, 1
    %p167 = scmp.eq.s32.totalorder %s19, 1
    %p168 = scmp.ne.s32.totalorder %s163, %s165
    %p169 = scmp.eq.s32.totalorder %s19, 0
    %p170 = por %p168, %p169
    %p171 = scmp.ne.s32.totalorder %s163, %s165
    %p172 = scmp.eq.s32.totalorder %s24, 1
    %p173 = por %p171, %p172
    %p174 = scmp.ne.s32.totalorder %s165, %s166
    %p175 = scmp.eq.s32.totalorder %s24, 0
    %p176 = por %p174, %p175
    %p177 = scmp.ne.s32.totalorder %s165, %s166
    %p178 = scmp.eq.s32.totalorder %s25, 1
    %p179 = por %p177, %p178
    %p181 = scmp.ne.s32.totalorder %s166, %s180
    %p182 = scmp.eq.s32.totalorder %s25, 0
    %p183 = por %p181, %p182
    %s185 = sadd.s32 %s184, 1
    %p188 = scmp.eq.s32.totalorder %s19, 1
    %p189 = scmp.ne.s32.totalorder %s184, %s186
    %p190 = scmp.eq.s32.totalorder %s19, 0
    %p191 = por %p189, %p190
    %p192 = scmp.ne.s32.totalorder %s184, %s186
    %p193 = scmp.eq.s32.totalorder %s24, 1
    %p194 = por %p192, %p193
    %p195 = scmp.ne.s32.totalorder %s186, %s187
    %p196 = scmp.eq.s32.totalorder %s24, 0
    %p197 = por %p195, %p196
    %p198 = scmp.ne.s32.totalorder %s186, %s187
    %p199 = scmp.eq.s32.totalorder %s25, 1
    %p200 = por %p198, %p199
    %p202 = scmp.ne.s32.totalorder %s187, %s201
    %p203 = scmp.eq.s32.totalorder %s25, 0
    %p204 = por %p202, %p203
    %s206 = sadd.s32 %s205, 1
    %p209 = scmp.eq.s32.totalorder %s19, 1
    %p210 = scmp.ne.s32.totalorder %s205, %s207
    %p211 = scmp.eq.s32.totalorder %s19, 0
    %p212 = por %p210, %p211
    %p213 = scmp.ne.s32.totalorder %s205, %s207
    %p214 = scmp.eq.s32.totalorder %s24, 1
    %p215 = por %p213, %p214
    %p216 = scmp.ne.s32.totalorder %s207, %s208
    %p217 = scmp.eq.s32.totalorder %s24, 0
    %p218 = por %p216, %p217
    %p219 = scmp.ne.s32.totalorder %s207, %s208
    %p220 = scmp.eq.s32.totalorder %s25, 1
    %p221 = por %p219, %p220
    %p223 = scmp.ne.s32.totalorder %s208, %s222
    %p224 = scmp.eq.s32.totalorder %s25, 0
    %p225 = por %p223, %p224
    %s227 = sadd.s32 %s226, 1
    %p230 = scmp.eq.s32.totalorder %s19, 1
    %p231 = scmp.ne.s32.totalorder %s226, %s228
    %p232 = scmp.eq.s32.totalorder %s19, 0
    %p233 = por %p231, %p232
    %p234 = scmp.ne.s32.totalorder %s226, %s228
    %p235 = scmp.eq.s32.totalorder %s24, 1
    %p236 = por %p234, %p235
    %p237 = scmp.ne.s32.totalorder %s228, %s229
    %p238 = scmp.eq.s32.totalorder %s24, 0
    %p239 = por %p237, %p238
    %p240 = scmp.ne.s32.totalorder %s228, %s229
    %p241 = scmp.eq.s32.totalorder %s25, 1
    %p242 = por %p240, %p241
    %p244 = scmp.ne.s32.totalorder %s229, %s243
    %p245 = scmp.eq.s32.totalorder %s25, 0
    %p246 = por %p244, %p245
    %s248 = sadd.s32 %s247, 1
    %p251 = scmp.eq.s32.totalorder %s19, 1
    %p252 = scmp.ne.s32.totalorder %s247, %s249
    %p253 = scmp.eq.s32.totalorder %s19, 0
    %p254 = por %p252, %p253
    %p255 = scmp.ne.s32.totalorder %s247, %s249
    %p256 = scmp.eq.s32.totalorder %s24, 1
    %p257 = por %p255, %p256
    %p258 = scmp.ne.s32.totalorder %s249, %s250
    %p259 = scmp.eq.s32.totalorder %s24, 0
    %p260 = por %p258, %p259
    %p261 = scmp.ne.s32.totalorder %s249, %s250
    %p262 = scmp.eq.s32.totalorder %s25, 1
    %p263 = por %p261, %p262
    %p265 = scmp.ne.s32.totalorder %s250, %s264
    %p266 = scmp.eq.s32.totalorder %s25, 0
    %p267 = por %p265, %p266
    %s269 = sadd.s32 %s268, 1
    %p272 = scmp.eq.s32.totalorder %s19, 1
    %p273 = scmp.ne.s32.totalorder %s268, %s270
    %p274 = scmp.eq.s32.totalorder %s19, 0
    %p275 = por %p273, %p274
    %p276 = scmp.ne.s32.totalorder %s268, %s270
    %p277 = scmp.eq.s32.totalorder %s24, 1
    %p278 = por %p276, %p277
    %p279 = scmp.ne.s32.totalorder %s270, %s271
    %p280 = scmp.eq.s32.totalorder %s24, 0
    %p281 = por %p279, %p280
    %p282 = scmp.ne.s32.totalorder %s270, %s271
    %p283 = scmp.eq.s32.totalorder %s25, 1
    %p284 = por %p282, %p283
    %p286 = scmp.ne.s32.totalorder %s271, %s285
    %p287 = scmp.eq.s32.totalorder %s25, 0
    %p288 = por %p286, %p287
    %s289 = ssub.s32 %s19, %s26
    %p290 = scmp.eq.s32.totalorder %s289, 0
    %s292 = sadd.s32 %s291, 1
    %s293 = scalar_select %p290, %s291, %s292
    %p296 = pneg %p290
    %p297 = scmp.eq.s32.totalorder %s19, 1
    %p298 = por %p296, %p297
    %p299 = scmp.ne.s32.totalorder %s291, %s294
    %p300 = scmp.eq.s32.totalorder %s19, 0
    %p301 = por %p299, %p300
    %p302 = scmp.ne.s32.totalorder %s291, %s294
    %p303 = scmp.eq.s32.totalorder %s24, 1
    %p304 = por %p302, %p303
    %p305 = scmp.ne.s32.totalorder %s294, %s295
    %p306 = scmp.eq.s32.totalorder %s24, 0
    %p307 = por %p305, %p306
    %p308 = scmp.ne.s32.totalorder %s294, %s295
    %p309 = scmp.eq.s32.totalorder %s25, 1
    %p310 = por %p308, %p309
    %p312 = scmp.ne.s32.totalorder %s295, %s311
    %p313 = scmp.eq.s32.totalorder %s25, 0
    %p314 = por %p312, %p313
    %p315 = scmp.le.s32.totalorder 1, %s19
    %p316 = scmp.lt.s32.totalorder %s19, 3
    %p317 = pnand %p315, %p316
    %p318 = pneg %p317
    // Predicated region
    $region9: #{modl_forward.4} parent=5 // pred_check
      _
    $region10: #{modl_forward.4} parent=5 // pred_check_branch
      %320 = sbr.rel (%p317) target = $region12
    $region11: #{modl_forward.4} parent=5 // pred_region
      %s321 = ssub.s32 %s19, 1
      // Predicated region
      $region13: #{modl_forward.4} parent=11 // pred_check
        %p322 = pneg %p40
      $region14: #{modl_forward.4} parent=11 // pred_check_branch
        %324 = sbr.rel (%p322) target = $region16
      $region15: #{modl_forward.4} parent=11 // pred_region
        _
      $region16: #{modl_forward.4} parent=11 // pred_fallthru
        _
      // Predicated region
      $region17: #{modl_forward.4} parent=11 // pred_check
        %p325 = pneg %p113
      $region18: #{modl_forward.4} parent=11 // pred_check_branch
        %327 = sbr.rel (%p325) target = $region20
      $region19: #{modl_forward.4} parent=11 // pred_region
        _
      $region20: #{modl_forward.4} parent=11 // pred_fallthru
        _
      // Predicated region
      $region21: #{modl_forward.4} parent=11 // pred_check
        %p328 = pneg %p134
      $region22: #{modl_forward.4} parent=11 // pred_check_branch
        %330 = sbr.rel (%p328) target = $region24
      $region23: #{modl_forward.4} parent=11 // pred_region
        _
      $region24: #{modl_forward.4} parent=11 // pred_fallthru
        _
      // Predicated region
      $region25: #{modl_forward.4} parent=11 // pred_check
        %p331 = pneg %p155
      $region26: #{modl_forward.4} parent=11 // pred_check_branch
        %333 = sbr.rel (%p331) target = $region28
      $region27: #{modl_forward.4} parent=11 // pred_region
        _
      $region28: #{modl_forward.4} parent=11 // pred_fallthru
        _
      // Predicated region
      $region29: #{modl_forward.4} parent=11 // pred_check
        %p334 = pneg %p176
      $region30: #{modl_forward.4} parent=11 // pred_check_branch
        %336 = sbr.rel (%p334) target = $region32
      $region31: #{modl_forward.4} parent=11 // pred_region
        _
      $region32: #{modl_forward.4} parent=11 // pred_fallthru
        _
      // Predicated region
      $region33: #{modl_forward.4} parent=11 // pred_check
        %p337 = pneg %p197
      $region34: #{modl_forward.4} parent=11 // pred_check_branch
        %339 = sbr.rel (%p337) target = $region36
      $region35: #{modl_forward.4} parent=11 // pred_region
        _
      $region36: #{modl_forward.4} parent=11 // pred_fallthru
        _
      // Predicated region
      $region37: #{modl_forward.4} parent=11 // pred_check
        %p340 = pneg %p218
      $region38: #{modl_forward.4} parent=11 // pred_check_branch
        %342 = sbr.rel (%p340) target = $region40
      $region39: #{modl_forward.4} parent=11 // pred_region
        _
      $region40: #{modl_forward.4} parent=11 // pred_fallthru
        _
      // Predicated region
      $region41: #{modl_forward.4} parent=11 // pred_check
        %p343 = pneg %p239
      $region42: #{modl_forward.4} parent=11 // pred_check_branch
        %345 = sbr.rel (%p343) target = $region44
      $region43: #{modl_forward.4} parent=11 // pred_region
        _
      $region44: #{modl_forward.4} parent=11 // pred_fallthru
        _
      // Predicated region
      $region45: #{modl_forward.4} parent=11 // pred_check
        %p346 = pneg %p260
      $region46: #{modl_forward.4} parent=11 // pred_check_branch
        %348 = sbr.rel (%p346) target = $region48
      $region47: #{modl_forward.4} parent=11 // pred_region
        _
      $region48: #{modl_forward.4} parent=11 // pred_fallthru
        _
      // Predicated region
      $region49: #{modl_forward.4} parent=11 // pred_check
        %p349 = pneg %p281
      $region50: #{modl_forward.4} parent=11 // pred_check_branch
        %351 = sbr.rel (%p349) target = $region52
      $region51: #{modl_forward.4} parent=11 // pred_region
        _
      $region52: #{modl_forward.4} parent=11 // pred_fallthru
        _
    $region12: #{modl_forward.4} parent=5 // pred_fallthru
      _
    %p352 = scmp.lt.s32.totalorder %s19, 2
    // Predicated region
    $region53: #{modl_forward.4} parent=5 // pred_check
      %p353 = pneg %p352
    $region54: #{modl_forward.4} parent=5 // pred_check_branch
      %355 = sbr.rel (%p353) target = $region56
    $region55: #{modl_forward.4} parent=5 // pred_region
      // Predicated region
      $region57: #{modl_forward.4} parent=55 // pred_check
        %p356 = pneg %p60
      $region58: #{modl_forward.4} parent=55 // pred_check_branch
        %358 = sbr.rel (%p356) target = $region60
      $region59: #{modl_forward.4} parent=55 // pred_region
        %p359 = scmp.lt.s32.totalorder %s19, 1
        %s360 = scalar_select %p359, %s19, 1
        %s361 = smul.addr %s360, 2
        %s362 = smul.addr %s361, 2
        %s363 = scalar_lea.vmem %s1, %s362
      $region60: #{modl_forward.4} parent=55 // pred_fallthru
        _
      // Predicated region
      $region61: #{modl_forward.4} parent=55 // pred_check
        %p364 = pneg %p86
      $region62: #{modl_forward.4} parent=55 // pred_check_branch
        %366 = sbr.rel (%p364) target = $region64
      $region63: #{modl_forward.4} parent=55 // pred_region
        %p367 = scmp.lt.s32.totalorder %s19, 1
        %s368 = scalar_select %p367, %s19, 1
        %s369 = smul.addr %s368, 2
        %s370 = smul.addr %s369, 2
        %s371 = scalar_lea.vmem %s2, %s370
      $region64: #{modl_forward.4} parent=55 // pred_fallthru
        _
    $region56: #{modl_forward.4} parent=5 // pred_fallthru
      _
    %p372 = scmp.le.s32.totalorder 1, %s19
    %p373 = scmp.lt.s32.totalorder %s19, 3
    %p374 = pnand %p372, %p373
    %p375 = pneg %p374
    // Predicated region
    $region65: #{modl_forward.4} parent=5 // pred_check
      _
    $region66: #{modl_forward.4} parent=5 // pred_check_branch
      %377 = sbr.rel (%p374) target = $region68
    $region67: #{modl_forward.4} parent=5 // pred_region
      %s378 = ssub.s32 %s19, 1
      %p379 = pneg %p40
      %p380 = pneg %p37
      %p381 = scmp.lt.s32.totalorder %s24, 1
      %s382 = scalar_select %p381, %s24, 1
      %s383 = smul.addr %s382, 2
      %s384 = smul.addr %s383, 2
      %s385 = scalar_lea.vmem %s1, %s384
      %p386 = pneg %p66
      %p387 = pneg %p63
      %p388 = scmp.lt.s32.totalorder %s24, 1
      %s389 = scalar_select %p388, %s24, 1
      %s390 = smul.addr %s389, 2
      %s391 = smul.addr %s390, 2
      %s392 = scalar_lea.vmem %s2, %s391
      %p393 = pneg %p92
      %p394 = pneg %p89
      %p395 = pneg %p113
      %p396 = pneg %p110
      %p397 = pneg %p134
      %p398 = pneg %p131
      %p399 = pneg %p155
      %p400 = pneg %p152
      %p401 = pneg %p176
      %p402 = pneg %p173
      %p403 = pneg %p197
      %p404 = pneg %p194
      %p405 = pneg %p218
      %p406 = pneg %p215
      %p407 = pneg %p239
      %p408 = pneg %p236
      %p409 = pneg %p260
      %p410 = pneg %p257
      %p411 = pneg %p281
      %p412 = pneg %p278
      %p413 = pneg %p307
      %p414 = pneg %p304
      %p415 = scmp.lt.s32.totalorder %s24, 1
      %s416 = scalar_select %p415, %s24, 1
      %s417 = smul.addr %s416, 2
      %s418 = smul.addr %s417, 2
      %s419 = scalar_lea.vmem %s12, %s418
      %p420 = scmp.lt.s32.totalorder %s24, 1
      %s421 = scalar_select %p420, %s24, 1
      %s422 = smul.addr %s421, 2
      %s423 = smul.addr %s422, 2
      %s424 = scalar_lea.vmem %s1, %s423
      %p425 = scmp.lt.s32.totalorder %s24, 1
      %s426 = scalar_select %p425, %s24, 1
      %s427 = smul.addr %s426, 2
      %s428 = smul.addr %s427, 2
      %s429 = scalar_lea.vmem %s2, %s428
      %p430 = scmp.lt.s32.totalorder %s24, 1
      %s431 = scalar_select %p430, %s24, 1
      %s432 = smul.addr %s431, 2
      %s433 = smul.addr %s432, 2
      %s434 = scalar_lea.vmem %s12, %s433
      %s436 = sld [smem:[#allocation2]]
      %v437 = vld [vmem:[%s424] sm:$0xf]
      %v440 = vunpack.c.l.s4 1983009808
      %v441 = vunpack.c.0.s8 %v440
      %v442 = vlaneseq
      %v443 = vshrl.u32 %v442, 7
      %v444 = vsub.s32 %v441, %v443
      %v445 = vrot.slane %v437, %v444
      %v446 = vcombine.high %v445, %v445
      %449 = vrot.lane.b32.xlu0 %v445, 17
      %v450 = vpop.permute.xlu0 %449
      %451 = vrot.lane.b32.xlu0 %v446, 17
      %v452 = vpop.permute.xlu0 %451
      %v453 = vlaneseq
      %v454 = vand.u32 %v453, 127
      %vm455 = vcmp.lt.s32.totalorder %v454, 17
      %v456 = vsel %vm455, %v450, %v452
      %v457 = vsel %vm455, %v452, %v450
      %v458 = vld [vmem:[%s3] ss:$8 sm:$0x3]
      %v460 = vlaneseq
      %v461 = vshrl.u32 %v460, 7
      %v462 = vsub.s32 0, %v461
      %v463 = vrot.slane %v458, %v462
      %v464 = vlaneseq
      %v465 = vshrl.u32 %v464, 7
      %v466 = vsub.s32 1, %v465
      %v467 = vrot.slane %v458, %v466
      %v470 = vmul.f32 %v457, %v463
      %v471 = vmul.f32 %v456, %v467
      %472 = vrot.lane.b32.xlu0 %v445, 16
      %v473 = vpop.permute.xlu0 %472
      %474 = vrot.lane.b32.xlu0 %v446, 16
      %v475 = vpop.permute.xlu0 %474
      %vm476 = vcmp.lt.s32.totalorder %v454, 16
      %v477 = vsel %vm476, %v473, %v475
      %v478 = vsel %vm476, %v475, %v473
      %s479 = scalar_lea.vmem %s3, 1
      %v480 = vld [vmem:[%s479] ss:$8 sm:$0x3]
      %v482 = vlaneseq
      %v483 = vshrl.u32 %v482, 7
      %v484 = vsub.s32 0, %v483
      %v485 = vrot.slane %v480, %v484
      %v486 = vlaneseq
      %v487 = vshrl.u32 %v486, 7
      %v488 = vsub.s32 1, %v487
      %v489 = vrot.slane %v480, %v488
      %v492 = vmul.f32 %v478, %v485
      %v493 = vmul.f32 %v477, %v489
      %494 = vrot.lane.b32.xlu0 %v445, 15
      %v495 = vpop.permute.xlu0 %494
      %496 = vrot.lane.b32.xlu0 %v446, 15
      %v497 = vpop.permute.xlu0 %496
      %vm498 = vcmp.lt.s32.totalorder %v454, 15
      %v499 = vsel %vm498, %v495, %v497
      %v500 = vsel %vm498, %v497, %v495
      %s501 = scalar_lea.vmem %s3, 2
      %v502 = vld [vmem:[%s501] ss:$8 sm:$0x3]
      %v504 = vlaneseq
      %v505 = vshrl.u32 %v504, 7
      %v506 = vsub.s32 0, %v505
      %v507 = vrot.slane %v502, %v506
      %v508 = vlaneseq
      %v509 = vshrl.u32 %v508, 7
      %v510 = vsub.s32 1, %v509
      %v511 = vrot.slane %v502, %v510
      %v514 = vmul.f32 %v500, %v507
      %v515 = vmul.f32 %v499, %v511
      %516 = vrot.lane.b32.xlu0 %v445, 1
      %v517 = vpop.permute.xlu0 %516
      %518 = vrot.lane.b32.xlu0 %v446, 1
      %v519 = vpop.permute.xlu0 %518
      %vm520 = vcmp.lt.s32.totalorder %v454, 1
      %v521 = vsel %vm520, %v517, %v519
      %v522 = vsel %vm520, %v519, %v517
      %s523 = scalar_lea.vmem %s3, 3
      %v524 = vld [vmem:[%s523] ss:$8 sm:$0x3]
      %v526 = vlaneseq
      %v527 = vshrl.u32 %v526, 7
      %v528 = vsub.s32 0, %v527
      %v529 = vrot.slane %v524, %v528
      %v530 = vlaneseq
      %v531 = vshrl.u32 %v530, 7
      %v532 = vsub.s32 1, %v531
      %v533 = vrot.slane %v524, %v532
      %v536 = vmul.f32 %v522, %v529
      %v537 = vmul.f32 %v521, %v533
      %538 = vrot.lane.b32.xlu0 %v445, 127
      %v539 = vpop.permute.xlu0 %538
      %540 = vrot.lane.b32.xlu0 %v446, 127
      %v541 = vpop.permute.xlu0 %540
      %vm542 = vcmp.lt.s32.totalorder %v454, 127
      %v543 = vsel %vm542, %v539, %v541
      %v544 = vsel %vm542, %v541, %v539
      %s545 = scalar_lea.vmem %s3, 5
      %v546 = vld [vmem:[%s545] ss:$8 sm:$0x3]
      %v548 = vlaneseq
      %v549 = vshrl.u32 %v548, 7
      %v550 = vsub.s32 0, %v549
      %v551 = vrot.slane %v546, %v550
      %v552 = vlaneseq
      %v553 = vshrl.u32 %v552, 7
      %v554 = vsub.s32 1, %v553
      %v555 = vrot.slane %v546, %v554
      %v558 = vmul.f32 %v543, %v551
      %v559 = vmul.f32 %v544, %v555
      %560 = vrot.lane.b32.xlu0 %v445, 113
      %v561 = vpop.permute.xlu0 %560
      %562 = vrot.lane.b32.xlu0 %v446, 113
      %v563 = vpop.permute.xlu0 %562
      %vm564 = vcmp.lt.s32.totalorder %v454, 113
      %v565 = vsel %vm564, %v561, %v563
      %v566 = vsel %vm564, %v563, %v561
      %s567 = scalar_lea.vmem %s3, 6
      %v568 = vld [vmem:[%s567] ss:$8 sm:$0x3]
      %v570 = vlaneseq
      %v571 = vshrl.u32 %v570, 7
      %v572 = vsub.s32 0, %v571
      %v573 = vrot.slane %v568, %v572
      %v574 = vlaneseq
      %v575 = vshrl.u32 %v574, 7
      %v576 = vsub.s32 1, %v575
      %v577 = vrot.slane %v568, %v576
      %v580 = vmul.f32 %v565, %v573
      %v581 = vmul.f32 %v566, %v577
      %582 = vrot.lane.b32.xlu0 %v445, 112
      %v583 = vpop.permute.xlu0 %582
      %584 = vrot.lane.b32.xlu0 %v446, 112
      %v585 = vpop.permute.xlu0 %584
      %vm586 = vcmp.lt.s32.totalorder %v454, 112
      %v587 = vsel %vm586, %v583, %v585
      %v588 = vsel %vm586, %v585, %v583
      %s589 = scalar_lea.vmem %s3, 7
      %v590 = vld [vmem:[%s589] ss:$8 sm:$0x3]
      %v592 = vlaneseq
      %v593 = vshrl.u32 %v592, 7
      %v594 = vsub.s32 0, %v593
      %v595 = vrot.slane %v590, %v594
      %v596 = vlaneseq
      %v597 = vshrl.u32 %v596, 7
      %v598 = vsub.s32 1, %v597
      %v599 = vrot.slane %v590, %v598
      %v602 = vmul.f32 %v587, %v595
      %v603 = vmul.f32 %v588, %v599
      %604 = vrot.lane.b32.xlu0 %v445, 111
      %v605 = vpop.permute.xlu0 %604
      %606 = vrot.lane.b32.xlu0 %v446, 111
      %v607 = vpop.permute.xlu0 %606
      %vm608 = vcmp.lt.s32.totalorder %v454, 111
      %v609 = vsel %vm608, %v605, %v607
      %v610 = vsel %vm608, %v607, %v605
      %s611 = scalar_lea.vmem %s3, 16
      %v612 = vld [vmem:[%s611] ss:$8 sm:$0x3]
      %v614 = vlaneseq
      %v615 = vshrl.u32 %v614, 7
      %v616 = vsub.s32 0, %v615
      %v617 = vrot.slane %v612, %v616
      %v618 = vlaneseq
      %v619 = vshrl.u32 %v618, 7
      %v620 = vsub.s32 1, %v619
      %v621 = vrot.slane %v612, %v620
      %v624 = vmul.f32 %v609, %v617
      %v625 = vmul.f32 %v610, %v621
      %v628 = vrot.slane %v492, 6
      %v629 = vrot.slane %v493, 6
      %v634 = vrot.slane %v514, 4
      %v635 = vrot.slane %v515, 4
      %v640 = vrot.slane %v536, 2
      %v641 = vrot.slane %v537, 2
      %v646 = vrot.slane %v558, 6
      %v647 = vrot.slane %v559, 6
      %v652 = vrot.slane %v580, 4
      %v653 = vrot.slane %v581, 4
      %v658 = vrot.slane %v602, 2
      %v659 = vrot.slane %v603, 2
      %vm662 = vcmask 1041408
      %v663 = vsel %vm662, %v470, %v628
      %v664 = vsel %vm662, %v471, %v629
      %vm665 = vcmask 1043456
      %v666 = vsel %vm665, %v663, %v634
      %v667 = vsel %vm665, %v664, %v635
      %vm668 = vcmask 1045504
      %v669 = vsel %vm668, %v666, %v640
      %v670 = vsel %vm668, %v667, %v641
      %v671 = vsel %vm662, %v445, %v646
      %v672 = vsel %vm662, %v446, %v647
      %v673 = vsel %vm665, %v671, %v652
      %v674 = vsel %vm665, %v672, %v653
      %v675 = vsel %vm668, %v673, %v658
      %v676 = vsel %vm668, %v674, %v659
      %v677 = vpack.c.bf16 %v675, %v669
      %v678 = vpack.c.bf16 %v676, %v670
      %v679 = vpack.c.bf16 %v624, %v624
      %v680 = vpack.c.bf16 %v625, %v625
      %v681 = vld [vmem:[%s4] sm:$0xf]
      %v682 = vld [vmem:[%s4 + $0x4] sm:$0xf]
      %v683 = vld [vmem:[%s4 + $0x8] sm:$0xf]
      %v684 = vld [vmem:[%s4 + $0xc] sm:$0xf]
      %v685 = vld [vmem:[%s5] sm:$0xff]
      %v686 = vld [vmem:[%s5 + $0x8] sm:$0xff]
      %v687 = vld [vmem:[%s5 + $0x10] sm:$0xff]
      %v688 = vld [vmem:[%s5 + $0x18] sm:$0xff]
      %690 = vset.pattern.permute.xlu0 0
      %691 = vperm.xlu0 %690, %v685
      %v692 = vpop.permute.xlu0 %691
      %695 = vset.pattern.permute.xlu0 0
      %696 = vperm.xlu0 %695, %v686
      %v697 = vpop.permute.xlu0 %696
      %700 = vset.pattern.permute.xlu0 0
      %701 = vperm.xlu0 %700, %v687
      %v702 = vpop.permute.xlu0 %701
      %705 = vset.pattern.permute.xlu0 0
      %706 = vperm.xlu0 %705, %v688
      %v707 = vpop.permute.xlu0 %706
      %v713 = vunpack.c.l.b16 %v681
      %v714 = vunpack.c.l.b16 %v682
      %v715 = vunpack.c.l.b16 %v683
      %v716 = vunpack.c.l.b16 %v684
      %v717 = vpack.c.b16 %v714, %v713
      %v718 = vpack.c.b16 %v716, %v715
      %vm719 = vcmask 146432
      %v721 = vsel %vm719, %v717, 0
      %v724 = vsel %vm719, %v718, 0
      %vm726 = vcmask 1040384
      %v728 = vsel %vm726, %v679, 0
      %v731 = vsel %vm726, %v680, 0
      %733 = vmatprep.subr.bf16.mxu0 %v678
      %734 = vmatpush1.bf16.msra.mxu0 %v677
      %735 = vmatprep.subr.bf16.mxu0 %v731
      %736 = vmatpush1.bf16.msra.mxu0 %v728
      %737 = vmatprep.subr.bf16.mxu0 0
      %738 = vmatpush1.bf16.msra.mxu0 0
      %739 = vmatprep.subr.bf16.mxu0 0
      %740 = vmatpush1.bf16.msra.mxu0 0
      %741 = vmatprep.subr.bf16.mxu0 0
      %742 = vmatpush1.bf16.msra.mxu0 0
      %743 = vmatprep.subr.bf16.mxu0 0
      %744 = vmatpush1.bf16.msra.mxu0 0
      %745 = vmatprep.subr.bf16.mxu0 0
      %746 = vmatpush1.bf16.msra.mxu0 0
      %747 = vmatprep.subr.bf16.mxu0 0
      %748 = vmatpush1.bf16.msra.mxu0 0
      %749 = vmatprep.subr.bf16.mxu0 0
      %750 = vmatpush1.bf16.msra.mxu0 0
      %751 = vmatprep.subr.bf16.mxu0 0
      %752 = vmatpush1.bf16.msra.mxu0 0
      %753 = vmatprep.subr.bf16.mxu0 0
      %754 = vmatpush1.bf16.msra.mxu0 0
      %755 = vmatprep.subr.bf16.mxu0 0
      %756 = vmatpush1.bf16.msra.mxu0 0
      %757 = vmatprep.subr.bf16.mxu0 0
      %758 = vmatpush1.bf16.msra.mxu0 0
      %759 = vmatprep.subr.bf16.mxu0 0
      %760 = vmatpush1.bf16.msra.mxu0 0
      %761 = vmatprep.subr.bf16.mxu0 0
      %762 = vmatpush1.bf16.msra.mxu0 0
      %763 = vmatprep.subr.bf16.mxu0 0
      %764 = vmatpush1.bf16.msra.mxu0 0
      %765 = vmatprep.mubr.bf16.mxu0 0
      %766 = vmatmul.mubr.bf16.gmra.mrb[0].mxu0 %v721
      %v767 = vpop.f32.mrb[0].mxu0
      %v768 = vadd.f32 %v692, %v767
      %v769 = vpop.f32.mrb[0].mxu0
      %v770 = vadd.f32 %v692, %v769
      %v771 = vpop.f32.mrb[0].mxu0
      %v772 = vadd.f32 %v697, %v771
      %v773 = vpop.f32.mrb[0].mxu0
      %v774 = vadd.f32 %v697, %v773
      %775 = vmatprep.mubr.bf16.mxu0 0
      %776 = vmatmul.mubr.bf16.gmra.mrb[0].mxu0 %v724
      %v777 = vpop.f32.mrb[0].mxu0
      %v778 = vadd.f32 %v702, %v777
      %v779 = vpop.f32.mrb[0].mxu0
      %v780 = vadd.f32 %v702, %v779
      %v781 = vpop.f32.mrb[0].mxu0
      %v782 = vadd.f32 %v707, %v781
      %v783 = vpop.f32.mrb[0].mxu0
      %v784 = vadd.f32 %v707, %v783
      %785 = vdwg.mxu0
      %v786 = vmax.f32 %v768, 0.0
      %v787 = vmax.f32 %v770, 0.0
      %v788 = vmax.f32 %v772, 0.0
      %v789 = vmax.f32 %v774, 0.0
      %v790 = vmax.f32 %v778, 0.0
      %v791 = vmax.f32 %v780, 0.0
      %v792 = vmax.f32 %v782, 0.0
      %v793 = vmax.f32 %v784, 0.0
      %794 = vrot.lane.b32.xlu0 %v786, 17
      %v795 = vpop.permute.xlu0 %794
      %796 = vrot.lane.b32.xlu0 %v788, 17
      %v797 = vpop.permute.xlu0 %796
      %798 = vrot.lane.b32.xlu0 %v790, 17
      %v799 = vpop.permute.xlu0 %798
      %800 = vrot.lane.b32.xlu0 %v792, 17
      %v801 = vpop.permute.xlu0 %800
      %802 = vrot.lane.b32.xlu0 %v787, 17
      %v803 = vpop.permute.xlu0 %802
      %804 = vrot.lane.b32.xlu0 %v789, 17
      %v805 = vpop.permute.xlu0 %804
      %806 = vrot.lane.b32.xlu0 %v791, 17
      %v807 = vpop.permute.xlu0 %806
      %808 = vrot.lane.b32.xlu0 %v793, 17
      %v809 = vpop.permute.xlu0 %808
      %v810 = vsel %vm455, %v795, %v803
      %v811 = vsel %vm455, %v797, %v805
      %v812 = vsel %vm455, %v799, %v807
      %v813 = vsel %vm455, %v801, %v809
      %v814 = vsel %vm455, %v803, %v795
      %v815 = vsel %vm455, %v805, %v797
      %v816 = vsel %vm455, %v807, %v799
      %v817 = vsel %vm455, %v809, %v801
      %v818 = vmul.f32 %v814, %v463
      %v819 = vmul.f32 %v810, %v467
      %v820 = vmul.f32 %v815, %v463
      %v821 = vmul.f32 %v811, %v467
      %v822 = vmul.f32 %v816, %v463
      %v823 = vmul.f32 %v812, %v467
      %v824 = vmul.f32 %v817, %v463
      %v825 = vmul.f32 %v813, %v467
      %826 = vrot.lane.b32.xlu0 %v786, 16
      %v827 = vpop.permute.xlu0 %826
      %828 = vrot.lane.b32.xlu0 %v788, 16
      %v829 = vpop.permute.xlu0 %828
      %830 = vrot.lane.b32.xlu0 %v790, 16
      %v831 = vpop.permute.xlu0 %830
      %832 = vrot.lane.b32.xlu0 %v792, 16
      %v833 = vpop.permute.xlu0 %832
      %834 = vrot.lane.b32.xlu0 %v787, 16
      %v835 = vpop.permute.xlu0 %834
      %836 = vrot.lane.b32.xlu0 %v789, 16
      %v837 = vpop.permute.xlu0 %836
      %838 = vrot.lane.b32.xlu0 %v791, 16
      %v839 = vpop.permute.xlu0 %838
      %840 = vrot.lane.b32.xlu0 %v793, 16
      %v841 = vpop.permute.xlu0 %840
      %v842 = vsel %vm476, %v827, %v835
      %v843 = vsel %vm476, %v829, %v837
      %v844 = vsel %vm476, %v831, %v839
      %v845 = vsel %vm476, %v833, %v841
      %v846 = vsel %vm476, %v835, %v827
      %v847 = vsel %vm476, %v837, %v829
      %v848 = vsel %vm476, %v839, %v831
      %v849 = vsel %vm476, %v841, %v833
      %v850 = vmul.f32 %v846, %v485
      %v851 = vmul.f32 %v842, %v489
      %v852 = vmul.f32 %v847, %v485
      %v853 = vmul.f32 %v843, %v489
      %v854 = vmul.f32 %v848, %v485
      %v855 = vmul.f32 %v844, %v489
      %v856 = vmul.f32 %v849, %v485
      %v857 = vmul.f32 %v845, %v489
      %858 = vrot.lane.b32.xlu0 %v786, 15
      %v859 = vpop.permute.xlu0 %858
      %860 = vrot.lane.b32.xlu0 %v788, 15
      %v861 = vpop.permute.xlu0 %860
      %862 = vrot.lane.b32.xlu0 %v790, 15
      %v863 = vpop.permute.xlu0 %862
      %864 = vrot.lane.b32.xlu0 %v792, 15
      %v865 = vpop.permute.xlu0 %864
      %866 = vrot.lane.b32.xlu0 %v787, 15
      %v867 = vpop.permute.xlu0 %866
      %868 = vrot.lane.b32.xlu0 %v789, 15
      %v869 = vpop.permute.xlu0 %868
      %870 = vrot.lane.b32.xlu0 %v791, 15
      %v871 = vpop.permute.xlu0 %870
      %872 = vrot.lane.b32.xlu0 %v793, 15
      %v873 = vpop.permute.xlu0 %872
      %v874 = vsel %vm498, %v859, %v867
      %v875 = vsel %vm498, %v861, %v869
      %v876 = vsel %vm498, %v863, %v871
      %v877 = vsel %vm498, %v865, %v873
      %v878 = vsel %vm498, %v867, %v859
      %v879 = vsel %vm498, %v869, %v861
      %v880 = vsel %vm498, %v871, %v863
      %v881 = vsel %vm498, %v873, %v865
      %v882 = vmul.f32 %v878, %v507
      %v883 = vmul.f32 %v874, %v511
      %v884 = vmul.f32 %v879, %v507
      %v885 = vmul.f32 %v875, %v511
      %v886 = vmul.f32 %v880, %v507
      %v887 = vmul.f32 %v876, %v511
      %v888 = vmul.f32 %v881, %v507
      %v889 = vmul.f32 %v877, %v511
      %890 = vrot.lane.b32.xlu0 %v786, 1
      %v891 = vpop.permute.xlu0 %890
      %892 = vrot.lane.b32.xlu0 %v788, 1
      %v893 = vpop.permute.xlu0 %892
      %894 = vrot.lane.b32.xlu0 %v790, 1
      %v895 = vpop.permute.xlu0 %894
      %896 = vrot.lane.b32.xlu0 %v792, 1
      %v897 = vpop.permute.xlu0 %896
      %898 = vrot.lane.b32.xlu0 %v787, 1
      %v899 = vpop.permute.xlu0 %898
      %900 = vrot.lane.b32.xlu0 %v789, 1
      %v901 = vpop.permute.xlu0 %900
      %902 = vrot.lane.b32.xlu0 %v791, 1
      %v903 = vpop.permute.xlu0 %902
      %904 = vrot.lane.b32.xlu0 %v793, 1
      %v905 = vpop.permute.xlu0 %904
      %v906 = vsel %vm520, %v891, %v899
      %v907 = vsel %vm520, %v893, %v901
      %v908 = vsel %vm520, %v895, %v903
      %v909 = vsel %vm520, %v897, %v905
      %v910 = vsel %vm520, %v899, %v891
      %v911 = vsel %vm520, %v901, %v893
      %v912 = vsel %vm520, %v903, %v895
      %v913 = vsel %vm520, %v905, %v897
      %v914 = vmul.f32 %v910, %v529
      %v915 = vmul.f32 %v906, %v533
      %v916 = vmul.f32 %v911, %v529
      %v917 = vmul.f32 %v907, %v533
      %v918 = vmul.f32 %v912, %v529
      %v919 = vmul.f32 %v908, %v533
      %v920 = vmul.f32 %v913, %v529
      %v921 = vmul.f32 %v909, %v533
      %922 = vrot.lane.b32.xlu0 %v786, 127
      %v923 = vpop.permute.xlu0 %922
      %924 = vrot.lane.b32.xlu0 %v788, 127
      %v925 = vpop.permute.xlu0 %924
      %926 = vrot.lane.b32.xlu0 %v790, 127
      %v927 = vpop.permute.xlu0 %926
      %928 = vrot.lane.b32.xlu0 %v792, 127
      %v929 = vpop.permute.xlu0 %928
      %930 = vrot.lane.b32.xlu0 %v787, 127
      %v931 = vpop.permute.xlu0 %930
      %932 = vrot.lane.b32.xlu0 %v789, 127
      %v933 = vpop.permute.xlu0 %932
      %934 = vrot.lane.b32.xlu0 %v791, 127
      %v935 = vpop.permute.xlu0 %934
      %936 = vrot.lane.b32.xlu0 %v793, 127
      %v937 = vpop.permute.xlu0 %936
      %v938 = vsel %vm542, %v923, %v931
      %v939 = vsel %vm542, %v925, %v933
      %v940 = vsel %vm542, %v927, %v935
      %v941 = vsel %vm542, %v929, %v937
      %v942 = vsel %vm542, %v931, %v923
      %v943 = vsel %vm542, %v933, %v925
      %v944 = vsel %vm542, %v935, %v927
      %v945 = vsel %vm542, %v937, %v929
      %v946 = vmul.f32 %v938, %v551
      %v947 = vmul.f32 %v942, %v555
      %v948 = vmul.f32 %v939, %v551
      %v949 = vmul.f32 %v943, %v555
      %v950 = vmul.f32 %v940, %v551
      %v951 = vmul.f32 %v944, %v555
      %v952 = vmul.f32 %v941, %v551
      %v953 = vmul.f32 %v945, %v555
      %954 = vrot.lane.b32.xlu0 %v786, 113
      %v955 = vpop.permute.xlu0 %954
      %956 = vrot.lane.b32.xlu0 %v788, 113
      %v957 = vpop.permute.xlu0 %956
      %958 = vrot.lane.b32.xlu0 %v790, 113
      %v959 = vpop.permute.xlu0 %958
      %960 = vrot.lane.b32.xlu0 %v792, 113
      %v961 = vpop.permute.xlu0 %960
      %962 = vrot.lane.b32.xlu0 %v787, 113
      %v963 = vpop.permute.xlu0 %962
      %964 = vrot.lane.b32.xlu0 %v789, 113
      %v965 = vpop.permute.xlu0 %964
      %966 = vrot.lane.b32.xlu0 %v791, 113
      %v967 = vpop.permute.xlu0 %966
      %968 = vrot.lane.b32.xlu0 %v793, 113
      %v969 = vpop.permute.xlu0 %968
      %v970 = vsel %vm564, %v955, %v963
      %v971 = vsel %vm564, %v957, %v965
      %v972 = vsel %vm564, %v959, %v967
      %v973 = vsel %vm564, %v961, %v969
      %v974 = vsel %vm564, %v963, %v955
      %v975 = vsel %vm564, %v965, %v957
      %v976 = vsel %vm564, %v967, %v959
      %v977 = vsel %vm564, %v969, %v961
      %v978 = vmul.f32 %v970, %v573
      %v979 = vmul.f32 %v974, %v577
      %v980 = vmul.f32 %v971, %v573
      %v981 = vmul.f32 %v975, %v577
      %v982 = vmul.f32 %v972, %v573
      %v983 = vmul.f32 %v976, %v577
      %v984 = vmul.f32 %v973, %v573
      %v985 = vmul.f32 %v977, %v577
      %986 = vrot.lane.b32.xlu0 %v786, 112
      %v987 = vpop.permute.xlu0 %986
      %988 = vrot.lane.b32.xlu0 %v788, 112
      %v989 = vpop.permute.xlu0 %988
      %990 = vrot.lane.b32.xlu0 %v790, 112
      %v991 = vpop.permute.xlu0 %990
      %992 = vrot.lane.b32.xlu0 %v792, 112
      %v993 = vpop.permute.xlu0 %992
      %994 = vrot.lane.b32.xlu0 %v787, 112
      %v995 = vpop.permute.xlu0 %994
      %996 = vrot.lane.b32.xlu0 %v789, 112
      %v997 = vpop.permute.xlu0 %996
      %998 = vrot.lane.b32.xlu0 %v791, 112
      %v999 = vpop.permute.xlu0 %998
      %1000 = vrot.lane.b32.xlu0 %v793, 112
      %v1001 = vpop.permute.xlu0 %1000
      %v1002 = vsel %vm586, %v987, %v995
      %v1003 = vsel %vm586, %v989, %v997
      %v1004 = vsel %vm586, %v991, %v999
      %v1005 = vsel %vm586, %v993, %v1001
      %v1006 = vsel %vm586, %v995, %v987
      %v1007 = vsel %vm586, %v997, %v989
      %v1008 = vsel %vm586, %v999, %v991
      %v1009 = vsel %vm586, %v1001, %v993
      %v1010 = vmul.f32 %v1002, %v595
      %v1011 = vmul.f32 %v1006, %v599
      %v1012 = vmul.f32 %v1003, %v595
      %v1013 = vmul.f32 %v1007, %v599
      %v1014 = vmul.f32 %v1004, %v595
      %v1015 = vmul.f32 %v1008, %v599
      %v1016 = vmul.f32 %v1005, %v595
      %v1017 = vmul.f32 %v1009, %v599
      %1018 = vrot.lane.b32.xlu0 %v786, 111
      %v1019 = vpop.permute.xlu0 %1018
      %1020 = vrot.lane.b32.xlu0 %v788, 111
      %v1021 = vpop.permute.xlu0 %1020
      %1022 = vrot.lane.b32.xlu0 %v790, 111
      %v1023 = vpop.permute.xlu0 %1022
      %1024 = vrot.lane.b32.xlu0 %v792, 111
      %v1025 = vpop.permute.xlu0 %1024
      %1026 = vrot.lane.b32.xlu0 %v787, 111
      %v1027 = vpop.permute.xlu0 %1026
      %1028 = vrot.lane.b32.xlu0 %v789, 111
      %v1029 = vpop.permute.xlu0 %1028
      %1030 = vrot.lane.b32.xlu0 %v791, 111
      %v1031 = vpop.permute.xlu0 %1030
      %1032 = vrot.lane.b32.xlu0 %v793, 111
      %v1033 = vpop.permute.xlu0 %1032
      %v1034 = vsel %vm608, %v1019, %v1027
      %v1035 = vsel %vm608, %v1021, %v1029
      %v1036 = vsel %vm608, %v1023, %v1031
      %v1037 = vsel %vm608, %v1025, %v1033
      %v1038 = vsel %vm608, %v1027, %v1019
      %v1039 = vsel %vm608, %v1029, %v1021
      %v1040 = vsel %vm608, %v1031, %v1023
      %v1041 = vsel %vm608, %v1033, %v1025
      %v1042 = vmul.f32 %v1034, %v617
      %v1043 = vmul.f32 %v1038, %v621
      %v1044 = vmul.f32 %v1035, %v617
      %v1045 = vmul.f32 %v1039, %v621
      %v1046 = vmul.f32 %v1036, %v617
      %v1047 = vmul.f32 %v1040, %v621
      %v1048 = vmul.f32 %v1037, %v617
      %v1049 = vmul.f32 %v1041, %v621
      %v1050 = vpack.c.bf16 %v820, %v818
      %v1051 = vpack.c.bf16 %v821, %v819
      %v1052 = vpack.c.bf16 %v824, %v822
      %v1053 = vpack.c.bf16 %v825, %v823
      %v1054 = vpack.c.bf16 %v852, %v850
      %v1055 = vpack.c.bf16 %v853, %v851
      %v1056 = vpack.c.bf16 %v856, %v854
      %v1057 = vpack.c.bf16 %v857, %v855
      %v1058 = vpack.c.bf16 %v884, %v882
      %v1059 = vpack.c.bf16 %v885, %v883
      %v1060 = vpack.c.bf16 %v888, %v886
      %v1061 = vpack.c.bf16 %v889, %v887
      %v1062 = vpack.c.bf16 %v916, %v914
      %v1063 = vpack.c.bf16 %v917, %v915
      %v1064 = vpack.c.bf16 %v920, %v918
      %v1065 = vpack.c.bf16 %v921, %v919
      %v1066 = vpack.c.bf16 %v788, %v786
      %v1067 = vpack.c.bf16 %v789, %v787
      %v1068 = vpack.c.bf16 %v792, %v790
      %v1069 = vpack.c.bf16 %v793, %v791
      %v1070 = vpack.c.bf16 %v948, %v946
      %v1071 = vpack.c.bf16 %v949, %v947
      %v1072 = vpack.c.bf16 %v952, %v950
      %v1073 = vpack.c.bf16 %v953, %v951
      %v1074 = vpack.c.bf16 %v980, %v978
      %v1075 = vpack.c.bf16 %v981, %v979
      %v1076 = vpack.c.bf16 %v984, %v982
      %v1077 = vpack.c.bf16 %v985, %v983
      %v1078 = vpack.c.bf16 %v1012, %v1010
      %v1079 = vpack.c.bf16 %v1013, %v1011
      %v1080 = vpack.c.bf16 %v1016, %v1014
      %v1081 = vpack.c.bf16 %v1017, %v1015
      %v1082 = vpack.c.bf16 %v1044, %v1042
      %v1083 = vpack.c.bf16 %v1045, %v1043
      %v1084 = vpack.c.bf16 %v1048, %v1046
      %v1085 = vpack.c.bf16 %v1049, %v1047
      %v1086 = vld [vmem:[%s6] sm:$0xff]
      %v1087 = vld [vmem:[%s6 + $0x8] sm:$0xf]
      %v1088 = vld [vmem:[%s6 + $0xc] sm:$0xff]
      %v1089 = vld [vmem:[%s6 + $0x14] sm:$0xf]
      %v1090 = vld [vmem:[%s6 + $0x18] sm:$0xff]
      %v1091 = vld [vmem:[%s6 + $0x20] sm:$0xf]
      %v1092 = vld [vmem:[%s6 + $0x24] sm:$0xff]
      %v1093 = vld [vmem:[%s6 + $0x2c] sm:$0xf]
      %v1094 = vld [vmem:[%s7] sm:$0xff]
      %v1095 = vld [vmem:[%s7 + $0x8] sm:$0xff]
      %v1096 = vld [vmem:[%s7 + $0x10] sm:$0xff]
      %v1097 = vld [vmem:[%s7 + $0x18] sm:$0xff]
      %1099 = vset.pattern.permute.xlu0 0
      %1100 = vperm.xlu0 %1099, %v1094
      %v1101 = vpop.permute.xlu0 %1100
      %1104 = vset.pattern.permute.xlu0 0
      %1105 = vperm.xlu0 %1104, %v1095
      %v1106 = vpop.permute.xlu0 %1105
      %1109 = vset.pattern.permute.xlu0 0
      %1110 = vperm.xlu0 %1109, %v1096
      %v1111 = vpop.permute.xlu0 %1110
      %1114 = vset.pattern.permute.xlu0 0
      %1115 = vperm.xlu0 %1114, %v1097
      %v1116 = vpop.permute.xlu0 %1115
      %v1126 = vunpack.c.l.b16 %v1086
      %v1127 = vunpack.c.h.b16 %v1086
      %v1128 = vunpack.c.l.b16 %v1087
      %v1129 = vunpack.c.l.b16 %v1088
      %v1130 = vunpack.c.h.b16 %v1088
      %v1131 = vunpack.c.l.b16 %v1089
      %v1132 = vunpack.c.l.b16 %v1090
      %v1133 = vunpack.c.h.b16 %v1090
      %v1134 = vunpack.c.l.b16 %v1091
      %v1135 = vunpack.c.l.b16 %v1092
      %v1136 = vunpack.c.h.b16 %v1092
      %v1137 = vunpack.c.l.b16 %v1093
      %v1138 = vpack.c.b16 %v1129, %v1126
      %v1139 = vpack.c.b16 %v1130, %v1127
      %v1140 = vpack.c.b16 %v1131, %v1128
      %v1141 = vpack.c.b16 %v1135, %v1132
      %v1142 = vpack.c.b16 %v1136, %v1133
      %v1143 = vpack.c.b16 %v1137, %v1134
      %vm1148 = vcmask 261120
      %v1150 = vsel %vm1148, %v1140, 0
      %v1153 = vsel %vm1148, %v1143, 0
      %1155 = vmatprep.subr.bf16.mxu0 %v1051
      %1156 = vmatpush1.bf16.msra.mxu0 %v1050
      %1157 = vmatprep.subr.bf16.mxu0 %v1053
      %1158 = vmatpush1.bf16.msra.mxu0 %v1052
      %1159 = vmatprep.subr.bf16.mxu0 %v1055
      %1160 = vmatpush1.bf16.msra.mxu0 %v1054
      %1161 = vmatprep.subr.bf16.mxu0 %v1057
      %1162 = vmatpush1.bf16.msra.mxu0 %v1056
      %1163 = vmatprep.subr.bf16.mxu0 %v1059
      %1164 = vmatpush1.bf16.msra.mxu0 %v1058
      %1165 = vmatprep.subr.bf16.mxu0 %v1061
      %1166 = vmatpush1.bf16.msra.mxu0 %v1060
      %1167 = vmatprep.subr.bf16.mxu0 %v1063
      %1168 = vmatpush1.bf16.msra.mxu0 %v1062
      %1169 = vmatprep.subr.bf16.mxu0 %v1065
      %1170 = vmatpush1.bf16.msra.mxu0 %v1064
      %1171 = vmatprep.subr.bf16.mxu0 %v1067
      %1172 = vmatpush1.bf16.msra.mxu0 %v1066
      %1173 = vmatprep.subr.bf16.mxu0 %v1069
      %1174 = vmatpush1.bf16.msra.mxu0 %v1068
      %1175 = vmatprep.subr.bf16.mxu0 %v1071
      %1176 = vmatpush1.bf16.msra.mxu0 %v1070
      %1177 = vmatprep.subr.bf16.mxu0 %v1073
      %1178 = vmatpush1.bf16.msra.mxu0 %v1072
      %1179 = vmatprep.subr.bf16.mxu0 %v1075
      %1180 = vmatpush1.bf16.msra.mxu0 %v1074
      %1181 = vmatprep.subr.bf16.mxu0 %v1077
      %1182 = vmatpush1.bf16.msra.mxu0 %v1076
      %1183 = vmatprep.subr.bf16.mxu0 %v1079
      %1184 = vmatpush1.bf16.msra.mxu0 %v1078
      %1185 = vmatprep.subr.bf16.mxu0 %v1081
      %1186 = vmatpush1.bf16.msra.mxu0 %v1080
      %1187 = vmatprep.mubr.bf16.mxu0 %v1139
      %1188 = vmatmul.mubr.bf16.gmra.mrb[0].mxu0 %v1138
      %v1189 = vpop.f32.mrb[0].mxu0
      %v1190 = vadd.f32 %v1101, %v1189
      %v1191 = vpop.f32.mrb[0].mxu0
      %v1192 = vadd.f32 %v1101, %v1191
      %v1193 = vpop.f32.mrb[0].mxu0
      %v1194 = vadd.f32 %v1106, %v1193
      %v1195 = vpop.f32.mrb[0].mxu0
      %v1196 = vadd.f32 %v1106, %v1195
      %1197 = vmatprep.mubr.bf16.mxu0 %v1142
      %1198 = vmatmul.mubr.bf16.gmra.mrb[0].mxu0 %v1141
      %v1199 = vpop.f32.mrb[0].mxu0
      %v1200 = vadd.f32 %v1111, %v1199
      %v1201 = vpop.f32.mrb[0].mxu0
      %v1202 = vadd.f32 %v1111, %v1201
      %v1203 = vpop.f32.mrb[0].mxu0
      %v1204 = vadd.f32 %v1116, %v1203
      %v1205 = vpop.f32.mrb[0].mxu0
      %v1206 = vadd.f32 %v1116, %v1205
      %1207 = vdwg.mxu0
      %1208 = vmatprep.subr.bf16.mxu0 %v1083
      %1209 = vmatpush1.bf16.msra.mxu0 %v1082
      %1210 = vmatprep.subr.bf16.mxu0 %v1085
      %1211 = vmatpush1.bf16.msra.mxu0 %v1084
      %1212 = vmatprep.subr.bf16.mxu0 0
      %1213 = vmatpush1.bf16.msra.mxu0 0
      %1214 = vmatprep.subr.bf16.mxu0 0
      %1215 = vmatpush1.bf16.msra.mxu0 0
      %1216 = vmatprep.subr.bf16.mxu0 0
      %1217 = vmatpush1.bf16.msra.mxu0 0
      %1218 = vmatprep.subr.bf16.mxu0 0
      %1219 = vmatpush1.bf16.msra.mxu0 0
      %1220 = vmatprep.subr.bf16.mxu0 0
      %1221 = vmatpush1.bf16.msra.mxu0 0
      %1222 = vmatprep.subr.bf16.mxu0 0
      %1223 = vmatpush1.bf16.msra.mxu0 0
      %1224 = vmatprep.subr.bf16.mxu0 0
      %1225 = vmatpush1.bf16.msra.mxu0 0
      %1226 = vmatprep.subr.bf16.mxu0 0
      %1227 = vmatpush1.bf16.msra.mxu0 0
      %1228 = vmatprep.subr.bf16.mxu0 0
      %1229 = vmatpush1.bf16.msra.mxu0 0
      %1230 = vmatprep.subr.bf16.mxu0 0
      %1231 = vmatpush1.bf16.msra.mxu0 0
      %1232 = vmatprep.subr.bf16.mxu0 0
      %1233 = vmatpush1.bf16.msra.mxu0 0
      %1234 = vmatprep.subr.bf16.mxu0 0
      %1235 = vmatpush1.bf16.msra.mxu0 0
      %1236 = vmatprep.subr.bf16.mxu0 0
      %1237 = vmatpush1.bf16.msra.mxu0 0
      %1238 = vmatprep.subr.bf16.mxu0 0
      %1239 = vmatpush1.bf16.msra.mxu0 0
      %1240 = vmatprep.mubr.bf16.mxu0 0
      %1241 = vmatmul.mubr.bf16.gmra.mrb[0].mxu0 %v1150
      %v1242 = vpop.f32.mrb[0].mxu0
      %v1243 = vadd.f32 %v1190, %v1242
      %v1244 = vpop.f32.mrb[0].mxu0
      %v1245 = vadd.f32 %v1192, %v1244
      %v1246 = vpop.f32.mrb[0].mxu0
      %v1247 = vadd.f32 %v1194, %v1246
      %v1248 = vpop.f32.mrb[0].mxu0
      %v1249 = vadd.f32 %v1196, %v1248
      %1250 = vmatprep.mubr.bf16.mxu0 0
      %1251 = vmatmul.mubr.bf16.gmra.mrb[0].mxu0 %v1153
      %v1252 = vpop.f32.mrb[0].mxu0
      %v1253 = vadd.f32 %v1200, %v1252
      %v1254 = vpop.f32.mrb[0].mxu0
      %v1255 = vadd.f32 %v1202, %v1254
      %v1256 = vpop.f32.mrb[0].mxu0
      %v1257 = vadd.f32 %v1204, %v1256
      %v1258 = vpop.f32.mrb[0].mxu0
      %v1259 = vadd.f32 %v1206, %v1258
      %1260 = vdwg.mxu0
      %v1261 = vmax.f32 %v1243, 0.0
      %v1262 = vmax.f32 %v1245, 0.0
      %v1263 = vmax.f32 %v1247, 0.0
      %v1264 = vmax.f32 %v1249, 0.0
      %v1265 = vmax.f32 %v1253, 0.0
      %v1266 = vmax.f32 %v1255, 0.0
      %v1267 = vmax.f32 %v1257, 0.0
      %v1268 = vmax.f32 %v1259, 0.0
      %1269 = vrot.lane.b32.xlu0 %v1261, 17
      %v1270 = vpop.permute.xlu0 %1269
      %1271 = vrot.lane.b32.xlu0 %v1263, 17
      %v1272 = vpop.permute.xlu0 %1271
      %1273 = vrot.lane.b32.xlu0 %v1265, 17
      %v1274 = vpop.permute.xlu0 %1273
      %1275 = vrot.lane.b32.xlu0 %v1267, 17
      %v1276 = vpop.permute.xlu0 %1275
      %1277 = vrot.lane.b32.xlu0 %v1262, 17
      %v1278 = vpop.permute.xlu0 %1277
      %1279 = vrot.lane.b32.xlu0 %v1264, 17
      %v1280 = vpop.permute.xlu0 %1279
      %1281 = vrot.lane.b32.xlu0 %v1266, 17
      %v1282 = vpop.permute.xlu0 %1281
      %1283 = vrot.lane.b32.xlu0 %v1268, 17
      %v1284 = vpop.permute.xlu0 %1283
      %v1285 = vsel %vm455, %v1270, %v1278
      %v1286 = vsel %vm455, %v1272, %v1280
      %v1287 = vsel %vm455, %v1274, %v1282
      %v1288 = vsel %vm455, %v1276, %v1284
      %v1289 = vsel %vm455, %v1278, %v1270
      %v1290 = vsel %vm455, %v1280, %v1272
      %v1291 = vsel %vm455, %v1282, %v1274
      %v1292 = vsel %vm455, %v1284, %v1276
      %v1293 = vmul.f32 %v1289, %v463
      %v1294 = vmul.f32 %v1285, %v467
      %v1295 = vmul.f32 %v1290, %v463
      %v1296 = vmul.f32 %v1286, %v467
      %v1297 = vmul.f32 %v1291, %v463
      %v1298 = vmul.f32 %v1287, %v467
      %v1299 = vmul.f32 %v1292, %v463
      %v1300 = vmul.f32 %v1288, %v467
      %1301 = vrot.lane.b32.xlu0 %v1261, 16
      %v1302 = vpop.permute.xlu0 %1301
      %1303 = vrot.lane.b32.xlu0 %v1263, 16
      %v1304 = vpop.permute.xlu0 %1303
      %1305 = vrot.lane.b32.xlu0 %v1265, 16
      %v1306 = vpop.permute.xlu0 %1305
      %1307 = vrot.lane.b32.xlu0 %v1267, 16
      %v1308 = vpop.permute.xlu0 %1307
      %1309 = vrot.lane.b32.xlu0 %v1262, 16
      %v1310 = vpop.permute.xlu0 %1309
      %1311 = vrot.lane.b32.xlu0 %v1264, 16
      %v1312 = vpop.permute.xlu0 %1311
      %1313 = vrot.lane.b32.xlu0 %v1266, 16
      %v1314 = vpop.permute.xlu0 %1313
      %1315 = vrot.lane.b32.xlu0 %v1268, 16
      %v1316 = vpop.permute.xlu0 %1315
      %v1317 = vsel %vm476, %v1302, %v1310
      %v1318 = vsel %vm476, %v1304, %v1312
      %v1319 = vsel %vm476, %v1306, %v1314
      %v1320 = vsel %vm476, %v1308, %v1316
      %v1321 = vsel %vm476, %v1310, %v1302
      %v1322 = vsel %vm476, %v1312, %v1304
      %v1323 = vsel %vm476, %v1314, %v1306
      %v1324 = vsel %vm476, %v1316, %v1308
      %v1325 = vmul.f32 %v1321, %v485
      %v1326 = vmul.f32 %v1317, %v489
      %v1327 = vmul.f32 %v1322, %v485
      %v1328 = vmul.f32 %v1318, %v489
      %v1329 = vmul.f32 %v1323, %v485
      %v1330 = vmul.f32 %v1319, %v489
      %v1331 = vmul.f32 %v1324, %v485
      %v1332 = vmul.f32 %v1320, %v489
      %1333 = vrot.lane.b32.xlu0 %v1261, 15
      %v1334 = vpop.permute.xlu0 %1333
      %1335 = vrot.lane.b32.xlu0 %v1263, 15
      %v1336 = vpop.permute.xlu0 %1335
      %1337 = vrot.lane.b32.xlu0 %v1265, 15
      %v1338 = vpop.permute.xlu0 %1337
      %1339 = vrot.lane.b32.xlu0 %v1267, 15
      %v1340 = vpop.permute.xlu0 %1339
      %1341 = vrot.lane.b32.xlu0 %v1262, 15
      %v1342 = vpop.permute.xlu0 %1341
      %1343 = vrot.lane.b32.xlu0 %v1264, 15
      %v1344 = vpop.permute.xlu0 %1343
      %1345 = vrot.lane.b32.xlu0 %v1266, 15
      %v1346 = vpop.permute.xlu0 %1345
      %1347 = vrot.lane.b32.xlu0 %v1268, 15
      %v1348 = vpop.permute.xlu0 %1347
      %v1349 = vsel %vm498, %v1334, %v1342
      %v1350 = vsel %vm498, %v1336, %v1344
      %v1351 = vsel %vm498, %v1338, %v1346
      %v1352 = vsel %vm498, %v1340, %v1348
      %v1353 = vsel %vm498, %v1342, %v1334
      %v1354 = vsel %vm498, %v1344, %v1336
      %v1355 = vsel %vm498, %v1346, %v1338
      %v1356 = vsel %vm498, %v1348, %v1340
      %v1357 = vmul.f32 %v1353, %v507
      %v1358 = vmul.f32 %v1349, %v511
      %v1359 = vmul.f32 %v1354, %v507
      %v1360 = vmul.f32 %v1350, %v511
      %v1361 = vmul.f32 %v1355, %v507
      %v1362 = vmul.f32 %v1351, %v511
      %v1363 = vmul.f32 %v1356, %v507
      %v1364 = vmul.f32 %v1352, %v511
      %1365 = vrot.lane.b32.xlu0 %v1261, 1
      %v1366 = vpop.permute.xlu0 %1365
      %1367 = vrot.lane.b32.xlu0 %v1263, 1
      %v1368 = vpop.permute.xlu0 %1367
      %1369 = vrot.lane.b32.xlu0 %v1265, 1
      %v1370 = vpop.permute.xlu0 %1369
      %1371 = vrot.lane.b32.xlu0 %v1267, 1
      %v1372 = vpop.permute.xlu0 %1371
      %1373 = vrot.lane.b32.xlu0 %v1262, 1
      %v1374 = vpop.permute.xlu0 %1373
      %1375 = vrot.lane.b32.xlu0 %v1264, 1
      %v1376 = vpop.permute.xlu0 %1375
      %1377 = vrot.lane.b32.xlu0 %v1266, 1
      %v1378 = vpop.permute.xlu0 %1377
      %1379 = vrot.lane.b32.xlu0 %v1268, 1
      %v1380 = vpop.permute.xlu0 %1379
      %v1381 = vsel %vm520, %v1366, %v1374
      %v1382 = vsel %vm520, %v1368, %v1376
      %v1383 = vsel %vm520, %v1370, %v1378
      %v1384 = vsel %vm520, %v1372, %v1380
      %v1385 = vsel %vm520, %v1374, %v1366
      %v1386 = vsel %vm520, %v1376, %v1368
      %v1387 = vsel %vm520, %v1378, %v1370
      %v1388 = vsel %vm520, %v1380, %v1372
      %v1389 = vmul.f32 %v1385, %v529
      %v1390 = vmul.f32 %v1381, %v533
      %v1391 = vmul.f32 %v1386, %v529
      %v1392 = vmul.f32 %v1382, %v533
      %v1393 = vmul.f32 %v1387, %v529
      %v1394 = vmul.f32 %v1383, %v533
      %v1395 = vmul.f32 %v1388, %v529
      %v1396 = vmul.f32 %v1384, %v533
      %1397 = vrot.lane.b32.xlu0 %v1261, 127
      %v1398 = vpop.permute.xlu0 %1397
      %1399 = vrot.lane.b32.xlu0 %v1263, 127
      %v1400 = vpop.permute.xlu0 %1399
      %1401 = vrot.lane.b32.xlu0 %v1265, 127
      %v1402 = vpop.permute.xlu0 %1401
      %1403 = vrot.lane.b32.xlu0 %v1267, 127
      %v1404 = vpop.permute.xlu0 %1403
      %1405 = vrot.lane.b32.xlu0 %v1262, 127
      %v1406 = vpop.permute.xlu0 %1405
      %1407 = vrot.lane.b32.xlu0 %v1264, 127
      %v1408 = vpop.permute.xlu0 %1407
      %1409 = vrot.lane.b32.xlu0 %v1266, 127
      %v1410 = vpop.permute.xlu0 %1409
      %1411 = vrot.lane.b32.xlu0 %v1268, 127
      %v1412 = vpop.permute.xlu0 %1411
      %v1413 = vsel %vm542, %v1398, %v1406
      %v1414 = vsel %vm542, %v1400, %v1408
      %v1415 = vsel %vm542, %v1402, %v1410
      %v1416 = vsel %vm542, %v1404, %v1412
      %v1417 = vsel %vm542, %v1406, %v1398
      %v1418 = vsel %vm542, %v1408, %v1400
      %v1419 = vsel %vm542, %v1410, %v1402
      %v1420 = vsel %vm542, %v1412, %v1404
      %v1421 = vmul.f32 %v1413, %v551
      %v1422 = vmul.f32 %v1417, %v555
      %v1423 = vmul.f32 %v1414, %v551
      %v1424 = vmul.f32 %v1418, %v555
      %v1425 = vmul.f32 %v1415, %v551
      %v1426 = vmul.f32 %v1419, %v555
      %v1427 = vmul.f32 %v1416, %v551
      %v1428 = vmul.f32 %v1420, %v555
      %1429 = vrot.lane.b32.xlu0 %v1261, 113
      %v1430 = vpop.permute.xlu0 %1429
      %1431 = vrot.lane.b32.xlu0 %v1263, 113
      %v1432 = vpop.permute.xlu0 %1431
      %1433 = vrot.lane.b32.xlu0 %v1265, 113
      %v1434 = vpop.permute.xlu0 %1433
      %1435 = vrot.lane.b32.xlu0 %v1267, 113
      %v1436 = vpop.permute.xlu0 %1435
      %1437 = vrot.lane.b32.xlu0 %v1262, 113
      %v1438 = vpop.permute.xlu0 %1437
      %1439 = vrot.lane.b32.xlu0 %v1264, 113
      %v1440 = vpop.permute.xlu0 %1439
      %1441 = vrot.lane.b32.xlu0 %v1266, 113
      %v1442 = vpop.permute.xlu0 %1441
      %1443 = vrot.lane.b32.xlu0 %v1268, 113
      %v1444 = vpop.permute.xlu0 %1443
      %v1445 = vsel %vm564, %v1430, %v1438
      %v1446 = vsel %vm564, %v1432, %v1440
      %v1447 = vsel %vm564, %v1434, %v1442
      %v1448 = vsel %vm564, %v1436, %v1444
      %v1449 = vsel %vm564, %v1438, %v1430
      %v1450 = vsel %vm564, %v1440, %v1432
      %v1451 = vsel %vm564, %v1442, %v1434
      %v1452 = vsel %vm564, %v1444, %v1436
      %v1453 = vmul.f32 %v1445, %v573
      %v1454 = vmul.f32 %v1449, %v577
      %v1455 = vmul.f32 %v1446, %v573
      %v1456 = vmul.f32 %v1450, %v577
      %v1457 = vmul.f32 %v1447, %v573
      %v1458 = vmul.f32 %v1451, %v577
      %v1459 = vmul.f32 %v1448, %v573
      %v1460 = vmul.f32 %v1452, %v577
      %1461 = vrot.lane.b32.xlu0 %v1261, 112
      %v1462 = vpop.permute.xlu0 %1461
      %1463 = vrot.lane.b32.xlu0 %v1263, 112
      %v1464 = vpop.permute.xlu0 %1463
      %1465 = vrot.lane.b32.xlu0 %v1265, 112
      %v1466 = vpop.permute.xlu0 %1465
      %1467 = vrot.lane.b32.xlu0 %v1267, 112
      %v1468 = vpop.permute.xlu0 %1467
      %1469 = vrot.lane.b32.xlu0 %v1262, 112
      %v1470 = vpop.permute.xlu0 %1469
      %1471 = vrot.lane.b32.xlu0 %v1264, 112
      %v1472 = vpop.permute.xlu0 %1471
      %1473 = vrot.lane.b32.xlu0 %v1266, 112
      %v1474 = vpop.permute.xlu0 %1473
      %1475 = vrot.lane.b32.xlu0 %v1268, 112
      %v1476 = vpop.permute.xlu0 %1475
      %v1477 = vsel %vm586, %v1462, %v1470
      %v1478 = vsel %vm586, %v1464, %v1472
      %v1479 = vsel %vm586, %v1466, %v1474
      %v1480 = vsel %vm586, %v1468, %v1476
      %v1481 = vsel %vm586, %v1470, %v1462
      %v1482 = vsel %vm586, %v1472, %v1464
      %v1483 = vsel %vm586, %v1474, %v1466
      %v1484 = vsel %vm586, %v1476, %v1468
      %v1485 = vmul.f32 %v1477, %v595
      %v1486 = vmul.f32 %v1481, %v599
      %v1487 = vmul.f32 %v1478, %v595
      %v1488 = vmul.f32 %v1482, %v599
      %v1489 = vmul.f32 %v1479, %v595
      %v1490 = vmul.f32 %v1483, %v599
      %v1491 = vmul.f32 %v1480, %v595
      %v1492 = vmul.f32 %v1484, %v599
      %1493 = vrot.lane.b32.xlu0 %v1261, 111
      %v1494 = vpop.permute.xlu0 %1493
      %1495 = vrot.lane.b32.xlu0 %v1263, 111
      %v1496 = vpop.permute.xlu0 %1495
      %1497 = vrot.lane.b32.xlu0 %v1265, 111
      %v1498 = vpop.permute.xlu0 %1497
      %1499 = vrot.lane.b32.xlu0 %v1267, 111
      %v1500 = vpop.permute.xlu0 %1499
      %1501 = vrot.lane.b32.xlu0 %v1262, 111
      %v1502 = vpop.permute.xlu0 %1501
      %1503 = vrot.lane.b32.xlu0 %v1264, 111
      %v1504 = vpop.permute.xlu0 %1503
      %1505 = vrot.lane.b32.xlu0 %v1266, 111
      %v1506 = vpop.permute.xlu0 %1505
      %1507 = vrot.lane.b32.xlu0 %v1268, 111
      %v1508 = vpop.permute.xlu0 %1507
      %v1509 = vsel %vm608, %v1494, %v1502
      %v1510 = vsel %vm608, %v1496, %v1504
      %v1511 = vsel %vm608, %v1498, %v1506
      %v1512 = vsel %vm608, %v1500, %v1508
      %v1513 = vsel %vm608, %v1502, %v1494
      %v1514 = vsel %vm608, %v1504, %v1496
      %v1515 = vsel %vm608, %v1506, %v1498
      %v1516 = vsel %vm608, %v1508, %v1500
      %v1517 = vmul.f32 %v1509, %v617
      %v1518 = vmul.f32 %v1513, %v621
      %v1519 = vmul.f32 %v1510, %v617
      %v1520 = vmul.f32 %v1514, %v621
      %v1521 = vmul.f32 %v1511, %v617
      %v1522 = vmul.f32 %v1515, %v621
      %v1523 = vmul.f32 %v1512, %v617
      %v1524 = vmul.f32 %v1516, %v621
      %v1525 = vpack.c.bf16 %v1295, %v1293
      %v1526 = vpack.c.bf16 %v1296, %v1294
      %v1527 = vpack.c.bf16 %v1299, %v1297
      %v1528 = vpack.c.bf16 %v1300, %v1298
      %v1529 = vpack.c.bf16 %v1327, %v1325
      %v1530 = vpack.c.bf16 %v1328, %v1326
      %v1531 = vpack.c.bf16 %v1331, %v1329
      %v1532 = vpack.c.bf16 %v1332, %v1330
      %v1533 = vpack.c.bf16 %v1359, %v1357
      %v1534 = vpack.c.bf16 %v1360, %v1358
      %v1535 = vpack.c.bf16 %v1363, %v1361
      %v1536 = vpack.c.bf16 %v1364, %v1362
      %v1537 = vpack.c.bf16 %v1391, %v1389
      %v1538 = vpack.c.bf16 %v1392, %v1390
      %v1539 = vpack.c.bf16 %v1395, %v1393
      %v1540 = vpack.c.bf16 %v1396, %v1394
      %v1541 = vpack.c.bf16 %v1263, %v1261
      %v1542 = vpack.c.bf16 %v1264, %v1262
      %v1543 = vpack.c.bf16 %v1267, %v1265
      %v1544 = vpack.c.bf16 %v1268, %v1266
      %v1545 = vpack.c.bf16 %v1423, %v1421
      %v1546 = vpack.c.bf16 %v1424, %v1422
      %v1547 = vpack.c.bf16 %v1427, %v1425
      %v1548 = vpack.c.bf16 %v1428, %v1426
      %v1549 = vpack.c.bf16 %v1455, %v1453
      %v1550 = vpack.c.bf16 %v1456, %v1454
      %v1551 = vpack.c.bf16 %v1459, %v1457
      %v1552 = vpack.c.bf16 %v1460, %v1458
      %v1553 = vpack.c.bf16 %v1487, %v1485
      %v1554 = vpack.c.bf16 %v1488, %v1486
      %v1555 = vpack.c.bf16 %v1491, %v1489
      %v1556 = vpack.c.bf16 %v1492, %v1490
      %v1557 = vpack.c.bf16 %v1519, %v1517
      %v1558 = vpack.c.bf16 %v1520, %v1518
      %v1559 = vpack.c.bf16 %v1523, %v1521
      %v1560 = vpack.c.bf16 %v1524, %v1522
      %v1561 = vld [vmem:[%s8] sm:$0xff]
      %v1562 = vld [vmem:[%s8 + $0x8] sm:$0xf]
      %v1563 = vld [vmem:[%s8 + $0xc] sm:$0xff]
      %v1564 = vld [vmem:[%s8 + $0x14] sm:$0xf]
      %v1565 = vld [vmem:[%s8 + $0x18] sm:$0xff]
      %v1566 = vld [vmem:[%s8 + $0x20] sm:$0xf]
      %v1567 = vld [vmem:[%s8 + $0x24] sm:$0xff]
      %v1568 = vld [vmem:[%s8 + $0x2c] sm:$0xf]
      %v1569 = vld [vmem:[%s9] sm:$0xff]
      %v1570 = vld [vmem:[%s9 + $0x8] sm:$0xff]
      %v1571 = vld [vmem:[%s9 + $0x10] sm:$0xff]
      %v1572 = vld [vmem:[%s9 + $0x18] sm:$0xff]
      %1574 = vset.pattern.permute.xlu0 0
      %1575 = vperm.xlu0 %1574, %v1569
      %v1576 = vpop.permute.xlu0 %1575
      %1579 = vset.pattern.permute.xlu0 0
      %1580 = vperm.xlu0 %1579, %v1570
      %v1581 = vpop.permute.xlu0 %1580
      %1584 = vset.pattern.permute.xlu0 0
      %1585 = vperm.xlu0 %1584, %v1571
      %v1586 = vpop.permute.xlu0 %1585
      %1589 = vset.pattern.permute.xlu0 0
      %1590 = vperm.xlu0 %1589, %v1572
      %v1591 = vpop.permute.xlu0 %1590
      %v1601 = vunpack.c.l.b16 %v1561
      %v1602 = vunpack.c.h.b16 %v1561
      %v1603 = vunpack.c.l.b16 %v1562
      %v1604 = vunpack.c.l.b16 %v1563
      %v1605 = vunpack.c.h.b16 %v1563
      %v1606 = vunpack.c.l.b16 %v1564
      %v1607 = vunpack.c.l.b16 %v1565
      %v1608 = vunpack.c.h.b16 %v1565
      %v1609 = vunpack.c.l.b16 %v1566
      %v1610 = vunpack.c.l.b16 %v1567
      %v1611 = vunpack.c.h.b16 %v1567
      %v1612 = vunpack.c.l.b16 %v1568
      %v1613 = vpack.c.b16 %v1604, %v1601
      %v1614 = vpack.c.b16 %v1605, %v1602
      %v1615 = vpack.c.b16 %v1606, %v1603
      %v1616 = vpack.c.b16 %v1610, %v1607
      %v1617 = vpack.c.b16 %v1611, %v1608
      %v1618 = vpack.c.b16 %v1612, %v1609
      %v1624 = vsel %vm1148, %v1615, 0
      %v1627 = vsel %vm1148, %v1618, 0
      %1629 = vmatprep.subr.bf16.mxu0 %v1526
      %1630 = vmatpush1.bf16.msra.mxu0 %v1525
      %1631 = vmatprep.subr.bf16.mxu0 %v1528
      %1632 = vmatpush1.bf16.msra.mxu0 %v1527
      %1633 = vmatprep.subr.bf16.mxu0 %v1530
      %1634 = vmatpush1.bf16.msra.mxu0 %v1529
      %1635 = vmatprep.subr.bf16.mxu0 %v1532
      %1636 = vmatpush1.bf16.msra.mxu0 %v1531
      %1637 = vmatprep.subr.bf16.mxu0 %v1534
      %1638 = vmatpush1.bf16.msra.mxu0 %v1533
      %1639 = vmatprep.subr.bf16.mxu0 %v1536
      %1640 = vmatpush1.bf16.msra.mxu0 %v1535
      %1641 = vmatprep.subr.bf16.mxu0 %v1538
      %1642 = vmatpush1.bf16.msra.mxu0 %v1537
      %1643 = vmatprep.subr.bf16.mxu0 %v1540
      %1644 = vmatpush1.bf16.msra.mxu0 %v1539
      %1645 = vmatprep.subr.bf16.mxu0 %v1542
      %1646 = vmatpush1.bf16.msra.mxu0 %v1541
      %1647 = vmatprep.subr.bf16.mxu0 %v1544
      %1648 = vmatpush1.bf16.msra.mxu0 %v1543
      %1649 = vmatprep.subr.bf16.mxu0 %v1546
      %1650 = vmatpush1.bf16.msra.mxu0 %v1545
      %1651 = vmatprep.subr.bf16.mxu0 %v1548
      %1652 = vmatpush1.bf16.msra.mxu0 %v1547
      %1653 = vmatprep.subr.bf16.mxu0 %v1550
      %1654 = vmatpush1.bf16.msra.mxu0 %v1549
      %1655 = vmatprep.subr.bf16.mxu0 %v1552
      %1656 = vmatpush1.bf16.msra.mxu0 %v1551
      %1657 = vmatprep.subr.bf16.mxu0 %v1554
      %1658 = vmatpush1.bf16.msra.mxu0 %v1553
      %1659 = vmatprep.subr.bf16.mxu0 %v1556
      %1660 = vmatpush1.bf16.msra.mxu0 %v1555
      %1661 = vmatprep.mubr.bf16.mxu0 %v1614
      %1662 = vmatmul.mubr.bf16.gmra.mrb[0].mxu0 %v1613
      %v1663 = vpop.f32.mrb[0].mxu0
      %v1664 = vadd.f32 %v1576, %v1663
      %v1665 = vpop.f32.mrb[0].mxu0
      %v1666 = vadd.f32 %v1576, %v1665
      %v1667 = vpop.f32.mrb[0].mxu0
      %v1668 = vadd.f32 %v1581, %v1667
      %v1669 = vpop.f32.mrb[0].mxu0
      %v1670 = vadd.f32 %v1581, %v1669
      %1671 = vmatprep.mubr.bf16.mxu0 %v1617
      %1672 = vmatmul.mubr.bf16.gmra.mrb[0].mxu0 %v1616
      %v1673 = vpop.f32.mrb[0].mxu0
      %v1674 = vadd.f32 %v1586, %v1673
      %v1675 = vpop.f32.mrb[0].mxu0
      %v1676 = vadd.f32 %v1586, %v1675
      %v1677 = vpop.f32.mrb[0].mxu0
      %v1678 = vadd.f32 %v1591, %v1677
      %v1679 = vpop.f32.mrb[0].mxu0
      %v1680 = vadd.f32 %v1591, %v1679
      %1681 = vdwg.mxu0
      %1682 = vmatprep.subr.bf16.mxu0 %v1558
      %1683 = vmatpush1.bf16.msra.mxu0 %v1557
      %1684 = vmatprep.subr.bf16.mxu0 %v1560
      %1685 = vmatpush1.bf16.msra.mxu0 %v1559
      %1686 = vmatprep.subr.bf16.mxu0 0
      %1687 = vmatpush1.bf16.msra.mxu0 0
      %1688 = vmatprep.subr.bf16.mxu0 0
      %1689 = vmatpush1.bf16.msra.mxu0 0
      %1690 = vmatprep.subr.bf16.mxu0 0
      %1691 = vmatpush1.bf16.msra.mxu0 0
      %1692 = vmatprep.subr.bf16.mxu0 0
      %1693 = vmatpush1.bf16.msra.mxu0 0
      %1694 = vmatprep.subr.bf16.mxu0 0
      %1695 = vmatpush1.bf16.msra.mxu0 0
      %1696 = vmatprep.subr.bf16.mxu0 0
      %1697 = vmatpush1.bf16.msra.mxu0 0
      %1698 = vmatprep.subr.bf16.mxu0 0
      %1699 = vmatpush1.bf16.msra.mxu0 0
      %1700 = vmatprep.subr.bf16.mxu0 0
      %1701 = vmatpush1.bf16.msra.mxu0 0
      %1702 = vmatprep.subr.bf16.mxu0 0
      %1703 = vmatpush1.bf16.msra.mxu0 0
      %1704 = vmatprep.subr.bf16.mxu0 0
      %1705 = vmatpush1.bf16.msra.mxu0 0
      %1706 = vmatprep.subr.bf16.mxu0 0
      %1707 = vmatpush1.bf16.msra.mxu0 0
      %1708 = vmatprep.subr.bf16.mxu0 0
      %1709 = vmatpush1.bf16.msra.mxu0 0
      %1710 = vmatprep.subr.bf16.mxu0 0
      %1711 = vmatpush1.bf16.msra.mxu0 0
      %1712 = vmatprep.subr.bf16.mxu0 0
      %1713 = vmatpush1.bf16.msra.mxu0 0
      %1714 = vmatprep.mubr.bf16.mxu0 0
      %1715 = vmatmul.mubr.bf16.gmra.mrb[0].mxu0 %v1624
      %v1716 = vpop.f32.mrb[0].mxu0
      %v1717 = vadd.f32 %v1664, %v1716
      %v1718 = vpop.f32.mrb[0].mxu0
      %v1719 = vadd.f32 %v1666, %v1718
      %v1720 = vpop.f32.mrb[0].mxu0
      %v1721 = vadd.f32 %v1668, %v1720
      %v1722 = vpop.f32.mrb[0].mxu0
      %v1723 = vadd.f32 %v1670, %v1722
      %1724 = vmatprep.mubr.bf16.mxu0 0
      %1725 = vmatmul.mubr.bf16.gmra.mrb[0].mxu0 %v1627
      %v1726 = vpop.f32.mrb[0].mxu0
      %v1727 = vadd.f32 %v1674, %v1726
      %v1728 = vpop.f32.mrb[0].mxu0
      %v1729 = vadd.f32 %v1676, %v1728
      %v1730 = vpop.f32.mrb[0].mxu0
      %v1731 = vadd.f32 %v1678, %v1730
      %v1732 = vpop.f32.mrb[0].mxu0
      %v1733 = vadd.f32 %v1680, %v1732
      %1734 = vdwg.mxu0
      %v1735 = vmax.f32 %v1717, 0.0
      %v1736 = vmax.f32 %v1719, 0.0
      %v1737 = vmax.f32 %v1721, 0.0
      %v1738 = vmax.f32 %v1723, 0.0
      %v1739 = vmax.f32 %v1727, 0.0
      %v1740 = vmax.f32 %v1729, 0.0
      %v1741 = vmax.f32 %v1731, 0.0
      %v1742 = vmax.f32 %v1733, 0.0
      %1743 = vrot.lane.b32.xlu0 %v1735, 17
      %v1744 = vpop.permute.xlu0 %1743
      %1745 = vrot.lane.b32.xlu0 %v1737, 17
      %v1746 = vpop.permute.xlu0 %1745
      %1747 = vrot.lane.b32.xlu0 %v1739, 17
      %v1748 = vpop.permute.xlu0 %1747
      %1749 = vrot.lane.b32.xlu0 %v1741, 17
      %v1750 = vpop.permute.xlu0 %1749
      %1751 = vrot.lane.b32.xlu0 %v1736, 17
      %v1752 = vpop.permute.xlu0 %1751
      %1753 = vrot.lane.b32.xlu0 %v1738, 17
      %v1754 = vpop.permute.xlu0 %1753
      %1755 = vrot.lane.b32.xlu0 %v1740, 17
      %v1756 = vpop.permute.xlu0 %1755
      %1757 = vrot.lane.b32.xlu0 %v1742, 17
      %v1758 = vpop.permute.xlu0 %1757
      %v1759 = vsel %vm455, %v1744, %v1752
      %v1760 = vsel %vm455, %v1746, %v1754
      %v1761 = vsel %vm455, %v1748, %v1756
      %v1762 = vsel %vm455, %v1750, %v1758
      %v1763 = vsel %vm455, %v1752, %v1744
      %v1764 = vsel %vm455, %v1754, %v1746
      %v1765 = vsel %vm455, %v1756, %v1748
      %v1766 = vsel %vm455, %v1758, %v1750
      %v1767 = vmul.f32 %v1763, %v463
      %v1768 = vmul.f32 %v1759, %v467
      %v1769 = vmul.f32 %v1764, %v463
      %v1770 = vmul.f32 %v1760, %v467
      %v1771 = vmul.f32 %v1765, %v463
      %v1772 = vmul.f32 %v1761, %v467
      %v1773 = vmul.f32 %v1766, %v463
      %v1774 = vmul.f32 %v1762, %v467
      %1775 = vrot.lane.b32.xlu0 %v1735, 16
      %v1776 = vpop.permute.xlu0 %1775
      %1777 = vrot.lane.b32.xlu0 %v1737, 16
      %v1778 = vpop.permute.xlu0 %1777
      %1779 = vrot.lane.b32.xlu0 %v1739, 16
      %v1780 = vpop.permute.xlu0 %1779
      %1781 = vrot.lane.b32.xlu0 %v1741, 16
      %v1782 = vpop.permute.xlu0 %1781
      %1783 = vrot.lane.b32.xlu0 %v1736, 16
      %v1784 = vpop.permute.xlu0 %1783
      %1785 = vrot.lane.b32.xlu0 %v1738, 16
      %v1786 = vpop.permute.xlu0 %1785
      %1787 = vrot.lane.b32.xlu0 %v1740, 16
      %v1788 = vpop.permute.xlu0 %1787
      %1789 = vrot.lane.b32.xlu0 %v1742, 16
      %v1790 = vpop.permute.xlu0 %1789
      %v1791 = vsel %vm476, %v1776, %v1784
      %v1792 = vsel %vm476, %v1778, %v1786
      %v1793 = vsel %vm476, %v1780, %v1788
      %v1794 = vsel %vm476, %v1782, %v1790
      %v1795 = vsel %vm476, %v1784, %v1776
      %v1796 = vsel %vm476, %v1786, %v1778
      %v1797 = vsel %vm476, %v1788, %v1780
      %v1798 = vsel %vm476, %v1790, %v1782
      %v1799 = vmul.f32 %v1795, %v485
      %v1800 = vmul.f32 %v1791, %v489
      %v1801 = vmul.f32 %v1796, %v485
      %v1802 = vmul.f32 %v1792, %v489
      %v1803 = vmul.f32 %v1797, %v485
      %v1804 = vmul.f32 %v1793, %v489
      %v1805 = vmul.f32 %v1798, %v485
      %v1806 = vmul.f32 %v1794, %v489
      %1807 = vrot.lane.b32.xlu0 %v1735, 15
      %v1808 = vpop.permute.xlu0 %1807
      %1809 = vrot.lane.b32.xlu0 %v1737, 15
      %v1810 = vpop.permute.xlu0 %1809
      %1811 = vrot.lane.b32.xlu0 %v1739, 15
      %v1812 = vpop.permute.xlu0 %1811
      %1813 = vrot.lane.b32.xlu0 %v1741, 15
      %v1814 = vpop.permute.xlu0 %1813
      %1815 = vrot.lane.b32.xlu0 %v1736, 15
      %v1816 = vpop.permute.xlu0 %1815
      %1817 = vrot.lane.b32.xlu0 %v1738, 15
      %v1818 = vpop.permute.xlu0 %1817
      %1819 = vrot.lane.b32.xlu0 %v1740, 15
      %v1820 = vpop.permute.xlu0 %1819
      %1821 = vrot.lane.b32.xlu0 %v1742, 15
      %v1822 = vpop.permute.xlu0 %1821
      %v1823 = vsel %vm498, %v1808, %v1816
      %v1824 = vsel %vm498, %v1810, %v1818
      %v1825 = vsel %vm498, %v1812, %v1820
      %v1826 = vsel %vm498, %v1814, %v1822
      %v1827 = vsel %vm498, %v1816, %v1808
      %v1828 = vsel %vm498, %v1818, %v1810
      %v1829 = vsel %vm498, %v1820, %v1812
      %v1830 = vsel %vm498, %v1822, %v1814
      %v1831 = vmul.f32 %v1827, %v507
      %v1832 = vmul.f32 %v1823, %v511
      %v1833 = vmul.f32 %v1828, %v507
      %v1834 = vmul.f32 %v1824, %v511
      %v1835 = vmul.f32 %v1829, %v507
      %v1836 = vmul.f32 %v1825, %v511
      %v1837 = vmul.f32 %v1830, %v507
      %v1838 = vmul.f32 %v1826, %v511
      %1839 = vrot.lane.b32.xlu0 %v1735, 1
      %v1840 = vpop.permute.xlu0 %1839
      %1841 = vrot.lane.b32.xlu0 %v1737, 1
      %v1842 = vpop.permute.xlu0 %1841
      %1843 = vrot.lane.b32.xlu0 %v1739, 1
      %v1844 = vpop.permute.xlu0 %1843
      %1845 = vrot.lane.b32.xlu0 %v1741, 1
      %v1846 = vpop.permute.xlu0 %1845
      %1847 = vrot.lane.b32.xlu0 %v1736, 1
      %v1848 = vpop.permute.xlu0 %1847
      %1849 = vrot.lane.b32.xlu0 %v1738, 1
      %v1850 = vpop.permute.xlu0 %1849
      %1851 = vrot.lane.b32.xlu0 %v1740, 1
      %v1852 = vpop.permute.xlu0 %1851
      %1853 = vrot.lane.b32.xlu0 %v1742, 1
      %v1854 = vpop.permute.xlu0 %1853
      %v1855 = vsel %vm520, %v1840, %v1848
      %v1856 = vsel %vm520, %v1842, %v1850
      %v1857 = vsel %vm520, %v1844, %v1852
      %v1858 = vsel %vm520, %v1846, %v1854
      %v1859 = vsel %vm520, %v1848, %v1840
      %v1860 = vsel %vm520, %v1850, %v1842
      %v1861 = vsel %vm520, %v1852, %v1844
      %v1862 = vsel %vm520, %v1854, %v1846
      %v1863 = vmul.f32 %v1859, %v529
      %v1864 = vmul.f32 %v1855, %v533
      %v1865 = vmul.f32 %v1860, %v529
      %v1866 = vmul.f32 %v1856, %v533
      %v1867 = vmul.f32 %v1861, %v529
      %v1868 = vmul.f32 %v1857, %v533
      %v1869 = vmul.f32 %v1862, %v529
      %v1870 = vmul.f32 %v1858, %v533
      %1871 = vrot.lane.b32.xlu0 %v1735, 127
      %v1872 = vpop.permute.xlu0 %1871
      %1873 = vrot.lane.b32.xlu0 %v1737, 127
      %v1874 = vpop.permute.xlu0 %1873
      %1875 = vrot.lane.b32.xlu0 %v1739, 127
      %v1876 = vpop.permute.xlu0 %1875
      %1877 = vrot.lane.b32.xlu0 %v1741, 127
      %v1878 = vpop.permute.xlu0 %1877
      %1879 = vrot.lane.b32.xlu0 %v1736, 127
      %v1880 = vpop.permute.xlu0 %1879
      %1881 = vrot.lane.b32.xlu0 %v1738, 127
      %v1882 = vpop.permute.xlu0 %1881
      %1883 = vrot.lane.b32.xlu0 %v1740, 127
      %v1884 = vpop.permute.xlu0 %1883
      %1885 = vrot.lane.b32.xlu0 %v1742, 127
      %v1886 = vpop.permute.xlu0 %1885
      %v1887 = vsel %vm542, %v1872, %v1880
      %v1888 = vsel %vm542, %v1874, %v1882
      %v1889 = vsel %vm542, %v1876, %v1884
      %v1890 = vsel %vm542, %v1878, %v1886
      %v1891 = vsel %vm542, %v1880, %v1872
      %v1892 = vsel %vm542, %v1882, %v1874
      %v1893 = vsel %vm542, %v1884, %v1876
      %v1894 = vsel %vm542, %v1886, %v1878
      %v1895 = vmul.f32 %v1887, %v551
      %v1896 = vmul.f32 %v1891, %v555
      %v1897 = vmul.f32 %v1888, %v551
      %v1898 = vmul.f32 %v1892, %v555
      %v1899 = vmul.f32 %v1889, %v551
      %v1900 = vmul.f32 %v1893, %v555
      %v1901 = vmul.f32 %v1890, %v551
      %v1902 = vmul.f32 %v1894, %v555
      %1903 = vrot.lane.b32.xlu0 %v1735, 113
      %v1904 = vpop.permute.xlu0 %1903
      %1905 = vrot.lane.b32.xlu0 %v1737, 113
      %v1906 = vpop.permute.xlu0 %1905
      %1907 = vrot.lane.b32.xlu0 %v1739, 113
      %v1908 = vpop.permute.xlu0 %1907
      %1909 = vrot.lane.b32.xlu0 %v1741, 113
      %v1910 = vpop.permute.xlu0 %1909
      %1911 = vrot.lane.b32.xlu0 %v1736, 113
      %v1912 = vpop.permute.xlu0 %1911
      %1913 = vrot.lane.b32.xlu0 %v1738, 113
      %v1914 = vpop.permute.xlu0 %1913
      %1915 = vrot.lane.b32.xlu0 %v1740, 113
      %v1916 = vpop.permute.xlu0 %1915
      %1917 = vrot.lane.b32.xlu0 %v1742, 113
      %v1918 = vpop.permute.xlu0 %1917
      %v1919 = vsel %vm564, %v1904, %v1912
      %v1920 = vsel %vm564, %v1906, %v1914
      %v1921 = vsel %vm564, %v1908, %v1916
      %v1922 = vsel %vm564, %v1910, %v1918
      %v1923 = vsel %vm564, %v1912, %v1904
      %v1924 = vsel %vm564, %v1914, %v1906
      %v1925 = vsel %vm564, %v1916, %v1908
      %v1926 = vsel %vm564, %v1918, %v1910
      %v1927 = vmul.f32 %v1919, %v573
      %v1928 = vmul.f32 %v1923, %v577
      %v1929 = vmul.f32 %v1920, %v573
      %v1930 = vmul.f32 %v1924, %v577
      %v1931 = vmul.f32 %v1921, %v573
      %v1932 = vmul.f32 %v1925, %v577
      %v1933 = vmul.f32 %v1922, %v573
      %v1934 = vmul.f32 %v1926, %v577
      %1935 = vrot.lane.b32.xlu0 %v1735, 112
      %v1936 = vpop.permute.xlu0 %1935
      %1937 = vrot.lane.b32.xlu0 %v1737, 112
      %v1938 = vpop.permute.xlu0 %1937
      %1939 = vrot.lane.b32.xlu0 %v1739, 112
      %v1940 = vpop.permute.xlu0 %1939
      %1941 = vrot.lane.b32.xlu0 %v1741, 112
      %v1942 = vpop.permute.xlu0 %1941
      %1943 = vrot.lane.b32.xlu0 %v1736, 112
      %v1944 = vpop.permute.xlu0 %1943
      %1945 = vrot.lane.b32.xlu0 %v1738, 112
      %v1946 = vpop.permute.xlu0 %1945
      %1947 = vrot.lane.b32.xlu0 %v1740, 112
      %v1948 = vpop.permute.xlu0 %1947
      %1949 = vrot.lane.b32.xlu0 %v1742, 112
      %v1950 = vpop.permute.xlu0 %1949
      %v1951 = vsel %vm586, %v1936, %v1944
      %v1952 = vsel %vm586, %v1938, %v1946
      %v1953 = vsel %vm586, %v1940, %v1948
      %v1954 = vsel %vm586, %v1942, %v1950
      %v1955 = vsel %vm586, %v1944, %v1936
      %v1956 = vsel %vm586, %v1946, %v1938
      %v1957 = vsel %vm586, %v1948, %v1940
      %v1958 = vsel %vm586, %v1950, %v1942
      %v1959 = vmul.f32 %v1951, %v595
      %v1960 = vmul.f32 %v1955, %v599
      %v1961 = vmul.f32 %v1952, %v595
      %v1962 = vmul.f32 %v1956, %v599
      %v1963 = vmul.f32 %v1953, %v595
      %v1964 = vmul.f32 %v1957, %v599
      %v1965 = vmul.f32 %v1954, %v595
      %v1966 = vmul.f32 %v1958, %v599
      %1967 = vrot.lane.b32.xlu0 %v1735, 111
      %v1968 = vpop.permute.xlu0 %1967
      %1969 = vrot.lane.b32.xlu0 %v1737, 111
      %v1970 = vpop.permute.xlu0 %1969
      %1971 = vrot.lane.b32.xlu0 %v1739, 111
      %v1972 = vpop.permute.xlu0 %1971
      %1973 = vrot.lane.b32.xlu0 %v1741, 111
      %v1974 = vpop.permute.xlu0 %1973
      %1975 = vrot.lane.b32.xlu0 %v1736, 111
      %v1976 = vpop.permute.xlu0 %1975
      %1977 = vrot.lane.b32.xlu0 %v1738, 111
      %v1978 = vpop.permute.xlu0 %1977
      %1979 = vrot.lane.b32.xlu0 %v1740, 111
      %v1980 = vpop.permute.xlu0 %1979
      %1981 = vrot.lane.b32.xlu0 %v1742, 111
      %v1982 = vpop.permute.xlu0 %1981
      %v1983 = vsel %vm608, %v1968, %v1976
      %v1984 = vsel %vm608, %v1970, %v1978
      %v1985 = vsel %vm608, %v1972, %v1980
      %v1986 = vsel %vm608, %v1974, %v1982
      %v1987 = vsel %vm608, %v1976, %v1968
      %v1988 = vsel %vm608, %v1978, %v1970
      %v1989 = vsel %vm608, %v1980, %v1972
      %v1990 = vsel %vm608, %v1982, %v1974
      %v1991 = vmul.f32 %v1983, %v617
      %v1992 = vmul.f32 %v1987, %v621
      %v1993 = vmul.f32 %v1984, %v617
      %v1994 = vmul.f32 %v1988, %v621
      %v1995 = vmul.f32 %v1985, %v617
      %v1996 = vmul.f32 %v1989, %v621
      %v1997 = vmul.f32 %v1986, %v617
      %v1998 = vmul.f32 %v1990, %v621
      %v1999 = vpack.c.bf16 %v1769, %v1767
      %v2000 = vpack.c.bf16 %v1770, %v1768
      %v2001 = vpack.c.bf16 %v1773, %v1771
      %v2002 = vpack.c.bf16 %v1774, %v1772
      %v2003 = vpack.c.bf16 %v1801, %v1799
      %v2004 = vpack.c.bf16 %v1802, %v1800
      %v2005 = vpack.c.bf16 %v1805, %v1803
      %v2006 = vpack.c.bf16 %v1806, %v1804
      %v2007 = vpack.c.bf16 %v1833, %v1831
      %v2008 = vpack.c.bf16 %v1834, %v1832
      %v2009 = vpack.c.bf16 %v1837, %v1835
      %v2010 = vpack.c.bf16 %v1838, %v1836
      %v2011 = vpack.c.bf16 %v1865, %v1863
      %v2012 = vpack.c.bf16 %v1866, %v1864
      %v2013 = vpack.c.bf16 %v1869, %v1867
      %v2014 = vpack.c.bf16 %v1870, %v1868
      %v2015 = vpack.c.bf16 %v1737, %v1735
      %v2016 = vpack.c.bf16 %v1738, %v1736
      %v2017 = vpack.c.bf16 %v1741, %v1739
      %v2018 = vpack.c.bf16 %v1742, %v1740
      %v2019 = vpack.c.bf16 %v1897, %v1895
      %v2020 = vpack.c.bf16 %v1898, %v1896
      %v2021 = vpack.c.bf16 %v1901, %v1899
      %v2022 = vpack.c.bf16 %v1902, %v1900
      %v2023 = vpack.c.bf16 %v1929, %v1927
      %v2024 = vpack.c.bf16 %v1930, %v1928
      %v2025 = vpack.c.bf16 %v1933, %v1931
      %v2026 = vpack.c.bf16 %v1934, %v1932
      %v2027 = vpack.c.bf16 %v1961, %v1959
      %v2028 = vpack.c.bf16 %v1962, %v1960
      %v2029 = vpack.c.bf16 %v1965, %v1963
      %v2030 = vpack.c.bf16 %v1966, %v1964
      %v2031 = vpack.c.bf16 %v1993, %v1991
      %v2032 = vpack.c.bf16 %v1994, %v1992
      %v2033 = vpack.c.bf16 %v1997, %v1995
      %v2034 = vpack.c.bf16 %v1998, %v1996
      %v2035 = vld [vmem:[%s10] sm:$0x7]
      %v2036 = vld [vmem:[%s11] sm:$0x3]
      %2038 = vset.pattern.permute.xlu0 0
      %2039 = vperm.xlu0 %2038, %v2036
      %v2040 = vpop.permute.xlu0 %2039
      %v2044 = vunpack.c.l.s4 1966171168
      %v2045 = vunpack.c.0.s8 %v2044
      %v2046 = vlaneseq
      %v2047 = vshrl.u32 %v2046, 7
      %v2048 = vsub.s32 %v2045, %v2047
      %v2049 = vrot.slane %v2035, %v2048
      %v2050 = vcombine.high %v2049, %v2049
      %v2052 = vunpack.c.l.s4 1966171168
      %v2053 = vunpack.c.0.s8 %v2052
      %v2054 = vlaneseq
      %v2055 = vshrl.u32 %v2054, 7
      %v2056 = vsub.s32 %v2053, %v2055
      %v2057 = vrot.slane %v2049, %v2056
      %v2059 = vunpack.c.l.s4 1966171168
      %v2060 = vunpack.c.0.s8 %v2059
      %v2061 = vlaneseq
      %v2062 = vshrl.u32 %v2061, 7
      %v2063 = vsub.s32 %v2060, %v2062
      %v2064 = vrot.slane %v2050, %v2063
      %v2065 = vcombine.high %v2057, %v2057
      %v2069 = vsel %vm1148, %v2065, 0
      %2071 = vmatprep.subr.bf16.mxu0 %v2000
      %2072 = vmatpush1.bf16.msra.mxu0 %v1999
      %2073 = vmatprep.subr.bf16.mxu0 %v2002
      %2074 = vmatpush1.bf16.msra.mxu0 %v2001
      %2075 = vmatprep.subr.bf16.mxu0 %v2004
      %2076 = vmatpush1.bf16.msra.mxu0 %v2003
      %2077 = vmatprep.subr.bf16.mxu0 %v2006
      %2078 = vmatpush1.bf16.msra.mxu0 %v2005
      %2079 = vmatprep.subr.bf16.mxu0 %v2008
      %2080 = vmatpush1.bf16.msra.mxu0 %v2007
      %2081 = vmatprep.subr.bf16.mxu0 %v2010
      %2082 = vmatpush1.bf16.msra.mxu0 %v2009
      %2083 = vmatprep.subr.bf16.mxu0 %v2012
      %2084 = vmatpush1.bf16.msra.mxu0 %v2011
      %2085 = vmatprep.subr.bf16.mxu0 %v2014
      %2086 = vmatpush1.bf16.msra.mxu0 %v2013
      %2087 = vmatprep.subr.bf16.mxu0 %v2016
      %2088 = vmatpush1.bf16.msra.mxu0 %v2015
      %2089 = vmatprep.subr.bf16.mxu0 %v2018
      %2090 = vmatpush1.bf16.msra.mxu0 %v2017
      %2091 = vmatprep.subr.bf16.mxu0 %v2020
      %2092 = vmatpush1.bf16.msra.mxu0 %v2019
      %2093 = vmatprep.subr.bf16.mxu0 %v2022
      %2094 = vmatpush1.bf16.msra.mxu0 %v2021
      %2095 = vmatprep.subr.bf16.mxu0 %v2024
      %2096 = vmatpush1.bf16.msra.mxu0 %v2023
      %2097 = vmatprep.subr.bf16.mxu0 %v2026
      %2098 = vmatpush1.bf16.msra.mxu0 %v2025
      %2099 = vmatprep.subr.bf16.mxu0 %v2028
      %2100 = vmatpush1.bf16.msra.mxu0 %v2027
      %2101 = vmatprep.subr.bf16.mxu0 %v2030
      %2102 = vmatpush1.bf16.msra.mxu0 %v2029
      %2103 = vmatprep.mubr.bf16.mxu0 %v2064
      %2104 = vmatmul.mubr.bf16.gmra.mrb[0].mxu0 %v2057
      %v2105 = vpop.f32.mrb[0].mxu0
      %v2106 = vadd.f32 %v2040, %v2105
      %v2107 = vpop.f32.mrb[0].mxu0
      %v2108 = vadd.f32 %v2040, %v2107
      %v2109 = vpop.f32.mrb[0].mxu0
      %v2110 = vpop.f32.mrb[0].mxu0
      %2111 = vdwg.mxu0
      %2112 = vmatprep.subr.bf16.mxu0 %v2032
      %2113 = vmatpush1.bf16.msra.mxu0 %v2031
      %2114 = vmatprep.subr.bf16.mxu0 %v2034
      %2115 = vmatpush1.bf16.msra.mxu0 %v2033
      %2116 = vmatprep.subr.bf16.mxu0 0
      %2117 = vmatpush1.bf16.msra.mxu0 0
      %2118 = vmatprep.subr.bf16.mxu0 0
      %2119 = vmatpush1.bf16.msra.mxu0 0
      %2120 = vmatprep.subr.bf16.mxu0 0
      %2121 = vmatpush1.bf16.msra.mxu0 0
      %2122 = vmatprep.subr.bf16.mxu0 0
      %2123 = vmatpush1.bf16.msra.mxu0 0
      %2124 = vmatprep.subr.bf16.mxu0 0
      %2125 = vmatpush1.bf16.msra.mxu0 0
      %2126 = vmatprep.subr.bf16.mxu0 0
      %2127 = vmatpush1.bf16.msra.mxu0 0
      %2128 = vmatprep.subr.bf16.mxu0 0
      %2129 = vmatpush1.bf16.msra.mxu0 0
      %2130 = vmatprep.subr.bf16.mxu0 0
      %2131 = vmatpush1.bf16.msra.mxu0 0
      %2132 = vmatprep.subr.bf16.mxu0 0
      %2133 = vmatpush1.bf16.msra.mxu0 0
      %2134 = vmatprep.subr.bf16.mxu0 0
      %2135 = vmatpush1.bf16.msra.mxu0 0
      %2136 = vmatprep.subr.bf16.mxu0 0
      %2137 = vmatpush1.bf16.msra.mxu0 0
      %2138 = vmatprep.subr.bf16.mxu0 0
      %2139 = vmatpush1.bf16.msra.mxu0 0
      %2140 = vmatprep.subr.bf16.mxu0 0
      %2141 = vmatpush1.bf16.msra.mxu0 0
      %2142 = vmatprep.subr.bf16.mxu0 0
      %2143 = vmatpush1.bf16.msra.mxu0 0
      %2144 = vmatprep.mubr.bf16.mxu0 0
      %2145 = vmatmul.mubr.bf16.gmra.mrb[0].mxu0 %v2069
      %v2146 = vpop.f32.mrb[0].mxu0
      %v2147 = vadd.f32 %v2106, %v2146
      %v2148 = vpop.f32.mrb[0].mxu0
      %v2149 = vadd.f32 %v2108, %v2148
      %v2150 = vpop.f32.mrb[0].mxu0
      %v2151 = vpop.f32.mrb[0].mxu0
      %2152 = vdwg.mxu0
      %v2153 = vld [vmem:[%s429] sm:$0xf]
      %v2154 = vstv %s436
      %v2155 = vmul.f32 %v2154, %v2147
      %v2156 = vmul.f32 %v2154, %v2149
      %v2159 = vcombine.low %v2155, %v2156
      %v2161 = vunpack.c.l.s4 1983009808
      %v2162 = vunpack.c.0.s8 %v2161
      %v2163 = vlaneseq
      %v2164 = vshrl.u32 %v2163, 7
      %v2165 = vsub.s32 %v2162, %v2164
      %v2166 = vrot.slane %v2159, %v2165
      %v2168 = vadd.f32 %v2153, %v2166
      %2169 = vst [vmem:[%s434] sm:$0xf] %v2168
      %p2170 = scmp.lt.s32.totalorder %s24, 1
      %s2171 = scalar_select %p2170, %s24, 1
      %s2172 = smul.addr %s2171, 2
      %s2173 = smul.addr %s2172, 2
      %s2174 = scalar_lea.vmem %s12, %s2173
      // Predicated region
      $region69: #{modl_forward.4} parent=67 // pred_check
        %p2175 = pneg %p304
      $region70: #{modl_forward.4} parent=67 // pred_check_branch
        %2177 = sbr.rel (%p2175) target = $region72
      $region71: #{modl_forward.4} parent=67 // pred_region
        _
      $region72: #{modl_forward.4} parent=67 // pred_fallthru
        _
    $region68: #{modl_forward.4} parent=5 // pred_fallthru
      _
    %p2178 = scmp.le.s32.totalorder 2, %s19
    // Predicated region
    $region73: #{modl_forward.4} parent=5 // pred_check
      %p2179 = pneg %p2178
    $region74: #{modl_forward.4} parent=5 // pred_check_branch
      %2181 = sbr.rel (%p2179) target = $region76
    $region75: #{modl_forward.4} parent=5 // pred_region
      %s2182 = ssub.s32 %s19, 2
      // Predicated region
      $region77: #{modl_forward.4} parent=75 // pred_check
        %p2183 = pneg %p310
      $region78: #{modl_forward.4} parent=75 // pred_check_branch
        %2185 = sbr.rel (%p2183) target = $region80
      $region79: #{modl_forward.4} parent=75 // pred_region
        %p2186 = scmp.lt.s32.totalorder %s25, 1
        %s2187 = scalar_select %p2186, %s25, 1
        %s2188 = smul.addr %s2187, 2
        %s2189 = smul.addr %s2188, 2
        %s2190 = scalar_lea.vmem %s12, %s2189
      $region80: #{modl_forward.4} parent=75 // pred_fallthru
        _
    $region76: #{modl_forward.4} parent=5 // pred_fallthru
      _
  $region6: #{modl_forward.4} parent=0 // loop_footer
    %s23 = sadd.s32 1, %s19
  $region7: #{modl_forward.4} parent=0 // loop_footer_branch
    %18 = sbr.rel target = $region3
  $region8: #{modl_forward.4} parent=0 // loop_exit
    _

// kernel: modl_forward.5
$region0: #{modl_forward.5}
  #allocation0 [shape = 'u32[]', space=smem, size = 0x4, offset = 0x4, fixed_abs, tag = 'smem constant byte address 0x4 - core index']
  #allocation1 [shape = 'u32[144,128]{1,0:T(1,128)}', space=vmem, size = 0x12000, scoped, tag = 'internal scratch']
  #allocation2 [shape = 'f32[1]{0:T(128)S(6)}', space=smem, size = 0x200, scoped, tag = 'scoped memory for modl_forward.5']
  %s0 = inlined_call_operand.<no memory space> [shape: f32[1], index: 0, kind: input, shape index: {}]
  %s1 = inlined_call_operand.vmem [shape: f32[2,2,16,16], index: 1, kind: input, shape index: {}]
  %s2 = inlined_call_operand.vmem [shape: f32[2,4,16,16], index: 2, kind: input, shape index: {}]
  %s3 = inlined_call_operand.vmem [shape: f32[2,4,16,16], index: 3, kind: input, shape index: {}]
  %s4 = inlined_call_operand.vmem [shape: f32[2,16,16], index: 4, kind: input, shape index: {}]
  %s5 = inlined_call_operand.vmem [shape: bf16[16,16], index: 5, kind: input, shape index: {}]
  %s6 = inlined_call_operand.vmem [shape: bf16[16,16], index: 6, kind: input, shape index: {}]
  %s7 = inlined_call_operand.vmem [shape: bf16[16,16], index: 7, kind: input, shape index: {}]
  %s8 = inlined_call_operand.vmem [shape: f32[2,2,16,16], index: 8, kind: output, shape index: {}]
  %s9 = sld [smem:[#allocation0]]
  $region72: #{modl_forward.5} parent=0
    _
  %s11 = ssub.s32 1, %s9
  %s12 = scalar_select 0, %s11, %s9
  %13 = sst [smem:[#allocation2]] %s0
  loop: start=0, step=1, limit=4
  $region2: #{modl_forward.5} parent=0 // loop_pre_header
    _
  $region3: #{modl_forward.5} parent=0 // loop_header
    %s15 = sphi 0, %s19
    %p16 = scmp.ge.s32.totalorder %s15, 4
    %s23 = sphi 0, %s23
    %s25 = sphi 0, %s23
    %s26 = sphi 0, %s25
    %s40 = sphi 0, %s26
    %s46 = sphi 0, %s48
    %s49 = sphi 0, %s46
    %s50 = sphi 0, %s49
    %s66 = sphi 0, %s50
    %s72 = sphi 0, %s74
    %s75 = sphi 0, %s72
    %s76 = sphi 0, %s75
    %s92 = sphi 0, %s76
    %s98 = sphi 0, %s100
    %s101 = sphi 0, %s98
    %s102 = sphi 0, %s101
    %s118 = sphi 0, %s102
    %s124 = sphi 0, %s126
    %s127 = sphi 0, %s124
    %s128 = sphi 0, %s127
    %s144 = sphi 0, %s128
    %s148 = sphi 0, %s148
    %s150 = sphi 0, %s148
    %s151 = sphi 0, %s150
    %s165 = sphi 0, %s151
    %s169 = sphi 0, %s169
    %s171 = sphi 0, %s169
    %s172 = sphi 0, %s171
    %s186 = sphi 0, %s172
    %s190 = sphi 0, %s190
    %s192 = sphi 0, %s190
    %s193 = sphi 0, %s192
    %s207 = sphi 0, %s193
    %s213 = sphi 0, %s215
    %s216 = sphi 0, %s213
    %s217 = sphi 0, %s216
    %s233 = sphi 0, %s217
  $region4: #{modl_forward.5} parent=0 // loop_header_branch
    %18 = sbr.rel (%p16) target = $region8
  $region5: #{modl_forward.5} parent=0 // loop_body
    %s20 = ssub.s32 %s15, 1
    %s21 = ssub.s32 %s15, 2
    %s22 = sadd.s32 %s15, 1
    %s24 = sadd.s32 %s23, 1
    %p27 = scmp.eq.s32.totalorder %s15, 1
    %p28 = scmp.ne.s32.totalorder %s23, %s25
    %p29 = scmp.eq.s32.totalorder %s15, 0
    %p30 = por %p28, %p29
    %p31 = scmp.ne.s32.totalorder %s23, %s25
    %p32 = scmp.eq.s32.totalorder %s20, 1
    %p33 = por %p31, %p32
    %p34 = scmp.ne.s32.totalorder %s25, %s26
    %p35 = scmp.eq.s32.totalorder %s20, 0
    %p36 = por %p34, %p35
    %p37 = scmp.ne.s32.totalorder %s25, %s26
    %p38 = scmp.eq.s32.totalorder %s21, 1
    %p39 = por %p37, %p38
    %p41 = scmp.ne.s32.totalorder %s26, %s40
    %p42 = scmp.eq.s32.totalorder %s21, 0
    %p43 = por %p41, %p42
    %s44 = ssub.s32 %s15, %s22
    %p45 = scmp.eq.s32.totalorder %s44, 0
    %s47 = sadd.s32 %s46, 1
    %s48 = scalar_select %p45, %s46, %s47
    %p51 = pneg %p45
    %p52 = scmp.eq.s32.totalorder %s15, 1
    %p53 = por %p51, %p52
    %p54 = scmp.ne.s32.totalorder %s46, %s49
    %p55 = scmp.eq.s32.totalorder %s15, 0
    %p56 = por %p54, %p55
    %p57 = scmp.ne.s32.totalorder %s46, %s49
    %p58 = scmp.eq.s32.totalorder %s20, 1
    %p59 = por %p57, %p58
    %p60 = scmp.ne.s32.totalorder %s49, %s50
    %p61 = scmp.eq.s32.totalorder %s20, 0
    %p62 = por %p60, %p61
    %p63 = scmp.ne.s32.totalorder %s49, %s50
    %p64 = scmp.eq.s32.totalorder %s21, 1
    %p65 = por %p63, %p64
    %p67 = scmp.ne.s32.totalorder %s50, %s66
    %p68 = scmp.eq.s32.totalorder %s21, 0
    %p69 = por %p67, %p68
    %s70 = ssub.s32 %s15, %s22
    %p71 = scmp.eq.s32.totalorder %s70, 0
    %s73 = sadd.s32 %s72, 1
    %s74 = scalar_select %p71, %s72, %s73
    %p77 = pneg %p71
    %p78 = scmp.eq.s32.totalorder %s15, 1
    %p79 = por %p77, %p78
    %p80 = scmp.ne.s32.totalorder %s72, %s75
    %p81 = scmp.eq.s32.totalorder %s15, 0
    %p82 = por %p80, %p81
    %p83 = scmp.ne.s32.totalorder %s72, %s75
    %p84 = scmp.eq.s32.totalorder %s20, 1
    %p85 = por %p83, %p84
    %p86 = scmp.ne.s32.totalorder %s75, %s76
    %p87 = scmp.eq.s32.totalorder %s20, 0
    %p88 = por %p86, %p87
    %p89 = scmp.ne.s32.totalorder %s75, %s76
    %p90 = scmp.eq.s32.totalorder %s21, 1
    %p91 = por %p89, %p90
    %p93 = scmp.ne.s32.totalorder %s76, %s92
    %p94 = scmp.eq.s32.totalorder %s21, 0
    %p95 = por %p93, %p94
    %s96 = ssub.s32 %s15, %s22
    %p97 = scmp.eq.s32.totalorder %s96, 0
    %s99 = sadd.s32 %s98, 1
    %s100 = scalar_select %p97, %s98, %s99
    %p103 = pneg %p97
    %p104 = scmp.eq.s32.totalorder %s15, 1
    %p105 = por %p103, %p104
    %p106 = scmp.ne.s32.totalorder %s98, %s101
    %p107 = scmp.eq.s32.totalorder %s15, 0
    %p108 = por %p106, %p107
    %p109 = scmp.ne.s32.totalorder %s98, %s101
    %p110 = scmp.eq.s32.totalorder %s20, 1
    %p111 = por %p109, %p110
    %p112 = scmp.ne.s32.totalorder %s101, %s102
    %p113 = scmp.eq.s32.totalorder %s20, 0
    %p114 = por %p112, %p113
    %p115 = scmp.ne.s32.totalorder %s101, %s102
    %p116 = scmp.eq.s32.totalorder %s21, 1
    %p117 = por %p115, %p116
    %p119 = scmp.ne.s32.totalorder %s102, %s118
    %p120 = scmp.eq.s32.totalorder %s21, 0
    %p121 = por %p119, %p120
    %s122 = ssub.s32 %s15, %s22
    %p123 = scmp.eq.s32.totalorder %s122, 0
    %s125 = sadd.s32 %s124, 1
    %s126 = scalar_select %p123, %s124, %s125
    %p129 = pneg %p123
    %p130 = scmp.eq.s32.totalorder %s15, 1
    %p131 = por %p129, %p130
    %p132 = scmp.ne.s32.totalorder %s124, %s127
    %p133 = scmp.eq.s32.totalorder %s15, 0
    %p134 = por %p132, %p133
    %p135 = scmp.ne.s32.totalorder %s124, %s127
    %p136 = scmp.eq.s32.totalorder %s20, 1
    %p137 = por %p135, %p136
    %p138 = scmp.ne.s32.totalorder %s127, %s128
    %p139 = scmp.eq.s32.totalorder %s20, 0
    %p140 = por %p138, %p139
    %p141 = scmp.ne.s32.totalorder %s127, %s128
    %p142 = scmp.eq.s32.totalorder %s21, 1
    %p143 = por %p141, %p142
    %p145 = scmp.ne.s32.totalorder %s128, %s144
    %p146 = scmp.eq.s32.totalorder %s21, 0
    %p147 = por %p145, %p146
    %s149 = sadd.s32 %s148, 1
    %p152 = scmp.eq.s32.totalorder %s15, 1
    %p153 = scmp.ne.s32.totalorder %s148, %s150
    %p154 = scmp.eq.s32.totalorder %s15, 0
    %p155 = por %p153, %p154
    %p156 = scmp.ne.s32.totalorder %s148, %s150
    %p157 = scmp.eq.s32.totalorder %s20, 1
    %p158 = por %p156, %p157
    %p159 = scmp.ne.s32.totalorder %s150, %s151
    %p160 = scmp.eq.s32.totalorder %s20, 0
    %p161 = por %p159, %p160
    %p162 = scmp.ne.s32.totalorder %s150, %s151
    %p163 = scmp.eq.s32.totalorder %s21, 1
    %p164 = por %p162, %p163
    %p166 = scmp.ne.s32.totalorder %s151, %s165
    %p167 = scmp.eq.s32.totalorder %s21, 0
    %p168 = por %p166, %p167
    %s170 = sadd.s32 %s169, 1
    %p173 = scmp.eq.s32.totalorder %s15, 1
    %p174 = scmp.ne.s32.totalorder %s169, %s171
    %p175 = scmp.eq.s32.totalorder %s15, 0
    %p176 = por %p174, %p175
    %p177 = scmp.ne.s32.totalorder %s169, %s171
    %p178 = scmp.eq.s32.totalorder %s20, 1
    %p179 = por %p177, %p178
    %p180 = scmp.ne.s32.totalorder %s171, %s172
    %p181 = scmp.eq.s32.totalorder %s20, 0
    %p182 = por %p180, %p181
    %p183 = scmp.ne.s32.totalorder %s171, %s172
    %p184 = scmp.eq.s32.totalorder %s21, 1
    %p185 = por %p183, %p184
    %p187 = scmp.ne.s32.totalorder %s172, %s186
    %p188 = scmp.eq.s32.totalorder %s21, 0
    %p189 = por %p187, %p188
    %s191 = sadd.s32 %s190, 1
    %p194 = scmp.eq.s32.totalorder %s15, 1
    %p195 = scmp.ne.s32.totalorder %s190, %s192
    %p196 = scmp.eq.s32.totalorder %s15, 0
    %p197 = por %p195, %p196
    %p198 = scmp.ne.s32.totalorder %s190, %s192
    %p199 = scmp.eq.s32.totalorder %s20, 1
    %p200 = por %p198, %p199
    %p201 = scmp.ne.s32.totalorder %s192, %s193
    %p202 = scmp.eq.s32.totalorder %s20, 0
    %p203 = por %p201, %p202
    %p204 = scmp.ne.s32.totalorder %s192, %s193
    %p205 = scmp.eq.s32.totalorder %s21, 1
    %p206 = por %p204, %p205
    %p208 = scmp.ne.s32.totalorder %s193, %s207
    %p209 = scmp.eq.s32.totalorder %s21, 0
    %p210 = por %p208, %p209
    %s211 = ssub.s32 %s15, %s22
    %p212 = scmp.eq.s32.totalorder %s211, 0
    %s214 = sadd.s32 %s213, 1
    %s215 = scalar_select %p212, %s213, %s214
    %p218 = pneg %p212
    %p219 = scmp.eq.s32.totalorder %s15, 1
    %p220 = por %p218, %p219
    %p221 = scmp.ne.s32.totalorder %s213, %s216
    %p222 = scmp.eq.s32.totalorder %s15, 0
    %p223 = por %p221, %p222
    %p224 = scmp.ne.s32.totalorder %s213, %s216
    %p225 = scmp.eq.s32.totalorder %s20, 1
    %p226 = por %p224, %p225
    %p227 = scmp.ne.s32.totalorder %s216, %s217
    %p228 = scmp.eq.s32.totalorder %s20, 0
    %p229 = por %p227, %p228
    %p230 = scmp.ne.s32.totalorder %s216, %s217
    %p231 = scmp.eq.s32.totalorder %s21, 1
    %p232 = por %p230, %p231
    %p234 = scmp.ne.s32.totalorder %s217, %s233
    %p235 = scmp.eq.s32.totalorder %s21, 0
    %p236 = por %p234, %p235
    %p237 = scmp.le.s32.totalorder 1, %s15
    %p238 = scmp.lt.s32.totalorder %s15, 3
    %p239 = pnand %p237, %p238
    %p240 = pneg %p239
    // Predicated region
    $region9: #{modl_forward.5} parent=5 // pred_check
      _
    $region10: #{modl_forward.5} parent=5 // pred_check_branch
      %242 = sbr.rel (%p239) target = $region12
    $region11: #{modl_forward.5} parent=5 // pred_region
      %s243 = ssub.s32 %s15, 1
      // Predicated region
      $region13: #{modl_forward.5} parent=11 // pred_check
        %p244 = pneg %p36
      $region14: #{modl_forward.5} parent=11 // pred_check_branch
        %246 = sbr.rel (%p244) target = $region16
      $region15: #{modl_forward.5} parent=11 // pred_region
        _
      $region16: #{modl_forward.5} parent=11 // pred_fallthru
        _
      // Predicated region
      $region17: #{modl_forward.5} parent=11 // pred_check
        %p247 = pneg %p161
      $region18: #{modl_forward.5} parent=11 // pred_check_branch
        %249 = sbr.rel (%p247) target = $region20
      $region19: #{modl_forward.5} parent=11 // pred_region
        _
      $region20: #{modl_forward.5} parent=11 // pred_fallthru
        _
      // Predicated region
      $region21: #{modl_forward.5} parent=11 // pred_check
        %p250 = pneg %p182
      $region22: #{modl_forward.5} parent=11 // pred_check_branch
        %252 = sbr.rel (%p250) target = $region24
      $region23: #{modl_forward.5} parent=11 // pred_region
        _
      $region24: #{modl_forward.5} parent=11 // pred_fallthru
        _
      // Predicated region
      $region25: #{modl_forward.5} parent=11 // pred_check
        %p253 = pneg %p203
      $region26: #{modl_forward.5} parent=11 // pred_check_branch
        %255 = sbr.rel (%p253) target = $region28
      $region27: #{modl_forward.5} parent=11 // pred_region
        _
      $region28: #{modl_forward.5} parent=11 // pred_fallthru
        _
    $region12: #{modl_forward.5} parent=5 // pred_fallthru
      _
    %p256 = scmp.lt.s32.totalorder %s15, 2
    // Predicated region
    $region29: #{modl_forward.5} parent=5 // pred_check
      %p257 = pneg %p256
    $region30: #{modl_forward.5} parent=5 // pred_check_branch
      %259 = sbr.rel (%p257) target = $region32
    $region31: #{modl_forward.5} parent=5 // pred_region
      // Predicated region
      $region33: #{modl_forward.5} parent=31 // pred_check
        %p260 = pneg %p56
      $region34: #{modl_forward.5} parent=31 // pred_check_branch
        %262 = sbr.rel (%p260) target = $region36
      $region35: #{modl_forward.5} parent=31 // pred_region
        %p263 = scmp.lt.s32.totalorder %s15, 1
        %s264 = scalar_select %p263, %s15, 1
        %s265 = smul.addr %s264, 4
        %s266 = smul.addr %s265, 8
        %s267 = scalar_lea.vmem %s1, %s266
      $region36: #{modl_forward.5} parent=31 // pred_fallthru
        _
      // Predicated region
      $region37: #{modl_forward.5} parent=31 // pred_check
        %p268 = pneg %p82
      $region38: #{modl_forward.5} parent=31 // pred_check_branch
        %270 = sbr.rel (%p268) target = $region40
      $region39: #{modl_forward.5} parent=31 // pred_region
        %p271 = scmp.lt.s32.totalorder %s15, 1
        %s272 = scalar_select %p271, %s15, 1
        %s273 = smul.addr %s272, 8
        %s274 = smul.addr %s273, 8
        %s275 = scalar_lea.vmem %s2, %s274
      $region40: #{modl_forward.5} parent=31 // pred_fallthru
        _
      // Predicated region
      $region41: #{modl_forward.5} parent=31 // pred_check
        %p276 = pneg %p108
      $region42: #{modl_forward.5} parent=31 // pred_check_branch
        %278 = sbr.rel (%p276) target = $region44
      $region43: #{modl_forward.5} parent=31 // pred_region
        %p279 = scmp.lt.s32.totalorder %s15, 1
        %s280 = scalar_select %p279, %s15, 1
        %s281 = smul.addr %s280, 8
        %s282 = smul.addr %s281, 8
        %s283 = scalar_lea.vmem %s3, %s282
      $region44: #{modl_forward.5} parent=31 // pred_fallthru
        _
      // Predicated region
      $region45: #{modl_forward.5} parent=31 // pred_check
        %p284 = pneg %p134
      $region46: #{modl_forward.5} parent=31 // pred_check_branch
        %286 = sbr.rel (%p284) target = $region48
      $region47: #{modl_forward.5} parent=31 // pred_region
        %p287 = scmp.lt.s32.totalorder %s15, 1
        %s288 = scalar_select %p287, %s15, 1
        %s289 = smul.addr %s288, 2
        %s290 = smul.addr %s289, 8
        %s291 = scalar_lea.vmem %s4, %s290
      $region48: #{modl_forward.5} parent=31 // pred_fallthru
        _
    $region32: #{modl_forward.5} parent=5 // pred_fallthru
      _
    %p292 = scmp.le.s32.totalorder 1, %s15
    %p293 = scmp.lt.s32.totalorder %s15, 3
    %p294 = pnand %p292, %p293
    %p295 = pneg %p294
    // Predicated region
    $region49: #{modl_forward.5} parent=5 // pred_check
      _
    $region50: #{modl_forward.5} parent=5 // pred_check_branch
      %297 = sbr.rel (%p294) target = $region52
    $region51: #{modl_forward.5} parent=5 // pred_region
      %s298 = ssub.s32 %s15, 1
      %p299 = pneg %p36
      %p300 = pneg %p33
      %p301 = scmp.lt.s32.totalorder %s20, 1
      %s302 = scalar_select %p301, %s20, 1
      %s303 = smul.addr %s302, 4
      %s304 = smul.addr %s303, 8
      %s305 = scalar_lea.vmem %s1, %s304
      %p306 = pneg %p62
      %p307 = pneg %p59
      %p308 = scmp.lt.s32.totalorder %s20, 1
      %s309 = scalar_select %p308, %s20, 1
      %s310 = smul.addr %s309, 8
      %s311 = smul.addr %s310, 8
      %s312 = scalar_lea.vmem %s2, %s311
      %p313 = pneg %p88
      %p314 = pneg %p85
      %p315 = scmp.lt.s32.totalorder %s20, 1
      %s316 = scalar_select %p315, %s20, 1
      %s317 = smul.addr %s316, 8
      %s318 = smul.addr %s317, 8
      %s319 = scalar_lea.vmem %s3, %s318
      %p320 = pneg %p114
      %p321 = pneg %p111
      %p322 = scmp.lt.s32.totalorder %s20, 1
      %s323 = scalar_select %p322, %s20, 1
      %s324 = smul.addr %s323, 2
      %s325 = smul.addr %s324, 8
      %s326 = scalar_lea.vmem %s4, %s325
      %p327 = pneg %p140
      %p328 = pneg %p137
      %p329 = pneg %p161
      %p330 = pneg %p158
      %p331 = pneg %p182
      %p332 = pneg %p179
      %p333 = pneg %p203
      %p334 = pneg %p200
      %p335 = pneg %p229
      %p336 = pneg %p226
      %p337 = scmp.lt.s32.totalorder %s20, 1
      %s338 = scalar_select %p337, %s20, 1
      %s339 = smul.addr %s338, 4
      %s340 = smul.addr %s339, 8
      %s341 = scalar_lea.vmem %s8, %s340
      %p342 = scmp.lt.s32.totalorder %s20, 1
      %s343 = scalar_select %p342, %s20, 1
      %s344 = smul.addr %s343, 4
      %s345 = smul.addr %s344, 8
      %s346 = scalar_lea.vmem %s1, %s345
      %p347 = scmp.lt.s32.totalorder %s20, 1
      %s348 = scalar_select %p347, %s20, 1
      %s349 = smul.addr %s348, 8
      %s350 = smul.addr %s349, 8
      %s351 = scalar_lea.vmem %s2, %s350
      %p352 = scmp.lt.s32.totalorder %s20, 1
      %s353 = scalar_select %p352, %s20, 1
      %s354 = smul.addr %s353, 8
      %s355 = smul.addr %s354, 8
      %s356 = scalar_lea.vmem %s3, %s355
      %p357 = scmp.lt.s32.totalorder %s20, 1
      %s358 = scalar_select %p357, %s20, 1
      %s359 = smul.addr %s358, 2
      %s360 = smul.addr %s359, 8
      %s361 = scalar_lea.vmem %s4, %s360
      %p362 = scmp.lt.s32.totalorder %s20, 1
      %s363 = scalar_select %p362, %s20, 1
      %s364 = smul.addr %s363, 4
      %s365 = smul.addr %s364, 8
      %s366 = scalar_lea.vmem %s8, %s365
      %s368 = sld [smem:[#allocation2]]
      %v369 = vld [vmem:[%s5] sm:$0xf]
      %v370 = vld [vmem:[%s5 + $0x4] sm:$0xf]
      %v371 = vld [vmem:[%s6] sm:$0xf]
      %v372 = vld [vmem:[%s6 + $0x4] sm:$0xf]
      %v373 = vld [vmem:[%s7] sm:$0xf]
      %v374 = vld [vmem:[%s7 + $0x4] sm:$0xf]
      %v375 = vld [vmem:[%s351] sm:$0xff]
      %v376 = vld [vmem:[%s351 + $0x8] sm:$0xff]
      %v377 = vld [vmem:[%s351 + $0x10] sm:$0xff]
      %v378 = vld [vmem:[%s351 + $0x18] sm:$0xff]
      %v379 = vld [vmem:[%s351 + $0x20] sm:$0xff]
      %v380 = vld [vmem:[%s351 + $0x28] sm:$0xff]
      %v381 = vld [vmem:[%s351 + $0x30] sm:$0xff]
      %v382 = vld [vmem:[%s351 + $0x38] sm:$0xff]
      %v383 = vld [vmem:[%s356] sm:$0xff]
      %v384 = vld [vmem:[%s356 + $0x8] sm:$0xff]
      %v385 = vld [vmem:[%s356 + $0x10] sm:$0xff]
      %v386 = vld [vmem:[%s356 + $0x18] sm:$0xff]
      %v387 = vld [vmem:[%s356 + $0x20] sm:$0xff]
      %v388 = vld [vmem:[%s356 + $0x28] sm:$0xff]
      %v389 = vld [vmem:[%s356 + $0x30] sm:$0xff]
      %v390 = vld [vmem:[%s356 + $0x38] sm:$0xff]
      %v391 = vld [vmem:[%s361] sm:$0xff]
      %v392 = vld [vmem:[%s361 + $0x8] sm:$0xff]
      %v393 = vld [vmem:[%s346] sm:$0xff]
      %v394 = vld [vmem:[%s346 + $0x8] sm:$0xff]
      %v395 = vld [vmem:[%s346 + $0x10] sm:$0xff]
      %v396 = vld [vmem:[%s346 + $0x18] sm:$0xff]
      %v397 = vmul.f32 %v393, %v393
      %v398 = vmul.f32 %v394, %v394
      %v399 = vmul.f32 %v395, %v395
      %v400 = vmul.f32 %v396, %v396
      %v401 = vadd.f32 %v397, %v399
      %v402 = vadd.f32 %v398, %v400
      %vm403 = vcmask 130048
      %v404 = vsel %vm403, %v401, 0.0
      %v405 = vsel %vm403, %v402, 0.0
      %v406 = vadd.f32 %v404, %v405
      %407 = vadd.xlane.f32.xlu0 %v406
      %v408 = vpop.xlane.xlu0 %407
      %v409 = vrot.slane %v408, 4
      %v410 = vadd.f32 %v408, %v409
      %v411 = vrot.slane %v410, 2
      %v412 = vadd.f32 %v410, %v411
      %v413 = vrot.slane %v412, 1
      %v414 = vadd.f32 %v412, %v413
      %s415 = vtos %v414
      %v416 = vstv %s415
      loop: start=0, step=1, limit=10
      $region53: #{modl_forward.5} parent=51 // loop_pre_header
        _
      $region54: #{modl_forward.5} parent=51 // loop_header
        %s418 = sphi 0, %s422
        %p419 = scmp.ge.s32.totalorder %s418, 10
        %v423 = vphi 0.0, %v2340
        %v424 = vphi 0.0, %v2341
        %v425 = vphi 0.0, %v2344
        %v426 = vphi 0.0, %v2345
        %v427 = vphi %v393, %v2348
        %v428 = vphi %v394, %v2349
        %v429 = vphi %v395, %v2352
        %v430 = vphi %v396, %v2353
        %v431 = vphi %v393, %v2379
        %v432 = vphi %v394, %v2380
        %v433 = vphi %v395, %v2383
        %v434 = vphi %v396, %v2384
        %v435 = vphi %v416, %v2372
      $region55: #{modl_forward.5} parent=51 // loop_header_branch
        %421 = sbr.rel (%p419) target = $region59
      $region56: #{modl_forward.5} parent=51 // loop_body
        %v436 = vmul.f32 %v375, %v431
        %v437 = vmul.f32 %v376, %v432
        %v438 = vmul.f32 %v377, %v431
        %v439 = vmul.f32 %v378, %v432
        %v440 = vmul.f32 %v379, %v431
        %v441 = vmul.f32 %v380, %v432
        %v442 = vmul.f32 %v381, %v431
        %v443 = vmul.f32 %v382, %v432
        %v444 = vmul.f32 %v383, %v433
        %v445 = vmul.f32 %v384, %v434
        %v446 = vmul.f32 %v385, %v433
        %v447 = vmul.f32 %v386, %v434
        %v448 = vmul.f32 %v387, %v433
        %v449 = vmul.f32 %v388, %v434
        %v450 = vmul.f32 %v389, %v433
        %v451 = vmul.f32 %v390, %v434
        %v452 = vsub.f32 %v436, %v444
        %v453 = vsub.f32 %v437, %v445
        %v454 = vsub.f32 %v438, %v446
        %v455 = vsub.f32 %v439, %v447
        %v456 = vsub.f32 %v440, %v448
        %v457 = vsub.f32 %v441, %v449
        %v458 = vsub.f32 %v442, %v450
        %v459 = vsub.f32 %v443, %v451
        %v460 = vmul.f32 %v375, %v433
        %v461 = vmul.f32 %v376, %v434
        %v462 = vmul.f32 %v377, %v433
        %v463 = vmul.f32 %v378, %v434
        %v464 = vmul.f32 %v379, %v433
        %v465 = vmul.f32 %v380, %v434
        %v466 = vmul.f32 %v381, %v433
        %v467 = vmul.f32 %v382, %v434
        %v468 = vmul.f32 %v383, %v431
        %v469 = vmul.f32 %v384, %v432
        %v470 = vmul.f32 %v385, %v431
        %v471 = vmul.f32 %v386, %v432
        %v472 = vmul.f32 %v387, %v431
        %v473 = vmul.f32 %v388, %v432
        %v474 = vmul.f32 %v389, %v431
        %v475 = vmul.f32 %v390, %v432
        %v476 = vadd.f32 %v460, %v468
        %v477 = vadd.f32 %v461, %v469
        %v478 = vadd.f32 %v462, %v470
        %v479 = vadd.f32 %v463, %v471
        %v480 = vadd.f32 %v464, %v472
        %v481 = vadd.f32 %v465, %v473
        %v482 = vadd.f32 %v466, %v474
        %v483 = vadd.f32 %v467, %v475
        %v484 = vpack.c.bf16 %v453, %v452
        %v485 = vpack.c.bf16 %v455, %v454
        %v486 = vpack.c.bf16 %v457, %v456
        %v487 = vpack.c.bf16 %v459, %v458
        %v488 = vpack.c.bf16 %v477, %v476
        %v489 = vpack.c.bf16 %v479, %v478
        %v490 = vpack.c.bf16 %v481, %v480
        %v491 = vpack.c.bf16 %v483, %v482
        %v494 = vunpack.c.l.b16 %v369
        %v495 = vunpack.c.l.b16 %v370
        %v496 = vpack.c.b16 %v495, %v494
        %v499 = vsel %vm403, %v484, 0
        %v502 = vsel %vm403, %v485, 0
        %v505 = vsel %vm403, %v486, 0
        %v508 = vsel %vm403, %v487, 0
        %510 = vmatprep.subr.bf16.mxu0 0
        %511 = vmatpush1.bf16.msra.mxu0 %v496
        %512 = vmatprep.subr.bf16.mxu0 0
        %513 = vmatpush1.bf16.msra.mxu0 0
        %514 = vmatprep.subr.bf16.mxu0 0
        %515 = vmatpush1.bf16.msra.mxu0 0
        %516 = vmatprep.subr.bf16.mxu0 0
        %517 = vmatpush1.bf16.msra.mxu0 0
        %518 = vmatprep.subr.bf16.mxu0 0
        %519 = vmatpush1.bf16.msra.mxu0 0
        %520 = vmatprep.subr.bf16.mxu0 0
        %521 = vmatpush1.bf16.msra.mxu0 0
        %522 = vmatprep.subr.bf16.mxu0 0
        %523 = vmatpush1.bf16.msra.mxu0 0
        %524 = vmatprep.subr.bf16.mxu0 0
        %525 = vmatpush1.bf16.msra.mxu0 0
        %526 = vmatprep.subr.bf16.mxu0 0
        %527 = vmatpush1.bf16.msra.mxu0 0
        %528 = vmatprep.subr.bf16.mxu0 0
        %529 = vmatpush1.bf16.msra.mxu0 0
        %530 = vmatprep.subr.bf16.mxu0 0
        %531 = vmatpush1.bf16.msra.mxu0 0
        %532 = vmatprep.subr.bf16.mxu0 0
        %533 = vmatpush1.bf16.msra.mxu0 0
        %534 = vmatprep.subr.bf16.mxu0 0
        %535 = vmatpush1.bf16.msra.mxu0 0
        %536 = vmatprep.subr.bf16.mxu0 0
        %537 = vmatpush1.bf16.msra.mxu0 0
        %538 = vmatprep.subr.bf16.mxu0 0
        %539 = vmatpush1.bf16.msra.mxu0 0
        %540 = vmatprep.subr.bf16.mxu0 0
        %541 = vmatpush1.bf16.msra.mxu0 0
        %542 = vmatprep.mubr.bf16.mxu0 0
        %543 = vmatmul.mubr.bf16.gmra.mrb[0].mxu0 %v499
        %v544 = vpop.f32.mrb[0].mxu0
        %v545 = vadd.f32 0.0, %v544
        %v546 = vpop.f32.mrb[0].mxu0
        %v547 = vpop.f32.mrb[0].mxu0
        %v548 = vadd.f32 0.0, %v547
        %v549 = vpop.f32.mrb[0].mxu0
        %550 = vmatprep.mubr.bf16.mxu0 0
        %551 = vmatmul.mubr.bf16.gmra.mrb[0].mxu0 %v502
        %v552 = vpop.f32.mrb[0].mxu0
        %v553 = vadd.f32 0.0, %v552
        %v554 = vpop.f32.mrb[0].mxu0
        %v555 = vpop.f32.mrb[0].mxu0
        %v556 = vadd.f32 0.0, %v555
        %v557 = vpop.f32.mrb[0].mxu0
        %558 = vmatprep.mubr.bf16.mxu0 0
        %559 = vmatmul.mubr.bf16.gmra.mrb[0].mxu0 %v505
        %v560 = vpop.f32.mrb[0].mxu0
        %v561 = vadd.f32 0.0, %v560
        %v562 = vpop.f32.mrb[0].mxu0
        %v563 = vpop.f32.mrb[0].mxu0
        %v564 = vadd.f32 0.0, %v563
        %v565 = vpop.f32.mrb[0].mxu0
        %566 = vmatprep.mubr.bf16.mxu0 0
        %567 = vmatmul.mubr.bf16.gmra.mrb[0].mxu0 %v508
        %v568 = vpop.f32.mrb[0].mxu0
        %v569 = vadd.f32 0.0, %v568
        %v570 = vpop.f32.mrb[0].mxu0
        %v571 = vpop.f32.mrb[0].mxu0
        %v572 = vadd.f32 0.0, %v571
        %v573 = vpop.f32.mrb[0].mxu0
        %574 = vdwg.mxu0
        %v577 = vunpack.c.l.b16 %v371
        %v578 = vunpack.c.l.b16 %v372
        %v579 = vpack.c.b16 %v578, %v577
        %v582 = vsel %vm403, %v488, 0
        %v585 = vsel %vm403, %v489, 0
        %v588 = vsel %vm403, %v490, 0
        %v591 = vsel %vm403, %v491, 0
        %593 = vmatprep.subr.bf16.mxu0 0
        %594 = vmatpush1.bf16.msra.mxu0 %v579
        %595 = vmatprep.subr.bf16.mxu0 0
        %596 = vmatpush1.bf16.msra.mxu0 0
        %597 = vmatprep.subr.bf16.mxu0 0
        %598 = vmatpush1.bf16.msra.mxu0 0
        %599 = vmatprep.subr.bf16.mxu0 0
        %600 = vmatpush1.bf16.msra.mxu0 0
        %601 = vmatprep.subr.bf16.mxu0 0
        %602 = vmatpush1.bf16.msra.mxu0 0
        %603 = vmatprep.subr.bf16.mxu0 0
        %604 = vmatpush1.bf16.msra.mxu0 0
        %605 = vmatprep.subr.bf16.mxu0 0
        %606 = vmatpush1.bf16.msra.mxu0 0
        %607 = vmatprep.subr.bf16.mxu0 0
        %608 = vmatpush1.bf16.msra.mxu0 0
        %609 = vmatprep.subr.bf16.mxu0 0
        %610 = vmatpush1.bf16.msra.mxu0 0
        %611 = vmatprep.subr.bf16.mxu0 0
        %612 = vmatpush1.bf16.msra.mxu0 0
        %613 = vmatprep.subr.bf16.mxu0 0
        %614 = vmatpush1.bf16.msra.mxu0 0
        %615 = vmatprep.subr.bf16.mxu0 0
        %616 = vmatpush1.bf16.msra.mxu0 0
        %617 = vmatprep.subr.bf16.mxu0 0
        %618 = vmatpush1.bf16.msra.mxu0 0
        %619 = vmatprep.subr.bf16.mxu0 0
        %620 = vmatpush1.bf16.msra.mxu0 0
        %621 = vmatprep.subr.bf16.mxu0 0
        %622 = vmatpush1.bf16.msra.mxu0 0
        %623 = vmatprep.subr.bf16.mxu0 0
        %624 = vmatpush1.bf16.msra.mxu0 0
        %625 = vmatprep.mubr.bf16.mxu0 0
        %626 = vmatmul.mubr.bf16.gmra.mrb[0].mxu0 %v582
        %v627 = vpop.f32.mrb[0].mxu0
        %v628 = vadd.f32 0.0, %v627
        %v629 = vpop.f32.mrb[0].mxu0
        %v630 = vpop.f32.mrb[0].mxu0
        %v631 = vadd.f32 0.0, %v630
        %v632 = vpop.f32.mrb[0].mxu0
        %633 = vmatprep.mubr.bf16.mxu0 0
        %634 = vmatmul.mubr.bf16.gmra.mrb[0].mxu0 %v585
        %v635 = vpop.f32.mrb[0].mxu0
        %v636 = vadd.f32 0.0, %v635
        %v637 = vpop.f32.mrb[0].mxu0
        %v638 = vpop.f32.mrb[0].mxu0
        %v639 = vadd.f32 0.0, %v638
        %v640 = vpop.f32.mrb[0].mxu0
        %641 = vmatprep.mubr.bf16.mxu0 0
        %642 = vmatmul.mubr.bf16.gmra.mrb[0].mxu0 %v588
        %v643 = vpop.f32.mrb[0].mxu0
        %v644 = vadd.f32 0.0, %v643
        %v645 = vpop.f32.mrb[0].mxu0
        %v646 = vpop.f32.mrb[0].mxu0
        %v647 = vadd.f32 0.0, %v646
        %v648 = vpop.f32.mrb[0].mxu0
        %649 = vmatprep.mubr.bf16.mxu0 0
        %650 = vmatmul.mubr.bf16.gmra.mrb[0].mxu0 %v591
        %v651 = vpop.f32.mrb[0].mxu0
        %v652 = vadd.f32 0.0, %v651
        %v653 = vpop.f32.mrb[0].mxu0
        %v654 = vpop.f32.mrb[0].mxu0
        %v655 = vadd.f32 0.0, %v654
        %v656 = vpop.f32.mrb[0].mxu0
        %657 = vdwg.mxu0
        %v658 = vsub.f32 %v545, %v628
        %v659 = vsub.f32 %v548, %v631
        %v660 = vsub.f32 %v553, %v636
        %v661 = vsub.f32 %v556, %v639
        %v662 = vsub.f32 %v561, %v644
        %v663 = vsub.f32 %v564, %v647
        %v664 = vsub.f32 %v569, %v652
        %v665 = vsub.f32 %v572, %v655
        %666 = vmatprep.subr.bf16.mxu0 0
        %667 = vmatpush1.bf16.msra.mxu0 %v496
        %668 = vmatprep.subr.bf16.mxu0 0
        %669 = vmatpush1.bf16.msra.mxu0 0
        %670 = vmatprep.subr.bf16.mxu0 0
        %671 = vmatpush1.bf16.msra.mxu0 0
        %672 = vmatprep.subr.bf16.mxu0 0
        %673 = vmatpush1.bf16.msra.mxu0 0
        %674 = vmatprep.subr.bf16.mxu0 0
        %675 = vmatpush1.bf16.msra.mxu0 0
        %676 = vmatprep.subr.bf16.mxu0 0
        %677 = vmatpush1.bf16.msra.mxu0 0
        %678 = vmatprep.subr.bf16.mxu0 0
        %679 = vmatpush1.bf16.msra.mxu0 0
        %680 = vmatprep.subr.bf16.mxu0 0
        %681 = vmatpush1.bf16.msra.mxu0 0
        %682 = vmatprep.subr.bf16.mxu0 0
        %683 = vmatpush1.bf16.msra.mxu0 0
        %684 = vmatprep.subr.bf16.mxu0 0
        %685 = vmatpush1.bf16.msra.mxu0 0
        %686 = vmatprep.subr.bf16.mxu0 0
        %687 = vmatpush1.bf16.msra.mxu0 0
        %688 = vmatprep.subr.bf16.mxu0 0
        %689 = vmatpush1.bf16.msra.mxu0 0
        %690 = vmatprep.subr.bf16.mxu0 0
        %691 = vmatpush1.bf16.msra.mxu0 0
        %692 = vmatprep.subr.bf16.mxu0 0
        %693 = vmatpush1.bf16.msra.mxu0 0
        %694 = vmatprep.subr.bf16.mxu0 0
        %695 = vmatpush1.bf16.msra.mxu0 0
        %696 = vmatprep.subr.bf16.mxu0 0
        %697 = vmatpush1.bf16.msra.mxu0 0
        %698 = vmatprep.mubr.bf16.mxu0 0
        %699 = vmatmul.mubr.bf16.gmra.mrb[0].mxu0 %v582
        %v700 = vpop.f32.mrb[0].mxu0
        %v701 = vadd.f32 0.0, %v700
        %v702 = vpop.f32.mrb[0].mxu0
        %v703 = vpop.f32.mrb[0].mxu0
        %v704 = vadd.f32 0.0, %v703
        %v705 = vpop.f32.mrb[0].mxu0
        %706 = vmatprep.mubr.bf16.mxu0 0
        %707 = vmatmul.mubr.bf16.gmra.mrb[0].mxu0 %v585
        %v708 = vpop.f32.mrb[0].mxu0
        %v709 = vadd.f32 0.0, %v708
        %v710 = vpop.f32.mrb[0].mxu0
        %v711 = vpop.f32.mrb[0].mxu0
        %v712 = vadd.f32 0.0, %v711
        %v713 = vpop.f32.mrb[0].mxu0
        %714 = vmatprep.mubr.bf16.mxu0 0
        %715 = vmatmul.mubr.bf16.gmra.mrb[0].mxu0 %v588
        %v716 = vpop.f32.mrb[0].mxu0
        %v717 = vadd.f32 0.0, %v716
        %v718 = vpop.f32.mrb[0].mxu0
        %v719 = vpop.f32.mrb[0].mxu0
        %v720 = vadd.f32 0.0, %v719
        %v721 = vpop.f32.mrb[0].mxu0
        %722 = vmatprep.mubr.bf16.mxu0 0
        %723 = vmatmul.mubr.bf16.gmra.mrb[0].mxu0 %v591
        %v724 = vpop.f32.mrb[0].mxu0
        %v725 = vadd.f32 0.0, %v724
        %v726 = vpop.f32.mrb[0].mxu0
        %v727 = vpop.f32.mrb[0].mxu0
        %v728 = vadd.f32 0.0, %v727
        %v729 = vpop.f32.mrb[0].mxu0
        %730 = vdwg.mxu0
        %731 = vmatprep.subr.bf16.mxu0 0
        %732 = vmatpush1.bf16.msra.mxu0 %v579
        %733 = vmatprep.subr.bf16.mxu0 0
        %734 = vmatpush1.bf16.msra.mxu0 0
        %735 = vmatprep.subr.bf16.mxu0 0
        %736 = vmatpush1.bf16.msra.mxu0 0
        %737 = vmatprep.subr.bf16.mxu0 0
        %738 = vmatpush1.bf16.msra.mxu0 0
        %739 = vmatprep.subr.bf16.mxu0 0
        %740 = vmatpush1.bf16.msra.mxu0 0
        %741 = vmatprep.subr.bf16.mxu0 0
        %742 = vmatpush1.bf16.msra.mxu0 0
        %743 = vmatprep.subr.bf16.mxu0 0
        %744 = vmatpush1.bf16.msra.mxu0 0
        %745 = vmatprep.subr.bf16.mxu0 0
        %746 = vmatpush1.bf16.msra.mxu0 0
        %747 = vmatprep.subr.bf16.mxu0 0
        %748 = vmatpush1.bf16.msra.mxu0 0
        %749 = vmatprep.subr.bf16.mxu0 0
        %750 = vmatpush1.bf16.msra.mxu0 0
        %751 = vmatprep.subr.bf16.mxu0 0
        %752 = vmatpush1.bf16.msra.mxu0 0
        %753 = vmatprep.subr.bf16.mxu0 0
        %754 = vmatpush1.bf16.msra.mxu0 0
        %755 = vmatprep.subr.bf16.mxu0 0
        %756 = vmatpush1.bf16.msra.mxu0 0
        %757 = vmatprep.subr.bf16.mxu0 0
        %758 = vmatpush1.bf16.msra.mxu0 0
        %759 = vmatprep.subr.bf16.mxu0 0
        %760 = vmatpush1.bf16.msra.mxu0 0
        %761 = vmatprep.subr.bf16.mxu0 0
        %762 = vmatpush1.bf16.msra.mxu0 0
        %763 = vmatprep.mubr.bf16.mxu0 0
        %764 = vmatmul.mubr.bf16.gmra.mrb[0].mxu0 %v499
        %v765 = vpop.f32.mrb[0].mxu0
        %v766 = vadd.f32 %v701, %v765
        %v767 = vpop.f32.mrb[0].mxu0
        %v768 = vpop.f32.mrb[0].mxu0
        %v769 = vadd.f32 %v704, %v768
        %v770 = vpop.f32.mrb[0].mxu0
        %771 = vmatprep.mubr.bf16.mxu0 0
        %772 = vmatmul.mubr.bf16.gmra.mrb[0].mxu0 %v502
        %v773 = vpop.f32.mrb[0].mxu0
        %v774 = vadd.f32 %v709, %v773
        %v775 = vpop.f32.mrb[0].mxu0
        %v776 = vpop.f32.mrb[0].mxu0
        %v777 = vadd.f32 %v712, %v776
        %v778 = vpop.f32.mrb[0].mxu0
        %779 = vmatprep.mubr.bf16.mxu0 0
        %780 = vmatmul.mubr.bf16.gmra.mrb[0].mxu0 %v505
        %v781 = vpop.f32.mrb[0].mxu0
        %v782 = vadd.f32 %v717, %v781
        %v783 = vpop.f32.mrb[0].mxu0
        %v784 = vpop.f32.mrb[0].mxu0
        %v785 = vadd.f32 %v720, %v784
        %v786 = vpop.f32.mrb[0].mxu0
        %787 = vmatprep.mubr.bf16.mxu0 0
        %788 = vmatmul.mubr.bf16.gmra.mrb[0].mxu0 %v508
        %v789 = vpop.f32.mrb[0].mxu0
        %v790 = vadd.f32 %v725, %v789
        %v791 = vpop.f32.mrb[0].mxu0
        %v792 = vpop.f32.mrb[0].mxu0
        %v793 = vadd.f32 %v728, %v792
        %v794 = vpop.f32.mrb[0].mxu0
        %795 = vdwg.mxu0
        %796 = vxpose.xlu0.b32.start [1/16] %v658, 128
        %797 = vxpose.xlu0.b32.cont [2/16] %v659, 128
        %798 = vxpose.xlu0.b32.cont [3/16] 0.0, 128
        %799 = vxpose.xlu0.b32.cont [4/16] 0.0, 128
        %800 = vxpose.xlu0.b32.cont [5/16] 0.0, 128
        %801 = vxpose.xlu0.b32.cont [6/16] 0.0, 128
        %802 = vxpose.xlu0.b32.cont [7/16] 0.0, 128
        %803 = vxpose.xlu0.b32.cont [8/16] 0.0, 128
        %804 = vxpose.xlu0.b32.cont [9/16] 0.0, 128
        %805 = vxpose.xlu0.b32.cont [10/16] 0.0, 128
        %806 = vxpose.xlu0.b32.cont [11/16] 0.0, 128
        %807 = vxpose.xlu0.b32.cont [12/16] 0.0, 128
        %808 = vxpose.xlu0.b32.cont [13/16] 0.0, 128
        %809 = vxpose.xlu0.b32.cont [14/16] 0.0, 128
        %810 = vxpose.xlu0.b32.cont [15/16] 0.0, 128
        %811 = vxpose.xlu0.b32.end [16/16] 0.0, 128
        %v812 = vpop.trf.xlu0
        %v813 = vpop.trf.xlu0
        %v814 = vpop.trf.xlu0
        %v815 = vpop.trf.xlu0
        %v816 = vpop.trf.xlu0
        %v817 = vpop.trf.xlu0
        %v818 = vpop.trf.xlu0
        %v819 = vpop.trf.xlu0
        %v820 = vpop.trf.xlu0
        %v821 = vpop.trf.xlu0
        %v822 = vpop.trf.xlu0
        %v823 = vpop.trf.xlu0
        %v824 = vpop.trf.xlu0
        %v825 = vpop.trf.xlu0
        %v826 = vpop.trf.xlu0
        %v827 = vpop.trf.xlu0
        %828 = vxpose.xlu0.b32.start [1/16] %v660, 128
        %829 = vxpose.xlu0.b32.cont [2/16] %v661, 128
        %830 = vxpose.xlu0.b32.cont [3/16] 0.0, 128
        %831 = vxpose.xlu0.b32.cont [4/16] 0.0, 128
        %832 = vxpose.xlu0.b32.cont [5/16] 0.0, 128
        %833 = vxpose.xlu0.b32.cont [6/16] 0.0, 128
        %834 = vxpose.xlu0.b32.cont [7/16] 0.0, 128
        %835 = vxpose.xlu0.b32.cont [8/16] 0.0, 128
        %836 = vxpose.xlu0.b32.cont [9/16] 0.0, 128
        %837 = vxpose.xlu0.b32.cont [10/16] 0.0, 128
        %838 = vxpose.xlu0.b32.cont [11/16] 0.0, 128
        %839 = vxpose.xlu0.b32.cont [12/16] 0.0, 128
        %840 = vxpose.xlu0.b32.cont [13/16] 0.0, 128
        %841 = vxpose.xlu0.b32.cont [14/16] 0.0, 128
        %842 = vxpose.xlu0.b32.cont [15/16] 0.0, 128
        %843 = vxpose.xlu0.b32.end [16/16] 0.0, 128
        %v844 = vpop.trf.xlu0
        %v845 = vpop.trf.xlu0
        %v846 = vpop.trf.xlu0
        %v847 = vpop.trf.xlu0
        %v848 = vpop.trf.xlu0
        %v849 = vpop.trf.xlu0
        %v850 = vpop.trf.xlu0
        %v851 = vpop.trf.xlu0
        %v852 = vpop.trf.xlu0
        %v853 = vpop.trf.xlu0
        %v854 = vpop.trf.xlu0
        %v855 = vpop.trf.xlu0
        %v856 = vpop.trf.xlu0
        %v857 = vpop.trf.xlu0
        %v858 = vpop.trf.xlu0
        %v859 = vpop.trf.xlu0
        %860 = vxpose.xlu0.b32.start [1/16] %v662, 128
        %861 = vxpose.xlu0.b32.cont [2/16] %v663, 128
        %862 = vxpose.xlu0.b32.cont [3/16] 0.0, 128
        %863 = vxpose.xlu0.b32.cont [4/16] 0.0, 128
        %864 = vxpose.xlu0.b32.cont [5/16] 0.0, 128
        %865 = vxpose.xlu0.b32.cont [6/16] 0.0, 128
        %866 = vxpose.xlu0.b32.cont [7/16] 0.0, 128
        %867 = vxpose.xlu0.b32.cont [8/16] 0.0, 128
        %868 = vxpose.xlu0.b32.cont [9/16] 0.0, 128
        %869 = vxpose.xlu0.b32.cont [10/16] 0.0, 128
        %870 = vxpose.xlu0.b32.cont [11/16] 0.0, 128
        %871 = vxpose.xlu0.b32.cont [12/16] 0.0, 128
        %872 = vxpose.xlu0.b32.cont [13/16] 0.0, 128
        %873 = vxpose.xlu0.b32.cont [14/16] 0.0, 128
        %874 = vxpose.xlu0.b32.cont [15/16] 0.0, 128
        %875 = vxpose.xlu0.b32.end [16/16] 0.0, 128
        %v876 = vpop.trf.xlu0
        %v877 = vpop.trf.xlu0
        %v878 = vpop.trf.xlu0
        %v879 = vpop.trf.xlu0
        %v880 = vpop.trf.xlu0
        %v881 = vpop.trf.xlu0
        %v882 = vpop.trf.xlu0
        %v883 = vpop.trf.xlu0
        %v884 = vpop.trf.xlu0
        %v885 = vpop.trf.xlu0
        %v886 = vpop.trf.xlu0
        %v887 = vpop.trf.xlu0
        %v888 = vpop.trf.xlu0
        %v889 = vpop.trf.xlu0
        %v890 = vpop.trf.xlu0
        %v891 = vpop.trf.xlu0
        %892 = vxpose.xlu0.b32.start [1/16] %v664, 128
        %893 = vxpose.xlu0.b32.cont [2/16] %v665, 128
        %894 = vxpose.xlu0.b32.cont [3/16] 0.0, 128
        %895 = vxpose.xlu0.b32.cont [4/16] 0.0, 128
        %896 = vxpose.xlu0.b32.cont [5/16] 0.0, 128
        %897 = vxpose.xlu0.b32.cont [6/16] 0.0, 128
        %898 = vxpose.xlu0.b32.cont [7/16] 0.0, 128
        %899 = vxpose.xlu0.b32.cont [8/16] 0.0, 128
        %900 = vxpose.xlu0.b32.cont [9/16] 0.0, 128
        %901 = vxpose.xlu0.b32.cont [10/16] 0.0, 128
        %902 = vxpose.xlu0.b32.cont [11/16] 0.0, 128
        %903 = vxpose.xlu0.b32.cont [12/16] 0.0, 128
        %904 = vxpose.xlu0.b32.cont [13/16] 0.0, 128
        %905 = vxpose.xlu0.b32.cont [14/16] 0.0, 128
        %906 = vxpose.xlu0.b32.cont [15/16] 0.0, 128
        %907 = vxpose.xlu0.b32.end [16/16] 0.0, 128
        %v908 = vpop.trf.xlu0
        %v909 = vpop.trf.xlu0
        %v910 = vpop.trf.xlu0
        %v911 = vpop.trf.xlu0
        %v912 = vpop.trf.xlu0
        %v913 = vpop.trf.xlu0
        %v914 = vpop.trf.xlu0
        %v915 = vpop.trf.xlu0
        %v916 = vpop.trf.xlu0
        %v917 = vpop.trf.xlu0
        %v918 = vpop.trf.xlu0
        %v919 = vpop.trf.xlu0
        %v920 = vpop.trf.xlu0
        %v921 = vpop.trf.xlu0
        %v922 = vpop.trf.xlu0
        %v923 = vpop.trf.xlu0
        %924 = vxpose.xlu0.b32.start [1/16] %v766, 128
        %925 = vxpose.xlu0.b32.cont [2/16] %v769, 128
        %926 = vxpose.xlu0.b32.cont [3/16] 0.0, 128
        %927 = vxpose.xlu0.b32.cont [4/16] 0.0, 128
        %928 = vxpose.xlu0.b32.cont [5/16] 0.0, 128
        %929 = vxpose.xlu0.b32.cont [6/16] 0.0, 128
        %930 = vxpose.xlu0.b32.cont [7/16] 0.0, 128
        %931 = vxpose.xlu0.b32.cont [8/16] 0.0, 128
        %932 = vxpose.xlu0.b32.cont [9/16] 0.0, 128
        %933 = vxpose.xlu0.b32.cont [10/16] 0.0, 128
        %934 = vxpose.xlu0.b32.cont [11/16] 0.0, 128
        %935 = vxpose.xlu0.b32.cont [12/16] 0.0, 128
        %936 = vxpose.xlu0.b32.cont [13/16] 0.0, 128
        %937 = vxpose.xlu0.b32.cont [14/16] 0.0, 128
        %938 = vxpose.xlu0.b32.cont [15/16] 0.0, 128
        %939 = vxpose.xlu0.b32.end [16/16] 0.0, 128
        %v940 = vpop.trf.xlu0
        %v941 = vpop.trf.xlu0
        %v942 = vpop.trf.xlu0
        %v943 = vpop.trf.xlu0
        %v944 = vpop.trf.xlu0
        %v945 = vpop.trf.xlu0
        %v946 = vpop.trf.xlu0
        %v947 = vpop.trf.xlu0
        %v948 = vpop.trf.xlu0
        %v949 = vpop.trf.xlu0
        %v950 = vpop.trf.xlu0
        %v951 = vpop.trf.xlu0
        %v952 = vpop.trf.xlu0
        %v953 = vpop.trf.xlu0
        %v954 = vpop.trf.xlu0
        %v955 = vpop.trf.xlu0
        %956 = vxpose.xlu0.b32.start [1/16] %v774, 128
        %957 = vxpose.xlu0.b32.cont [2/16] %v777, 128
        %958 = vxpose.xlu0.b32.cont [3/16] 0.0, 128
        %959 = vxpose.xlu0.b32.cont [4/16] 0.0, 128
        %960 = vxpose.xlu0.b32.cont [5/16] 0.0, 128
        %961 = vxpose.xlu0.b32.cont [6/16] 0.0, 128
        %962 = vxpose.xlu0.b32.cont [7/16] 0.0, 128
        %963 = vxpose.xlu0.b32.cont [8/16] 0.0, 128
        %964 = vxpose.xlu0.b32.cont [9/16] 0.0, 128
        %965 = vxpose.xlu0.b32.cont [10/16] 0.0, 128
        %966 = vxpose.xlu0.b32.cont [11/16] 0.0, 128
        %967 = vxpose.xlu0.b32.cont [12/16] 0.0, 128
        %968 = vxpose.xlu0.b32.cont [13/16] 0.0, 128
        %969 = vxpose.xlu0.b32.cont [14/16] 0.0, 128
        %970 = vxpose.xlu0.b32.cont [15/16] 0.0, 128
        %971 = vxpose.xlu0.b32.end [16/16] 0.0, 128
        %v972 = vpop.trf.xlu0
        %v973 = vpop.trf.xlu0
        %v974 = vpop.trf.xlu0
        %v975 = vpop.trf.xlu0
        %v976 = vpop.trf.xlu0
        %v977 = vpop.trf.xlu0
        %v978 = vpop.trf.xlu0
        %v979 = vpop.trf.xlu0
        %v980 = vpop.trf.xlu0
        %v981 = vpop.trf.xlu0
        %v982 = vpop.trf.xlu0
        %v983 = vpop.trf.xlu0
        %v984 = vpop.trf.xlu0
        %v985 = vpop.trf.xlu0
        %v986 = vpop.trf.xlu0
        %v987 = vpop.trf.xlu0
        %988 = vxpose.xlu0.b32.start [1/16] %v782, 128
        %989 = vxpose.xlu0.b32.cont [2/16] %v785, 128
        %990 = vxpose.xlu0.b32.cont [3/16] 0.0, 128
        %991 = vxpose.xlu0.b32.cont [4/16] 0.0, 128
        %992 = vxpose.xlu0.b32.cont [5/16] 0.0, 128
        %993 = vxpose.xlu0.b32.cont [6/16] 0.0, 128
        %994 = vxpose.xlu0.b32.cont [7/16] 0.0, 128
        %995 = vxpose.xlu0.b32.cont [8/16] 0.0, 128
        %996 = vxpose.xlu0.b32.cont [9/16] 0.0, 128
        %997 = vxpose.xlu0.b32.cont [10/16] 0.0, 128
        %998 = vxpose.xlu0.b32.cont [11/16] 0.0, 128
        %999 = vxpose.xlu0.b32.cont [12/16] 0.0, 128
        %1000 = vxpose.xlu0.b32.cont [13/16] 0.0, 128
        %1001 = vxpose.xlu0.b32.cont [14/16] 0.0, 128
        %1002 = vxpose.xlu0.b32.cont [15/16] 0.0, 128
        %1003 = vxpose.xlu0.b32.end [16/16] 0.0, 128
        %v1004 = vpop.trf.xlu0
        %v1005 = vpop.trf.xlu0
        %v1006 = vpop.trf.xlu0
        %v1007 = vpop.trf.xlu0
        %v1008 = vpop.trf.xlu0
        %v1009 = vpop.trf.xlu0
        %v1010 = vpop.trf.xlu0
        %v1011 = vpop.trf.xlu0
        %v1012 = vpop.trf.xlu0
        %v1013 = vpop.trf.xlu0
        %v1014 = vpop.trf.xlu0
        %v1015 = vpop.trf.xlu0
        %v1016 = vpop.trf.xlu0
        %v1017 = vpop.trf.xlu0
        %v1018 = vpop.trf.xlu0
        %v1019 = vpop.trf.xlu0
        %1020 = vxpose.xlu0.b32.start [1/16] %v790, 128
        %1021 = vxpose.xlu0.b32.cont [2/16] %v793, 128
        %1022 = vxpose.xlu0.b32.cont [3/16] 0.0, 128
        %1023 = vxpose.xlu0.b32.cont [4/16] 0.0, 128
        %1024 = vxpose.xlu0.b32.cont [5/16] 0.0, 128
        %1025 = vxpose.xlu0.b32.cont [6/16] 0.0, 128
        %1026 = vxpose.xlu0.b32.cont [7/16] 0.0, 128
        %1027 = vxpose.xlu0.b32.cont [8/16] 0.0, 128
        %1028 = vxpose.xlu0.b32.cont [9/16] 0.0, 128
        %1029 = vxpose.xlu0.b32.cont [10/16] 0.0, 128
        %1030 = vxpose.xlu0.b32.cont [11/16] 0.0, 128
        %1031 = vxpose.xlu0.b32.cont [12/16] 0.0, 128
        %1032 = vxpose.xlu0.b32.cont [13/16] 0.0, 128
        %1033 = vxpose.xlu0.b32.cont [14/16] 0.0, 128
        %1034 = vxpose.xlu0.b32.cont [15/16] 0.0, 128
        %1035 = vxpose.xlu0.b32.end [16/16] 0.0, 128
        %v1036 = vpop.trf.xlu0
        %v1037 = vpop.trf.xlu0
        %v1038 = vpop.trf.xlu0
        %v1039 = vpop.trf.xlu0
        %v1040 = vpop.trf.xlu0
        %v1041 = vpop.trf.xlu0
        %v1042 = vpop.trf.xlu0
        %v1043 = vpop.trf.xlu0
        %v1044 = vpop.trf.xlu0
        %v1045 = vpop.trf.xlu0
        %v1046 = vpop.trf.xlu0
        %v1047 = vpop.trf.xlu0
        %v1048 = vpop.trf.xlu0
        %v1049 = vpop.trf.xlu0
        %v1050 = vpop.trf.xlu0
        %v1051 = vpop.trf.xlu0
        %v1052 = vpack.c.bf16 %v813, %v812
        %v1053 = vpack.c.bf16 %v845, %v844
        %v1054 = vpack.c.bf16 %v877, %v876
        %v1055 = vpack.c.bf16 %v909, %v908
        %v1056 = vpack.c.bf16 %v941, %v940
        %v1057 = vpack.c.bf16 %v973, %v972
        %v1058 = vpack.c.bf16 %v1005, %v1004
        %v1059 = vpack.c.bf16 %v1037, %v1036
        %v1061 = vsel %vm403, %v1052, 0
        %v1064 = vsel %vm403, %v1053, 0
        %v1067 = vsel %vm403, %v1054, 0
        %v1070 = vsel %vm403, %v1055, 0
        %1072 = vmatprep.subr.bf16.mxu0 0
        %1073 = vmatpush1.bf16.msra.mxu0 %v496
        %1074 = vmatprep.subr.bf16.mxu0 0
        %1075 = vmatpush1.bf16.msra.mxu0 0
        %1076 = vmatprep.subr.bf16.mxu0 0
        %1077 = vmatpush1.bf16.msra.mxu0 0
        %1078 = vmatprep.subr.bf16.mxu0 0
        %1079 = vmatpush1.bf16.msra.mxu0 0
        %1080 = vmatprep.subr.bf16.mxu0 0
        %1081 = vmatpush1.bf16.msra.mxu0 0
        %1082 = vmatprep.subr.bf16.mxu0 0
        %1083 = vmatpush1.bf16.msra.mxu0 0
        %1084 = vmatprep.subr.bf16.mxu0 0
        %1085 = vmatpush1.bf16.msra.mxu0 0
        %1086 = vmatprep.subr.bf16.mxu0 0
        %1087 = vmatpush1.bf16.msra.mxu0 0
        %1088 = vmatprep.subr.bf16.mxu0 0
        %1089 = vmatpush1.bf16.msra.mxu0 0
        %1090 = vmatprep.subr.bf16.mxu0 0
        %1091 = vmatpush1.bf16.msra.mxu0 0
        %1092 = vmatprep.subr.bf16.mxu0 0
        %1093 = vmatpush1.bf16.msra.mxu0 0
        %1094 = vmatprep.subr.bf16.mxu0 0
        %1095 = vmatpush1.bf16.msra.mxu0 0
        %1096 = vmatprep.subr.bf16.mxu0 0
        %1097 = vmatpush1.bf16.msra.mxu0 0
        %1098 = vmatprep.subr.bf16.mxu0 0
        %1099 = vmatpush1.bf16.msra.mxu0 0
        %1100 = vmatprep.subr.bf16.mxu0 0
        %1101 = vmatpush1.bf16.msra.mxu0 0
        %1102 = vmatprep.subr.bf16.mxu0 0
        %1103 = vmatpush1.bf16.msra.mxu0 0
        %1104 = vmatprep.mubr.bf16.mxu0 0
        %1105 = vmatmul.mubr.bf16.gmra.mrb[0].mxu0 %v1061
        %v1106 = vpop.f32.mrb[0].mxu0
        %v1107 = vadd.f32 0.0, %v1106
        %v1108 = vpop.f32.mrb[0].mxu0
        %v1109 = vpop.f32.mrb[0].mxu0
        %v1110 = vadd.f32 0.0, %v1109
        %v1111 = vpop.f32.mrb[0].mxu0
        %1112 = vmatprep.mubr.bf16.mxu0 0
        %1113 = vmatmul.mubr.bf16.gmra.mrb[0].mxu0 %v1064
        %v1114 = vpop.f32.mrb[0].mxu0
        %v1115 = vadd.f32 0.0, %v1114
        %v1116 = vpop.f32.mrb[0].mxu0
        %v1117 = vpop.f32.mrb[0].mxu0
        %v1118 = vadd.f32 0.0, %v1117
        %v1119 = vpop.f32.mrb[0].mxu0
        %1120 = vmatprep.mubr.bf16.mxu0 0
        %1121 = vmatmul.mubr.bf16.gmra.mrb[0].mxu0 %v1067
        %v1122 = vpop.f32.mrb[0].mxu0
        %v1123 = vadd.f32 0.0, %v1122
        %v1124 = vpop.f32.mrb[0].mxu0
        %v1125 = vpop.f32.mrb[0].mxu0
        %v1126 = vadd.f32 0.0, %v1125
        %v1127 = vpop.f32.mrb[0].mxu0
        %1128 = vmatprep.mubr.bf16.mxu0 0
        %1129 = vmatmul.mubr.bf16.gmra.mrb[0].mxu0 %v1070
        %v1130 = vpop.f32.mrb[0].mxu0
        %v1131 = vadd.f32 0.0, %v1130
        %v1132 = vpop.f32.mrb[0].mxu0
        %v1133 = vpop.f32.mrb[0].mxu0
        %v1134 = vadd.f32 0.0, %v1133
        %v1135 = vpop.f32.mrb[0].mxu0
        %1136 = vdwg.mxu0
        %v1138 = vsel %vm403, %v1056, 0
        %v1141 = vsel %vm403, %v1057, 0
        %v1144 = vsel %vm403, %v1058, 0
        %v1147 = vsel %vm403, %v1059, 0
        %1149 = vmatprep.subr.bf16.mxu0 0
        %1150 = vmatpush1.bf16.msra.mxu0 %v579
        %1151 = vmatprep.subr.bf16.mxu0 0
        %1152 = vmatpush1.bf16.msra.mxu0 0
        %1153 = vmatprep.subr.bf16.mxu0 0
        %1154 = vmatpush1.bf16.msra.mxu0 0
        %1155 = vmatprep.subr.bf16.mxu0 0
        %1156 = vmatpush1.bf16.msra.mxu0 0
        %1157 = vmatprep.subr.bf16.mxu0 0
        %1158 = vmatpush1.bf16.msra.mxu0 0
        %1159 = vmatprep.subr.bf16.mxu0 0
        %1160 = vmatpush1.bf16.msra.mxu0 0
        %1161 = vmatprep.subr.bf16.mxu0 0
        %1162 = vmatpush1.bf16.msra.mxu0 0
        %1163 = vmatprep.subr.bf16.mxu0 0
        %1164 = vmatpush1.bf16.msra.mxu0 0
        %1165 = vmatprep.subr.bf16.mxu0 0
        %1166 = vmatpush1.bf16.msra.mxu0 0
        %1167 = vmatprep.subr.bf16.mxu0 0
        %1168 = vmatpush1.bf16.msra.mxu0 0
        %1169 = vmatprep.subr.bf16.mxu0 0
        %1170 = vmatpush1.bf16.msra.mxu0 0
        %1171 = vmatprep.subr.bf16.mxu0 0
        %1172 = vmatpush1.bf16.msra.mxu0 0
        %1173 = vmatprep.subr.bf16.mxu0 0
        %1174 = vmatpush1.bf16.msra.mxu0 0
        %1175 = vmatprep.subr.bf16.mxu0 0
        %1176 = vmatpush1.bf16.msra.mxu0 0
        %1177 = vmatprep.subr.bf16.mxu0 0
        %1178 = vmatpush1.bf16.msra.mxu0 0
        %1179 = vmatprep.subr.bf16.mxu0 0
        %1180 = vmatpush1.bf16.msra.mxu0 0
        %1181 = vmatprep.mubr.bf16.mxu0 0
        %1182 = vmatmul.mubr.bf16.gmra.mrb[0].mxu0 %v1138
        %v1183 = vpop.f32.mrb[0].mxu0
        %v1184 = vadd.f32 0.0, %v1183
        %v1185 = vpop.f32.mrb[0].mxu0
        %v1186 = vpop.f32.mrb[0].mxu0
        %v1187 = vadd.f32 0.0, %v1186
        %v1188 = vpop.f32.mrb[0].mxu0
        %1189 = vmatprep.mubr.bf16.mxu0 0
        %1190 = vmatmul.mubr.bf16.gmra.mrb[0].mxu0 %v1141
        %v1191 = vpop.f32.mrb[0].mxu0
        %v1192 = vadd.f32 0.0, %v1191
        %v1193 = vpop.f32.mrb[0].mxu0
        %v1194 = vpop.f32.mrb[0].mxu0
        %v1195 = vadd.f32 0.0, %v1194
        %v1196 = vpop.f32.mrb[0].mxu0
        %1197 = vmatprep.mubr.bf16.mxu0 0
        %1198 = vmatmul.mubr.bf16.gmra.mrb[0].mxu0 %v1144
        %v1199 = vpop.f32.mrb[0].mxu0
        %v1200 = vadd.f32 0.0, %v1199
        %v1201 = vpop.f32.mrb[0].mxu0
        %v1202 = vpop.f32.mrb[0].mxu0
        %v1203 = vadd.f32 0.0, %v1202
        %v1204 = vpop.f32.mrb[0].mxu0
        %1205 = vmatprep.mubr.bf16.mxu0 0
        %1206 = vmatmul.mubr.bf16.gmra.mrb[0].mxu0 %v1147
        %v1207 = vpop.f32.mrb[0].mxu0
        %v1208 = vadd.f32 0.0, %v1207
        %v1209 = vpop.f32.mrb[0].mxu0
        %v1210 = vpop.f32.mrb[0].mxu0
        %v1211 = vadd.f32 0.0, %v1210
        %v1212 = vpop.f32.mrb[0].mxu0
        %1213 = vdwg.mxu0
        %v1214 = vsub.f32 %v1107, %v1184
        %v1215 = vsub.f32 %v1110, %v1187
        %v1216 = vsub.f32 %v1115, %v1192
        %v1217 = vsub.f32 %v1118, %v1195
        %v1218 = vsub.f32 %v1123, %v1200
        %v1219 = vsub.f32 %v1126, %v1203
        %v1220 = vsub.f32 %v1131, %v1208
        %v1221 = vsub.f32 %v1134, %v1211
        %1222 = vmatprep.subr.bf16.mxu0 0
        %1223 = vmatpush1.bf16.msra.mxu0 %v496
        %1224 = vmatprep.subr.bf16.mxu0 0
        %1225 = vmatpush1.bf16.msra.mxu0 0
        %1226 = vmatprep.subr.bf16.mxu0 0
        %1227 = vmatpush1.bf16.msra.mxu0 0
        %1228 = vmatprep.subr.bf16.mxu0 0
        %1229 = vmatpush1.bf16.msra.mxu0 0
        %1230 = vmatprep.subr.bf16.mxu0 0
        %1231 = vmatpush1.bf16.msra.mxu0 0
        %1232 = vmatprep.subr.bf16.mxu0 0
        %1233 = vmatpush1.bf16.msra.mxu0 0
        %1234 = vmatprep.subr.bf16.mxu0 0
        %1235 = vmatpush1.bf16.msra.mxu0 0
        %1236 = vmatprep.subr.bf16.mxu0 0
        %1237 = vmatpush1.bf16.msra.mxu0 0
        %1238 = vmatprep.subr.bf16.mxu0 0
        %1239 = vmatpush1.bf16.msra.mxu0 0
        %1240 = vmatprep.subr.bf16.mxu0 0
        %1241 = vmatpush1.bf16.msra.mxu0 0
        %1242 = vmatprep.subr.bf16.mxu0 0
        %1243 = vmatpush1.bf16.msra.mxu0 0
        %1244 = vmatprep.subr.bf16.mxu0 0
        %1245 = vmatpush1.bf16.msra.mxu0 0
        %1246 = vmatprep.subr.bf16.mxu0 0
        %1247 = vmatpush1.bf16.msra.mxu0 0
        %1248 = vmatprep.subr.bf16.mxu0 0
        %1249 = vmatpush1.bf16.msra.mxu0 0
        %1250 = vmatprep.subr.bf16.mxu0 0
        %1251 = vmatpush1.bf16.msra.mxu0 0
        %1252 = vmatprep.subr.bf16.mxu0 0
        %1253 = vmatpush1.bf16.msra.mxu0 0
        %1254 = vmatprep.mubr.bf16.mxu0 0
        %1255 = vmatmul.mubr.bf16.gmra.mrb[0].mxu0 %v1138
        %v1256 = vpop.f32.mrb[0].mxu0
        %v1257 = vadd.f32 0.0, %v1256
        %v1258 = vpop.f32.mrb[0].mxu0
        %v1259 = vpop.f32.mrb[0].mxu0
        %v1260 = vadd.f32 0.0, %v1259
        %v1261 = vpop.f32.mrb[0].mxu0
        %1262 = vmatprep.mubr.bf16.mxu0 0
        %1263 = vmatmul.mubr.bf16.gmra.mrb[0].mxu0 %v1141
        %v1264 = vpop.f32.mrb[0].mxu0
        %v1265 = vadd.f32 0.0, %v1264
        %v1266 = vpop.f32.mrb[0].mxu0
        %v1267 = vpop.f32.mrb[0].mxu0
        %v1268 = vadd.f32 0.0, %v1267
        %v1269 = vpop.f32.mrb[0].mxu0
        %1270 = vmatprep.mubr.bf16.mxu0 0
        %1271 = vmatmul.mubr.bf16.gmra.mrb[0].mxu0 %v1144
        %v1272 = vpop.f32.mrb[0].mxu0
        %v1273 = vadd.f32 0.0, %v1272
        %v1274 = vpop.f32.mrb[0].mxu0
        %v1275 = vpop.f32.mrb[0].mxu0
        %v1276 = vadd.f32 0.0, %v1275
        %v1277 = vpop.f32.mrb[0].mxu0
        %1278 = vmatprep.mubr.bf16.mxu0 0
        %1279 = vmatmul.mubr.bf16.gmra.mrb[0].mxu0 %v1147
        %v1280 = vpop.f32.mrb[0].mxu0
        %v1281 = vadd.f32 0.0, %v1280
        %v1282 = vpop.f32.mrb[0].mxu0
        %v1283 = vpop.f32.mrb[0].mxu0
        %v1284 = vadd.f32 0.0, %v1283
        %v1285 = vpop.f32.mrb[0].mxu0
        %1286 = vdwg.mxu0
        %1287 = vmatprep.subr.bf16.mxu0 0
        %1288 = vmatpush1.bf16.msra.mxu0 %v579
        %1289 = vmatprep.subr.bf16.mxu0 0
        %1290 = vmatpush1.bf16.msra.mxu0 0
        %1291 = vmatprep.subr.bf16.mxu0 0
        %1292 = vmatpush1.bf16.msra.mxu0 0
        %1293 = vmatprep.subr.bf16.mxu0 0
        %1294 = vmatpush1.bf16.msra.mxu0 0
        %1295 = vmatprep.subr.bf16.mxu0 0
        %1296 = vmatpush1.bf16.msra.mxu0 0
        %1297 = vmatprep.subr.bf16.mxu0 0
        %1298 = vmatpush1.bf16.msra.mxu0 0
        %1299 = vmatprep.subr.bf16.mxu0 0
        %1300 = vmatpush1.bf16.msra.mxu0 0
        %1301 = vmatprep.subr.bf16.mxu0 0
        %1302 = vmatpush1.bf16.msra.mxu0 0
        %1303 = vmatprep.subr.bf16.mxu0 0
        %1304 = vmatpush1.bf16.msra.mxu0 0
        %1305 = vmatprep.subr.bf16.mxu0 0
        %1306 = vmatpush1.bf16.msra.mxu0 0
        %1307 = vmatprep.subr.bf16.mxu0 0
        %1308 = vmatpush1.bf16.msra.mxu0 0
        %1309 = vmatprep.subr.bf16.mxu0 0
        %1310 = vmatpush1.bf16.msra.mxu0 0
        %1311 = vmatprep.subr.bf16.mxu0 0
        %1312 = vmatpush1.bf16.msra.mxu0 0
        %1313 = vmatprep.subr.bf16.mxu0 0
        %1314 = vmatpush1.bf16.msra.mxu0 0
        %1315 = vmatprep.subr.bf16.mxu0 0
        %1316 = vmatpush1.bf16.msra.mxu0 0
        %1317 = vmatprep.subr.bf16.mxu0 0
        %1318 = vmatpush1.bf16.msra.mxu0 0
        %1319 = vmatprep.mubr.bf16.mxu0 0
        %1320 = vmatmul.mubr.bf16.gmra.mrb[0].mxu0 %v1061
        %v1321 = vpop.f32.mrb[0].mxu0
        %v1322 = vadd.f32 %v1257, %v1321
        %v1323 = vpop.f32.mrb[0].mxu0
        %v1324 = vpop.f32.mrb[0].mxu0
        %v1325 = vadd.f32 %v1260, %v1324
        %v1326 = vpop.f32.mrb[0].mxu0
        %1327 = vmatprep.mubr.bf16.mxu0 0
        %1328 = vmatmul.mubr.bf16.gmra.mrb[0].mxu0 %v1064
        %v1329 = vpop.f32.mrb[0].mxu0
        %v1330 = vadd.f32 %v1265, %v1329
        %v1331 = vpop.f32.mrb[0].mxu0
        %v1332 = vpop.f32.mrb[0].mxu0
        %v1333 = vadd.f32 %v1268, %v1332
        %v1334 = vpop.f32.mrb[0].mxu0
        %1335 = vmatprep.mubr.bf16.mxu0 0
        %1336 = vmatmul.mubr.bf16.gmra.mrb[0].mxu0 %v1067
        %v1337 = vpop.f32.mrb[0].mxu0
        %v1338 = vadd.f32 %v1273, %v1337
        %v1339 = vpop.f32.mrb[0].mxu0
        %v1340 = vpop.f32.mrb[0].mxu0
        %v1341 = vadd.f32 %v1276, %v1340
        %v1342 = vpop.f32.mrb[0].mxu0
        %1343 = vmatprep.mubr.bf16.mxu0 0
        %1344 = vmatmul.mubr.bf16.gmra.mrb[0].mxu0 %v1070
        %v1345 = vpop.f32.mrb[0].mxu0
        %v1346 = vadd.f32 %v1281, %v1345
        %v1347 = vpop.f32.mrb[0].mxu0
        %v1348 = vpop.f32.mrb[0].mxu0
        %v1349 = vadd.f32 %v1284, %v1348
        %v1350 = vpop.f32.mrb[0].mxu0
        %1351 = vdwg.mxu0
        %v1352 = vmul.f32 %v1214, %v391
        %v1353 = vmul.f32 %v1215, %v392
        %v1354 = vmul.f32 %v1216, %v391
        %v1355 = vmul.f32 %v1217, %v392
        %v1356 = vmul.f32 %v1218, %v391
        %v1357 = vmul.f32 %v1219, %v392
        %v1358 = vmul.f32 %v1220, %v391
        %v1359 = vmul.f32 %v1221, %v392
        %v1360 = vmul.f32 %v1322, %v391
        %v1361 = vmul.f32 %v1325, %v392
        %v1362 = vmul.f32 %v1330, %v391
        %v1363 = vmul.f32 %v1333, %v392
        %v1364 = vmul.f32 %v1338, %v391
        %v1365 = vmul.f32 %v1341, %v392
        %v1366 = vmul.f32 %v1346, %v391
        %v1367 = vmul.f32 %v1349, %v392
        %v1368 = vpack.c.bf16 %v1353, %v1352
        %v1369 = vpack.c.bf16 %v1355, %v1354
        %v1370 = vpack.c.bf16 %v1357, %v1356
        %v1371 = vpack.c.bf16 %v1359, %v1358
        %v1372 = vpack.c.bf16 %v1361, %v1360
        %v1373 = vpack.c.bf16 %v1363, %v1362
        %v1374 = vpack.c.bf16 %v1365, %v1364
        %v1375 = vpack.c.bf16 %v1367, %v1366
        %v1377 = vsel %vm403, %v1368, 0
        %v1380 = vsel %vm403, %v1369, 0
        %v1383 = vsel %vm403, %v1370, 0
        %v1386 = vsel %vm403, %v1371, 0
        %1388 = vmatprep.subr.bf16.mxu0 0
        %1389 = vmatpush1.bf16.msra.mxu0 %v496
        %1390 = vmatprep.subr.bf16.mxu0 0
        %1391 = vmatpush1.bf16.msra.mxu0 0
        %1392 = vmatprep.subr.bf16.mxu0 0
        %1393 = vmatpush1.bf16.msra.mxu0 0
        %1394 = vmatprep.subr.bf16.mxu0 0
        %1395 = vmatpush1.bf16.msra.mxu0 0
        %1396 = vmatprep.subr.bf16.mxu0 0
        %1397 = vmatpush1.bf16.msra.mxu0 0
        %1398 = vmatprep.subr.bf16.mxu0 0
        %1399 = vmatpush1.bf16.msra.mxu0 0
        %1400 = vmatprep.subr.bf16.mxu0 0
        %1401 = vmatpush1.bf16.msra.mxu0 0
        %1402 = vmatprep.subr.bf16.mxu0 0
        %1403 = vmatpush1.bf16.msra.mxu0 0
        %1404 = vmatprep.subr.bf16.mxu0 0
        %1405 = vmatpush1.bf16.msra.mxu0 0
        %1406 = vmatprep.subr.bf16.mxu0 0
        %1407 = vmatpush1.bf16.msra.mxu0 0
        %1408 = vmatprep.subr.bf16.mxu0 0
        %1409 = vmatpush1.bf16.msra.mxu0 0
        %1410 = vmatprep.subr.bf16.mxu0 0
        %1411 = vmatpush1.bf16.msra.mxu0 0
        %1412 = vmatprep.subr.bf16.mxu0 0
        %1413 = vmatpush1.bf16.msra.mxu0 0
        %1414 = vmatprep.subr.bf16.mxu0 0
        %1415 = vmatpush1.bf16.msra.mxu0 0
        %1416 = vmatprep.subr.bf16.mxu0 0
        %1417 = vmatpush1.bf16.msra.mxu0 0
        %1418 = vmatprep.subr.bf16.mxu0 0
        %1419 = vmatpush1.bf16.msra.mxu0 0
        %1420 = vmatprep.mubr.bf16.mxu0 0
        %1421 = vmatmul.mubr.bf16.gmra.mrb[0].mxu0 %v1377
        %v1422 = vpop.f32.mrb[0].mxu0
        %v1423 = vadd.f32 0.0, %v1422
        %v1424 = vpop.f32.mrb[0].mxu0
        %v1425 = vpop.f32.mrb[0].mxu0
        %v1426 = vadd.f32 0.0, %v1425
        %v1427 = vpop.f32.mrb[0].mxu0
        %1428 = vmatprep.mubr.bf16.mxu0 0
        %1429 = vmatmul.mubr.bf16.gmra.mrb[0].mxu0 %v1380
        %v1430 = vpop.f32.mrb[0].mxu0
        %v1431 = vadd.f32 0.0, %v1430
        %v1432 = vpop.f32.mrb[0].mxu0
        %v1433 = vpop.f32.mrb[0].mxu0
        %v1434 = vadd.f32 0.0, %v1433
        %v1435 = vpop.f32.mrb[0].mxu0
        %1436 = vmatprep.mubr.bf16.mxu0 0
        %1437 = vmatmul.mubr.bf16.gmra.mrb[0].mxu0 %v1383
        %v1438 = vpop.f32.mrb[0].mxu0
        %v1439 = vadd.f32 0.0, %v1438
        %v1440 = vpop.f32.mrb[0].mxu0
        %v1441 = vpop.f32.mrb[0].mxu0
        %v1442 = vadd.f32 0.0, %v1441
        %v1443 = vpop.f32.mrb[0].mxu0
        %1444 = vmatprep.mubr.bf16.mxu0 0
        %1445 = vmatmul.mubr.bf16.gmra.mrb[0].mxu0 %v1386
        %v1446 = vpop.f32.mrb[0].mxu0
        %v1447 = vadd.f32 0.0, %v1446
        %v1448 = vpop.f32.mrb[0].mxu0
        %v1449 = vpop.f32.mrb[0].mxu0
        %v1450 = vadd.f32 0.0, %v1449
        %v1451 = vpop.f32.mrb[0].mxu0
        %1452 = vdwg.mxu0
        %v1455 = vunpack.c.l.b16 %v373
        %v1456 = vunpack.c.l.b16 %v374
        %v1457 = vpack.c.b16 %v1456, %v1455
        %v1460 = vsel %vm403, %v1372, 0
        %v1463 = vsel %vm403, %v1373, 0
        %v1466 = vsel %vm403, %v1374, 0
        %v1469 = vsel %vm403, %v1375, 0
        %1471 = vmatprep.subr.bf16.mxu0 0
        %1472 = vmatpush1.bf16.msra.mxu0 %v1457
        %1473 = vmatprep.subr.bf16.mxu0 0
        %1474 = vmatpush1.bf16.msra.mxu0 0
        %1475 = vmatprep.subr.bf16.mxu0 0
        %1476 = vmatpush1.bf16.msra.mxu0 0
        %1477 = vmatprep.subr.bf16.mxu0 0
        %1478 = vmatpush1.bf16.msra.mxu0 0
        %1479 = vmatprep.subr.bf16.mxu0 0
        %1480 = vmatpush1.bf16.msra.mxu0 0
        %1481 = vmatprep.subr.bf16.mxu0 0
        %1482 = vmatpush1.bf16.msra.mxu0 0
        %1483 = vmatprep.subr.bf16.mxu0 0
        %1484 = vmatpush1.bf16.msra.mxu0 0
        %1485 = vmatprep.subr.bf16.mxu0 0
        %1486 = vmatpush1.bf16.msra.mxu0 0
        %1487 = vmatprep.subr.bf16.mxu0 0
        %1488 = vmatpush1.bf16.msra.mxu0 0
        %1489 = vmatprep.subr.bf16.mxu0 0
        %1490 = vmatpush1.bf16.msra.mxu0 0
        %1491 = vmatprep.subr.bf16.mxu0 0
        %1492 = vmatpush1.bf16.msra.mxu0 0
        %1493 = vmatprep.subr.bf16.mxu0 0
        %1494 = vmatpush1.bf16.msra.mxu0 0
        %1495 = vmatprep.subr.bf16.mxu0 0
        %1496 = vmatpush1.bf16.msra.mxu0 0
        %1497 = vmatprep.subr.bf16.mxu0 0
        %1498 = vmatpush1.bf16.msra.mxu0 0
        %1499 = vmatprep.subr.bf16.mxu0 0
        %1500 = vmatpush1.bf16.msra.mxu0 0
        %1501 = vmatprep.subr.bf16.mxu0 0
        %1502 = vmatpush1.bf16.msra.mxu0 0
        %1503 = vmatprep.mubr.bf16.mxu0 0
        %1504 = vmatmul.mubr.bf16.gmra.mrb[0].mxu0 %v1460
        %v1505 = vpop.f32.mrb[0].mxu0
        %v1506 = vadd.f32 0.0, %v1505
        %v1507 = vpop.f32.mrb[0].mxu0
        %v1508 = vpop.f32.mrb[0].mxu0
        %v1509 = vadd.f32 0.0, %v1508
        %v1510 = vpop.f32.mrb[0].mxu0
        %1511 = vmatprep.mubr.bf16.mxu0 0
        %1512 = vmatmul.mubr.bf16.gmra.mrb[0].mxu0 %v1463
        %v1513 = vpop.f32.mrb[0].mxu0
        %v1514 = vadd.f32 0.0, %v1513
        %v1515 = vpop.f32.mrb[0].mxu0
        %v1516 = vpop.f32.mrb[0].mxu0
        %v1517 = vadd.f32 0.0, %v1516
        %v1518 = vpop.f32.mrb[0].mxu0
        %1519 = vmatprep.mubr.bf16.mxu0 0
        %1520 = vmatmul.mubr.bf16.gmra.mrb[0].mxu0 %v1466
        %v1521 = vpop.f32.mrb[0].mxu0
        %v1522 = vadd.f32 0.0, %v1521
        %v1523 = vpop.f32.mrb[0].mxu0
        %v1524 = vpop.f32.mrb[0].mxu0
        %v1525 = vadd.f32 0.0, %v1524
        %v1526 = vpop.f32.mrb[0].mxu0
        %1527 = vmatprep.mubr.bf16.mxu0 0
        %1528 = vmatmul.mubr.bf16.gmra.mrb[0].mxu0 %v1469
        %v1529 = vpop.f32.mrb[0].mxu0
        %v1530 = vadd.f32 0.0, %v1529
        %v1531 = vpop.f32.mrb[0].mxu0
        %v1532 = vpop.f32.mrb[0].mxu0
        %v1533 = vadd.f32 0.0, %v1532
        %v1534 = vpop.f32.mrb[0].mxu0
        %1535 = vdwg.mxu0
        %v1536 = vsub.f32 %v1423, %v1506
        %v1537 = vsub.f32 %v1426, %v1509
        %v1538 = vsub.f32 %v1431, %v1514
        %v1539 = vsub.f32 %v1434, %v1517
        %v1540 = vsub.f32 %v1439, %v1522
        %v1541 = vsub.f32 %v1442, %v1525
        %v1542 = vsub.f32 %v1447, %v1530
        %v1543 = vsub.f32 %v1450, %v1533
        %1544 = vmatprep.subr.bf16.mxu0 0
        %1545 = vmatpush1.bf16.msra.mxu0 %v496
        %1546 = vmatprep.subr.bf16.mxu0 0
        %1547 = vmatpush1.bf16.msra.mxu0 0
        %1548 = vmatprep.subr.bf16.mxu0 0
        %1549 = vmatpush1.bf16.msra.mxu0 0
        %1550 = vmatprep.subr.bf16.mxu0 0
        %1551 = vmatpush1.bf16.msra.mxu0 0
        %1552 = vmatprep.subr.bf16.mxu0 0
        %1553 = vmatpush1.bf16.msra.mxu0 0
        %1554 = vmatprep.subr.bf16.mxu0 0
        %1555 = vmatpush1.bf16.msra.mxu0 0
        %1556 = vmatprep.subr.bf16.mxu0 0
        %1557 = vmatpush1.bf16.msra.mxu0 0
        %1558 = vmatprep.subr.bf16.mxu0 0
        %1559 = vmatpush1.bf16.msra.mxu0 0
        %1560 = vmatprep.subr.bf16.mxu0 0
        %1561 = vmatpush1.bf16.msra.mxu0 0
        %1562 = vmatprep.subr.bf16.mxu0 0
        %1563 = vmatpush1.bf16.msra.mxu0 0
        %1564 = vmatprep.subr.bf16.mxu0 0
        %1565 = vmatpush1.bf16.msra.mxu0 0
        %1566 = vmatprep.subr.bf16.mxu0 0
        %1567 = vmatpush1.bf16.msra.mxu0 0
        %1568 = vmatprep.subr.bf16.mxu0 0
        %1569 = vmatpush1.bf16.msra.mxu0 0
        %1570 = vmatprep.subr.bf16.mxu0 0
        %1571 = vmatpush1.bf16.msra.mxu0 0
        %1572 = vmatprep.subr.bf16.mxu0 0
        %1573 = vmatpush1.bf16.msra.mxu0 0
        %1574 = vmatprep.subr.bf16.mxu0 0
        %1575 = vmatpush1.bf16.msra.mxu0 0
        %1576 = vmatprep.mubr.bf16.mxu0 0
        %1577 = vmatmul.mubr.bf16.gmra.mrb[0].mxu0 %v1460
        %v1578 = vpop.f32.mrb[0].mxu0
        %v1579 = vadd.f32 0.0, %v1578
        %v1580 = vpop.f32.mrb[0].mxu0
        %v1581 = vpop.f32.mrb[0].mxu0
        %v1582 = vadd.f32 0.0, %v1581
        %v1583 = vpop.f32.mrb[0].mxu0
        %1584 = vmatprep.mubr.bf16.mxu0 0
        %1585 = vmatmul.mubr.bf16.gmra.mrb[0].mxu0 %v1463
        %v1586 = vpop.f32.mrb[0].mxu0
        %v1587 = vadd.f32 0.0, %v1586
        %v1588 = vpop.f32.mrb[0].mxu0
        %v1589 = vpop.f32.mrb[0].mxu0
        %v1590 = vadd.f32 0.0, %v1589
        %v1591 = vpop.f32.mrb[0].mxu0
        %1592 = vmatprep.mubr.bf16.mxu0 0
        %1593 = vmatmul.mubr.bf16.gmra.mrb[0].mxu0 %v1466
        %v1594 = vpop.f32.mrb[0].mxu0
        %v1595 = vadd.f32 0.0, %v1594
        %v1596 = vpop.f32.mrb[0].mxu0
        %v1597 = vpop.f32.mrb[0].mxu0
        %v1598 = vadd.f32 0.0, %v1597
        %v1599 = vpop.f32.mrb[0].mxu0
        %1600 = vmatprep.mubr.bf16.mxu0 0
        %1601 = vmatmul.mubr.bf16.gmra.mrb[0].mxu0 %v1469
        %v1602 = vpop.f32.mrb[0].mxu0
        %v1603 = vadd.f32 0.0, %v1602
        %v1604 = vpop.f32.mrb[0].mxu0
        %v1605 = vpop.f32.mrb[0].mxu0
        %v1606 = vadd.f32 0.0, %v1605
        %v1607 = vpop.f32.mrb[0].mxu0
        %1608 = vdwg.mxu0
        %1609 = vmatprep.subr.bf16.mxu0 0
        %1610 = vmatpush1.bf16.msra.mxu0 %v1457
        %1611 = vmatprep.subr.bf16.mxu0 0
        %1612 = vmatpush1.bf16.msra.mxu0 0
        %1613 = vmatprep.subr.bf16.mxu0 0
        %1614 = vmatpush1.bf16.msra.mxu0 0
        %1615 = vmatprep.subr.bf16.mxu0 0
        %1616 = vmatpush1.bf16.msra.mxu0 0
        %1617 = vmatprep.subr.bf16.mxu0 0
        %1618 = vmatpush1.bf16.msra.mxu0 0
        %1619 = vmatprep.subr.bf16.mxu0 0
        %1620 = vmatpush1.bf16.msra.mxu0 0
        %1621 = vmatprep.subr.bf16.mxu0 0
        %1622 = vmatpush1.bf16.msra.mxu0 0
        %1623 = vmatprep.subr.bf16.mxu0 0
        %1624 = vmatpush1.bf16.msra.mxu0 0
        %1625 = vmatprep.subr.bf16.mxu0 0
        %1626 = vmatpush1.bf16.msra.mxu0 0
        %1627 = vmatprep.subr.bf16.mxu0 0
        %1628 = vmatpush1.bf16.msra.mxu0 0
        %1629 = vmatprep.subr.bf16.mxu0 0
        %1630 = vmatpush1.bf16.msra.mxu0 0
        %1631 = vmatprep.subr.bf16.mxu0 0
        %1632 = vmatpush1.bf16.msra.mxu0 0
        %1633 = vmatprep.subr.bf16.mxu0 0
        %1634 = vmatpush1.bf16.msra.mxu0 0
        %1635 = vmatprep.subr.bf16.mxu0 0
        %1636 = vmatpush1.bf16.msra.mxu0 0
        %1637 = vmatprep.subr.bf16.mxu0 0
        %1638 = vmatpush1.bf16.msra.mxu0 0
        %1639 = vmatprep.subr.bf16.mxu0 0
        %1640 = vmatpush1.bf16.msra.mxu0 0
        %1641 = vmatprep.mubr.bf16.mxu0 0
        %1642 = vmatmul.mubr.bf16.gmra.mrb[0].mxu0 %v1377
        %v1643 = vpop.f32.mrb[0].mxu0
        %v1644 = vadd.f32 %v1579, %v1643
        %v1645 = vpop.f32.mrb[0].mxu0
        %v1646 = vpop.f32.mrb[0].mxu0
        %v1647 = vadd.f32 %v1582, %v1646
        %v1648 = vpop.f32.mrb[0].mxu0
        %1649 = vmatprep.mubr.bf16.mxu0 0
        %1650 = vmatmul.mubr.bf16.gmra.mrb[0].mxu0 %v1380
        %v1651 = vpop.f32.mrb[0].mxu0
        %v1652 = vadd.f32 %v1587, %v1651
        %v1653 = vpop.f32.mrb[0].mxu0
        %v1654 = vpop.f32.mrb[0].mxu0
        %v1655 = vadd.f32 %v1590, %v1654
        %v1656 = vpop.f32.mrb[0].mxu0
        %1657 = vmatprep.mubr.bf16.mxu0 0
        %1658 = vmatmul.mubr.bf16.gmra.mrb[0].mxu0 %v1383
        %v1659 = vpop.f32.mrb[0].mxu0
        %v1660 = vadd.f32 %v1595, %v1659
        %v1661 = vpop.f32.mrb[0].mxu0
        %v1662 = vpop.f32.mrb[0].mxu0
        %v1663 = vadd.f32 %v1598, %v1662
        %v1664 = vpop.f32.mrb[0].mxu0
        %1665 = vmatprep.mubr.bf16.mxu0 0
        %1666 = vmatmul.mubr.bf16.gmra.mrb[0].mxu0 %v1386
        %v1667 = vpop.f32.mrb[0].mxu0
        %v1668 = vadd.f32 %v1603, %v1667
        %v1669 = vpop.f32.mrb[0].mxu0
        %v1670 = vpop.f32.mrb[0].mxu0
        %v1671 = vadd.f32 %v1606, %v1670
        %v1672 = vpop.f32.mrb[0].mxu0
        %1673 = vdwg.mxu0
        %1674 = vxpose.xlu0.b32.start [1/16] %v1536, 128
        %1675 = vxpose.xlu0.b32.cont [2/16] %v1537, 128
        %1676 = vxpose.xlu0.b32.cont [3/16] 0.0, 128
        %1677 = vxpose.xlu0.b32.cont [4/16] 0.0, 128
        %1678 = vxpose.xlu0.b32.cont [5/16] 0.0, 128
        %1679 = vxpose.xlu0.b32.cont [6/16] 0.0, 128
        %1680 = vxpose.xlu0.b32.cont [7/16] 0.0, 128
        %1681 = vxpose.xlu0.b32.cont [8/16] 0.0, 128
        %1682 = vxpose.xlu0.b32.cont [9/16] 0.0, 128
        %1683 = vxpose.xlu0.b32.cont [10/16] 0.0, 128
        %1684 = vxpose.xlu0.b32.cont [11/16] 0.0, 128
        %1685 = vxpose.xlu0.b32.cont [12/16] 0.0, 128
        %1686 = vxpose.xlu0.b32.cont [13/16] 0.0, 128
        %1687 = vxpose.xlu0.b32.cont [14/16] 0.0, 128
        %1688 = vxpose.xlu0.b32.cont [15/16] 0.0, 128
        %1689 = vxpose.xlu0.b32.end [16/16] 0.0, 128
        %v1690 = vpop.trf.xlu0
        %v1691 = vpop.trf.xlu0
        %v1692 = vpop.trf.xlu0
        %v1693 = vpop.trf.xlu0
        %v1694 = vpop.trf.xlu0
        %v1695 = vpop.trf.xlu0
        %v1696 = vpop.trf.xlu0
        %v1697 = vpop.trf.xlu0
        %v1698 = vpop.trf.xlu0
        %v1699 = vpop.trf.xlu0
        %v1700 = vpop.trf.xlu0
        %v1701 = vpop.trf.xlu0
        %v1702 = vpop.trf.xlu0
        %v1703 = vpop.trf.xlu0
        %v1704 = vpop.trf.xlu0
        %v1705 = vpop.trf.xlu0
        %1706 = vxpose.xlu0.b32.start [1/16] %v1538, 128
        %1707 = vxpose.xlu0.b32.cont [2/16] %v1539, 128
        %1708 = vxpose.xlu0.b32.cont [3/16] 0.0, 128
        %1709 = vxpose.xlu0.b32.cont [4/16] 0.0, 128
        %1710 = vxpose.xlu0.b32.cont [5/16] 0.0, 128
        %1711 = vxpose.xlu0.b32.cont [6/16] 0.0, 128
        %1712 = vxpose.xlu0.b32.cont [7/16] 0.0, 128
        %1713 = vxpose.xlu0.b32.cont [8/16] 0.0, 128
        %1714 = vxpose.xlu0.b32.cont [9/16] 0.0, 128
        %1715 = vxpose.xlu0.b32.cont [10/16] 0.0, 128
        %1716 = vxpose.xlu0.b32.cont [11/16] 0.0, 128
        %1717 = vxpose.xlu0.b32.cont [12/16] 0.0, 128
        %1718 = vxpose.xlu0.b32.cont [13/16] 0.0, 128
        %1719 = vxpose.xlu0.b32.cont [14/16] 0.0, 128
        %1720 = vxpose.xlu0.b32.cont [15/16] 0.0, 128
        %1721 = vxpose.xlu0.b32.end [16/16] 0.0, 128
        %v1722 = vpop.trf.xlu0
        %v1723 = vpop.trf.xlu0
        %v1724 = vpop.trf.xlu0
        %v1725 = vpop.trf.xlu0
        %v1726 = vpop.trf.xlu0
        %v1727 = vpop.trf.xlu0
        %v1728 = vpop.trf.xlu0
        %v1729 = vpop.trf.xlu0
        %v1730 = vpop.trf.xlu0
        %v1731 = vpop.trf.xlu0
        %v1732 = vpop.trf.xlu0
        %v1733 = vpop.trf.xlu0
        %v1734 = vpop.trf.xlu0
        %v1735 = vpop.trf.xlu0
        %v1736 = vpop.trf.xlu0
        %v1737 = vpop.trf.xlu0
        %1738 = vxpose.xlu0.b32.start [1/16] %v1540, 128
        %1739 = vxpose.xlu0.b32.cont [2/16] %v1541, 128
        %1740 = vxpose.xlu0.b32.cont [3/16] 0.0, 128
        %1741 = vxpose.xlu0.b32.cont [4/16] 0.0, 128
        %1742 = vxpose.xlu0.b32.cont [5/16] 0.0, 128
        %1743 = vxpose.xlu0.b32.cont [6/16] 0.0, 128
        %1744 = vxpose.xlu0.b32.cont [7/16] 0.0, 128
        %1745 = vxpose.xlu0.b32.cont [8/16] 0.0, 128
        %1746 = vxpose.xlu0.b32.cont [9/16] 0.0, 128
        %1747 = vxpose.xlu0.b32.cont [10/16] 0.0, 128
        %1748 = vxpose.xlu0.b32.cont [11/16] 0.0, 128
        %1749 = vxpose.xlu0.b32.cont [12/16] 0.0, 128
        %1750 = vxpose.xlu0.b32.cont [13/16] 0.0, 128
        %1751 = vxpose.xlu0.b32.cont [14/16] 0.0, 128
        %1752 = vxpose.xlu0.b32.cont [15/16] 0.0, 128
        %1753 = vxpose.xlu0.b32.end [16/16] 0.0, 128
        %v1754 = vpop.trf.xlu0
        %v1755 = vpop.trf.xlu0
        %v1756 = vpop.trf.xlu0
        %v1757 = vpop.trf.xlu0
        %v1758 = vpop.trf.xlu0
        %v1759 = vpop.trf.xlu0
        %v1760 = vpop.trf.xlu0
        %v1761 = vpop.trf.xlu0
        %v1762 = vpop.trf.xlu0
        %v1763 = vpop.trf.xlu0
        %v1764 = vpop.trf.xlu0
        %v1765 = vpop.trf.xlu0
        %v1766 = vpop.trf.xlu0
        %v1767 = vpop.trf.xlu0
        %v1768 = vpop.trf.xlu0
        %v1769 = vpop.trf.xlu0
        %1770 = vxpose.xlu0.b32.start [1/16] %v1542, 128
        %1771 = vxpose.xlu0.b32.cont [2/16] %v1543, 128
        %1772 = vxpose.xlu0.b32.cont [3/16] 0.0, 128
        %1773 = vxpose.xlu0.b32.cont [4/16] 0.0, 128
        %1774 = vxpose.xlu0.b32.cont [5/16] 0.0, 128
        %1775 = vxpose.xlu0.b32.cont [6/16] 0.0, 128
        %1776 = vxpose.xlu0.b32.cont [7/16] 0.0, 128
        %1777 = vxpose.xlu0.b32.cont [8/16] 0.0, 128
        %1778 = vxpose.xlu0.b32.cont [9/16] 0.0, 128
        %1779 = vxpose.xlu0.b32.cont [10/16] 0.0, 128
        %1780 = vxpose.xlu0.b32.cont [11/16] 0.0, 128
        %1781 = vxpose.xlu0.b32.cont [12/16] 0.0, 128
        %1782 = vxpose.xlu0.b32.cont [13/16] 0.0, 128
        %1783 = vxpose.xlu0.b32.cont [14/16] 0.0, 128
        %1784 = vxpose.xlu0.b32.cont [15/16] 0.0, 128
        %1785 = vxpose.xlu0.b32.end [16/16] 0.0, 128
        %v1786 = vpop.trf.xlu0
        %v1787 = vpop.trf.xlu0
        %v1788 = vpop.trf.xlu0
        %v1789 = vpop.trf.xlu0
        %v1790 = vpop.trf.xlu0
        %v1791 = vpop.trf.xlu0
        %v1792 = vpop.trf.xlu0
        %v1793 = vpop.trf.xlu0
        %v1794 = vpop.trf.xlu0
        %v1795 = vpop.trf.xlu0
        %v1796 = vpop.trf.xlu0
        %v1797 = vpop.trf.xlu0
        %v1798 = vpop.trf.xlu0
        %v1799 = vpop.trf.xlu0
        %v1800 = vpop.trf.xlu0
        %v1801 = vpop.trf.xlu0
        %1802 = vxpose.xlu0.b32.start [1/16] %v1644, 128
        %1803 = vxpose.xlu0.b32.cont [2/16] %v1647, 128
        %1804 = vxpose.xlu0.b32.cont [3/16] 0.0, 128
        %1805 = vxpose.xlu0.b32.cont [4/16] 0.0, 128
        %1806 = vxpose.xlu0.b32.cont [5/16] 0.0, 128
        %1807 = vxpose.xlu0.b32.cont [6/16] 0.0, 128
        %1808 = vxpose.xlu0.b32.cont [7/16] 0.0, 128
        %1809 = vxpose.xlu0.b32.cont [8/16] 0.0, 128
        %1810 = vxpose.xlu0.b32.cont [9/16] 0.0, 128
        %1811 = vxpose.xlu0.b32.cont [10/16] 0.0, 128
        %1812 = vxpose.xlu0.b32.cont [11/16] 0.0, 128
        %1813 = vxpose.xlu0.b32.cont [12/16] 0.0, 128
        %1814 = vxpose.xlu0.b32.cont [13/16] 0.0, 128
        %1815 = vxpose.xlu0.b32.cont [14/16] 0.0, 128
        %1816 = vxpose.xlu0.b32.cont [15/16] 0.0, 128
        %1817 = vxpose.xlu0.b32.end [16/16] 0.0, 128
        %v1818 = vpop.trf.xlu0
        %v1819 = vpop.trf.xlu0
        %v1820 = vpop.trf.xlu0
        %v1821 = vpop.trf.xlu0
        %v1822 = vpop.trf.xlu0
        %v1823 = vpop.trf.xlu0
        %v1824 = vpop.trf.xlu0
        %v1825 = vpop.trf.xlu0
        %v1826 = vpop.trf.xlu0
        %v1827 = vpop.trf.xlu0
        %v1828 = vpop.trf.xlu0
        %v1829 = vpop.trf.xlu0
        %v1830 = vpop.trf.xlu0
        %v1831 = vpop.trf.xlu0
        %v1832 = vpop.trf.xlu0
        %v1833 = vpop.trf.xlu0
        %1834 = vxpose.xlu0.b32.start [1/16] %v1652, 128
        %1835 = vxpose.xlu0.b32.cont [2/16] %v1655, 128
        %1836 = vxpose.xlu0.b32.cont [3/16] 0.0, 128
        %1837 = vxpose.xlu0.b32.cont [4/16] 0.0, 128
        %1838 = vxpose.xlu0.b32.cont [5/16] 0.0, 128
        %1839 = vxpose.xlu0.b32.cont [6/16] 0.0, 128
        %1840 = vxpose.xlu0.b32.cont [7/16] 0.0, 128
        %1841 = vxpose.xlu0.b32.cont [8/16] 0.0, 128
        %1842 = vxpose.xlu0.b32.cont [9/16] 0.0, 128
        %1843 = vxpose.xlu0.b32.cont [10/16] 0.0, 128
        %1844 = vxpose.xlu0.b32.cont [11/16] 0.0, 128
        %1845 = vxpose.xlu0.b32.cont [12/16] 0.0, 128
        %1846 = vxpose.xlu0.b32.cont [13/16] 0.0, 128
        %1847 = vxpose.xlu0.b32.cont [14/16] 0.0, 128
        %1848 = vxpose.xlu0.b32.cont [15/16] 0.0, 128
        %1849 = vxpose.xlu0.b32.end [16/16] 0.0, 128
        %v1850 = vpop.trf.xlu0
        %v1851 = vpop.trf.xlu0
        %v1852 = vpop.trf.xlu0
        %v1853 = vpop.trf.xlu0
        %v1854 = vpop.trf.xlu0
        %v1855 = vpop.trf.xlu0
        %v1856 = vpop.trf.xlu0
        %v1857 = vpop.trf.xlu0
        %v1858 = vpop.trf.xlu0
        %v1859 = vpop.trf.xlu0
        %v1860 = vpop.trf.xlu0
        %v1861 = vpop.trf.xlu0
        %v1862 = vpop.trf.xlu0
        %v1863 = vpop.trf.xlu0
        %v1864 = vpop.trf.xlu0
        %v1865 = vpop.trf.xlu0
        %1866 = vxpose.xlu0.b32.start [1/16] %v1660, 128
        %1867 = vxpose.xlu0.b32.cont [2/16] %v1663, 128
        %1868 = vxpose.xlu0.b32.cont [3/16] 0.0, 128
        %1869 = vxpose.xlu0.b32.cont [4/16] 0.0, 128
        %1870 = vxpose.xlu0.b32.cont [5/16] 0.0, 128
        %1871 = vxpose.xlu0.b32.cont [6/16] 0.0, 128
        %1872 = vxpose.xlu0.b32.cont [7/16] 0.0, 128
        %1873 = vxpose.xlu0.b32.cont [8/16] 0.0, 128
        %1874 = vxpose.xlu0.b32.cont [9/16] 0.0, 128
        %1875 = vxpose.xlu0.b32.cont [10/16] 0.0, 128
        %1876 = vxpose.xlu0.b32.cont [11/16] 0.0, 128
        %1877 = vxpose.xlu0.b32.cont [12/16] 0.0, 128
        %1878 = vxpose.xlu0.b32.cont [13/16] 0.0, 128
        %1879 = vxpose.xlu0.b32.cont [14/16] 0.0, 128
        %1880 = vxpose.xlu0.b32.cont [15/16] 0.0, 128
        %1881 = vxpose.xlu0.b32.end [16/16] 0.0, 128
        %v1882 = vpop.trf.xlu0
        %v1883 = vpop.trf.xlu0
        %v1884 = vpop.trf.xlu0
        %v1885 = vpop.trf.xlu0
        %v1886 = vpop.trf.xlu0
        %v1887 = vpop.trf.xlu0
        %v1888 = vpop.trf.xlu0
        %v1889 = vpop.trf.xlu0
        %v1890 = vpop.trf.xlu0
        %v1891 = vpop.trf.xlu0
        %v1892 = vpop.trf.xlu0
        %v1893 = vpop.trf.xlu0
        %v1894 = vpop.trf.xlu0
        %v1895 = vpop.trf.xlu0
        %v1896 = vpop.trf.xlu0
        %v1897 = vpop.trf.xlu0
        %1898 = vxpose.xlu0.b32.start [1/16] %v1668, 128
        %1899 = vxpose.xlu0.b32.cont [2/16] %v1671, 128
        %1900 = vxpose.xlu0.b32.cont [3/16] 0.0, 128
        %1901 = vxpose.xlu0.b32.cont [4/16] 0.0, 128
        %1902 = vxpose.xlu0.b32.cont [5/16] 0.0, 128
        %1903 = vxpose.xlu0.b32.cont [6/16] 0.0, 128
        %1904 = vxpose.xlu0.b32.cont [7/16] 0.0, 128
        %1905 = vxpose.xlu0.b32.cont [8/16] 0.0, 128
        %1906 = vxpose.xlu0.b32.cont [9/16] 0.0, 128
        %1907 = vxpose.xlu0.b32.cont [10/16] 0.0, 128
        %1908 = vxpose.xlu0.b32.cont [11/16] 0.0, 128
        %1909 = vxpose.xlu0.b32.cont [12/16] 0.0, 128
        %1910 = vxpose.xlu0.b32.cont [13/16] 0.0, 128
        %1911 = vxpose.xlu0.b32.cont [14/16] 0.0, 128
        %1912 = vxpose.xlu0.b32.cont [15/16] 0.0, 128
        %1913 = vxpose.xlu0.b32.end [16/16] 0.0, 128
        %v1914 = vpop.trf.xlu0
        %v1915 = vpop.trf.xlu0
        %v1916 = vpop.trf.xlu0
        %v1917 = vpop.trf.xlu0
        %v1918 = vpop.trf.xlu0
        %v1919 = vpop.trf.xlu0
        %v1920 = vpop.trf.xlu0
        %v1921 = vpop.trf.xlu0
        %v1922 = vpop.trf.xlu0
        %v1923 = vpop.trf.xlu0
        %v1924 = vpop.trf.xlu0
        %v1925 = vpop.trf.xlu0
        %v1926 = vpop.trf.xlu0
        %v1927 = vpop.trf.xlu0
        %v1928 = vpop.trf.xlu0
        %v1929 = vpop.trf.xlu0
        %v1930 = vpack.c.bf16 %v1691, %v1690
        %v1931 = vpack.c.bf16 %v1723, %v1722
        %v1932 = vpack.c.bf16 %v1755, %v1754
        %v1933 = vpack.c.bf16 %v1787, %v1786
        %v1934 = vpack.c.bf16 %v1819, %v1818
        %v1935 = vpack.c.bf16 %v1851, %v1850
        %v1936 = vpack.c.bf16 %v1883, %v1882
        %v1937 = vpack.c.bf16 %v1915, %v1914
        %v1939 = vsel %vm403, %v1930, 0
        %v1942 = vsel %vm403, %v1931, 0
        %v1945 = vsel %vm403, %v1932, 0
        %v1948 = vsel %vm403, %v1933, 0
        %1950 = vmatprep.subr.bf16.mxu0 0
        %1951 = vmatpush1.bf16.msra.mxu0 %v496
        %1952 = vmatprep.subr.bf16.mxu0 0
        %1953 = vmatpush1.bf16.msra.mxu0 0
        %1954 = vmatprep.subr.bf16.mxu0 0
        %1955 = vmatpush1.bf16.msra.mxu0 0
        %1956 = vmatprep.subr.bf16.mxu0 0
        %1957 = vmatpush1.bf16.msra.mxu0 0
        %1958 = vmatprep.subr.bf16.mxu0 0
        %1959 = vmatpush1.bf16.msra.mxu0 0
        %1960 = vmatprep.subr.bf16.mxu0 0
        %1961 = vmatpush1.bf16.msra.mxu0 0
        %1962 = vmatprep.subr.bf16.mxu0 0
        %1963 = vmatpush1.bf16.msra.mxu0 0
        %1964 = vmatprep.subr.bf16.mxu0 0
        %1965 = vmatpush1.bf16.msra.mxu0 0
        %1966 = vmatprep.subr.bf16.mxu0 0
        %1967 = vmatpush1.bf16.msra.mxu0 0
        %1968 = vmatprep.subr.bf16.mxu0 0
        %1969 = vmatpush1.bf16.msra.mxu0 0
        %1970 = vmatprep.subr.bf16.mxu0 0
        %1971 = vmatpush1.bf16.msra.mxu0 0
        %1972 = vmatprep.subr.bf16.mxu0 0
        %1973 = vmatpush1.bf16.msra.mxu0 0
        %1974 = vmatprep.subr.bf16.mxu0 0
        %1975 = vmatpush1.bf16.msra.mxu0 0
        %1976 = vmatprep.subr.bf16.mxu0 0
        %1977 = vmatpush1.bf16.msra.mxu0 0
        %1978 = vmatprep.subr.bf16.mxu0 0
        %1979 = vmatpush1.bf16.msra.mxu0 0
        %1980 = vmatprep.subr.bf16.mxu0 0
        %1981 = vmatpush1.bf16.msra.mxu0 0
        %1982 = vmatprep.mubr.bf16.mxu0 0
        %1983 = vmatmul.mubr.bf16.gmra.mrb[0].mxu0 %v1939
        %v1984 = vpop.f32.mrb[0].mxu0
        %v1985 = vadd.f32 0.0, %v1984
        %v1986 = vpop.f32.mrb[0].mxu0
        %v1987 = vpop.f32.mrb[0].mxu0
        %v1988 = vadd.f32 0.0, %v1987
        %v1989 = vpop.f32.mrb[0].mxu0
        %1990 = vmatprep.mubr.bf16.mxu0 0
        %1991 = vmatmul.mubr.bf16.gmra.mrb[0].mxu0 %v1942
        %v1992 = vpop.f32.mrb[0].mxu0
        %v1993 = vadd.f32 0.0, %v1992
        %v1994 = vpop.f32.mrb[0].mxu0
        %v1995 = vpop.f32.mrb[0].mxu0
        %v1996 = vadd.f32 0.0, %v1995
        %v1997 = vpop.f32.mrb[0].mxu0
        %1998 = vmatprep.mubr.bf16.mxu0 0
        %1999 = vmatmul.mubr.bf16.gmra.mrb[0].mxu0 %v1945
        %v2000 = vpop.f32.mrb[0].mxu0
        %v2001 = vadd.f32 0.0, %v2000
        %v2002 = vpop.f32.mrb[0].mxu0
        %v2003 = vpop.f32.mrb[0].mxu0
        %v2004 = vadd.f32 0.0, %v2003
        %v2005 = vpop.f32.mrb[0].mxu0
        %2006 = vmatprep.mubr.bf16.mxu0 0
        %2007 = vmatmul.mubr.bf16.gmra.mrb[0].mxu0 %v1948
        %v2008 = vpop.f32.mrb[0].mxu0
        %v2009 = vadd.f32 0.0, %v2008
        %v2010 = vpop.f32.mrb[0].mxu0
        %v2011 = vpop.f32.mrb[0].mxu0
        %v2012 = vadd.f32 0.0, %v2011
        %v2013 = vpop.f32.mrb[0].mxu0
        %2014 = vdwg.mxu0
        %v2016 = vsel %vm403, %v1934, 0
        %v2019 = vsel %vm403, %v1935, 0
        %v2022 = vsel %vm403, %v1936, 0
        %v2025 = vsel %vm403, %v1937, 0
        %2027 = vmatprep.subr.bf16.mxu0 0
        %2028 = vmatpush1.bf16.msra.mxu0 %v1457
        %2029 = vmatprep.subr.bf16.mxu0 0
        %2030 = vmatpush1.bf16.msra.mxu0 0
        %2031 = vmatprep.subr.bf16.mxu0 0
        %2032 = vmatpush1.bf16.msra.mxu0 0
        %2033 = vmatprep.subr.bf16.mxu0 0
        %2034 = vmatpush1.bf16.msra.mxu0 0
        %2035 = vmatprep.subr.bf16.mxu0 0
        %2036 = vmatpush1.bf16.msra.mxu0 0
        %2037 = vmatprep.subr.bf16.mxu0 0
        %2038 = vmatpush1.bf16.msra.mxu0 0
        %2039 = vmatprep.subr.bf16.mxu0 0
        %2040 = vmatpush1.bf16.msra.mxu0 0
        %2041 = vmatprep.subr.bf16.mxu0 0
        %2042 = vmatpush1.bf16.msra.mxu0 0
        %2043 = vmatprep.subr.bf16.mxu0 0
        %2044 = vmatpush1.bf16.msra.mxu0 0
        %2045 = vmatprep.subr.bf16.mxu0 0
        %2046 = vmatpush1.bf16.msra.mxu0 0
        %2047 = vmatprep.subr.bf16.mxu0 0
        %2048 = vmatpush1.bf16.msra.mxu0 0
        %2049 = vmatprep.subr.bf16.mxu0 0
        %2050 = vmatpush1.bf16.msra.mxu0 0
        %2051 = vmatprep.subr.bf16.mxu0 0
        %2052 = vmatpush1.bf16.msra.mxu0 0
        %2053 = vmatprep.subr.bf16.mxu0 0
        %2054 = vmatpush1.bf16.msra.mxu0 0
        %2055 = vmatprep.subr.bf16.mxu0 0
        %2056 = vmatpush1.bf16.msra.mxu0 0
        %2057 = vmatprep.subr.bf16.mxu0 0
        %2058 = vmatpush1.bf16.msra.mxu0 0
        %2059 = vmatprep.mubr.bf16.mxu0 0
        %2060 = vmatmul.mubr.bf16.gmra.mrb[0].mxu0 %v2016
        %v2061 = vpop.f32.mrb[0].mxu0
        %v2062 = vadd.f32 0.0, %v2061
        %v2063 = vpop.f32.mrb[0].mxu0
        %v2064 = vpop.f32.mrb[0].mxu0
        %v2065 = vadd.f32 0.0, %v2064
        %v2066 = vpop.f32.mrb[0].mxu0
        %2067 = vmatprep.mubr.bf16.mxu0 0
        %2068 = vmatmul.mubr.bf16.gmra.mrb[0].mxu0 %v2019
        %v2069 = vpop.f32.mrb[0].mxu0
        %v2070 = vadd.f32 0.0, %v2069
        %v2071 = vpop.f32.mrb[0].mxu0
        %v2072 = vpop.f32.mrb[0].mxu0
        %v2073 = vadd.f32 0.0, %v2072
        %v2074 = vpop.f32.mrb[0].mxu0
        %2075 = vmatprep.mubr.bf16.mxu0 0
        %2076 = vmatmul.mubr.bf16.gmra.mrb[0].mxu0 %v2022
        %v2077 = vpop.f32.mrb[0].mxu0
        %v2078 = vadd.f32 0.0, %v2077
        %v2079 = vpop.f32.mrb[0].mxu0
        %v2080 = vpop.f32.mrb[0].mxu0
        %v2081 = vadd.f32 0.0, %v2080
        %v2082 = vpop.f32.mrb[0].mxu0
        %2083 = vmatprep.mubr.bf16.mxu0 0
        %2084 = vmatmul.mubr.bf16.gmra.mrb[0].mxu0 %v2025
        %v2085 = vpop.f32.mrb[0].mxu0
        %v2086 = vadd.f32 0.0, %v2085
        %v2087 = vpop.f32.mrb[0].mxu0
        %v2088 = vpop.f32.mrb[0].mxu0
        %v2089 = vadd.f32 0.0, %v2088
        %v2090 = vpop.f32.mrb[0].mxu0
        %2091 = vdwg.mxu0
        %v2092 = vsub.f32 %v1985, %v2062
        %v2093 = vsub.f32 %v1988, %v2065
        %v2094 = vsub.f32 %v1993, %v2070
        %v2095 = vsub.f32 %v1996, %v2073
        %v2096 = vsub.f32 %v2001, %v2078
        %v2097 = vsub.f32 %v2004, %v2081
        %v2098 = vsub.f32 %v2009, %v2086
        %v2099 = vsub.f32 %v2012, %v2089
        %2100 = vmatprep.subr.bf16.mxu0 0
        %2101 = vmatpush1.bf16.msra.mxu0 %v496
        %2102 = vmatprep.subr.bf16.mxu0 0
        %2103 = vmatpush1.bf16.msra.mxu0 0
        %2104 = vmatprep.subr.bf16.mxu0 0
        %2105 = vmatpush1.bf16.msra.mxu0 0
        %2106 = vmatprep.subr.bf16.mxu0 0
        %2107 = vmatpush1.bf16.msra.mxu0 0
        %2108 = vmatprep.subr.bf16.mxu0 0
        %2109 = vmatpush1.bf16.msra.mxu0 0
        %2110 = vmatprep.subr.bf16.mxu0 0
        %2111 = vmatpush1.bf16.msra.mxu0 0
        %2112 = vmatprep.subr.bf16.mxu0 0
        %2113 = vmatpush1.bf16.msra.mxu0 0
        %2114 = vmatprep.subr.bf16.mxu0 0
        %2115 = vmatpush1.bf16.msra.mxu0 0
        %2116 = vmatprep.subr.bf16.mxu0 0
        %2117 = vmatpush1.bf16.msra.mxu0 0
        %2118 = vmatprep.subr.bf16.mxu0 0
        %2119 = vmatpush1.bf16.msra.mxu0 0
        %2120 = vmatprep.subr.bf16.mxu0 0
        %2121 = vmatpush1.bf16.msra.mxu0 0
        %2122 = vmatprep.subr.bf16.mxu0 0
        %2123 = vmatpush1.bf16.msra.mxu0 0
        %2124 = vmatprep.subr.bf16.mxu0 0
        %2125 = vmatpush1.bf16.msra.mxu0 0
        %2126 = vmatprep.subr.bf16.mxu0 0
        %2127 = vmatpush1.bf16.msra.mxu0 0
        %2128 = vmatprep.subr.bf16.mxu0 0
        %2129 = vmatpush1.bf16.msra.mxu0 0
        %2130 = vmatprep.subr.bf16.mxu0 0
        %2131 = vmatpush1.bf16.msra.mxu0 0
        %2132 = vmatprep.mubr.bf16.mxu0 0
        %2133 = vmatmul.mubr.bf16.gmra.mrb[0].mxu0 %v2016
        %v2134 = vpop.f32.mrb[0].mxu0
        %v2135 = vadd.f32 0.0, %v2134
        %v2136 = vpop.f32.mrb[0].mxu0
        %v2137 = vpop.f32.mrb[0].mxu0
        %v2138 = vadd.f32 0.0, %v2137
        %v2139 = vpop.f32.mrb[0].mxu0
        %2140 = vmatprep.mubr.bf16.mxu0 0
        %2141 = vmatmul.mubr.bf16.gmra.mrb[0].mxu0 %v2019
        %v2142 = vpop.f32.mrb[0].mxu0
        %v2143 = vadd.f32 0.0, %v2142
        %v2144 = vpop.f32.mrb[0].mxu0
        %v2145 = vpop.f32.mrb[0].mxu0
        %v2146 = vadd.f32 0.0, %v2145
        %v2147 = vpop.f32.mrb[0].mxu0
        %2148 = vmatprep.mubr.bf16.mxu0 0
        %2149 = vmatmul.mubr.bf16.gmra.mrb[0].mxu0 %v2022
        %v2150 = vpop.f32.mrb[0].mxu0
        %v2151 = vadd.f32 0.0, %v2150
        %v2152 = vpop.f32.mrb[0].mxu0
        %v2153 = vpop.f32.mrb[0].mxu0
        %v2154 = vadd.f32 0.0, %v2153
        %v2155 = vpop.f32.mrb[0].mxu0
        %2156 = vmatprep.mubr.bf16.mxu0 0
        %2157 = vmatmul.mubr.bf16.gmra.mrb[0].mxu0 %v2025
        %v2158 = vpop.f32.mrb[0].mxu0
        %v2159 = vadd.f32 0.0, %v2158
        %v2160 = vpop.f32.mrb[0].mxu0
        %v2161 = vpop.f32.mrb[0].mxu0
        %v2162 = vadd.f32 0.0, %v2161
        %v2163 = vpop.f32.mrb[0].mxu0
        %2164 = vdwg.mxu0
        %2165 = vmatprep.subr.bf16.mxu0 0
        %2166 = vmatpush1.bf16.msra.mxu0 %v1457
        %2167 = vmatprep.subr.bf16.mxu0 0
        %2168 = vmatpush1.bf16.msra.mxu0 0
        %2169 = vmatprep.subr.bf16.mxu0 0
        %2170 = vmatpush1.bf16.msra.mxu0 0
        %2171 = vmatprep.subr.bf16.mxu0 0
        %2172 = vmatpush1.bf16.msra.mxu0 0
        %2173 = vmatprep.subr.bf16.mxu0 0
        %2174 = vmatpush1.bf16.msra.mxu0 0
        %2175 = vmatprep.subr.bf16.mxu0 0
        %2176 = vmatpush1.bf16.msra.mxu0 0
        %2177 = vmatprep.subr.bf16.mxu0 0
        %2178 = vmatpush1.bf16.msra.mxu0 0
        %2179 = vmatprep.subr.bf16.mxu0 0
        %2180 = vmatpush1.bf16.msra.mxu0 0
        %2181 = vmatprep.subr.bf16.mxu0 0
        %2182 = vmatpush1.bf16.msra.mxu0 0
        %2183 = vmatprep.subr.bf16.mxu0 0
        %2184 = vmatpush1.bf16.msra.mxu0 0
        %2185 = vmatprep.subr.bf16.mxu0 0
        %2186 = vmatpush1.bf16.msra.mxu0 0
        %2187 = vmatprep.subr.bf16.mxu0 0
        %2188 = vmatpush1.bf16.msra.mxu0 0
        %2189 = vmatprep.subr.bf16.mxu0 0
        %2190 = vmatpush1.bf16.msra.mxu0 0
        %2191 = vmatprep.subr.bf16.mxu0 0
        %2192 = vmatpush1.bf16.msra.mxu0 0
        %2193 = vmatprep.subr.bf16.mxu0 0
        %2194 = vmatpush1.bf16.msra.mxu0 0
        %2195 = vmatprep.subr.bf16.mxu0 0
        %2196 = vmatpush1.bf16.msra.mxu0 0
        %2197 = vmatprep.mubr.bf16.mxu0 0
        %2198 = vmatmul.mubr.bf16.gmra.mrb[0].mxu0 %v1939
        %v2199 = vpop.f32.mrb[0].mxu0
        %v2200 = vadd.f32 %v2135, %v2199
        %v2201 = vpop.f32.mrb[0].mxu0
        %v2202 = vpop.f32.mrb[0].mxu0
        %v2203 = vadd.f32 %v2138, %v2202
        %v2204 = vpop.f32.mrb[0].mxu0
        %2205 = vmatprep.mubr.bf16.mxu0 0
        %2206 = vmatmul.mubr.bf16.gmra.mrb[0].mxu0 %v1942
        %v2207 = vpop.f32.mrb[0].mxu0
        %v2208 = vadd.f32 %v2143, %v2207
        %v2209 = vpop.f32.mrb[0].mxu0
        %v2210 = vpop.f32.mrb[0].mxu0
        %v2211 = vadd.f32 %v2146, %v2210
        %v2212 = vpop.f32.mrb[0].mxu0
        %2213 = vmatprep.mubr.bf16.mxu0 0
        %2214 = vmatmul.mubr.bf16.gmra.mrb[0].mxu0 %v1945
        %v2215 = vpop.f32.mrb[0].mxu0
        %v2216 = vadd.f32 %v2151, %v2215
        %v2217 = vpop.f32.mrb[0].mxu0
        %v2218 = vpop.f32.mrb[0].mxu0
        %v2219 = vadd.f32 %v2154, %v2218
        %v2220 = vpop.f32.mrb[0].mxu0
        %2221 = vmatprep.mubr.bf16.mxu0 0
        %2222 = vmatmul.mubr.bf16.gmra.mrb[0].mxu0 %v1948
        %v2223 = vpop.f32.mrb[0].mxu0
        %v2224 = vadd.f32 %v2159, %v2223
        %v2225 = vpop.f32.mrb[0].mxu0
        %v2226 = vpop.f32.mrb[0].mxu0
        %v2227 = vadd.f32 %v2162, %v2226
        %v2228 = vpop.f32.mrb[0].mxu0
        %2229 = vdwg.mxu0
        %v2230 = vmul.f32 %v375, %v2092
        %v2231 = vmul.f32 %v376, %v2093
        %v2232 = vmul.f32 %v377, %v2094
        %v2233 = vmul.f32 %v378, %v2095
        %v2234 = vmul.f32 %v379, %v2096
        %v2235 = vmul.f32 %v380, %v2097
        %v2236 = vmul.f32 %v381, %v2098
        %v2237 = vmul.f32 %v382, %v2099
        %v2238 = vmul.f32 %v383, %v2200
        %v2239 = vmul.f32 %v384, %v2203
        %v2240 = vmul.f32 %v385, %v2208
        %v2241 = vmul.f32 %v386, %v2211
        %v2242 = vmul.f32 %v387, %v2216
        %v2243 = vmul.f32 %v388, %v2219
        %v2244 = vmul.f32 %v389, %v2224
        %v2245 = vmul.f32 %v390, %v2227
        %v2246 = vadd.f32 %v2230, %v2238
        %v2247 = vadd.f32 %v2231, %v2239
        %v2248 = vadd.f32 %v2232, %v2240
        %v2249 = vadd.f32 %v2233, %v2241
        %v2250 = vadd.f32 %v2234, %v2242
        %v2251 = vadd.f32 %v2235, %v2243
        %v2252 = vadd.f32 %v2236, %v2244
        %v2253 = vadd.f32 %v2237, %v2245
        %v2254 = vsel %vm403, %v2246, 0.0
        %v2255 = vsel %vm403, %v2248, 0.0
        %v2256 = vadd.f32 %v2254, %v2255
        %v2257 = vsel %vm403, %v2250, 0.0
        %v2258 = vadd.f32 %v2256, %v2257
        %v2259 = vsel %vm403, %v2252, 0.0
        %v2260 = vadd.f32 %v2258, %v2259
        %v2261 = vsel %vm403, %v2247, 0.0
        %v2262 = vsel %vm403, %v2249, 0.0
        %v2263 = vadd.f32 %v2261, %v2262
        %v2264 = vsel %vm403, %v2251, 0.0
        %v2265 = vadd.f32 %v2263, %v2264
        %v2266 = vsel %vm403, %v2253, 0.0
        %v2267 = vadd.f32 %v2265, %v2266
        %v2268 = vmul.f32 %v375, %v2200
        %v2269 = vmul.f32 %v376, %v2203
        %v2270 = vmul.f32 %v377, %v2208
        %v2271 = vmul.f32 %v378, %v2211
        %v2272 = vmul.f32 %v379, %v2216
        %v2273 = vmul.f32 %v380, %v2219
        %v2274 = vmul.f32 %v381, %v2224
        %v2275 = vmul.f32 %v382, %v2227
        %v2276 = vmul.f32 %v383, %v2092
        %v2277 = vmul.f32 %v384, %v2093
        %v2278 = vmul.f32 %v385, %v2094
        %v2279 = vmul.f32 %v386, %v2095
        %v2280 = vmul.f32 %v387, %v2096
        %v2281 = vmul.f32 %v388, %v2097
        %v2282 = vmul.f32 %v389, %v2098
        %v2283 = vmul.f32 %v390, %v2099
        %v2284 = vsub.f32 %v2268, %v2276
        %v2285 = vsub.f32 %v2269, %v2277
        %v2286 = vsub.f32 %v2270, %v2278
        %v2287 = vsub.f32 %v2271, %v2279
        %v2288 = vsub.f32 %v2272, %v2280
        %v2289 = vsub.f32 %v2273, %v2281
        %v2290 = vsub.f32 %v2274, %v2282
        %v2291 = vsub.f32 %v2275, %v2283
        %v2292 = vsel %vm403, %v2284, 0.0
        %v2293 = vsel %vm403, %v2286, 0.0
        %v2294 = vadd.f32 %v2292, %v2293
        %v2295 = vsel %vm403, %v2288, 0.0
        %v2296 = vadd.f32 %v2294, %v2295
        %v2297 = vsel %vm403, %v2290, 0.0
        %v2298 = vadd.f32 %v2296, %v2297
        %v2299 = vsel %vm403, %v2285, 0.0
        %v2300 = vsel %vm403, %v2287, 0.0
        %v2301 = vadd.f32 %v2299, %v2300
        %v2302 = vsel %vm403, %v2289, 0.0
        %v2303 = vadd.f32 %v2301, %v2302
        %v2304 = vsel %vm403, %v2291, 0.0
        %v2305 = vadd.f32 %v2303, %v2304
        %v2306 = vstv %s368
        %v2307 = vmul.f32 %v2306, %v431
        %v2308 = vmul.f32 %v2306, %v432
        %v2309 = vadd.f32 %v2260, %v2307
        %v2310 = vadd.f32 %v2267, %v2308
        %v2311 = vmul.f32 %v2306, %v433
        %v2312 = vmul.f32 %v2306, %v434
        %v2313 = vadd.f32 %v2298, %v2311
        %v2314 = vadd.f32 %v2305, %v2312
        %v2315 = vmul.f32 %v431, %v2309
        %v2316 = vmul.f32 %v432, %v2310
        %v2317 = vmul.f32 %v433, %v2313
        %v2318 = vmul.f32 %v434, %v2314
        %v2319 = vadd.f32 %v2315, %v2317
        %v2320 = vadd.f32 %v2316, %v2318
        %v2321 = vsel %vm403, %v2319, 0.0
        %v2322 = vsel %vm403, %v2320, 0.0
        %v2323 = vadd.f32 %v2321, %v2322
        %2324 = vadd.xlane.f32.xlu0 %v2323
        %v2325 = vpop.xlane.xlu0 %2324
        %v2326 = vrot.slane %v2325, 4
        %v2327 = vadd.f32 %v2325, %v2326
        %v2328 = vrot.slane %v2327, 2
        %v2329 = vadd.f32 %v2327, %v2328
        %v2330 = vrot.slane %v2329, 1
        %v2331 = vadd.f32 %v2329, %v2330
        %s2332 = vtos %v2331
        %v2333 = vstv %s2332
        %vm2334 = vcmp.gt.f32.partialorder %v2333, 1e-12
        %v2335 = vrcp.pop %v2333
        %v2336 = vmul.f32 %v435, %v2335
        %v2337 = vsel %vm2334, %v2336, 0.0
        %v2338 = vmul.f32 %v2337, %v431
        %v2339 = vmul.f32 %v2337, %v432
        %v2340 = vadd.f32 %v423, %v2338
        %v2341 = vadd.f32 %v424, %v2339
        %v2342 = vmul.f32 %v2337, %v433
        %v2343 = vmul.f32 %v2337, %v434
        %v2344 = vadd.f32 %v425, %v2342
        %v2345 = vadd.f32 %v426, %v2343
        %v2346 = vmul.f32 %v2337, %v2309
        %v2347 = vmul.f32 %v2337, %v2310
        %v2348 = vsub.f32 %v427, %v2346
        %v2349 = vsub.f32 %v428, %v2347
        %v2350 = vmul.f32 %v2337, %v2313
        %v2351 = vmul.f32 %v2337, %v2314
        %v2352 = vsub.f32 %v429, %v2350
        %v2353 = vsub.f32 %v430, %v2351
        %v2354 = vmul.f32 %v2348, %v2348
        %v2355 = vmul.f32 %v2349, %v2349
        %v2356 = vmul.f32 %v2352, %v2352
        %v2357 = vmul.f32 %v2353, %v2353
        %v2358 = vadd.f32 %v2354, %v2356
        %v2359 = vadd.f32 %v2355, %v2357
        %v2360 = vsel %vm403, %v2358, 0.0
        %v2361 = vsel %vm403, %v2359, 0.0
        %v2362 = vadd.f32 %v2360, %v2361
        %2363 = vadd.xlane.f32.xlu0 %v2362
        %v2364 = vpop.xlane.xlu0 %2363
        %v2365 = vrot.slane %v2364, 4
        %v2366 = vadd.f32 %v2364, %v2365
        %v2367 = vrot.slane %v2366, 2
        %v2368 = vadd.f32 %v2366, %v2367
        %v2369 = vrot.slane %v2368, 1
        %v2370 = vadd.f32 %v2368, %v2369
        %s2371 = vtos %v2370
        %v2372 = vstv %s2371
        %vm2373 = vcmp.gt.f32.partialorder %v435, 1e-12
        %v2374 = vrcp.pop %v435
        %v2375 = vmul.f32 %v2372, %v2374
        %v2376 = vsel %vm2373, %v2375, 0.0
        %v2377 = vmul.f32 %v2376, %v431
        %v2378 = vmul.f32 %v2376, %v432
        %v2379 = vadd.f32 %v2348, %v2377
        %v2380 = vadd.f32 %v2349, %v2378
        %v2381 = vmul.f32 %v2376, %v433
        %v2382 = vmul.f32 %v2376, %v434
        %v2383 = vadd.f32 %v2352, %v2381
        %v2384 = vadd.f32 %v2353, %v2382
      $region57: #{modl_forward.5} parent=51 // loop_footer
        %s422 = sadd.s32 1, %s418
      $region58: #{modl_forward.5} parent=51 // loop_footer_branch
        %417 = sbr.rel target = $region54
      $region59: #{modl_forward.5} parent=51 // loop_exit
        _
      %2385 = vst.msk [vmem:[%s366] sm:$0xff] %vm403, %v423
      %2386 = vst.msk [vmem:[%s366 + $0x8] sm:$0xff] %vm403, %v424
      %s2387 = scalar_lea.vmem %s366, 16
      %2388 = vst.msk [vmem:[%s2387] sm:$0xff] %vm403, %v425
      %2389 = vst.msk [vmem:[%s2387 + $0x8] sm:$0xff] %vm403, %v426
      %p2390 = scmp.lt.s32.totalorder %s20, 1
      %s2391 = scalar_select %p2390, %s20, 1
      %s2392 = smul.addr %s2391, 4
      %s2393 = smul.addr %s2392, 8
      %s2394 = scalar_lea.vmem %s8, %s2393
      // Predicated region
      $region60: #{modl_forward.5} parent=51 // pred_check
        %p2395 = pneg %p226
      $region61: #{modl_forward.5} parent=51 // pred_check_branch
        %2397 = sbr.rel (%p2395) target = $region63
      $region62: #{modl_forward.5} parent=51 // pred_region
        _
      $region63: #{modl_forward.5} parent=51 // pred_fallthru
        _
    $region52: #{modl_forward.5} parent=5 // pred_fallthru
      _
    %p2398 = scmp.le.s32.totalorder 2, %s15
    // Predicated region
    $region64: #{modl_forward.5} parent=5 // pred_check
      %p2399 = pneg %p2398
    $region65: #{modl_forward.5} parent=5 // pred_check_branch
      %2401 = sbr.rel (%p2399) target = $region67
    $region66: #{modl_forward.5} parent=5 // pred_region
      %s2402 = ssub.s32 %s15, 2
      // Predicated region
      $region68: #{modl_forward.5} parent=66 // pred_check
        %p2403 = pneg %p232
      $region69: #{modl_forward.5} parent=66 // pred_check_branch
        %2405 = sbr.rel (%p2403) target = $region71
      $region70: #{modl_forward.5} parent=66 // pred_region
        %p2406 = scmp.lt.s32.totalorder %s21, 1
        %s2407 = scalar_select %p2406, %s21, 1
        %s2408 = smul.addr %s2407, 4
        %s2409 = smul.addr %s2408, 8
        %s2410 = scalar_lea.vmem %s8, %s2409
      $region71: #{modl_forward.5} parent=66 // pred_fallthru
        _
    $region67: #{modl_forward.5} parent=5 // pred_fallthru
      _
  $region6: #{modl_forward.5} parent=0 // loop_footer
    %s19 = sadd.s32 1, %s15
  $region7: #{modl_forward.5} parent=0 // loop_footer_branch
    %14 = sbr.rel target = $region3
  $region8: #{modl_forward.5} parent=0 // loop_exit
    _

// kernel: modl_forward.7
$region0: #{modl_forward.7}
  #allocation0 [shape = 'u32[]', space=smem, size = 0x4, offset = 0x4, fixed_abs, tag = 'smem constant byte address 0x4 - core index']
  #allocation1 [shape = 'u32[144,128]{1,0:T(1,128)}', space=vmem, size = 0x12000, scoped, tag = 'internal scratch']
  #allocation2 [shape = 'f32[1]{0:T(128)S(6)}', space=smem, size = 0x200, scoped, tag = 'scoped memory for modl_forward.7']
  %s0 = inlined_call_operand.<no memory space> [shape: f32[1], index: 0, kind: input, shape index: {}]
  %s1 = inlined_call_operand.vmem [shape: f32[2,2,16,16], index: 1, kind: input, shape index: {}]
  %s2 = inlined_call_operand.vmem [shape: f32[2,4,16,16], index: 2, kind: input, shape index: {}]
  %s3 = inlined_call_operand.vmem [shape: f32[2,4,16,16], index: 3, kind: input, shape index: {}]
  %s4 = inlined_call_operand.vmem [shape: f32[2,16,16], index: 4, kind: input, shape index: {}]
  %s5 = inlined_call_operand.vmem [shape: bf16[16,16], index: 5, kind: input, shape index: {}]
  %s6 = inlined_call_operand.vmem [shape: bf16[16,16], index: 6, kind: input, shape index: {}]
  %s7 = inlined_call_operand.vmem [shape: bf16[16,16], index: 7, kind: input, shape index: {}]
  %s8 = inlined_call_operand.hbm [shape: f32[2,2,16,16], index: 8, kind: output, shape index: {}]
  %s9 = sld [smem:[#allocation0]]
  $region72: #{modl_forward.7} parent=0
    _
  %s11 = ssub.s32 1, %s9
  %s12 = scalar_select 0, %s11, %s9
  %13 = sst [smem:[#allocation2]] %s0
  $region1: #{modl_forward.7} parent=0
    #allocation3 [shape = 'u8[32768]{0}', space=vmem, size = 0x8000, scoped, tag = 'output window, operand 0']
    #allocation4 [shape = 's32[2]{0}', space=sflag, size = 0x8, scoped, tag = 'scoped memory for modl_forward.7']
    %14 = vsyncpa [#allocation4], 0
    %s15 = scalar_lea.sflag [#allocation4], 1
    %16 = vsyncpa %s15, 0
    loop: start=0, step=1, limit=4
    $region2: #{modl_forward.7} parent=1 // loop_pre_header
      _
    $region3: #{modl_forward.7} parent=1 // loop_header
      %s18 = sphi 0, %s22
      %p19 = scmp.ge.s32.totalorder %s18, 4
      %s26 = sphi 0, %s26
      %s28 = sphi 0, %s26
      %s29 = sphi 0, %s28
      %s43 = sphi 0, %s29
      %s49 = sphi 0, %s51
      %s52 = sphi 0, %s49
      %s53 = sphi 0, %s52
      %s69 = sphi 0, %s53
      %s75 = sphi 0, %s77
      %s78 = sphi 0, %s75
      %s79 = sphi 0, %s78
      %s95 = sphi 0, %s79
      %s101 = sphi 0, %s103
      %s104 = sphi 0, %s101
      %s105 = sphi 0, %s104
      %s121 = sphi 0, %s105
      %s127 = sphi 0, %s129
      %s130 = sphi 0, %s127
      %s131 = sphi 0, %s130
      %s147 = sphi 0, %s131
      %s151 = sphi 0, %s151
      %s153 = sphi 0, %s151
      %s154 = sphi 0, %s153
      %s168 = sphi 0, %s154
      %s172 = sphi 0, %s172
      %s174 = sphi 0, %s172
      %s175 = sphi 0, %s174
      %s189 = sphi 0, %s175
      %s193 = sphi 0, %s193
      %s195 = sphi 0, %s193
      %s196 = sphi 0, %s195
      %s210 = sphi 0, %s196
      %s216 = sphi 0, %s218
      %s219 = sphi 0, %s216
      %s220 = sphi 0, %s219
      %s236 = sphi 0, %s220
    $region4: #{modl_forward.7} parent=1 // loop_header_branch
      %21 = sbr.rel (%p19) target = $region8
    $region5: #{modl_forward.7} parent=1 // loop_body
      %s23 = ssub.s32 %s18, 1
      %s24 = ssub.s32 %s18, 2
      %s25 = sadd.s32 %s18, 1
      %s27 = sadd.s32 %s26, 1
      %p30 = scmp.eq.s32.totalorder %s18, 1
      %p31 = scmp.ne.s32.totalorder %s26, %s28
      %p32 = scmp.eq.s32.totalorder %s18, 0
      %p33 = por %p31, %p32
      %p34 = scmp.ne.s32.totalorder %s26, %s28
      %p35 = scmp.eq.s32.totalorder %s23, 1
      %p36 = por %p34, %p35
      %p37 = scmp.ne.s32.totalorder %s28, %s29
      %p38 = scmp.eq.s32.totalorder %s23, 0
      %p39 = por %p37, %p38
      %p40 = scmp.ne.s32.totalorder %s28, %s29
      %p41 = scmp.eq.s32.totalorder %s24, 1
      %p42 = por %p40, %p41
      %p44 = scmp.ne.s32.totalorder %s29, %s43
      %p45 = scmp.eq.s32.totalorder %s24, 0
      %p46 = por %p44, %p45
      %s47 = ssub.s32 %s18, %s25
      %p48 = scmp.eq.s32.totalorder %s47, 0
      %s50 = sadd.s32 %s49, 1
      %s51 = scalar_select %p48, %s49, %s50
      %p54 = pneg %p48
      %p55 = scmp.eq.s32.totalorder %s18, 1
      %p56 = por %p54, %p55
      %p57 = scmp.ne.s32.totalorder %s49, %s52
      %p58 = scmp.eq.s32.totalorder %s18, 0
      %p59 = por %p57, %p58
      %p60 = scmp.ne.s32.totalorder %s49, %s52
      %p61 = scmp.eq.s32.totalorder %s23, 1
      %p62 = por %p60, %p61
      %p63 = scmp.ne.s32.totalorder %s52, %s53
      %p64 = scmp.eq.s32.totalorder %s23, 0
      %p65 = por %p63, %p64
      %p66 = scmp.ne.s32.totalorder %s52, %s53
      %p67 = scmp.eq.s32.totalorder %s24, 1
      %p68 = por %p66, %p67
      %p70 = scmp.ne.s32.totalorder %s53, %s69
      %p71 = scmp.eq.s32.totalorder %s24, 0
      %p72 = por %p70, %p71
      %s73 = ssub.s32 %s18, %s25
      %p74 = scmp.eq.s32.totalorder %s73, 0
      %s76 = sadd.s32 %s75, 1
      %s77 = scalar_select %p74, %s75, %s76
      %p80 = pneg %p74
      %p81 = scmp.eq.s32.totalorder %s18, 1
      %p82 = por %p80, %p81
      %p83 = scmp.ne.s32.totalorder %s75, %s78
      %p84 = scmp.eq.s32.totalorder %s18, 0
      %p85 = por %p83, %p84
      %p86 = scmp.ne.s32.totalorder %s75, %s78
      %p87 = scmp.eq.s32.totalorder %s23, 1
      %p88 = por %p86, %p87
      %p89 = scmp.ne.s32.totalorder %s78, %s79
      %p90 = scmp.eq.s32.totalorder %s23, 0
      %p91 = por %p89, %p90
      %p92 = scmp.ne.s32.totalorder %s78, %s79
      %p93 = scmp.eq.s32.totalorder %s24, 1
      %p94 = por %p92, %p93
      %p96 = scmp.ne.s32.totalorder %s79, %s95
      %p97 = scmp.eq.s32.totalorder %s24, 0
      %p98 = por %p96, %p97
      %s99 = ssub.s32 %s18, %s25
      %p100 = scmp.eq.s32.totalorder %s99, 0
      %s102 = sadd.s32 %s101, 1
      %s103 = scalar_select %p100, %s101, %s102
      %p106 = pneg %p100
      %p107 = scmp.eq.s32.totalorder %s18, 1
      %p108 = por %p106, %p107
      %p109 = scmp.ne.s32.totalorder %s101, %s104
      %p110 = scmp.eq.s32.totalorder %s18, 0
      %p111 = por %p109, %p110
      %p112 = scmp.ne.s32.totalorder %s101, %s104
      %p113 = scmp.eq.s32.totalorder %s23, 1
      %p114 = por %p112, %p113
      %p115 = scmp.ne.s32.totalorder %s104, %s105
      %p116 = scmp.eq.s32.totalorder %s23, 0
      %p117 = por %p115, %p116
      %p118 = scmp.ne.s32.totalorder %s104, %s105
      %p119 = scmp.eq.s32.totalorder %s24, 1
      %p120 = por %p118, %p119
      %p122 = scmp.ne.s32.totalorder %s105, %s121
      %p123 = scmp.eq.s32.totalorder %s24, 0
      %p124 = por %p122, %p123
      %s125 = ssub.s32 %s18, %s25
      %p126 = scmp.eq.s32.totalorder %s125, 0
      %s128 = sadd.s32 %s127, 1
      %s129 = scalar_select %p126, %s127, %s128
      %p132 = pneg %p126
      %p133 = scmp.eq.s32.totalorder %s18, 1
      %p134 = por %p132, %p133
      %p135 = scmp.ne.s32.totalorder %s127, %s130
      %p136 = scmp.eq.s32.totalorder %s18, 0
      %p137 = por %p135, %p136
      %p138 = scmp.ne.s32.totalorder %s127, %s130
      %p139 = scmp.eq.s32.totalorder %s23, 1
      %p140 = por %p138, %p139
      %p141 = scmp.ne.s32.totalorder %s130, %s131
      %p142 = scmp.eq.s32.totalorder %s23, 0
      %p143 = por %p141, %p142
      %p144 = scmp.ne.s32.totalorder %s130, %s131
      %p145 = scmp.eq.s32.totalorder %s24, 1
      %p146 = por %p144, %p145
      %p148 = scmp.ne.s32.totalorder %s131, %s147
      %p149 = scmp.eq.s32.totalorder %s24, 0
      %p150 = por %p148, %p149
      %s152 = sadd.s32 %s151, 1
      %p155 = scmp.eq.s32.totalorder %s18, 1
      %p156 = scmp.ne.s32.totalorder %s151, %s153
      %p157 = scmp.eq.s32.totalorder %s18, 0
      %p158 = por %p156, %p157
      %p159 = scmp.ne.s32.totalorder %s151, %s153
      %p160 = scmp.eq.s32.totalorder %s23, 1
      %p161 = por %p159, %p160
      %p162 = scmp.ne.s32.totalorder %s153, %s154
      %p163 = scmp.eq.s32.totalorder %s23, 0
      %p164 = por %p162, %p163
      %p165 = scmp.ne.s32.totalorder %s153, %s154
      %p166 = scmp.eq.s32.totalorder %s24, 1
      %p167 = por %p165, %p166
      %p169 = scmp.ne.s32.totalorder %s154, %s168
      %p170 = scmp.eq.s32.totalorder %s24, 0
      %p171 = por %p169, %p170
      %s173 = sadd.s32 %s172, 1
      %p176 = scmp.eq.s32.totalorder %s18, 1
      %p177 = scmp.ne.s32.totalorder %s172, %s174
      %p178 = scmp.eq.s32.totalorder %s18, 0
      %p179 = por %p177, %p178
      %p180 = scmp.ne.s32.totalorder %s172, %s174
      %p181 = scmp.eq.s32.totalorder %s23, 1
      %p182 = por %p180, %p181
      %p183 = scmp.ne.s32.totalorder %s174, %s175
      %p184 = scmp.eq.s32.totalorder %s23, 0
      %p185 = por %p183, %p184
      %p186 = scmp.ne.s32.totalorder %s174, %s175
      %p187 = scmp.eq.s32.totalorder %s24, 1
      %p188 = por %p186, %p187
      %p190 = scmp.ne.s32.totalorder %s175, %s189
      %p191 = scmp.eq.s32.totalorder %s24, 0
      %p192 = por %p190, %p191
      %s194 = sadd.s32 %s193, 1
      %p197 = scmp.eq.s32.totalorder %s18, 1
      %p198 = scmp.ne.s32.totalorder %s193, %s195
      %p199 = scmp.eq.s32.totalorder %s18, 0
      %p200 = por %p198, %p199
      %p201 = scmp.ne.s32.totalorder %s193, %s195
      %p202 = scmp.eq.s32.totalorder %s23, 1
      %p203 = por %p201, %p202
      %p204 = scmp.ne.s32.totalorder %s195, %s196
      %p205 = scmp.eq.s32.totalorder %s23, 0
      %p206 = por %p204, %p205
      %p207 = scmp.ne.s32.totalorder %s195, %s196
      %p208 = scmp.eq.s32.totalorder %s24, 1
      %p209 = por %p207, %p208
      %p211 = scmp.ne.s32.totalorder %s196, %s210
      %p212 = scmp.eq.s32.totalorder %s24, 0
      %p213 = por %p211, %p212
      %s214 = ssub.s32 %s18, %s25
      %p215 = scmp.eq.s32.totalorder %s214, 0
      %s217 = sadd.s32 %s216, 1
      %s218 = scalar_select %p215, %s216, %s217
      %p221 = pneg %p215
      %p222 = scmp.eq.s32.totalorder %s18, 1
      %p223 = por %p221, %p222
      %p224 = scmp.ne.s32.totalorder %s216, %s219
      %p225 = scmp.eq.s32.totalorder %s18, 0
      %p226 = por %p224, %p225
      %p227 = scmp.ne.s32.totalorder %s216, %s219
      %p228 = scmp.eq.s32.totalorder %s23, 1
      %p229 = por %p227, %p228
      %p230 = scmp.ne.s32.totalorder %s219, %s220
      %p231 = scmp.eq.s32.totalorder %s23, 0
      %p232 = por %p230, %p231
      %p233 = scmp.ne.s32.totalorder %s219, %s220
      %p234 = scmp.eq.s32.totalorder %s24, 1
      %p235 = por %p233, %p234
      %p237 = scmp.ne.s32.totalorder %s220, %s236
      %p238 = scmp.eq.s32.totalorder %s24, 0
      %p239 = por %p237, %p238
      %p240 = scmp.le.s32.totalorder 1, %s18
      %p241 = scmp.lt.s32.totalorder %s18, 3
      %p242 = pnand %p240, %p241
      %p243 = pneg %p242
      // Predicated region
      $region9: #{modl_forward.7} parent=5 // pred_check
        _
      $region10: #{modl_forward.7} parent=5 // pred_check_branch
        %245 = sbr.rel (%p242) target = $region12
      $region11: #{modl_forward.7} parent=5 // pred_region
        %s246 = ssub.s32 %s18, 1
        // Predicated region
        $region13: #{modl_forward.7} parent=11 // pred_check
          %p247 = pneg %p39
        $region14: #{modl_forward.7} parent=11 // pred_check_branch
          %249 = sbr.rel (%p247) target = $region16
        $region15: #{modl_forward.7} parent=11 // pred_region
          _
        $region16: #{modl_forward.7} parent=11 // pred_fallthru
          _
        // Predicated region
        $region17: #{modl_forward.7} parent=11 // pred_check
          %p250 = pneg %p164
        $region18: #{modl_forward.7} parent=11 // pred_check_branch
          %252 = sbr.rel (%p250) target = $region20
        $region19: #{modl_forward.7} parent=11 // pred_region
          _
        $region20: #{modl_forward.7} parent=11 // pred_fallthru
          _
        // Predicated region
        $region21: #{modl_forward.7} parent=11 // pred_check
          %p253 = pneg %p185
        $region22: #{modl_forward.7} parent=11 // pred_check_branch
          %255 = sbr.rel (%p253) target = $region24
        $region23: #{modl_forward.7} parent=11 // pred_region
          _
        $region24: #{modl_forward.7} parent=11 // pred_fallthru
          _
        // Predicated region
        $region25: #{modl_forward.7} parent=11 // pred_check
          %p256 = pneg %p206
        $region26: #{modl_forward.7} parent=11 // pred_check_branch
          %258 = sbr.rel (%p256) target = $region28
        $region27: #{modl_forward.7} parent=11 // pred_region
          _
        $region28: #{modl_forward.7} parent=11 // pred_fallthru
          _
      $region12: #{modl_forward.7} parent=5 // pred_fallthru
        _
      %p259 = scmp.lt.s32.totalorder %s18, 2
      // Predicated region
      $region29: #{modl_forward.7} parent=5 // pred_check
        %p260 = pneg %p259
      $region30: #{modl_forward.7} parent=5 // pred_check_branch
        %262 = sbr.rel (%p260) target = $region32
      $region31: #{modl_forward.7} parent=5 // pred_region
        // Predicated region
        $region33: #{modl_forward.7} parent=31 // pred_check
          %p263 = pneg %p59
        $region34: #{modl_forward.7} parent=31 // pred_check_branch
          %265 = sbr.rel (%p263) target = $region36
        $region35: #{modl_forward.7} parent=31 // pred_region
          %p266 = scmp.lt.s32.totalorder %s18, 1
          %s267 = scalar_select %p266, %s18, 1
          %s268 = smul.addr %s267, 4
          %s269 = smul.addr %s268, 8
          %s270 = scalar_lea.vmem %s1, %s269
        $region36: #{modl_forward.7} parent=31 // pred_fallthru
          _
        // Predicated region
        $region37: #{modl_forward.7} parent=31 // pred_check
          %p271 = pneg %p85
        $region38: #{modl_forward.7} parent=31 // pred_check_branch
          %273 = sbr.rel (%p271) target = $region40
        $region39: #{modl_forward.7} parent=31 // pred_region
          %p274 = scmp.lt.s32.totalorder %s18, 1
          %s275 = scalar_select %p274, %s18, 1
          %s276 = smul.addr %s275, 8
          %s277 = smul.addr %s276, 8
          %s278 = scalar_lea.vmem %s2, %s277
        $region40: #{modl_forward.7} parent=31 // pred_fallthru
          _
        // Predicated region
        $region41: #{modl_forward.7} parent=31 // pred_check
          %p279 = pneg %p111
        $region42: #{modl_forward.7} parent=31 // pred_check_branch
          %281 = sbr.rel (%p279) target = $region44
        $region43: #{modl_forward.7} parent=31 // pred_region
          %p282 = scmp.lt.s32.totalorder %s18, 1
          %s283 = scalar_select %p282, %s18, 1
          %s284 = smul.addr %s283, 8
          %s285 = smul.addr %s284, 8
          %s286 = scalar_lea.vmem %s3, %s285
        $region44: #{modl_forward.7} parent=31 // pred_fallthru
          _
        // Predicated region
        $region45: #{modl_forward.7} parent=31 // pred_check
          %p287 = pneg %p137
        $region46: #{modl_forward.7} parent=31 // pred_check_branch
          %289 = sbr.rel (%p287) target = $region48
        $region47: #{modl_forward.7} parent=31 // pred_region
          %p290 = scmp.lt.s32.totalorder %s18, 1
          %s291 = scalar_select %p290, %s18, 1
          %s292 = smul.addr %s291, 2
          %s293 = smul.addr %s292, 8
          %s294 = scalar_lea.vmem %s4, %s293
        $region48: #{modl_forward.7} parent=31 // pred_fallthru
          _
      $region32: #{modl_forward.7} parent=5 // pred_fallthru
        _
      %p295 = scmp.le.s32.totalorder 1, %s18
      %p296 = scmp.lt.s32.totalorder %s18, 3
      %p297 = pnand %p295, %p296
      %p298 = pneg %p297
      // Predicated region
      $region49: #{modl_forward.7} parent=5 // pred_check
        _
      $region50: #{modl_forward.7} parent=5 // pred_check_branch
        %300 = sbr.rel (%p297) target = $region52
      $region51: #{modl_forward.7} parent=5 // pred_region
        %s301 = ssub.s32 %s18, 1
        %p302 = pneg %p39
        %p303 = pneg %p36
        %p304 = scmp.lt.s32.totalorder %s23, 1
        %s305 = scalar_select %p304, %s23, 1
        %s306 = smul.addr %s305, 4
        %s307 = smul.addr %s306, 8
        %s308 = scalar_lea.vmem %s1, %s307
        %p309 = pneg %p65
        %p310 = pneg %p62
        %p311 = scmp.lt.s32.totalorder %s23, 1
        %s312 = scalar_select %p311, %s23, 1
        %s313 = smul.addr %s312, 8
        %s314 = smul.addr %s313, 8
        %s315 = scalar_lea.vmem %s2, %s314
        %p316 = pneg %p91
        %p317 = pneg %p88
        %p318 = scmp.lt.s32.totalorder %s23, 1
        %s319 = scalar_select %p318, %s23, 1
        %s320 = smul.addr %s319, 8
        %s321 = smul.addr %s320, 8
        %s322 = scalar_lea.vmem %s3, %s321
        %p323 = pneg %p117
        %p324 = pneg %p114
        %p325 = scmp.lt.s32.totalorder %s23, 1
        %s326 = scalar_select %p325, %s23, 1
        %s327 = smul.addr %s326, 2
        %s328 = smul.addr %s327, 8
        %s329 = scalar_lea.vmem %s4, %s328
        %p330 = pneg %p143
        %p331 = pneg %p140
        %p332 = pneg %p164
        %p333 = pneg %p161
        %p334 = pneg %p185
        %p335 = pneg %p182
        %p336 = pneg %p206
        %p337 = pneg %p203
        %p338 = pneg %p232
        %p339 = pneg %p229
        %s340 = sand.u32 %s219, 1
        %s341 = scalar_lea.sflag [#allocation4], %s340
        %s342 = sand.u32 %s219, 1
        %s343 = smul.addr %s342, 32
        %s344 = scalar_lea.vmem [#allocation3], %s343
        %p345 = scmp.lt.s32.totalorder %s23, 1
        %s346 = scalar_select %p345, %s23, 1
        %s347 = smul.addr %s346, 4
        %s348 = smul.addr %s347, 8
        %s349 = scalar_lea.vmem %s1, %s348
        %p350 = scmp.lt.s32.totalorder %s23, 1
        %s351 = scalar_select %p350, %s23, 1
        %s352 = smul.addr %s351, 8
        %s353 = smul.addr %s352, 8
        %s354 = scalar_lea.vmem %s2, %s353
        %p355 = scmp.lt.s32.totalorder %s23, 1
        %s356 = scalar_select %p355, %s23, 1
        %s357 = smul.addr %s356, 8
        %s358 = smul.addr %s357, 8
        %s359 = scalar_lea.vmem %s3, %s358
        %p360 = scmp.lt.s32.totalorder %s23, 1
        %s361 = scalar_select %p360, %s23, 1
        %s362 = smul.addr %s361, 2
        %s363 = smul.addr %s362, 8
        %s364 = scalar_lea.vmem %s4, %s363
        %s366 = sld [smem:[#allocation2]]
        %v367 = vld [vmem:[%s5] sm:$0xf]
        %v368 = vld [vmem:[%s5 + $0x4] sm:$0xf]
        %v369 = vld [vmem:[%s6] sm:$0xf]
        %v370 = vld [vmem:[%s6 + $0x4] sm:$0xf]
        %v371 = vld [vmem:[%s7] sm:$0xf]
        %v372 = vld [vmem:[%s7 + $0x4] sm:$0xf]
        %v373 = vld [vmem:[%s354] sm:$0xff]
        %v374 = vld [vmem:[%s354 + $0x8] sm:$0xff]
        %v375 = vld [vmem:[%s354 + $0x10] sm:$0xff]
        %v376 = vld [vmem:[%s354 + $0x18] sm:$0xff]
        %v377 = vld [vmem:[%s354 + $0x20] sm:$0xff]
        %v378 = vld [vmem:[%s354 + $0x28] sm:$0xff]
        %v379 = vld [vmem:[%s354 + $0x30] sm:$0xff]
        %v380 = vld [vmem:[%s354 + $0x38] sm:$0xff]
        %v381 = vld [vmem:[%s359] sm:$0xff]
        %v382 = vld [vmem:[%s359 + $0x8] sm:$0xff]
        %v383 = vld [vmem:[%s359 + $0x10] sm:$0xff]
        %v384 = vld [vmem:[%s359 + $0x18] sm:$0xff]
        %v385 = vld [vmem:[%s359 + $0x20] sm:$0xff]
        %v386 = vld [vmem:[%s359 + $0x28] sm:$0xff]
        %v387 = vld [vmem:[%s359 + $0x30] sm:$0xff]
        %v388 = vld [vmem:[%s359 + $0x38] sm:$0xff]
        %v389 = vld [vmem:[%s364] sm:$0xff]
        %v390 = vld [vmem:[%s364 + $0x8] sm:$0xff]
        %v391 = vld [vmem:[%s349] sm:$0xff]
        %v392 = vld [vmem:[%s349 + $0x8] sm:$0xff]
        %v393 = vld [vmem:[%s349 + $0x10] sm:$0xff]
        %v394 = vld [vmem:[%s349 + $0x18] sm:$0xff]
        %v395 = vmul.f32 %v391, %v391
        %v396 = vmul.f32 %v392, %v392
        %v397 = vmul.f32 %v393, %v393
        %v398 = vmul.f32 %v394, %v394
        %v399 = vadd.f32 %v395, %v397
        %v400 = vadd.f32 %v396, %v398
        %vm401 = vcmask 130048
        %v402 = vsel %vm401, %v399, 0.0
        %v403 = vsel %vm401, %v400, 0.0
        %v404 = vadd.f32 %v402, %v403
        %405 = vadd.xlane.f32.xlu0 %v404
        %v406 = vpop.xlane.xlu0 %405
        %v407 = vrot.slane %v406, 4
        %v408 = vadd.f32 %v406, %v407
        %v409 = vrot.slane %v408, 2
        %v410 = vadd.f32 %v408, %v409
        %v411 = vrot.slane %v410, 1
        %v412 = vadd.f32 %v410, %v411
        %s413 = vtos %v412
        %v414 = vstv %s413
        loop: start=0, step=1, limit=10
        $region53: #{modl_forward.7} parent=51 // loop_pre_header
          _
        $region54: #{modl_forward.7} parent=51 // loop_header
          %s416 = sphi 0, %s420
          %p417 = scmp.ge.s32.totalorder %s416, 10
          %v421 = vphi 0.0, %v2338
          %v422 = vphi 0.0, %v2339
          %v423 = vphi 0.0, %v2342
          %v424 = vphi 0.0, %v2343
          %v425 = vphi %v391, %v2346
          %v426 = vphi %v392, %v2347
          %v427 = vphi %v393, %v2350
          %v428 = vphi %v394, %v2351
          %v429 = vphi %v391, %v2377
          %v430 = vphi %v392, %v2378
          %v431 = vphi %v393, %v2381
          %v432 = vphi %v394, %v2382
          %v433 = vphi %v414, %v2370
        $region55: #{modl_forward.7} parent=51 // loop_header_branch
          %419 = sbr.rel (%p417) target = $region59
        $region56: #{modl_forward.7} parent=51 // loop_body
          %v434 = vmul.f32 %v373, %v429
          %v435 = vmul.f32 %v374, %v430
          %v436 = vmul.f32 %v375, %v429
          %v437 = vmul.f32 %v376, %v430
          %v438 = vmul.f32 %v377, %v429
          %v439 = vmul.f32 %v378, %v430
          %v440 = vmul.f32 %v379, %v429
          %v441 = vmul.f32 %v380, %v430
          %v442 = vmul.f32 %v381, %v431
          %v443 = vmul.f32 %v382, %v432
          %v444 = vmul.f32 %v383, %v431
          %v445 = vmul.f32 %v384, %v432
          %v446 = vmul.f32 %v385, %v431
          %v447 = vmul.f32 %v386, %v432
          %v448 = vmul.f32 %v387, %v431
          %v449 = vmul.f32 %v388, %v432
          %v450 = vsub.f32 %v434, %v442
          %v451 = vsub.f32 %v435, %v443
          %v452 = vsub.f32 %v436, %v444
          %v453 = vsub.f32 %v437, %v445
          %v454 = vsub.f32 %v438, %v446
          %v455 = vsub.f32 %v439, %v447
          %v456 = vsub.f32 %v440, %v448
          %v457 = vsub.f32 %v441, %v449
          %v458 = vmul.f32 %v373, %v431
          %v459 = vmul.f32 %v374, %v432
          %v460 = vmul.f32 %v375, %v431
          %v461 = vmul.f32 %v376, %v432
          %v462 = vmul.f32 %v377, %v431
          %v463 = vmul.f32 %v378, %v432
          %v464 = vmul.f32 %v379, %v431
          %v465 = vmul.f32 %v380, %v432
          %v466 = vmul.f32 %v381, %v429
          %v467 = vmul.f32 %v382, %v430
          %v468 = vmul.f32 %v383, %v429
          %v469 = vmul.f32 %v384, %v430
          %v470 = vmul.f32 %v385, %v429
          %v471 = vmul.f32 %v386, %v430
          %v472 = vmul.f32 %v387, %v429
          %v473 = vmul.f32 %v388, %v430
          %v474 = vadd.f32 %v458, %v466
          %v475 = vadd.f32 %v459, %v467
          %v476 = vadd.f32 %v460, %v468
          %v477 = vadd.f32 %v461, %v469
          %v478 = vadd.f32 %v462, %v470
          %v479 = vadd.f32 %v463, %v471
          %v480 = vadd.f32 %v464, %v472
          %v481 = vadd.f32 %v465, %v473
          %v482 = vpack.c.bf16 %v451, %v450
          %v483 = vpack.c.bf16 %v453, %v452
          %v484 = vpack.c.bf16 %v455, %v454
          %v485 = vpack.c.bf16 %v457, %v456
          %v486 = vpack.c.bf16 %v475, %v474
          %v487 = vpack.c.bf16 %v477, %v476
          %v488 = vpack.c.bf16 %v479, %v478
          %v489 = vpack.c.bf16 %v481, %v480
          %v492 = vunpack.c.l.b16 %v367
          %v493 = vunpack.c.l.b16 %v368
          %v494 = vpack.c.b16 %v493, %v492
          %v497 = vsel %vm401, %v482, 0
          %v500 = vsel %vm401, %v483, 0
          %v503 = vsel %vm401, %v484, 0
          %v506 = vsel %vm401, %v485, 0
          %508 = vmatprep.subr.bf16.mxu0 0
          %509 = vmatpush1.bf16.msra.mxu0 %v494
          %510 = vmatprep.subr.bf16.mxu0 0
          %511 = vmatpush1.bf16.msra.mxu0 0
          %512 = vmatprep.subr.bf16.mxu0 0
          %513 = vmatpush1.bf16.msra.mxu0 0
          %514 = vmatprep.subr.bf16.mxu0 0
          %515 = vmatpush1.bf16.msra.mxu0 0
          %516 = vmatprep.subr.bf16.mxu0 0
          %517 = vmatpush1.bf16.msra.mxu0 0
          %518 = vmatprep.subr.bf16.mxu0 0
          %519 = vmatpush1.bf16.msra.mxu0 0
          %520 = vmatprep.subr.bf16.mxu0 0
          %521 = vmatpush1.bf16.msra.mxu0 0
          %522 = vmatprep.subr.bf16.mxu0 0
          %523 = vmatpush1.bf16.msra.mxu0 0
          %524 = vmatprep.subr.bf16.mxu0 0
          %525 = vmatpush1.bf16.msra.mxu0 0
          %526 = vmatprep.subr.bf16.mxu0 0
          %527 = vmatpush1.bf16.msra.mxu0 0
          %528 = vmatprep.subr.bf16.mxu0 0
          %529 = vmatpush1.bf16.msra.mxu0 0
          %530 = vmatprep.subr.bf16.mxu0 0
          %531 = vmatpush1.bf16.msra.mxu0 0
          %532 = vmatprep.subr.bf16.mxu0 0
          %533 = vmatpush1.bf16.msra.mxu0 0
          %534 = vmatprep.subr.bf16.mxu0 0
          %535 = vmatpush1.bf16.msra.mxu0 0
          %536 = vmatprep.subr.bf16.mxu0 0
          %537 = vmatpush1.bf16.msra.mxu0 0
          %538 = vmatprep.subr.bf16.mxu0 0
          %539 = vmatpush1.bf16.msra.mxu0 0
          %540 = vmatprep.mubr.bf16.mxu0 0
          %541 = vmatmul.mubr.bf16.gmra.mrb[0].mxu0 %v497
          %v542 = vpop.f32.mrb[0].mxu0
          %v543 = vadd.f32 0.0, %v542
          %v544 = vpop.f32.mrb[0].mxu0
          %v545 = vpop.f32.mrb[0].mxu0
          %v546 = vadd.f32 0.0, %v545
          %v547 = vpop.f32.mrb[0].mxu0
          %548 = vmatprep.mubr.bf16.mxu0 0
          %549 = vmatmul.mubr.bf16.gmra.mrb[0].mxu0 %v500
          %v550 = vpop.f32.mrb[0].mxu0
          %v551 = vadd.f32 0.0, %v550
          %v552 = vpop.f32.mrb[0].mxu0
          %v553 = vpop.f32.mrb[0].mxu0
          %v554 = vadd.f32 0.0, %v553
          %v555 = vpop.f32.mrb[0].mxu0
          %556 = vmatprep.mubr.bf16.mxu0 0
          %557 = vmatmul.mubr.bf16.gmra.mrb[0].mxu0 %v503
          %v558 = vpop.f32.mrb[0].mxu0
          %v559 = vadd.f32 0.0, %v558
          %v560 = vpop.f32.mrb[0].mxu0
          %v561 = vpop.f32.mrb[0].mxu0
          %v562 = vadd.f32 0.0, %v561
          %v563 = vpop.f32.mrb[0].mxu0
          %564 = vmatprep.mubr.bf16.mxu0 0
          %565 = vmatmul.mubr.bf16.gmra.mrb[0].mxu0 %v506
          %v566 = vpop.f32.mrb[0].mxu0
          %v567 = vadd.f32 0.0, %v566
          %v568 = vpop.f32.mrb[0].mxu0
          %v569 = vpop.f32.mrb[0].mxu0
          %v570 = vadd.f32 0.0, %v569
          %v571 = vpop.f32.mrb[0].mxu0
          %572 = vdwg.mxu0
          %v575 = vunpack.c.l.b16 %v369
          %v576 = vunpack.c.l.b16 %v370
          %v577 = vpack.c.b16 %v576, %v575
          %v580 = vsel %vm401, %v486, 0
          %v583 = vsel %vm401, %v487, 0
          %v586 = vsel %vm401, %v488, 0
          %v589 = vsel %vm401, %v489, 0
          %591 = vmatprep.subr.bf16.mxu0 0
          %592 = vmatpush1.bf16.msra.mxu0 %v577
          %593 = vmatprep.subr.bf16.mxu0 0
          %594 = vmatpush1.bf16.msra.mxu0 0
          %595 = vmatprep.subr.bf16.mxu0 0
          %596 = vmatpush1.bf16.msra.mxu0 0
          %597 = vmatprep.subr.bf16.mxu0 0
          %598 = vmatpush1.bf16.msra.mxu0 0
          %599 = vmatprep.subr.bf16.mxu0 0
          %600 = vmatpush1.bf16.msra.mxu0 0
          %601 = vmatprep.subr.bf16.mxu0 0
          %602 = vmatpush1.bf16.msra.mxu0 0
          %603 = vmatprep.subr.bf16.mxu0 0
          %604 = vmatpush1.bf16.msra.mxu0 0
          %605 = vmatprep.subr.bf16.mxu0 0
          %606 = vmatpush1.bf16.msra.mxu0 0
          %607 = vmatprep.subr.bf16.mxu0 0
          %608 = vmatpush1.bf16.msra.mxu0 0
          %609 = vmatprep.subr.bf16.mxu0 0
          %610 = vmatpush1.bf16.msra.mxu0 0
          %611 = vmatprep.subr.bf16.mxu0 0
          %612 = vmatpush1.bf16.msra.mxu0 0
          %613 = vmatprep.subr.bf16.mxu0 0
          %614 = vmatpush1.bf16.msra.mxu0 0
          %615 = vmatprep.subr.bf16.mxu0 0
          %616 = vmatpush1.bf16.msra.mxu0 0
          %617 = vmatprep.subr.bf16.mxu0 0
          %618 = vmatpush1.bf16.msra.mxu0 0
          %619 = vmatprep.subr.bf16.mxu0 0
          %620 = vmatpush1.bf16.msra.mxu0 0
          %621 = vmatprep.subr.bf16.mxu0 0
          %622 = vmatpush1.bf16.msra.mxu0 0
          %623 = vmatprep.mubr.bf16.mxu0 0
          %624 = vmatmul.mubr.bf16.gmra.mrb[0].mxu0 %v580
          %v625 = vpop.f32.mrb[0].mxu0
          %v626 = vadd.f32 0.0, %v625
          %v627 = vpop.f32.mrb[0].mxu0
          %v628 = vpop.f32.mrb[0].mxu0
          %v629 = vadd.f32 0.0, %v628
          %v630 = vpop.f32.mrb[0].mxu0
          %631 = vmatprep.mubr.bf16.mxu0 0
          %632 = vmatmul.mubr.bf16.gmra.mrb[0].mxu0 %v583
          %v633 = vpop.f32.mrb[0].mxu0
          %v634 = vadd.f32 0.0, %v633
          %v635 = vpop.f32.mrb[0].mxu0
          %v636 = vpop.f32.mrb[0].mxu0
          %v637 = vadd.f32 0.0, %v636
          %v638 = vpop.f32.mrb[0].mxu0
          %639 = vmatprep.mubr.bf16.mxu0 0
          %640 = vmatmul.mubr.bf16.gmra.mrb[0].mxu0 %v586
          %v641 = vpop.f32.mrb[0].mxu0
          %v642 = vadd.f32 0.0, %v641
          %v643 = vpop.f32.mrb[0].mxu0
          %v644 = vpop.f32.mrb[0].mxu0
          %v645 = vadd.f32 0.0, %v644
          %v646 = vpop.f32.mrb[0].mxu0
          %647 = vmatprep.mubr.bf16.mxu0 0
          %648 = vmatmul.mubr.bf16.gmra.mrb[0].mxu0 %v589
          %v649 = vpop.f32.mrb[0].mxu0
          %v650 = vadd.f32 0.0, %v649
          %v651 = vpop.f32.mrb[0].mxu0
          %v652 = vpop.f32.mrb[0].mxu0
          %v653 = vadd.f32 0.0, %v652
          %v654 = vpop.f32.mrb[0].mxu0
          %655 = vdwg.mxu0
          %v656 = vsub.f32 %v543, %v626
          %v657 = vsub.f32 %v546, %v629
          %v658 = vsub.f32 %v551, %v634
          %v659 = vsub.f32 %v554, %v637
          %v660 = vsub.f32 %v559, %v642
          %v661 = vsub.f32 %v562, %v645
          %v662 = vsub.f32 %v567, %v650
          %v663 = vsub.f32 %v570, %v653
          %664 = vmatprep.subr.bf16.mxu0 0
          %665 = vmatpush1.bf16.msra.mxu0 %v494
          %666 = vmatprep.subr.bf16.mxu0 0
          %667 = vmatpush1.bf16.msra.mxu0 0
          %668 = vmatprep.subr.bf16.mxu0 0
          %669 = vmatpush1.bf16.msra.mxu0 0
          %670 = vmatprep.subr.bf16.mxu0 0
          %671 = vmatpush1.bf16.msra.mxu0 0
          %672 = vmatprep.subr.bf16.mxu0 0
          %673 = vmatpush1.bf16.msra.mxu0 0
          %674 = vmatprep.subr.bf16.mxu0 0
          %675 = vmatpush1.bf16.msra.mxu0 0
          %676 = vmatprep.subr.bf16.mxu0 0
          %677 = vmatpush1.bf16.msra.mxu0 0
          %678 = vmatprep.subr.bf16.mxu0 0
          %679 = vmatpush1.bf16.msra.mxu0 0
          %680 = vmatprep.subr.bf16.mxu0 0
          %681 = vmatpush1.bf16.msra.mxu0 0
          %682 = vmatprep.subr.bf16.mxu0 0
          %683 = vmatpush1.bf16.msra.mxu0 0
          %684 = vmatprep.subr.bf16.mxu0 0
          %685 = vmatpush1.bf16.msra.mxu0 0
          %686 = vmatprep.subr.bf16.mxu0 0
          %687 = vmatpush1.bf16.msra.mxu0 0
          %688 = vmatprep.subr.bf16.mxu0 0
          %689 = vmatpush1.bf16.msra.mxu0 0
          %690 = vmatprep.subr.bf16.mxu0 0
          %691 = vmatpush1.bf16.msra.mxu0 0
          %692 = vmatprep.subr.bf16.mxu0 0
          %693 = vmatpush1.bf16.msra.mxu0 0
          %694 = vmatprep.subr.bf16.mxu0 0
          %695 = vmatpush1.bf16.msra.mxu0 0
          %696 = vmatprep.mubr.bf16.mxu0 0
          %697 = vmatmul.mubr.bf16.gmra.mrb[0].mxu0 %v580
          %v698 = vpop.f32.mrb[0].mxu0
          %v699 = vadd.f32 0.0, %v698
          %v700 = vpop.f32.mrb[0].mxu0
          %v701 = vpop.f32.mrb[0].mxu0
          %v702 = vadd.f32 0.0, %v701
          %v703 = vpop.f32.mrb[0].mxu0
          %704 = vmatprep.mubr.bf16.mxu0 0
          %705 = vmatmul.mubr.bf16.gmra.mrb[0].mxu0 %v583
          %v706 = vpop.f32.mrb[0].mxu0
          %v707 = vadd.f32 0.0, %v706
          %v708 = vpop.f32.mrb[0].mxu0
          %v709 = vpop.f32.mrb[0].mxu0
          %v710 = vadd.f32 0.0, %v709
          %v711 = vpop.f32.mrb[0].mxu0
          %712 = vmatprep.mubr.bf16.mxu0 0
          %713 = vmatmul.mubr.bf16.gmra.mrb[0].mxu0 %v586
          %v714 = vpop.f32.mrb[0].mxu0
          %v715 = vadd.f32 0.0, %v714
          %v716 = vpop.f32.mrb[0].mxu0
          %v717 = vpop.f32.mrb[0].mxu0
          %v718 = vadd.f32 0.0, %v717
          %v719 = vpop.f32.mrb[0].mxu0
          %720 = vmatprep.mubr.bf16.mxu0 0
          %721 = vmatmul.mubr.bf16.gmra.mrb[0].mxu0 %v589
          %v722 = vpop.f32.mrb[0].mxu0
          %v723 = vadd.f32 0.0, %v722
          %v724 = vpop.f32.mrb[0].mxu0
          %v725 = vpop.f32.mrb[0].mxu0
          %v726 = vadd.f32 0.0, %v725
          %v727 = vpop.f32.mrb[0].mxu0
          %728 = vdwg.mxu0
          %729 = vmatprep.subr.bf16.mxu0 0
          %730 = vmatpush1.bf16.msra.mxu0 %v577
          %731 = vmatprep.subr.bf16.mxu0 0
          %732 = vmatpush1.bf16.msra.mxu0 0
          %733 = vmatprep.subr.bf16.mxu0 0
          %734 = vmatpush1.bf16.msra.mxu0 0
          %735 = vmatprep.subr.bf16.mxu0 0
          %736 = vmatpush1.bf16.msra.mxu0 0
          %737 = vmatprep.subr.bf16.mxu0 0
          %738 = vmatpush1.bf16.msra.mxu0 0
          %739 = vmatprep.subr.bf16.mxu0 0
          %740 = vmatpush1.bf16.msra.mxu0 0
          %741 = vmatprep.subr.bf16.mxu0 0
          %742 = vmatpush1.bf16.msra.mxu0 0
          %743 = vmatprep.subr.bf16.mxu0 0
          %744 = vmatpush1.bf16.msra.mxu0 0
          %745 = vmatprep.subr.bf16.mxu0 0
          %746 = vmatpush1.bf16.msra.mxu0 0
          %747 = vmatprep.subr.bf16.mxu0 0
          %748 = vmatpush1.bf16.msra.mxu0 0
          %749 = vmatprep.subr.bf16.mxu0 0
          %750 = vmatpush1.bf16.msra.mxu0 0
          %751 = vmatprep.subr.bf16.mxu0 0
          %752 = vmatpush1.bf16.msra.mxu0 0
          %753 = vmatprep.subr.bf16.mxu0 0
          %754 = vmatpush1.bf16.msra.mxu0 0
          %755 = vmatprep.subr.bf16.mxu0 0
          %756 = vmatpush1.bf16.msra.mxu0 0
          %757 = vmatprep.subr.bf16.mxu0 0
          %758 = vmatpush1.bf16.msra.mxu0 0
          %759 = vmatprep.subr.bf16.mxu0 0
          %760 = vmatpush1.bf16.msra.mxu0 0
          %761 = vmatprep.mubr.bf16.mxu0 0
          %762 = vmatmul.mubr.bf16.gmra.mrb[0].mxu0 %v497
          %v763 = vpop.f32.mrb[0].mxu0
          %v764 = vadd.f32 %v699, %v763
          %v765 = vpop.f32.mrb[0].mxu0
          %v766 = vpop.f32.mrb[0].mxu0
          %v767 = vadd.f32 %v702, %v766
          %v768 = vpop.f32.mrb[0].mxu0
          %769 = vmatprep.mubr.bf16.mxu0 0
          %770 = vmatmul.mubr.bf16.gmra.mrb[0].mxu0 %v500
          %v771 = vpop.f32.mrb[0].mxu0
          %v772 = vadd.f32 %v707, %v771
          %v773 = vpop.f32.mrb[0].mxu0
          %v774 = vpop.f32.mrb[0].mxu0
          %v775 = vadd.f32 %v710, %v774
          %v776 = vpop.f32.mrb[0].mxu0
          %777 = vmatprep.mubr.bf16.mxu0 0
          %778 = vmatmul.mubr.bf16.gmra.mrb[0].mxu0 %v503
          %v779 = vpop.f32.mrb[0].mxu0
          %v780 = vadd.f32 %v715, %v779
          %v781 = vpop.f32.mrb[0].mxu0
          %v782 = vpop.f32.mrb[0].mxu0
          %v783 = vadd.f32 %v718, %v782
          %v784 = vpop.f32.mrb[0].mxu0
          %785 = vmatprep.mubr.bf16.mxu0 0
          %786 = vmatmul.mubr.bf16.gmra.mrb[0].mxu0 %v506
          %v787 = vpop.f32.mrb[0].mxu0
          %v788 = vadd.f32 %v723, %v787
          %v789 = vpop.f32.mrb[0].mxu0
          %v790 = vpop.f32.mrb[0].mxu0
          %v791 = vadd.f32 %v726, %v790
          %v792 = vpop.f32.mrb[0].mxu0
          %793 = vdwg.mxu0
          %794 = vxpose.xlu0.b32.start [1/16] %v656, 128
          %795 = vxpose.xlu0.b32.cont [2/16] %v657, 128
          %796 = vxpose.xlu0.b32.cont [3/16] 0.0, 128
          %797 = vxpose.xlu0.b32.cont [4/16] 0.0, 128
          %798 = vxpose.xlu0.b32.cont [5/16] 0.0, 128
          %799 = vxpose.xlu0.b32.cont [6/16] 0.0, 128
          %800 = vxpose.xlu0.b32.cont [7/16] 0.0, 128
          %801 = vxpose.xlu0.b32.cont [8/16] 0.0, 128
          %802 = vxpose.xlu0.b32.cont [9/16] 0.0, 128
          %803 = vxpose.xlu0.b32.cont [10/16] 0.0, 128
          %804 = vxpose.xlu0.b32.cont [11/16] 0.0, 128
          %805 = vxpose.xlu0.b32.cont [12/16] 0.0, 128
          %806 = vxpose.xlu0.b32.cont [13/16] 0.0, 128
          %807 = vxpose.xlu0.b32.cont [14/16] 0.0, 128
          %808 = vxpose.xlu0.b32.cont [15/16] 0.0, 128
          %809 = vxpose.xlu0.b32.end [16/16] 0.0, 128
          %v810 = vpop.trf.xlu0
          %v811 = vpop.trf.xlu0
          %v812 = vpop.trf.xlu0
          %v813 = vpop.trf.xlu0
          %v814 = vpop.trf.xlu0
          %v815 = vpop.trf.xlu0
          %v816 = vpop.trf.xlu0
          %v817 = vpop.trf.xlu0
          %v818 = vpop.trf.xlu0
          %v819 = vpop.trf.xlu0
          %v820 = vpop.trf.xlu0
          %v821 = vpop.trf.xlu0
          %v822 = vpop.trf.xlu0
          %v823 = vpop.trf.xlu0
          %v824 = vpop.trf.xlu0
          %v825 = vpop.trf.xlu0
          %826 = vxpose.xlu0.b32.start [1/16] %v658, 128
          %827 = vxpose.xlu0.b32.cont [2/16] %v659, 128
          %828 = vxpose.xlu0.b32.cont [3/16] 0.0, 128
          %829 = vxpose.xlu0.b32.cont [4/16] 0.0, 128
          %830 = vxpose.xlu0.b32.cont [5/16] 0.0, 128
          %831 = vxpose.xlu0.b32.cont [6/16] 0.0, 128
          %832 = vxpose.xlu0.b32.cont [7/16] 0.0, 128
          %833 = vxpose.xlu0.b32.cont [8/16] 0.0, 128
          %834 = vxpose.xlu0.b32.cont [9/16] 0.0, 128
          %835 = vxpose.xlu0.b32.cont [10/16] 0.0, 128
          %836 = vxpose.xlu0.b32.cont [11/16] 0.0, 128
          %837 = vxpose.xlu0.b32.cont [12/16] 0.0, 128
          %838 = vxpose.xlu0.b32.cont [13/16] 0.0, 128
          %839 = vxpose.xlu0.b32.cont [14/16] 0.0, 128
          %840 = vxpose.xlu0.b32.cont [15/16] 0.0, 128
          %841 = vxpose.xlu0.b32.end [16/16] 0.0, 128
          %v842 = vpop.trf.xlu0
          %v843 = vpop.trf.xlu0
          %v844 = vpop.trf.xlu0
          %v845 = vpop.trf.xlu0
          %v846 = vpop.trf.xlu0
          %v847 = vpop.trf.xlu0
          %v848 = vpop.trf.xlu0
          %v849 = vpop.trf.xlu0
          %v850 = vpop.trf.xlu0
          %v851 = vpop.trf.xlu0
          %v852 = vpop.trf.xlu0
          %v853 = vpop.trf.xlu0
          %v854 = vpop.trf.xlu0
          %v855 = vpop.trf.xlu0
          %v856 = vpop.trf.xlu0
          %v857 = vpop.trf.xlu0
          %858 = vxpose.xlu0.b32.start [1/16] %v660, 128
          %859 = vxpose.xlu0.b32.cont [2/16] %v661, 128
          %860 = vxpose.xlu0.b32.cont [3/16] 0.0, 128
          %861 = vxpose.xlu0.b32.cont [4/16] 0.0, 128
          %862 = vxpose.xlu0.b32.cont [5/16] 0.0, 128
          %863 = vxpose.xlu0.b32.cont [6/16] 0.0, 128
          %864 = vxpose.xlu0.b32.cont [7/16] 0.0, 128
          %865 = vxpose.xlu0.b32.cont [8/16] 0.0, 128
          %866 = vxpose.xlu0.b32.cont [9/16] 0.0, 128
          %867 = vxpose.xlu0.b32.cont [10/16] 0.0, 128
          %868 = vxpose.xlu0.b32.cont [11/16] 0.0, 128
          %869 = vxpose.xlu0.b32.cont [12/16] 0.0, 128
          %870 = vxpose.xlu0.b32.cont [13/16] 0.0, 128
          %871 = vxpose.xlu0.b32.cont [14/16] 0.0, 128
          %872 = vxpose.xlu0.b32.cont [15/16] 0.0, 128
          %873 = vxpose.xlu0.b32.end [16/16] 0.0, 128
          %v874 = vpop.trf.xlu0
          %v875 = vpop.trf.xlu0
          %v876 = vpop.trf.xlu0
          %v877 = vpop.trf.xlu0
          %v878 = vpop.trf.xlu0
          %v879 = vpop.trf.xlu0
          %v880 = vpop.trf.xlu0
          %v881 = vpop.trf.xlu0
          %v882 = vpop.trf.xlu0
          %v883 = vpop.trf.xlu0
          %v884 = vpop.trf.xlu0
          %v885 = vpop.trf.xlu0
          %v886 = vpop.trf.xlu0
          %v887 = vpop.trf.xlu0
          %v888 = vpop.trf.xlu0
          %v889 = vpop.trf.xlu0
          %890 = vxpose.xlu0.b32.start [1/16] %v662, 128
          %891 = vxpose.xlu0.b32.cont [2/16] %v663, 128
          %892 = vxpose.xlu0.b32.cont [3/16] 0.0, 128
          %893 = vxpose.xlu0.b32.cont [4/16] 0.0, 128
          %894 = vxpose.xlu0.b32.cont [5/16] 0.0, 128
          %895 = vxpose.xlu0.b32.cont [6/16] 0.0, 128
          %896 = vxpose.xlu0.b32.cont [7/16] 0.0, 128
          %897 = vxpose.xlu0.b32.cont [8/16] 0.0, 128
          %898 = vxpose.xlu0.b32.cont [9/16] 0.0, 128
          %899 = vxpose.xlu0.b32.cont [10/16] 0.0, 128
          %900 = vxpose.xlu0.b32.cont [11/16] 0.0, 128
          %901 = vxpose.xlu0.b32.cont [12/16] 0.0, 128
          %902 = vxpose.xlu0.b32.cont [13/16] 0.0, 128
          %903 = vxpose.xlu0.b32.cont [14/16] 0.0, 128
          %904 = vxpose.xlu0.b32.cont [15/16] 0.0, 128
          %905 = vxpose.xlu0.b32.end [16/16] 0.0, 128
          %v906 = vpop.trf.xlu0
          %v907 = vpop.trf.xlu0
          %v908 = vpop.trf.xlu0
          %v909 = vpop.trf.xlu0
          %v910 = vpop.trf.xlu0
          %v911 = vpop.trf.xlu0
          %v912 = vpop.trf.xlu0
          %v913 = vpop.trf.xlu0
          %v914 = vpop.trf.xlu0
          %v915 = vpop.trf.xlu0
          %v916 = vpop.trf.xlu0
          %v917 = vpop.trf.xlu0
          %v918 = vpop.trf.xlu0
          %v919 = vpop.trf.xlu0
          %v920 = vpop.trf.xlu0
          %v921 = vpop.trf.xlu0
          %922 = vxpose.xlu0.b32.start [1/16] %v764, 128
          %923 = vxpose.xlu0.b32.cont [2/16] %v767, 128
          %924 = vxpose.xlu0.b32.cont [3/16] 0.0, 128
          %925 = vxpose.xlu0.b32.cont [4/16] 0.0, 128
          %926 = vxpose.xlu0.b32.cont [5/16] 0.0, 128
          %927 = vxpose.xlu0.b32.cont [6/16] 0.0, 128
          %928 = vxpose.xlu0.b32.cont [7/16] 0.0, 128
          %929 = vxpose.xlu0.b32.cont [8/16] 0.0, 128
          %930 = vxpose.xlu0.b32.cont [9/16] 0.0, 128
          %931 = vxpose.xlu0.b32.cont [10/16] 0.0, 128
          %932 = vxpose.xlu0.b32.cont [11/16] 0.0, 128
          %933 = vxpose.xlu0.b32.cont [12/16] 0.0, 128
          %934 = vxpose.xlu0.b32.cont [13/16] 0.0, 128
          %935 = vxpose.xlu0.b32.cont [14/16] 0.0, 128
          %936 = vxpose.xlu0.b32.cont [15/16] 0.0, 128
          %937 = vxpose.xlu0.b32.end [16/16] 0.0, 128
          %v938 = vpop.trf.xlu0
          %v939 = vpop.trf.xlu0
          %v940 = vpop.trf.xlu0
          %v941 = vpop.trf.xlu0
          %v942 = vpop.trf.xlu0
          %v943 = vpop.trf.xlu0
          %v944 = vpop.trf.xlu0
          %v945 = vpop.trf.xlu0
          %v946 = vpop.trf.xlu0
          %v947 = vpop.trf.xlu0
          %v948 = vpop.trf.xlu0
          %v949 = vpop.trf.xlu0
          %v950 = vpop.trf.xlu0
          %v951 = vpop.trf.xlu0
          %v952 = vpop.trf.xlu0
          %v953 = vpop.trf.xlu0
          %954 = vxpose.xlu0.b32.start [1/16] %v772, 128
          %955 = vxpose.xlu0.b32.cont [2/16] %v775, 128
          %956 = vxpose.xlu0.b32.cont [3/16] 0.0, 128
          %957 = vxpose.xlu0.b32.cont [4/16] 0.0, 128
          %958 = vxpose.xlu0.b32.cont [5/16] 0.0, 128
          %959 = vxpose.xlu0.b32.cont [6/16] 0.0, 128
          %960 = vxpose.xlu0.b32.cont [7/16] 0.0, 128
          %961 = vxpose.xlu0.b32.cont [8/16] 0.0, 128
          %962 = vxpose.xlu0.b32.cont [9/16] 0.0, 128
          %963 = vxpose.xlu0.b32.cont [10/16] 0.0, 128
          %964 = vxpose.xlu0.b32.cont [11/16] 0.0, 128
          %965 = vxpose.xlu0.b32.cont [12/16] 0.0, 128
          %966 = vxpose.xlu0.b32.cont [13/16] 0.0, 128
          %967 = vxpose.xlu0.b32.cont [14/16] 0.0, 128
          %968 = vxpose.xlu0.b32.cont [15/16] 0.0, 128
          %969 = vxpose.xlu0.b32.end [16/16] 0.0, 128
          %v970 = vpop.trf.xlu0
          %v971 = vpop.trf.xlu0
          %v972 = vpop.trf.xlu0
          %v973 = vpop.trf.xlu0
          %v974 = vpop.trf.xlu0
          %v975 = vpop.trf.xlu0
          %v976 = vpop.trf.xlu0
          %v977 = vpop.trf.xlu0
          %v978 = vpop.trf.xlu0
          %v979 = vpop.trf.xlu0
          %v980 = vpop.trf.xlu0
          %v981 = vpop.trf.xlu0
          %v982 = vpop.trf.xlu0
          %v983 = vpop.trf.xlu0
          %v984 = vpop.trf.xlu0
          %v985 = vpop.trf.xlu0
          %986 = vxpose.xlu0.b32.start [1/16] %v780, 128
          %987 = vxpose.xlu0.b32.cont [2/16] %v783, 128
          %988 = vxpose.xlu0.b32.cont [3/16] 0.0, 128
          %989 = vxpose.xlu0.b32.cont [4/16] 0.0, 128
          %990 = vxpose.xlu0.b32.cont [5/16] 0.0, 128
          %991 = vxpose.xlu0.b32.cont [6/16] 0.0, 128
          %992 = vxpose.xlu0.b32.cont [7/16] 0.0, 128
          %993 = vxpose.xlu0.b32.cont [8/16] 0.0, 128
          %994 = vxpose.xlu0.b32.cont [9/16] 0.0, 128
          %995 = vxpose.xlu0.b32.cont [10/16] 0.0, 128
          %996 = vxpose.xlu0.b32.cont [11/16] 0.0, 128
          %997 = vxpose.xlu0.b32.cont [12/16] 0.0, 128
          %998 = vxpose.xlu0.b32.cont [13/16] 0.0, 128
          %999 = vxpose.xlu0.b32.cont [14/16] 0.0, 128
          %1000 = vxpose.xlu0.b32.cont [15/16] 0.0, 128
          %1001 = vxpose.xlu0.b32.end [16/16] 0.0, 128
          %v1002 = vpop.trf.xlu0
          %v1003 = vpop.trf.xlu0
          %v1004 = vpop.trf.xlu0
          %v1005 = vpop.trf.xlu0
          %v1006 = vpop.trf.xlu0
          %v1007 = vpop.trf.xlu0
          %v1008 = vpop.trf.xlu0
          %v1009 = vpop.trf.xlu0
          %v1010 = vpop.trf.xlu0
          %v1011 = vpop.trf.xlu0
          %v1012 = vpop.trf.xlu0
          %v1013 = vpop.trf.xlu0
          %v1014 = vpop.trf.xlu0
          %v1015 = vpop.trf.xlu0
          %v1016 = vpop.trf.xlu0
          %v1017 = vpop.trf.xlu0
          %1018 = vxpose.xlu0.b32.start [1/16] %v788, 128
          %1019 = vxpose.xlu0.b32.cont [2/16] %v791, 128
          %1020 = vxpose.xlu0.b32.cont [3/16] 0.0, 128
          %1021 = vxpose.xlu0.b32.cont [4/16] 0.0, 128
          %1022 = vxpose.xlu0.b32.cont [5/16] 0.0, 128
          %1023 = vxpose.xlu0.b32.cont [6/16] 0.0, 128
          %1024 = vxpose.xlu0.b32.cont [7/16] 0.0, 128
          %1025 = vxpose.xlu0.b32.cont [8/16] 0.0, 128
          %1026 = vxpose.xlu0.b32.cont [9/16] 0.0, 128
          %1027 = vxpose.xlu0.b32.cont [10/16] 0.0, 128
          %1028 = vxpose.xlu0.b32.cont [11/16] 0.0, 128
          %1029 = vxpose.xlu0.b32.cont [12/16] 0.0, 128
          %1030 = vxpose.xlu0.b32.cont [13/16] 0.0, 128
          %1031 = vxpose.xlu0.b32.cont [14/16] 0.0, 128
          %1032 = vxpose.xlu0.b32.cont [15/16] 0.0, 128
          %1033 = vxpose.xlu0.b32.end [16/16] 0.0, 128
          %v1034 = vpop.trf.xlu0
          %v1035 = vpop.trf.xlu0
          %v1036 = vpop.trf.xlu0
          %v1037 = vpop.trf.xlu0
          %v1038 = vpop.trf.xlu0
          %v1039 = vpop.trf.xlu0
          %v1040 = vpop.trf.xlu0
          %v1041 = vpop.trf.xlu0
          %v1042 = vpop.trf.xlu0
          %v1043 = vpop.trf.xlu0
          %v1044 = vpop.trf.xlu0
          %v1045 = vpop.trf.xlu0
          %v1046 = vpop.trf.xlu0
          %v1047 = vpop.trf.xlu0
          %v1048 = vpop.trf.xlu0
          %v1049 = vpop.trf.xlu0
          %v1050 = vpack.c.bf16 %v811, %v810
          %v1051 = vpack.c.bf16 %v843, %v842
          %v1052 = vpack.c.bf16 %v875, %v874
          %v1053 = vpack.c.bf16 %v907, %v906
          %v1054 = vpack.c.bf16 %v939, %v938
          %v1055 = vpack.c.bf16 %v971, %v970
          %v1056 = vpack.c.bf16 %v1003, %v1002
          %v1057 = vpack.c.bf16 %v1035, %v1034
          %v1059 = vsel %vm401, %v1050, 0
          %v1062 = vsel %vm401, %v1051, 0
          %v1065 = vsel %vm401, %v1052, 0
          %v1068 = vsel %vm401, %v1053, 0
          %1070 = vmatprep.subr.bf16.mxu0 0
          %1071 = vmatpush1.bf16.msra.mxu0 %v494
          %1072 = vmatprep.subr.bf16.mxu0 0
          %1073 = vmatpush1.bf16.msra.mxu0 0
          %1074 = vmatprep.subr.bf16.mxu0 0
          %1075 = vmatpush1.bf16.msra.mxu0 0
          %1076 = vmatprep.subr.bf16.mxu0 0
          %1077 = vmatpush1.bf16.msra.mxu0 0
          %1078 = vmatprep.subr.bf16.mxu0 0
          %1079 = vmatpush1.bf16.msra.mxu0 0
          %1080 = vmatprep.subr.bf16.mxu0 0
          %1081 = vmatpush1.bf16.msra.mxu0 0
          %1082 = vmatprep.subr.bf16.mxu0 0
          %1083 = vmatpush1.bf16.msra.mxu0 0
          %1084 = vmatprep.subr.bf16.mxu0 0
          %1085 = vmatpush1.bf16.msra.mxu0 0
          %1086 = vmatprep.subr.bf16.mxu0 0
          %1087 = vmatpush1.bf16.msra.mxu0 0
          %1088 = vmatprep.subr.bf16.mxu0 0
          %1089 = vmatpush1.bf16.msra.mxu0 0
          %1090 = vmatprep.subr.bf16.mxu0 0
          %1091 = vmatpush1.bf16.msra.mxu0 0
          %1092 = vmatprep.subr.bf16.mxu0 0
          %1093 = vmatpush1.bf16.msra.mxu0 0
          %1094 = vmatprep.subr.bf16.mxu0 0
          %1095 = vmatpush1.bf16.msra.mxu0 0
          %1096 = vmatprep.subr.bf16.mxu0 0
          %1097 = vmatpush1.bf16.msra.mxu0 0
          %1098 = vmatprep.subr.bf16.mxu0 0
          %1099 = vmatpush1.bf16.msra.mxu0 0
          %1100 = vmatprep.subr.bf16.mxu0 0
          %1101 = vmatpush1.bf16.msra.mxu0 0
          %1102 = vmatprep.mubr.bf16.mxu0 0
          %1103 = vmatmul.mubr.bf16.gmra.mrb[0].mxu0 %v1059
          %v1104 = vpop.f32.mrb[0].mxu0
          %v1105 = vadd.f32 0.0, %v1104
          %v1106 = vpop.f32.mrb[0].mxu0
          %v1107 = vpop.f32.mrb[0].mxu0
          %v1108 = vadd.f32 0.0, %v1107
          %v1109 = vpop.f32.mrb[0].mxu0
          %1110 = vmatprep.mubr.bf16.mxu0 0
          %1111 = vmatmul.mubr.bf16.gmra.mrb[0].mxu0 %v1062
          %v1112 = vpop.f32.mrb[0].mxu0
          %v1113 = vadd.f32 0.0, %v1112
          %v1114 = vpop.f32.mrb[0].mxu0
          %v1115 = vpop.f32.mrb[0].mxu0
          %v1116 = vadd.f32 0.0, %v1115
          %v1117 = vpop.f32.mrb[0].mxu0
          %1118 = vmatprep.mubr.bf16.mxu0 0
          %1119 = vmatmul.mubr.bf16.gmra.mrb[0].mxu0 %v1065
          %v1120 = vpop.f32.mrb[0].mxu0
          %v1121 = vadd.f32 0.0, %v1120
          %v1122 = vpop.f32.mrb[0].mxu0
          %v1123 = vpop.f32.mrb[0].mxu0
          %v1124 = vadd.f32 0.0, %v1123
          %v1125 = vpop.f32.mrb[0].mxu0
          %1126 = vmatprep.mubr.bf16.mxu0 0
          %1127 = vmatmul.mubr.bf16.gmra.mrb[0].mxu0 %v1068
          %v1128 = vpop.f32.mrb[0].mxu0
          %v1129 = vadd.f32 0.0, %v1128
          %v1130 = vpop.f32.mrb[0].mxu0
          %v1131 = vpop.f32.mrb[0].mxu0
          %v1132 = vadd.f32 0.0, %v1131
          %v1133 = vpop.f32.mrb[0].mxu0
          %1134 = vdwg.mxu0
          %v1136 = vsel %vm401, %v1054, 0
          %v1139 = vsel %vm401, %v1055, 0
          %v1142 = vsel %vm401, %v1056, 0
          %v1145 = vsel %vm401, %v1057, 0
          %1147 = vmatprep.subr.bf16.mxu0 0
          %1148 = vmatpush1.bf16.msra.mxu0 %v577
          %1149 = vmatprep.subr.bf16.mxu0 0
          %1150 = vmatpush1.bf16.msra.mxu0 0
          %1151 = vmatprep.subr.bf16.mxu0 0
          %1152 = vmatpush1.bf16.msra.mxu0 0
          %1153 = vmatprep.subr.bf16.mxu0 0
          %1154 = vmatpush1.bf16.msra.mxu0 0
          %1155 = vmatprep.subr.bf16.mxu0 0
          %1156 = vmatpush1.bf16.msra.mxu0 0
          %1157 = vmatprep.subr.bf16.mxu0 0
          %1158 = vmatpush1.bf16.msra.mxu0 0
          %1159 = vmatprep.subr.bf16.mxu0 0
          %1160 = vmatpush1.bf16.msra.mxu0 0
          %1161 = vmatprep.subr.bf16.mxu0 0
          %1162 = vmatpush1.bf16.msra.mxu0 0
          %1163 = vmatprep.subr.bf16.mxu0 0
          %1164 = vmatpush1.bf16.msra.mxu0 0
          %1165 = vmatprep.subr.bf16.mxu0 0
          %1166 = vmatpush1.bf16.msra.mxu0 0
          %1167 = vmatprep.subr.bf16.mxu0 0
          %1168 = vmatpush1.bf16.msra.mxu0 0
          %1169 = vmatprep.subr.bf16.mxu0 0
          %1170 = vmatpush1.bf16.msra.mxu0 0
          %1171 = vmatprep.subr.bf16.mxu0 0
          %1172 = vmatpush1.bf16.msra.mxu0 0
          %1173 = vmatprep.subr.bf16.mxu0 0
          %1174 = vmatpush1.bf16.msra.mxu0 0
          %1175 = vmatprep.subr.bf16.mxu0 0
          %1176 = vmatpush1.bf16.msra.mxu0 0
          %1177 = vmatprep.subr.bf16.mxu0 0
          %1178 = vmatpush1.bf16.msra.mxu0 0
          %1179 = vmatprep.mubr.bf16.mxu0 0
          %1180 = vmatmul.mubr.bf16.gmra.mrb[0].mxu0 %v1136
          %v1181 = vpop.f32.mrb[0].mxu0
          %v1182 = vadd.f32 0.0, %v1181
          %v1183 = vpop.f32.mrb[0].mxu0
          %v1184 = vpop.f32.mrb[0].mxu0
          %v1185 = vadd.f32 0.0, %v1184
          %v1186 = vpop.f32.mrb[0].mxu0
          %1187 = vmatprep.mubr.bf16.mxu0 0
          %1188 = vmatmul.mubr.bf16.gmra.mrb[0].mxu0 %v1139
          %v1189 = vpop.f32.mrb[0].mxu0
          %v1190 = vadd.f32 0.0, %v1189
          %v1191 = vpop.f32.mrb[0].mxu0
          %v1192 = vpop.f32.mrb[0].mxu0
          %v1193 = vadd.f32 0.0, %v1192
          %v1194 = vpop.f32.mrb[0].mxu0
          %1195 = vmatprep.mubr.bf16.mxu0 0
          %1196 = vmatmul.mubr.bf16.gmra.mrb[0].mxu0 %v1142
          %v1197 = vpop.f32.mrb[0].mxu0
          %v1198 = vadd.f32 0.0, %v1197
          %v1199 = vpop.f32.mrb[0].mxu0
          %v1200 = vpop.f32.mrb[0].mxu0
          %v1201 = vadd.f32 0.0, %v1200
          %v1202 = vpop.f32.mrb[0].mxu0
          %1203 = vmatprep.mubr.bf16.mxu0 0
          %1204 = vmatmul.mubr.bf16.gmra.mrb[0].mxu0 %v1145
          %v1205 = vpop.f32.mrb[0].mxu0
          %v1206 = vadd.f32 0.0, %v1205
          %v1207 = vpop.f32.mrb[0].mxu0
          %v1208 = vpop.f32.mrb[0].mxu0
          %v1209 = vadd.f32 0.0, %v1208
          %v1210 = vpop.f32.mrb[0].mxu0
          %1211 = vdwg.mxu0
          %v1212 = vsub.f32 %v1105, %v1182
          %v1213 = vsub.f32 %v1108, %v1185
          %v1214 = vsub.f32 %v1113, %v1190
          %v1215 = vsub.f32 %v1116, %v1193
          %v1216 = vsub.f32 %v1121, %v1198
          %v1217 = vsub.f32 %v1124, %v1201
          %v1218 = vsub.f32 %v1129, %v1206
          %v1219 = vsub.f32 %v1132, %v1209
          %1220 = vmatprep.subr.bf16.mxu0 0
          %1221 = vmatpush1.bf16.msra.mxu0 %v494
          %1222 = vmatprep.subr.bf16.mxu0 0
          %1223 = vmatpush1.bf16.msra.mxu0 0
          %1224 = vmatprep.subr.bf16.mxu0 0
          %1225 = vmatpush1.bf16.msra.mxu0 0
          %1226 = vmatprep.subr.bf16.mxu0 0
          %1227 = vmatpush1.bf16.msra.mxu0 0
          %1228 = vmatprep.subr.bf16.mxu0 0
          %1229 = vmatpush1.bf16.msra.mxu0 0
          %1230 = vmatprep.subr.bf16.mxu0 0
          %1231 = vmatpush1.bf16.msra.mxu0 0
          %1232 = vmatprep.subr.bf16.mxu0 0
          %1233 = vmatpush1.bf16.msra.mxu0 0
          %1234 = vmatprep.subr.bf16.mxu0 0
          %1235 = vmatpush1.bf16.msra.mxu0 0
          %1236 = vmatprep.subr.bf16.mxu0 0
          %1237 = vmatpush1.bf16.msra.mxu0 0
          %1238 = vmatprep.subr.bf16.mxu0 0
          %1239 = vmatpush1.bf16.msra.mxu0 0
          %1240 = vmatprep.subr.bf16.mxu0 0
          %1241 = vmatpush1.bf16.msra.mxu0 0
          %1242 = vmatprep.subr.bf16.mxu0 0
          %1243 = vmatpush1.bf16.msra.mxu0 0
          %1244 = vmatprep.subr.bf16.mxu0 0
          %1245 = vmatpush1.bf16.msra.mxu0 0
          %1246 = vmatprep.subr.bf16.mxu0 0
          %1247 = vmatpush1.bf16.msra.mxu0 0
          %1248 = vmatprep.subr.bf16.mxu0 0
          %1249 = vmatpush1.bf16.msra.mxu0 0
          %1250 = vmatprep.subr.bf16.mxu0 0
          %1251 = vmatpush1.bf16.msra.mxu0 0
          %1252 = vmatprep.mubr.bf16.mxu0 0
          %1253 = vmatmul.mubr.bf16.gmra.mrb[0].mxu0 %v1136
          %v1254 = vpop.f32.mrb[0].mxu0
          %v1255 = vadd.f32 0.0, %v1254
          %v1256 = vpop.f32.mrb[0].mxu0
          %v1257 = vpop.f32.mrb[0].mxu0
          %v1258 = vadd.f32 0.0, %v1257
          %v1259 = vpop.f32.mrb[0].mxu0
          %1260 = vmatprep.mubr.bf16.mxu0 0
          %1261 = vmatmul.mubr.bf16.gmra.mrb[0].mxu0 %v1139
          %v1262 = vpop.f32.mrb[0].mxu0
          %v1263 = vadd.f32 0.0, %v1262
          %v1264 = vpop.f32.mrb[0].mxu0
          %v1265 = vpop.f32.mrb[0].mxu0
          %v1266 = vadd.f32 0.0, %v1265
          %v1267 = vpop.f32.mrb[0].mxu0
          %1268 = vmatprep.mubr.bf16.mxu0 0
          %1269 = vmatmul.mubr.bf16.gmra.mrb[0].mxu0 %v1142
          %v1270 = vpop.f32.mrb[0].mxu0
          %v1271 = vadd.f32 0.0, %v1270
          %v1272 = vpop.f32.mrb[0].mxu0
          %v1273 = vpop.f32.mrb[0].mxu0
          %v1274 = vadd.f32 0.0, %v1273
          %v1275 = vpop.f32.mrb[0].mxu0
          %1276 = vmatprep.mubr.bf16.mxu0 0
          %1277 = vmatmul.mubr.bf16.gmra.mrb[0].mxu0 %v1145
          %v1278 = vpop.f32.mrb[0].mxu0
          %v1279 = vadd.f32 0.0, %v1278
          %v1280 = vpop.f32.mrb[0].mxu0
          %v1281 = vpop.f32.mrb[0].mxu0
          %v1282 = vadd.f32 0.0, %v1281
          %v1283 = vpop.f32.mrb[0].mxu0
          %1284 = vdwg.mxu0
          %1285 = vmatprep.subr.bf16.mxu0 0
          %1286 = vmatpush1.bf16.msra.mxu0 %v577
          %1287 = vmatprep.subr.bf16.mxu0 0
          %1288 = vmatpush1.bf16.msra.mxu0 0
          %1289 = vmatprep.subr.bf16.mxu0 0
          %1290 = vmatpush1.bf16.msra.mxu0 0
          %1291 = vmatprep.subr.bf16.mxu0 0
          %1292 = vmatpush1.bf16.msra.mxu0 0
          %1293 = vmatprep.subr.bf16.mxu0 0
          %1294 = vmatpush1.bf16.msra.mxu0 0
          %1295 = vmatprep.subr.bf16.mxu0 0
          %1296 = vmatpush1.bf16.msra.mxu0 0
          %1297 = vmatprep.subr.bf16.mxu0 0
          %1298 = vmatpush1.bf16.msra.mxu0 0
          %1299 = vmatprep.subr.bf16.mxu0 0
          %1300 = vmatpush1.bf16.msra.mxu0 0
          %1301 = vmatprep.subr.bf16.mxu0 0
          %1302 = vmatpush1.bf16.msra.mxu0 0
          %1303 = vmatprep.subr.bf16.mxu0 0
          %1304 = vmatpush1.bf16.msra.mxu0 0
          %1305 = vmatprep.subr.bf16.mxu0 0
          %1306 = vmatpush1.bf16.msra.mxu0 0
          %1307 = vmatprep.subr.bf16.mxu0 0
          %1308 = vmatpush1.bf16.msra.mxu0 0
          %1309 = vmatprep.subr.bf16.mxu0 0
          %1310 = vmatpush1.bf16.msra.mxu0 0
          %1311 = vmatprep.subr.bf16.mxu0 0
          %1312 = vmatpush1.bf16.msra.mxu0 0
          %1313 = vmatprep.subr.bf16.mxu0 0
          %1314 = vmatpush1.bf16.msra.mxu0 0
          %1315 = vmatprep.subr.bf16.mxu0 0
          %1316 = vmatpush1.bf16.msra.mxu0 0
          %1317 = vmatprep.mubr.bf16.mxu0 0
          %1318 = vmatmul.mubr.bf16.gmra.mrb[0].mxu0 %v1059
          %v1319 = vpop.f32.mrb[0].mxu0
          %v1320 = vadd.f32 %v1255, %v1319
          %v1321 = vpop.f32.mrb[0].mxu0
          %v1322 = vpop.f32.mrb[0].mxu0
          %v1323 = vadd.f32 %v1258, %v1322
          %v1324 = vpop.f32.mrb[0].mxu0
          %1325 = vmatprep.mubr.bf16.mxu0 0
          %1326 = vmatmul.mubr.bf16.gmra.mrb[0].mxu0 %v1062
          %v1327 = vpop.f32.mrb[0].mxu0
          %v1328 = vadd.f32 %v1263, %v1327
          %v1329 = vpop.f32.mrb[0].mxu0
          %v1330 = vpop.f32.mrb[0].mxu0
          %v1331 = vadd.f32 %v1266, %v1330
          %v1332 = vpop.f32.mrb[0].mxu0
          %1333 = vmatprep.mubr.bf16.mxu0 0
          %1334 = vmatmul.mubr.bf16.gmra.mrb[0].mxu0 %v1065
          %v1335 = vpop.f32.mrb[0].mxu0
          %v1336 = vadd.f32 %v1271, %v1335
          %v1337 = vpop.f32.mrb[0].mxu0
          %v1338 = vpop.f32.mrb[0].mxu0
          %v1339 = vadd.f32 %v1274, %v1338
          %v1340 = vpop.f32.mrb[0].mxu0
          %1341 = vmatprep.mubr.bf16.mxu0 0
          %1342 = vmatmul.mubr.bf16.gmra.mrb[0].mxu0 %v1068
          %v1343 = vpop.f32.mrb[0].mxu0
          %v1344 = vadd.f32 %v1279, %v1343
          %v1345 = vpop.f32.mrb[0].mxu0
          %v1346 = vpop.f32.mrb[0].mxu0
          %v1347 = vadd.f32 %v1282, %v1346
          %v1348 = vpop.f32.mrb[0].mxu0
          %1349 = vdwg.mxu0
          %v1350 = vmul.f32 %v1212, %v389
          %v1351 = vmul.f32 %v1213, %v390
          %v1352 = vmul.f32 %v1214, %v389
          %v1353 = vmul.f32 %v1215, %v390
          %v1354 = vmul.f32 %v1216, %v389
          %v1355 = vmul.f32 %v1217, %v390
          %v1356 = vmul.f32 %v1218, %v389
          %v1357 = vmul.f32 %v1219, %v390
          %v1358 = vmul.f32 %v1320, %v389
          %v1359 = vmul.f32 %v1323, %v390
          %v1360 = vmul.f32 %v1328, %v389
          %v1361 = vmul.f32 %v1331, %v390
          %v1362 = vmul.f32 %v1336, %v389
          %v1363 = vmul.f32 %v1339, %v390
          %v1364 = vmul.f32 %v1344, %v389
          %v1365 = vmul.f32 %v1347, %v390
          %v1366 = vpack.c.bf16 %v1351, %v1350
          %v1367 = vpack.c.bf16 %v1353, %v1352
          %v1368 = vpack.c.bf16 %v1355, %v1354
          %v1369 = vpack.c.bf16 %v1357, %v1356
          %v1370 = vpack.c.bf16 %v1359, %v1358
          %v1371 = vpack.c.bf16 %v1361, %v1360
          %v1372 = vpack.c.bf16 %v1363, %v1362
          %v1373 = vpack.c.bf16 %v1365, %v1364
          %v1375 = vsel %vm401, %v1366, 0
          %v1378 = vsel %vm401, %v1367, 0
          %v1381 = vsel %vm401, %v1368, 0
          %v1384 = vsel %vm401, %v1369, 0
          %1386 = vmatprep.subr.bf16.mxu0 0
          %1387 = vmatpush1.bf16.msra.mxu0 %v494
          %1388 = vmatprep.subr.bf16.mxu0 0
          %1389 = vmatpush1.bf16.msra.mxu0 0
          %1390 = vmatprep.subr.bf16.mxu0 0
          %1391 = vmatpush1.bf16.msra.mxu0 0
          %1392 = vmatprep.subr.bf16.mxu0 0
          %1393 = vmatpush1.bf16.msra.mxu0 0
          %1394 = vmatprep.subr.bf16.mxu0 0
          %1395 = vmatpush1.bf16.msra.mxu0 0
          %1396 = vmatprep.subr.bf16.mxu0 0
          %1397 = vmatpush1.bf16.msra.mxu0 0
          %1398 = vmatprep.subr.bf16.mxu0 0
          %1399 = vmatpush1.bf16.msra.mxu0 0
          %1400 = vmatprep.subr.bf16.mxu0 0
          %1401 = vmatpush1.bf16.msra.mxu0 0
          %1402 = vmatprep.subr.bf16.mxu0 0
          %1403 = vmatpush1.bf16.msra.mxu0 0
          %1404 = vmatprep.subr.bf16.mxu0 0
          %1405 = vmatpush1.bf16.msra.mxu0 0
          %1406 = vmatprep.subr.bf16.mxu0 0
          %1407 = vmatpush1.bf16.msra.mxu0 0
          %1408 = vmatprep.subr.bf16.mxu0 0
          %1409 = vmatpush1.bf16.msra.mxu0 0
          %1410 = vmatprep.subr.bf16.mxu0 0
          %1411 = vmatpush1.bf16.msra.mxu0 0
          %1412 = vmatprep.subr.bf16.mxu0 0
          %1413 = vmatpush1.bf16.msra.mxu0 0
          %1414 = vmatprep.subr.bf16.mxu0 0
          %1415 = vmatpush1.bf16.msra.mxu0 0
          %1416 = vmatprep.subr.bf16.mxu0 0
          %1417 = vmatpush1.bf16.msra.mxu0 0
          %1418 = vmatprep.mubr.bf16.mxu0 0
          %1419 = vmatmul.mubr.bf16.gmra.mrb[0].mxu0 %v1375
          %v1420 = vpop.f32.mrb[0].mxu0
          %v1421 = vadd.f32 0.0, %v1420
          %v1422 = vpop.f32.mrb[0].mxu0
          %v1423 = vpop.f32.mrb[0].mxu0
          %v1424 = vadd.f32 0.0, %v1423
          %v1425 = vpop.f32.mrb[0].mxu0
          %1426 = vmatprep.mubr.bf16.mxu0 0
          %1427 = vmatmul.mubr.bf16.gmra.mrb[0].mxu0 %v1378
          %v1428 = vpop.f32.mrb[0].mxu0
          %v1429 = vadd.f32 0.0, %v1428
          %v1430 = vpop.f32.mrb[0].mxu0
          %v1431 = vpop.f32.mrb[0].mxu0
          %v1432 = vadd.f32 0.0, %v1431
          %v1433 = vpop.f32.mrb[0].mxu0
          %1434 = vmatprep.mubr.bf16.mxu0 0
          %1435 = vmatmul.mubr.bf16.gmra.mrb[0].mxu0 %v1381
          %v1436 = vpop.f32.mrb[0].mxu0
          %v1437 = vadd.f32 0.0, %v1436
          %v1438 = vpop.f32.mrb[0].mxu0
          %v1439 = vpop.f32.mrb[0].mxu0
          %v1440 = vadd.f32 0.0, %v1439
          %v1441 = vpop.f32.mrb[0].mxu0
          %1442 = vmatprep.mubr.bf16.mxu0 0
          %1443 = vmatmul.mubr.bf16.gmra.mrb[0].mxu0 %v1384
          %v1444 = vpop.f32.mrb[0].mxu0
          %v1445 = vadd.f32 0.0, %v1444
          %v1446 = vpop.f32.mrb[0].mxu0
          %v1447 = vpop.f32.mrb[0].mxu0
          %v1448 = vadd.f32 0.0, %v1447
          %v1449 = vpop.f32.mrb[0].mxu0
          %1450 = vdwg.mxu0
          %v1453 = vunpack.c.l.b16 %v371
          %v1454 = vunpack.c.l.b16 %v372
          %v1455 = vpack.c.b16 %v1454, %v1453
          %v1458 = vsel %vm401, %v1370, 0
          %v1461 = vsel %vm401, %v1371, 0
          %v1464 = vsel %vm401, %v1372, 0
          %v1467 = vsel %vm401, %v1373, 0
          %1469 = vmatprep.subr.bf16.mxu0 0
          %1470 = vmatpush1.bf16.msra.mxu0 %v1455
          %1471 = vmatprep.subr.bf16.mxu0 0
          %1472 = vmatpush1.bf16.msra.mxu0 0
          %1473 = vmatprep.subr.bf16.mxu0 0
          %1474 = vmatpush1.bf16.msra.mxu0 0
          %1475 = vmatprep.subr.bf16.mxu0 0
          %1476 = vmatpush1.bf16.msra.mxu0 0
          %1477 = vmatprep.subr.bf16.mxu0 0
          %1478 = vmatpush1.bf16.msra.mxu0 0
          %1479 = vmatprep.subr.bf16.mxu0 0
          %1480 = vmatpush1.bf16.msra.mxu0 0
          %1481 = vmatprep.subr.bf16.mxu0 0
          %1482 = vmatpush1.bf16.msra.mxu0 0
          %1483 = vmatprep.subr.bf16.mxu0 0
          %1484 = vmatpush1.bf16.msra.mxu0 0
          %1485 = vmatprep.subr.bf16.mxu0 0
          %1486 = vmatpush1.bf16.msra.mxu0 0
          %1487 = vmatprep.subr.bf16.mxu0 0
          %1488 = vmatpush1.bf16.msra.mxu0 0
          %1489 = vmatprep.subr.bf16.mxu0 0
          %1490 = vmatpush1.bf16.msra.mxu0 0
          %1491 = vmatprep.subr.bf16.mxu0 0
          %1492 = vmatpush1.bf16.msra.mxu0 0
          %1493 = vmatprep.subr.bf16.mxu0 0
          %1494 = vmatpush1.bf16.msra.mxu0 0
          %1495 = vmatprep.subr.bf16.mxu0 0
          %1496 = vmatpush1.bf16.msra.mxu0 0
          %1497 = vmatprep.subr.bf16.mxu0 0
          %1498 = vmatpush1.bf16.msra.mxu0 0
          %1499 = vmatprep.subr.bf16.mxu0 0
          %1500 = vmatpush1.bf16.msra.mxu0 0
          %1501 = vmatprep.mubr.bf16.mxu0 0
          %1502 = vmatmul.mubr.bf16.gmra.mrb[0].mxu0 %v1458
          %v1503 = vpop.f32.mrb[0].mxu0
          %v1504 = vadd.f32 0.0, %v1503
          %v1505 = vpop.f32.mrb[0].mxu0
          %v1506 = vpop.f32.mrb[0].mxu0
          %v1507 = vadd.f32 0.0, %v1506
          %v1508 = vpop.f32.mrb[0].mxu0
          %1509 = vmatprep.mubr.bf16.mxu0 0
          %1510 = vmatmul.mubr.bf16.gmra.mrb[0].mxu0 %v1461
          %v1511 = vpop.f32.mrb[0].mxu0
          %v1512 = vadd.f32 0.0, %v1511
          %v1513 = vpop.f32.mrb[0].mxu0
          %v1514 = vpop.f32.mrb[0].mxu0
          %v1515 = vadd.f32 0.0, %v1514
          %v1516 = vpop.f32.mrb[0].mxu0
          %1517 = vmatprep.mubr.bf16.mxu0 0
          %1518 = vmatmul.mubr.bf16.gmra.mrb[0].mxu0 %v1464
          %v1519 = vpop.f32.mrb[0].mxu0
          %v1520 = vadd.f32 0.0, %v1519
          %v1521 = vpop.f32.mrb[0].mxu0
          %v1522 = vpop.f32.mrb[0].mxu0
          %v1523 = vadd.f32 0.0, %v1522
          %v1524 = vpop.f32.mrb[0].mxu0
          %1525 = vmatprep.mubr.bf16.mxu0 0
          %1526 = vmatmul.mubr.bf16.gmra.mrb[0].mxu0 %v1467
          %v1527 = vpop.f32.mrb[0].mxu0
          %v1528 = vadd.f32 0.0, %v1527
          %v1529 = vpop.f32.mrb[0].mxu0
          %v1530 = vpop.f32.mrb[0].mxu0
          %v1531 = vadd.f32 0.0, %v1530
          %v1532 = vpop.f32.mrb[0].mxu0
          %1533 = vdwg.mxu0
          %v1534 = vsub.f32 %v1421, %v1504
          %v1535 = vsub.f32 %v1424, %v1507
          %v1536 = vsub.f32 %v1429, %v1512
          %v1537 = vsub.f32 %v1432, %v1515
          %v1538 = vsub.f32 %v1437, %v1520
          %v1539 = vsub.f32 %v1440, %v1523
          %v1540 = vsub.f32 %v1445, %v1528
          %v1541 = vsub.f32 %v1448, %v1531
          %1542 = vmatprep.subr.bf16.mxu0 0
          %1543 = vmatpush1.bf16.msra.mxu0 %v494
          %1544 = vmatprep.subr.bf16.mxu0 0
          %1545 = vmatpush1.bf16.msra.mxu0 0
          %1546 = vmatprep.subr.bf16.mxu0 0
          %1547 = vmatpush1.bf16.msra.mxu0 0
          %1548 = vmatprep.subr.bf16.mxu0 0
          %1549 = vmatpush1.bf16.msra.mxu0 0
          %1550 = vmatprep.subr.bf16.mxu0 0
          %1551 = vmatpush1.bf16.msra.mxu0 0
          %1552 = vmatprep.subr.bf16.mxu0 0
          %1553 = vmatpush1.bf16.msra.mxu0 0
          %1554 = vmatprep.subr.bf16.mxu0 0
          %1555 = vmatpush1.bf16.msra.mxu0 0
          %1556 = vmatprep.subr.bf16.mxu0 0
          %1557 = vmatpush1.bf16.msra.mxu0 0
          %1558 = vmatprep.subr.bf16.mxu0 0
          %1559 = vmatpush1.bf16.msra.mxu0 0
          %1560 = vmatprep.subr.bf16.mxu0 0
          %1561 = vmatpush1.bf16.msra.mxu0 0
          %1562 = vmatprep.subr.bf16.mxu0 0
          %1563 = vmatpush1.bf16.msra.mxu0 0
          %1564 = vmatprep.subr.bf16.mxu0 0
          %1565 = vmatpush1.bf16.msra.mxu0 0
          %1566 = vmatprep.subr.bf16.mxu0 0
          %1567 = vmatpush1.bf16.msra.mxu0 0
          %1568 = vmatprep.subr.bf16.mxu0 0
          %1569 = vmatpush1.bf16.msra.mxu0 0
          %1570 = vmatprep.subr.bf16.mxu0 0
          %1571 = vmatpush1.bf16.msra.mxu0 0
          %1572 = vmatprep.subr.bf16.mxu0 0
          %1573 = vmatpush1.bf16.msra.mxu0 0
          %1574 = vmatprep.mubr.bf16.mxu0 0
          %1575 = vmatmul.mubr.bf16.gmra.mrb[0].mxu0 %v1458
          %v1576 = vpop.f32.mrb[0].mxu0
          %v1577 = vadd.f32 0.0, %v1576
          %v1578 = vpop.f32.mrb[0].mxu0
          %v1579 = vpop.f32.mrb[0].mxu0
          %v1580 = vadd.f32 0.0, %v1579
          %v1581 = vpop.f32.mrb[0].mxu0
          %1582 = vmatprep.mubr.bf16.mxu0 0
          %1583 = vmatmul.mubr.bf16.gmra.mrb[0].mxu0 %v1461
          %v1584 = vpop.f32.mrb[0].mxu0
          %v1585 = vadd.f32 0.0, %v1584
          %v1586 = vpop.f32.mrb[0].mxu0
          %v1587 = vpop.f32.mrb[0].mxu0
          %v1588 = vadd.f32 0.0, %v1587
          %v1589 = vpop.f32.mrb[0].mxu0
          %1590 = vmatprep.mubr.bf16.mxu0 0
          %1591 = vmatmul.mubr.bf16.gmra.mrb[0].mxu0 %v1464
          %v1592 = vpop.f32.mrb[0].mxu0
          %v1593 = vadd.f32 0.0, %v1592
          %v1594 = vpop.f32.mrb[0].mxu0
          %v1595 = vpop.f32.mrb[0].mxu0
          %v1596 = vadd.f32 0.0, %v1595
          %v1597 = vpop.f32.mrb[0].mxu0
          %1598 = vmatprep.mubr.bf16.mxu0 0
          %1599 = vmatmul.mubr.bf16.gmra.mrb[0].mxu0 %v1467
          %v1600 = vpop.f32.mrb[0].mxu0
          %v1601 = vadd.f32 0.0, %v1600
          %v1602 = vpop.f32.mrb[0].mxu0
          %v1603 = vpop.f32.mrb[0].mxu0
          %v1604 = vadd.f32 0.0, %v1603
          %v1605 = vpop.f32.mrb[0].mxu0
          %1606 = vdwg.mxu0
          %1607 = vmatprep.subr.bf16.mxu0 0
          %1608 = vmatpush1.bf16.msra.mxu0 %v1455
          %1609 = vmatprep.subr.bf16.mxu0 0
          %1610 = vmatpush1.bf16.msra.mxu0 0
          %1611 = vmatprep.subr.bf16.mxu0 0
          %1612 = vmatpush1.bf16.msra.mxu0 0
          %1613 = vmatprep.subr.bf16.mxu0 0
          %1614 = vmatpush1.bf16.msra.mxu0 0
          %1615 = vmatprep.subr.bf16.mxu0 0
          %1616 = vmatpush1.bf16.msra.mxu0 0
          %1617 = vmatprep.subr.bf16.mxu0 0
          %1618 = vmatpush1.bf16.msra.mxu0 0
          %1619 = vmatprep.subr.bf16.mxu0 0
          %1620 = vmatpush1.bf16.msra.mxu0 0
          %1621 = vmatprep.subr.bf16.mxu0 0
          %1622 = vmatpush1.bf16.msra.mxu0 0
          %1623 = vmatprep.subr.bf16.mxu0 0
          %1624 = vmatpush1.bf16.msra.mxu0 0
          %1625 = vmatprep.subr.bf16.mxu0 0
          %1626 = vmatpush1.bf16.msra.mxu0 0
          %1627 = vmatprep.subr.bf16.mxu0 0
          %1628 = vmatpush1.bf16.msra.mxu0 0
          %1629 = vmatprep.subr.bf16.mxu0 0
          %1630 = vmatpush1.bf16.msra.mxu0 0
          %1631 = vmatprep.subr.bf16.mxu0 0
          %1632 = vmatpush1.bf16.msra.mxu0 0
          %1633 = vmatprep.subr.bf16.mxu0 0
          %1634 = vmatpush1.bf16.msra.mxu0 0
          %1635 = vmatprep.subr.bf16.mxu0 0
          %1636 = vmatpush1.bf16.msra.mxu0 0
          %1637 = vmatprep.subr.bf16.mxu0 0
          %1638 = vmatpush1.bf16.msra.mxu0 0
          %1639 = vmatprep.mubr.bf16.mxu0 0
          %1640 = vmatmul.mubr.bf16.gmra.mrb[0].mxu0 %v1375
          %v1641 = vpop.f32.mrb[0].mxu0
          %v1642 = vadd.f32 %v1577, %v1641
          %v1643 = vpop.f32.mrb[0].mxu0
          %v1644 = vpop.f32.mrb[0].mxu0
          %v1645 = vadd.f32 %v1580, %v1644
          %v1646 = vpop.f32.mrb[0].mxu0
          %1647 = vmatprep.mubr.bf16.mxu0 0
          %1648 = vmatmul.mubr.bf16.gmra.mrb[0].mxu0 %v1378
          %v1649 = vpop.f32.mrb[0].mxu0
          %v1650 = vadd.f32 %v1585, %v1649
          %v1651 = vpop.f32.mrb[0].mxu0
          %v1652 = vpop.f32.mrb[0].mxu0
          %v1653 = vadd.f32 %v1588, %v1652
          %v1654 = vpop.f32.mrb[0].mxu0
          %1655 = vmatprep.mubr.bf16.mxu0 0
          %1656 = vmatmul.mubr.bf16.gmra.mrb[0].mxu0 %v1381
          %v1657 = vpop.f32.mrb[0].mxu0
          %v1658 = vadd.f32 %v1593, %v1657
          %v1659 = vpop.f32.mrb[0].mxu0
          %v1660 = vpop.f32.mrb[0].mxu0
          %v1661 = vadd.f32 %v1596, %v1660
          %v1662 = vpop.f32.mrb[0].mxu0
          %1663 = vmatprep.mubr.bf16.mxu0 0
          %1664 = vmatmul.mubr.bf16.gmra.mrb[0].mxu0 %v1384
          %v1665 = vpop.f32.mrb[0].mxu0
          %v1666 = vadd.f32 %v1601, %v1665
          %v1667 = vpop.f32.mrb[0].mxu0
          %v1668 = vpop.f32.mrb[0].mxu0
          %v1669 = vadd.f32 %v1604, %v1668
          %v1670 = vpop.f32.mrb[0].mxu0
          %1671 = vdwg.mxu0
          %1672 = vxpose.xlu0.b32.start [1/16] %v1534, 128
          %1673 = vxpose.xlu0.b32.cont [2/16] %v1535, 128
          %1674 = vxpose.xlu0.b32.cont [3/16] 0.0, 128
          %1675 = vxpose.xlu0.b32.cont [4/16] 0.0, 128
          %1676 = vxpose.xlu0.b32.cont [5/16] 0.0, 128
          %1677 = vxpose.xlu0.b32.cont [6/16] 0.0, 128
          %1678 = vxpose.xlu0.b32.cont [7/16] 0.0, 128
          %1679 = vxpose.xlu0.b32.cont [8/16] 0.0, 128
          %1680 = vxpose.xlu0.b32.cont [9/16] 0.0, 128
          %1681 = vxpose.xlu0.b32.cont [10/16] 0.0, 128
          %1682 = vxpose.xlu0.b32.cont [11/16] 0.0, 128
          %1683 = vxpose.xlu0.b32.cont [12/16] 0.0, 128
          %1684 = vxpose.xlu0.b32.cont [13/16] 0.0, 128
          %1685 = vxpose.xlu0.b32.cont [14/16] 0.0, 128
          %1686 = vxpose.xlu0.b32.cont [15/16] 0.0, 128
          %1687 = vxpose.xlu0.b32.end [16/16] 0.0, 128
          %v1688 = vpop.trf.xlu0
          %v1689 = vpop.trf.xlu0
          %v1690 = vpop.trf.xlu0
          %v1691 = vpop.trf.xlu0
          %v1692 = vpop.trf.xlu0
          %v1693 = vpop.trf.xlu0
          %v1694 = vpop.trf.xlu0
          %v1695 = vpop.trf.xlu0
          %v1696 = vpop.trf.xlu0
          %v1697 = vpop.trf.xlu0
          %v1698 = vpop.trf.xlu0
          %v1699 = vpop.trf.xlu0
          %v1700 = vpop.trf.xlu0
          %v1701 = vpop.trf.xlu0
          %v1702 = vpop.trf.xlu0
          %v1703 = vpop.trf.xlu0
          %1704 = vxpose.xlu0.b32.start [1/16] %v1536, 128
          %1705 = vxpose.xlu0.b32.cont [2/16] %v1537, 128
          %1706 = vxpose.xlu0.b32.cont [3/16] 0.0, 128
          %1707 = vxpose.xlu0.b32.cont [4/16] 0.0, 128
          %1708 = vxpose.xlu0.b32.cont [5/16] 0.0, 128
          %1709 = vxpose.xlu0.b32.cont [6/16] 0.0, 128
          %1710 = vxpose.xlu0.b32.cont [7/16] 0.0, 128
          %1711 = vxpose.xlu0.b32.cont [8/16] 0.0, 128
          %1712 = vxpose.xlu0.b32.cont [9/16] 0.0, 128
          %1713 = vxpose.xlu0.b32.cont [10/16] 0.0, 128
          %1714 = vxpose.xlu0.b32.cont [11/16] 0.0, 128
          %1715 = vxpose.xlu0.b32.cont [12/16] 0.0, 128
          %1716 = vxpose.xlu0.b32.cont [13/16] 0.0, 128
          %1717 = vxpose.xlu0.b32.cont [14/16] 0.0, 128
          %1718 = vxpose.xlu0.b32.cont [15/16] 0.0, 128
          %1719 = vxpose.xlu0.b32.end [16/16] 0.0, 128
          %v1720 = vpop.trf.xlu0
          %v1721 = vpop.trf.xlu0
          %v1722 = vpop.trf.xlu0
          %v1723 = vpop.trf.xlu0
          %v1724 = vpop.trf.xlu0
          %v1725 = vpop.trf.xlu0
          %v1726 = vpop.trf.xlu0
          %v1727 = vpop.trf.xlu0
          %v1728 = vpop.trf.xlu0
          %v1729 = vpop.trf.xlu0
          %v1730 = vpop.trf.xlu0
          %v1731 = vpop.trf.xlu0
          %v1732 = vpop.trf.xlu0
          %v1733 = vpop.trf.xlu0
          %v1734 = vpop.trf.xlu0
          %v1735 = vpop.trf.xlu0
          %1736 = vxpose.xlu0.b32.start [1/16] %v1538, 128
          %1737 = vxpose.xlu0.b32.cont [2/16] %v1539, 128
          %1738 = vxpose.xlu0.b32.cont [3/16] 0.0, 128
          %1739 = vxpose.xlu0.b32.cont [4/16] 0.0, 128
          %1740 = vxpose.xlu0.b32.cont [5/16] 0.0, 128
          %1741 = vxpose.xlu0.b32.cont [6/16] 0.0, 128
          %1742 = vxpose.xlu0.b32.cont [7/16] 0.0, 128
          %1743 = vxpose.xlu0.b32.cont [8/16] 0.0, 128
          %1744 = vxpose.xlu0.b32.cont [9/16] 0.0, 128
          %1745 = vxpose.xlu0.b32.cont [10/16] 0.0, 128
          %1746 = vxpose.xlu0.b32.cont [11/16] 0.0, 128
          %1747 = vxpose.xlu0.b32.cont [12/16] 0.0, 128
          %1748 = vxpose.xlu0.b32.cont [13/16] 0.0, 128
          %1749 = vxpose.xlu0.b32.cont [14/16] 0.0, 128
          %1750 = vxpose.xlu0.b32.cont [15/16] 0.0, 128
          %1751 = vxpose.xlu0.b32.end [16/16] 0.0, 128
          %v1752 = vpop.trf.xlu0
          %v1753 = vpop.trf.xlu0
          %v1754 = vpop.trf.xlu0
          %v1755 = vpop.trf.xlu0
          %v1756 = vpop.trf.xlu0
          %v1757 = vpop.trf.xlu0
          %v1758 = vpop.trf.xlu0
          %v1759 = vpop.trf.xlu0
          %v1760 = vpop.trf.xlu0
          %v1761 = vpop.trf.xlu0
          %v1762 = vpop.trf.xlu0
          %v1763 = vpop.trf.xlu0
          %v1764 = vpop.trf.xlu0
          %v1765 = vpop.trf.xlu0
          %v1766 = vpop.trf.xlu0
          %v1767 = vpop.trf.xlu0
          %1768 = vxpose.xlu0.b32.start [1/16] %v1540, 128
          %1769 = vxpose.xlu0.b32.cont [2/16] %v1541, 128
          %1770 = vxpose.xlu0.b32.cont [3/16] 0.0, 128
          %1771 = vxpose.xlu0.b32.cont [4/16] 0.0, 128
          %1772 = vxpose.xlu0.b32.cont [5/16] 0.0, 128
          %1773 = vxpose.xlu0.b32.cont [6/16] 0.0, 128
          %1774 = vxpose.xlu0.b32.cont [7/16] 0.0, 128
          %1775 = vxpose.xlu0.b32.cont [8/16] 0.0, 128
          %1776 = vxpose.xlu0.b32.cont [9/16] 0.0, 128
          %1777 = vxpose.xlu0.b32.cont [10/16] 0.0, 128
          %1778 = vxpose.xlu0.b32.cont [11/16] 0.0, 128
          %1779 = vxpose.xlu0.b32.cont [12/16] 0.0, 128
          %1780 = vxpose.xlu0.b32.cont [13/16] 0.0, 128
          %1781 = vxpose.xlu0.b32.cont [14/16] 0.0, 128
          %1782 = vxpose.xlu0.b32.cont [15/16] 0.0, 128
          %1783 = vxpose.xlu0.b32.end [16/16] 0.0, 128
          %v1784 = vpop.trf.xlu0
          %v1785 = vpop.trf.xlu0
          %v1786 = vpop.trf.xlu0
          %v1787 = vpop.trf.xlu0
          %v1788 = vpop.trf.xlu0
          %v1789 = vpop.trf.xlu0
          %v1790 = vpop.trf.xlu0
          %v1791 = vpop.trf.xlu0
          %v1792 = vpop.trf.xlu0
          %v1793 = vpop.trf.xlu0
          %v1794 = vpop.trf.xlu0
          %v1795 = vpop.trf.xlu0
          %v1796 = vpop.trf.xlu0
          %v1797 = vpop.trf.xlu0
          %v1798 = vpop.trf.xlu0
          %v1799 = vpop.trf.xlu0
          %1800 = vxpose.xlu0.b32.start [1/16] %v1642, 128
          %1801 = vxpose.xlu0.b32.cont [2/16] %v1645, 128
          %1802 = vxpose.xlu0.b32.cont [3/16] 0.0, 128
          %1803 = vxpose.xlu0.b32.cont [4/16] 0.0, 128
          %1804 = vxpose.xlu0.b32.cont [5/16] 0.0, 128
          %1805 = vxpose.xlu0.b32.cont [6/16] 0.0, 128
          %1806 = vxpose.xlu0.b32.cont [7/16] 0.0, 128
          %1807 = vxpose.xlu0.b32.cont [8/16] 0.0, 128
          %1808 = vxpose.xlu0.b32.cont [9/16] 0.0, 128
          %1809 = vxpose.xlu0.b32.cont [10/16] 0.0, 128
          %1810 = vxpose.xlu0.b32.cont [11/16] 0.0, 128
          %1811 = vxpose.xlu0.b32.cont [12/16] 0.0, 128
          %1812 = vxpose.xlu0.b32.cont [13/16] 0.0, 128
          %1813 = vxpose.xlu0.b32.cont [14/16] 0.0, 128
          %1814 = vxpose.xlu0.b32.cont [15/16] 0.0, 128
          %1815 = vxpose.xlu0.b32.end [16/16] 0.0, 128
          %v1816 = vpop.trf.xlu0
          %v1817 = vpop.trf.xlu0
          %v1818 = vpop.trf.xlu0
          %v1819 = vpop.trf.xlu0
          %v1820 = vpop.trf.xlu0
          %v1821 = vpop.trf.xlu0
          %v1822 = vpop.trf.xlu0
          %v1823 = vpop.trf.xlu0
          %v1824 = vpop.trf.xlu0
          %v1825 = vpop.trf.xlu0
          %v1826 = vpop.trf.xlu0
          %v1827 = vpop.trf.xlu0
          %v1828 = vpop.trf.xlu0
          %v1829 = vpop.trf.xlu0
          %v1830 = vpop.trf.xlu0
          %v1831 = vpop.trf.xlu0
          %1832 = vxpose.xlu0.b32.start [1/16] %v1650, 128
          %1833 = vxpose.xlu0.b32.cont [2/16] %v1653, 128
          %1834 = vxpose.xlu0.b32.cont [3/16] 0.0, 128
          %1835 = vxpose.xlu0.b32.cont [4/16] 0.0, 128
          %1836 = vxpose.xlu0.b32.cont [5/16] 0.0, 128
          %1837 = vxpose.xlu0.b32.cont [6/16] 0.0, 128
          %1838 = vxpose.xlu0.b32.cont [7/16] 0.0, 128
          %1839 = vxpose.xlu0.b32.cont [8/16] 0.0, 128
          %1840 = vxpose.xlu0.b32.cont [9/16] 0.0, 128
          %1841 = vxpose.xlu0.b32.cont [10/16] 0.0, 128
          %1842 = vxpose.xlu0.b32.cont [11/16] 0.0, 128
          %1843 = vxpose.xlu0.b32.cont [12/16] 0.0, 128
          %1844 = vxpose.xlu0.b32.cont [13/16] 0.0, 128
          %1845 = vxpose.xlu0.b32.cont [14/16] 0.0, 128
          %1846 = vxpose.xlu0.b32.cont [15/16] 0.0, 128
          %1847 = vxpose.xlu0.b32.end [16/16] 0.0, 128
          %v1848 = vpop.trf.xlu0
          %v1849 = vpop.trf.xlu0
          %v1850 = vpop.trf.xlu0
          %v1851 = vpop.trf.xlu0
          %v1852 = vpop.trf.xlu0
          %v1853 = vpop.trf.xlu0
          %v1854 = vpop.trf.xlu0
          %v1855 = vpop.trf.xlu0
          %v1856 = vpop.trf.xlu0
          %v1857 = vpop.trf.xlu0
          %v1858 = vpop.trf.xlu0
          %v1859 = vpop.trf.xlu0
          %v1860 = vpop.trf.xlu0
          %v1861 = vpop.trf.xlu0
          %v1862 = vpop.trf.xlu0
          %v1863 = vpop.trf.xlu0
          %1864 = vxpose.xlu0.b32.start [1/16] %v1658, 128
          %1865 = vxpose.xlu0.b32.cont [2/16] %v1661, 128
          %1866 = vxpose.xlu0.b32.cont [3/16] 0.0, 128
          %1867 = vxpose.xlu0.b32.cont [4/16] 0.0, 128
          %1868 = vxpose.xlu0.b32.cont [5/16] 0.0, 128
          %1869 = vxpose.xlu0.b32.cont [6/16] 0.0, 128
          %1870 = vxpose.xlu0.b32.cont [7/16] 0.0, 128
          %1871 = vxpose.xlu0.b32.cont [8/16] 0.0, 128
          %1872 = vxpose.xlu0.b32.cont [9/16] 0.0, 128
          %1873 = vxpose.xlu0.b32.cont [10/16] 0.0, 128
          %1874 = vxpose.xlu0.b32.cont [11/16] 0.0, 128
          %1875 = vxpose.xlu0.b32.cont [12/16] 0.0, 128
          %1876 = vxpose.xlu0.b32.cont [13/16] 0.0, 128
          %1877 = vxpose.xlu0.b32.cont [14/16] 0.0, 128
          %1878 = vxpose.xlu0.b32.cont [15/16] 0.0, 128
          %1879 = vxpose.xlu0.b32.end [16/16] 0.0, 128
          %v1880 = vpop.trf.xlu0
          %v1881 = vpop.trf.xlu0
          %v1882 = vpop.trf.xlu0
          %v1883 = vpop.trf.xlu0
          %v1884 = vpop.trf.xlu0
          %v1885 = vpop.trf.xlu0
          %v1886 = vpop.trf.xlu0
          %v1887 = vpop.trf.xlu0
          %v1888 = vpop.trf.xlu0
          %v1889 = vpop.trf.xlu0
          %v1890 = vpop.trf.xlu0
          %v1891 = vpop.trf.xlu0
          %v1892 = vpop.trf.xlu0
          %v1893 = vpop.trf.xlu0
          %v1894 = vpop.trf.xlu0
          %v1895 = vpop.trf.xlu0
          %1896 = vxpose.xlu0.b32.start [1/16] %v1666, 128
          %1897 = vxpose.xlu0.b32.cont [2/16] %v1669, 128
          %1898 = vxpose.xlu0.b32.cont [3/16] 0.0, 128
          %1899 = vxpose.xlu0.b32.cont [4/16] 0.0, 128
          %1900 = vxpose.xlu0.b32.cont [5/16] 0.0, 128
          %1901 = vxpose.xlu0.b32.cont [6/16] 0.0, 128
          %1902 = vxpose.xlu0.b32.cont [7/16] 0.0, 128
          %1903 = vxpose.xlu0.b32.cont [8/16] 0.0, 128
          %1904 = vxpose.xlu0.b32.cont [9/16] 0.0, 128
          %1905 = vxpose.xlu0.b32.cont [10/16] 0.0, 128
          %1906 = vxpose.xlu0.b32.cont [11/16] 0.0, 128
          %1907 = vxpose.xlu0.b32.cont [12/16] 0.0, 128
          %1908 = vxpose.xlu0.b32.cont [13/16] 0.0, 128
          %1909 = vxpose.xlu0.b32.cont [14/16] 0.0, 128
          %1910 = vxpose.xlu0.b32.cont [15/16] 0.0, 128
          %1911 = vxpose.xlu0.b32.end [16/16] 0.0, 128
          %v1912 = vpop.trf.xlu0
          %v1913 = vpop.trf.xlu0
          %v1914 = vpop.trf.xlu0
          %v1915 = vpop.trf.xlu0
          %v1916 = vpop.trf.xlu0
          %v1917 = vpop.trf.xlu0
          %v1918 = vpop.trf.xlu0
          %v1919 = vpop.trf.xlu0
          %v1920 = vpop.trf.xlu0
          %v1921 = vpop.trf.xlu0
          %v1922 = vpop.trf.xlu0
          %v1923 = vpop.trf.xlu0
          %v1924 = vpop.trf.xlu0
          %v1925 = vpop.trf.xlu0
          %v1926 = vpop.trf.xlu0
          %v1927 = vpop.trf.xlu0
          %v1928 = vpack.c.bf16 %v1689, %v1688
          %v1929 = vpack.c.bf16 %v1721, %v1720
          %v1930 = vpack.c.bf16 %v1753, %v1752
          %v1931 = vpack.c.bf16 %v1785, %v1784
          %v1932 = vpack.c.bf16 %v1817, %v1816
          %v1933 = vpack.c.bf16 %v1849, %v1848
          %v1934 = vpack.c.bf16 %v1881, %v1880
          %v1935 = vpack.c.bf16 %v1913, %v1912
          %v1937 = vsel %vm401, %v1928, 0
          %v1940 = vsel %vm401, %v1929, 0
          %v1943 = vsel %vm401, %v1930, 0
          %v1946 = vsel %vm401, %v1931, 0
          %1948 = vmatprep.subr.bf16.mxu0 0
          %1949 = vmatpush1.bf16.msra.mxu0 %v494
          %1950 = vmatprep.subr.bf16.mxu0 0
          %1951 = vmatpush1.bf16.msra.mxu0 0
          %1952 = vmatprep.subr.bf16.mxu0 0
          %1953 = vmatpush1.bf16.msra.mxu0 0
          %1954 = vmatprep.subr.bf16.mxu0 0
          %1955 = vmatpush1.bf16.msra.mxu0 0
          %1956 = vmatprep.subr.bf16.mxu0 0
          %1957 = vmatpush1.bf16.msra.mxu0 0
          %1958 = vmatprep.subr.bf16.mxu0 0
          %1959 = vmatpush1.bf16.msra.mxu0 0
          %1960 = vmatprep.subr.bf16.mxu0 0
          %1961 = vmatpush1.bf16.msra.mxu0 0
          %1962 = vmatprep.subr.bf16.mxu0 0
          %1963 = vmatpush1.bf16.msra.mxu0 0
          %1964 = vmatprep.subr.bf16.mxu0 0
          %1965 = vmatpush1.bf16.msra.mxu0 0
          %1966 = vmatprep.subr.bf16.mxu0 0
          %1967 = vmatpush1.bf16.msra.mxu0 0
          %1968 = vmatprep.subr.bf16.mxu0 0
          %1969 = vmatpush1.bf16.msra.mxu0 0
          %1970 = vmatprep.subr.bf16.mxu0 0
          %1971 = vmatpush1.bf16.msra.mxu0 0
          %1972 = vmatprep.subr.bf16.mxu0 0
          %1973 = vmatpush1.bf16.msra.mxu0 0
          %1974 = vmatprep.subr.bf16.mxu0 0
          %1975 = vmatpush1.bf16.msra.mxu0 0
          %1976 = vmatprep.subr.bf16.mxu0 0
          %1977 = vmatpush1.bf16.msra.mxu0 0
          %1978 = vmatprep.subr.bf16.mxu0 0
          %1979 = vmatpush1.bf16.msra.mxu0 0
          %1980 = vmatprep.mubr.bf16.mxu0 0
          %1981 = vmatmul.mubr.bf16.gmra.mrb[0].mxu0 %v1937
          %v1982 = vpop.f32.mrb[0].mxu0
          %v1983 = vadd.f32 0.0, %v1982
          %v1984 = vpop.f32.mrb[0].mxu0
          %v1985 = vpop.f32.mrb[0].mxu0
          %v1986 = vadd.f32 0.0, %v1985
          %v1987 = vpop.f32.mrb[0].mxu0
          %1988 = vmatprep.mubr.bf16.mxu0 0
          %1989 = vmatmul.mubr.bf16.gmra.mrb[0].mxu0 %v1940
          %v1990 = vpop.f32.mrb[0].mxu0
          %v1991 = vadd.f32 0.0, %v1990
          %v1992 = vpop.f32.mrb[0].mxu0
          %v1993 = vpop.f32.mrb[0].mxu0
          %v1994 = vadd.f32 0.0, %v1993
          %v1995 = vpop.f32.mrb[0].mxu0
          %1996 = vmatprep.mubr.bf16.mxu0 0
          %1997 = vmatmul.mubr.bf16.gmra.mrb[0].mxu0 %v1943
          %v1998 = vpop.f32.mrb[0].mxu0
          %v1999 = vadd.f32 0.0, %v1998
          %v2000 = vpop.f32.mrb[0].mxu0
          %v2001 = vpop.f32.mrb[0].mxu0
          %v2002 = vadd.f32 0.0, %v2001
          %v2003 = vpop.f32.mrb[0].mxu0
          %2004 = vmatprep.mubr.bf16.mxu0 0
          %2005 = vmatmul.mubr.bf16.gmra.mrb[0].mxu0 %v1946
          %v2006 = vpop.f32.mrb[0].mxu0
          %v2007 = vadd.f32 0.0, %v2006
          %v2008 = vpop.f32.mrb[0].mxu0
          %v2009 = vpop.f32.mrb[0].mxu0
          %v2010 = vadd.f32 0.0, %v2009
          %v2011 = vpop.f32.mrb[0].mxu0
          %2012 = vdwg.mxu0
          %v2014 = vsel %vm401, %v1932, 0
          %v2017 = vsel %vm401, %v1933, 0
          %v2020 = vsel %vm401, %v1934, 0
          %v2023 = vsel %vm401, %v1935, 0
          %2025 = vmatprep.subr.bf16.mxu0 0
          %2026 = vmatpush1.bf16.msra.mxu0 %v1455
          %2027 = vmatprep.subr.bf16.mxu0 0
          %2028 = vmatpush1.bf16.msra.mxu0 0
          %2029 = vmatprep.subr.bf16.mxu0 0
          %2030 = vmatpush1.bf16.msra.mxu0 0
          %2031 = vmatprep.subr.bf16.mxu0 0
          %2032 = vmatpush1.bf16.msra.mxu0 0
          %2033 = vmatprep.subr.bf16.mxu0 0
          %2034 = vmatpush1.bf16.msra.mxu0 0
          %2035 = vmatprep.subr.bf16.mxu0 0
          %2036 = vmatpush1.bf16.msra.mxu0 0
          %2037 = vmatprep.subr.bf16.mxu0 0
          %2038 = vmatpush1.bf16.msra.mxu0 0
          %2039 = vmatprep.subr.bf16.mxu0 0
          %2040 = vmatpush1.bf16.msra.mxu0 0
          %2041 = vmatprep.subr.bf16.mxu0 0
          %2042 = vmatpush1.bf16.msra.mxu0 0
          %2043 = vmatprep.subr.bf16.mxu0 0
          %2044 = vmatpush1.bf16.msra.mxu0 0
          %2045 = vmatprep.subr.bf16.mxu0 0
          %2046 = vmatpush1.bf16.msra.mxu0 0
          %2047 = vmatprep.subr.bf16.mxu0 0
          %2048 = vmatpush1.bf16.msra.mxu0 0
          %2049 = vmatprep.subr.bf16.mxu0 0
          %2050 = vmatpush1.bf16.msra.mxu0 0
          %2051 = vmatprep.subr.bf16.mxu0 0
          %2052 = vmatpush1.bf16.msra.mxu0 0
          %2053 = vmatprep.subr.bf16.mxu0 0
          %2054 = vmatpush1.bf16.msra.mxu0 0
          %2055 = vmatprep.subr.bf16.mxu0 0
          %2056 = vmatpush1.bf16.msra.mxu0 0
          %2057 = vmatprep.mubr.bf16.mxu0 0
          %2058 = vmatmul.mubr.bf16.gmra.mrb[0].mxu0 %v2014
          %v2059 = vpop.f32.mrb[0].mxu0
          %v2060 = vadd.f32 0.0, %v2059
          %v2061 = vpop.f32.mrb[0].mxu0
          %v2062 = vpop.f32.mrb[0].mxu0
          %v2063 = vadd.f32 0.0, %v2062
          %v2064 = vpop.f32.mrb[0].mxu0
          %2065 = vmatprep.mubr.bf16.mxu0 0
          %2066 = vmatmul.mubr.bf16.gmra.mrb[0].mxu0 %v2017
          %v2067 = vpop.f32.mrb[0].mxu0
          %v2068 = vadd.f32 0.0, %v2067
          %v2069 = vpop.f32.mrb[0].mxu0
          %v2070 = vpop.f32.mrb[0].mxu0
          %v2071 = vadd.f32 0.0, %v2070
          %v2072 = vpop.f32.mrb[0].mxu0
          %2073 = vmatprep.mubr.bf16.mxu0 0
          %2074 = vmatmul.mubr.bf16.gmra.mrb[0].mxu0 %v2020
          %v2075 = vpop.f32.mrb[0].mxu0
          %v2076 = vadd.f32 0.0, %v2075
          %v2077 = vpop.f32.mrb[0].mxu0
          %v2078 = vpop.f32.mrb[0].mxu0
          %v2079 = vadd.f32 0.0, %v2078
          %v2080 = vpop.f32.mrb[0].mxu0
          %2081 = vmatprep.mubr.bf16.mxu0 0
          %2082 = vmatmul.mubr.bf16.gmra.mrb[0].mxu0 %v2023
          %v2083 = vpop.f32.mrb[0].mxu0
          %v2084 = vadd.f32 0.0, %v2083
          %v2085 = vpop.f32.mrb[0].mxu0
          %v2086 = vpop.f32.mrb[0].mxu0
          %v2087 = vadd.f32 0.0, %v2086
          %v2088 = vpop.f32.mrb[0].mxu0
          %2089 = vdwg.mxu0
          %v2090 = vsub.f32 %v1983, %v2060
          %v2091 = vsub.f32 %v1986, %v2063
          %v2092 = vsub.f32 %v1991, %v2068
          %v2093 = vsub.f32 %v1994, %v2071
          %v2094 = vsub.f32 %v1999, %v2076
          %v2095 = vsub.f32 %v2002, %v2079
          %v2096 = vsub.f32 %v2007, %v2084
          %v2097 = vsub.f32 %v2010, %v2087
          %2098 = vmatprep.subr.bf16.mxu0 0
          %2099 = vmatpush1.bf16.msra.mxu0 %v494
          %2100 = vmatprep.subr.bf16.mxu0 0
          %2101 = vmatpush1.bf16.msra.mxu0 0
          %2102 = vmatprep.subr.bf16.mxu0 0
          %2103 = vmatpush1.bf16.msra.mxu0 0
          %2104 = vmatprep.subr.bf16.mxu0 0
          %2105 = vmatpush1.bf16.msra.mxu0 0
          %2106 = vmatprep.subr.bf16.mxu0 0
          %2107 = vmatpush1.bf16.msra.mxu0 0
          %2108 = vmatprep.subr.bf16.mxu0 0
          %2109 = vmatpush1.bf16.msra.mxu0 0
          %2110 = vmatprep.subr.bf16.mxu0 0
          %2111 = vmatpush1.bf16.msra.mxu0 0
          %2112 = vmatprep.subr.bf16.mxu0 0
          %2113 = vmatpush1.bf16.msra.mxu0 0
          %2114 = vmatprep.subr.bf16.mxu0 0
          %2115 = vmatpush1.bf16.msra.mxu0 0
          %2116 = vmatprep.subr.bf16.mxu0 0
          %2117 = vmatpush1.bf16.msra.mxu0 0
          %2118 = vmatprep.subr.bf16.mxu0 0
          %2119 = vmatpush1.bf16.msra.mxu0 0
          %2120 = vmatprep.subr.bf16.mxu0 0
          %2121 = vmatpush1.bf16.msra.mxu0 0
          %2122 = vmatprep.subr.bf16.mxu0 0
          %2123 = vmatpush1.bf16.msra.mxu0 0
          %2124 = vmatprep.subr.bf16.mxu0 0
          %2125 = vmatpush1.bf16.msra.mxu0 0
          %2126 = vmatprep.subr.bf16.mxu0 0
          %2127 = vmatpush1.bf16.msra.mxu0 0
          %2128 = vmatprep.subr.bf16.mxu0 0
          %2129 = vmatpush1.bf16.msra.mxu0 0
          %2130 = vmatprep.mubr.bf16.mxu0 0
          %2131 = vmatmul.mubr.bf16.gmra.mrb[0].mxu0 %v2014
          %v2132 = vpop.f32.mrb[0].mxu0
          %v2133 = vadd.f32 0.0, %v2132
          %v2134 = vpop.f32.mrb[0].mxu0
          %v2135 = vpop.f32.mrb[0].mxu0
          %v2136 = vadd.f32 0.0, %v2135
          %v2137 = vpop.f32.mrb[0].mxu0
          %2138 = vmatprep.mubr.bf16.mxu0 0
          %2139 = vmatmul.mubr.bf16.gmra.mrb[0].mxu0 %v2017
          %v2140 = vpop.f32.mrb[0].mxu0
          %v2141 = vadd.f32 0.0, %v2140
          %v2142 = vpop.f32.mrb[0].mxu0
          %v2143 = vpop.f32.mrb[0].mxu0
          %v2144 = vadd.f32 0.0, %v2143
          %v2145 = vpop.f32.mrb[0].mxu0
          %2146 = vmatprep.mubr.bf16.mxu0 0
          %2147 = vmatmul.mubr.bf16.gmra.mrb[0].mxu0 %v2020
          %v2148 = vpop.f32.mrb[0].mxu0
          %v2149 = vadd.f32 0.0, %v2148
          %v2150 = vpop.f32.mrb[0].mxu0
          %v2151 = vpop.f32.mrb[0].mxu0
          %v2152 = vadd.f32 0.0, %v2151
          %v2153 = vpop.f32.mrb[0].mxu0
          %2154 = vmatprep.mubr.bf16.mxu0 0
          %2155 = vmatmul.mubr.bf16.gmra.mrb[0].mxu0 %v2023
          %v2156 = vpop.f32.mrb[0].mxu0
          %v2157 = vadd.f32 0.0, %v2156
          %v2158 = vpop.f32.mrb[0].mxu0
          %v2159 = vpop.f32.mrb[0].mxu0
          %v2160 = vadd.f32 0.0, %v2159
          %v2161 = vpop.f32.mrb[0].mxu0
          %2162 = vdwg.mxu0
          %2163 = vmatprep.subr.bf16.mxu0 0
          %2164 = vmatpush1.bf16.msra.mxu0 %v1455
          %2165 = vmatprep.subr.bf16.mxu0 0
          %2166 = vmatpush1.bf16.msra.mxu0 0
          %2167 = vmatprep.subr.bf16.mxu0 0
          %2168 = vmatpush1.bf16.msra.mxu0 0
          %2169 = vmatprep.subr.bf16.mxu0 0
          %2170 = vmatpush1.bf16.msra.mxu0 0
          %2171 = vmatprep.subr.bf16.mxu0 0
          %2172 = vmatpush1.bf16.msra.mxu0 0
          %2173 = vmatprep.subr.bf16.mxu0 0
          %2174 = vmatpush1.bf16.msra.mxu0 0
          %2175 = vmatprep.subr.bf16.mxu0 0
          %2176 = vmatpush1.bf16.msra.mxu0 0
          %2177 = vmatprep.subr.bf16.mxu0 0
          %2178 = vmatpush1.bf16.msra.mxu0 0
          %2179 = vmatprep.subr.bf16.mxu0 0
          %2180 = vmatpush1.bf16.msra.mxu0 0
          %2181 = vmatprep.subr.bf16.mxu0 0
          %2182 = vmatpush1.bf16.msra.mxu0 0
          %2183 = vmatprep.subr.bf16.mxu0 0
          %2184 = vmatpush1.bf16.msra.mxu0 0
          %2185 = vmatprep.subr.bf16.mxu0 0
          %2186 = vmatpush1.bf16.msra.mxu0 0
          %2187 = vmatprep.subr.bf16.mxu0 0
          %2188 = vmatpush1.bf16.msra.mxu0 0
          %2189 = vmatprep.subr.bf16.mxu0 0
          %2190 = vmatpush1.bf16.msra.mxu0 0
          %2191 = vmatprep.subr.bf16.mxu0 0
          %2192 = vmatpush1.bf16.msra.mxu0 0
          %2193 = vmatprep.subr.bf16.mxu0 0
          %2194 = vmatpush1.bf16.msra.mxu0 0
          %2195 = vmatprep.mubr.bf16.mxu0 0
          %2196 = vmatmul.mubr.bf16.gmra.mrb[0].mxu0 %v1937
          %v2197 = vpop.f32.mrb[0].mxu0
          %v2198 = vadd.f32 %v2133, %v2197
          %v2199 = vpop.f32.mrb[0].mxu0
          %v2200 = vpop.f32.mrb[0].mxu0
          %v2201 = vadd.f32 %v2136, %v2200
          %v2202 = vpop.f32.mrb[0].mxu0
          %2203 = vmatprep.mubr.bf16.mxu0 0
          %2204 = vmatmul.mubr.bf16.gmra.mrb[0].mxu0 %v1940
          %v2205 = vpop.f32.mrb[0].mxu0
          %v2206 = vadd.f32 %v2141, %v2205
          %v2207 = vpop.f32.mrb[0].mxu0
          %v2208 = vpop.f32.mrb[0].mxu0
          %v2209 = vadd.f32 %v2144, %v2208
          %v2210 = vpop.f32.mrb[0].mxu0
          %2211 = vmatprep.mubr.bf16.mxu0 0
          %2212 = vmatmul.mubr.bf16.gmra.mrb[0].mxu0 %v1943
          %v2213 = vpop.f32.mrb[0].mxu0
          %v2214 = vadd.f32 %v2149, %v2213
          %v2215 = vpop.f32.mrb[0].mxu0
          %v2216 = vpop.f32.mrb[0].mxu0
          %v2217 = vadd.f32 %v2152, %v2216
          %v2218 = vpop.f32.mrb[0].mxu0
          %2219 = vmatprep.mubr.bf16.mxu0 0
          %2220 = vmatmul.mubr.bf16.gmra.mrb[0].mxu0 %v1946
          %v2221 = vpop.f32.mrb[0].mxu0
          %v2222 = vadd.f32 %v2157, %v2221
          %v2223 = vpop.f32.mrb[0].mxu0
          %v2224 = vpop.f32.mrb[0].mxu0
          %v2225 = vadd.f32 %v2160, %v2224
          %v2226 = vpop.f32.mrb[0].mxu0
          %2227 = vdwg.mxu0
          %v2228 = vmul.f32 %v373, %v2090
          %v2229 = vmul.f32 %v374, %v2091
          %v2230 = vmul.f32 %v375, %v2092
          %v2231 = vmul.f32 %v376, %v2093
          %v2232 = vmul.f32 %v377, %v2094
          %v2233 = vmul.f32 %v378, %v2095
          %v2234 = vmul.f32 %v379, %v2096
          %v2235 = vmul.f32 %v380, %v2097
          %v2236 = vmul.f32 %v381, %v2198
          %v2237 = vmul.f32 %v382, %v2201
          %v2238 = vmul.f32 %v383, %v2206
          %v2239 = vmul.f32 %v384, %v2209
          %v2240 = vmul.f32 %v385, %v2214
          %v2241 = vmul.f32 %v386, %v2217
          %v2242 = vmul.f32 %v387, %v2222
          %v2243 = vmul.f32 %v388, %v2225
          %v2244 = vadd.f32 %v2228, %v2236
          %v2245 = vadd.f32 %v2229, %v2237
          %v2246 = vadd.f32 %v2230, %v2238
          %v2247 = vadd.f32 %v2231, %v2239
          %v2248 = vadd.f32 %v2232, %v2240
          %v2249 = vadd.f32 %v2233, %v2241
          %v2250 = vadd.f32 %v2234, %v2242
          %v2251 = vadd.f32 %v2235, %v2243
          %v2252 = vsel %vm401, %v2244, 0.0
          %v2253 = vsel %vm401, %v2246, 0.0
          %v2254 = vadd.f32 %v2252, %v2253
          %v2255 = vsel %vm401, %v2248, 0.0
          %v2256 = vadd.f32 %v2254, %v2255
          %v2257 = vsel %vm401, %v2250, 0.0
          %v2258 = vadd.f32 %v2256, %v2257
          %v2259 = vsel %vm401, %v2245, 0.0
          %v2260 = vsel %vm401, %v2247, 0.0
          %v2261 = vadd.f32 %v2259, %v2260
          %v2262 = vsel %vm401, %v2249, 0.0
          %v2263 = vadd.f32 %v2261, %v2262
          %v2264 = vsel %vm401, %v2251, 0.0
          %v2265 = vadd.f32 %v2263, %v2264
          %v2266 = vmul.f32 %v373, %v2198
          %v2267 = vmul.f32 %v374, %v2201
          %v2268 = vmul.f32 %v375, %v2206
          %v2269 = vmul.f32 %v376, %v2209
          %v2270 = vmul.f32 %v377, %v2214
          %v2271 = vmul.f32 %v378, %v2217
          %v2272 = vmul.f32 %v379, %v2222
          %v2273 = vmul.f32 %v380, %v2225
          %v2274 = vmul.f32 %v381, %v2090
          %v2275 = vmul.f32 %v382, %v2091
          %v2276 = vmul.f32 %v383, %v2092
          %v2277 = vmul.f32 %v384, %v2093
          %v2278 = vmul.f32 %v385, %v2094
          %v2279 = vmul.f32 %v386, %v2095
          %v2280 = vmul.f32 %v387, %v2096
          %v2281 = vmul.f32 %v388, %v2097
          %v2282 = vsub.f32 %v2266, %v2274
          %v2283 = vsub.f32 %v2267, %v2275
          %v2284 = vsub.f32 %v2268, %v2276
          %v2285 = vsub.f32 %v2269, %v2277
          %v2286 = vsub.f32 %v2270, %v2278
          %v2287 = vsub.f32 %v2271, %v2279
          %v2288 = vsub.f32 %v2272, %v2280
          %v2289 = vsub.f32 %v2273, %v2281
          %v2290 = vsel %vm401, %v2282, 0.0
          %v2291 = vsel %vm401, %v2284, 0.0
          %v2292 = vadd.f32 %v2290, %v2291
          %v2293 = vsel %vm401, %v2286, 0.0
          %v2294 = vadd.f32 %v2292, %v2293
          %v2295 = vsel %vm401, %v2288, 0.0
          %v2296 = vadd.f32 %v2294, %v2295
          %v2297 = vsel %vm401, %v2283, 0.0
          %v2298 = vsel %vm401, %v2285, 0.0
          %v2299 = vadd.f32 %v2297, %v2298
          %v2300 = vsel %vm401, %v2287, 0.0
          %v2301 = vadd.f32 %v2299, %v2300
          %v2302 = vsel %vm401, %v2289, 0.0
          %v2303 = vadd.f32 %v2301, %v2302
          %v2304 = vstv %s366
          %v2305 = vmul.f32 %v2304, %v429
          %v2306 = vmul.f32 %v2304, %v430
          %v2307 = vadd.f32 %v2258, %v2305
          %v2308 = vadd.f32 %v2265, %v2306
          %v2309 = vmul.f32 %v2304, %v431
          %v2310 = vmul.f32 %v2304, %v432
          %v2311 = vadd.f32 %v2296, %v2309
          %v2312 = vadd.f32 %v2303, %v2310
          %v2313 = vmul.f32 %v429, %v2307
          %v2314 = vmul.f32 %v430, %v2308
          %v2315 = vmul.f32 %v431, %v2311
          %v2316 = vmul.f32 %v432, %v2312
          %v2317 = vadd.f32 %v2313, %v2315
          %v2318 = vadd.f32 %v2314, %v2316
          %v2319 = vsel %vm401, %v2317, 0.0
          %v2320 = vsel %vm401, %v2318, 0.0
          %v2321 = vadd.f32 %v2319, %v2320
          %2322 = vadd.xlane.f32.xlu0 %v2321
          %v2323 = vpop.xlane.xlu0 %2322
          %v2324 = vrot.slane %v2323, 4
          %v2325 = vadd.f32 %v2323, %v2324
          %v2326 = vrot.slane %v2325, 2
          %v2327 = vadd.f32 %v2325, %v2326
          %v2328 = vrot.slane %v2327, 1
          %v2329 = vadd.f32 %v2327, %v2328
          %s2330 = vtos %v2329
          %v2331 = vstv %s2330
          %vm2332 = vcmp.gt.f32.partialorder %v2331, 1e-12
          %v2333 = vrcp.pop %v2331
          %v2334 = vmul.f32 %v433, %v2333
          %v2335 = vsel %vm2332, %v2334, 0.0
          %v2336 = vmul.f32 %v2335, %v429
          %v2337 = vmul.f32 %v2335, %v430
          %v2338 = vadd.f32 %v421, %v2336
          %v2339 = vadd.f32 %v422, %v2337
          %v2340 = vmul.f32 %v2335, %v431
          %v2341 = vmul.f32 %v2335, %v432
          %v2342 = vadd.f32 %v423, %v2340
          %v2343 = vadd.f32 %v424, %v2341
          %v2344 = vmul.f32 %v2335, %v2307
          %v2345 = vmul.f32 %v2335, %v2308
          %v2346 = vsub.f32 %v425, %v2344
          %v2347 = vsub.f32 %v426, %v2345
          %v2348 = vmul.f32 %v2335, %v2311
          %v2349 = vmul.f32 %v2335, %v2312
          %v2350 = vsub.f32 %v427, %v2348
          %v2351 = vsub.f32 %v428, %v2349
          %v2352 = vmul.f32 %v2346, %v2346
          %v2353 = vmul.f32 %v2347, %v2347
          %v2354 = vmul.f32 %v2350, %v2350
          %v2355 = vmul.f32 %v2351, %v2351
          %v2356 = vadd.f32 %v2352, %v2354
          %v2357 = vadd.f32 %v2353, %v2355
          %v2358 = vsel %vm401, %v2356, 0.0
          %v2359 = vsel %vm401, %v2357, 0.0
          %v2360 = vadd.f32 %v2358, %v2359
          %2361 = vadd.xlane.f32.xlu0 %v2360
          %v2362 = vpop.xlane.xlu0 %2361
          %v2363 = vrot.slane %v2362, 4
          %v2364 = vadd.f32 %v2362, %v2363
          %v2365 = vrot.slane %v2364, 2
          %v2366 = vadd.f32 %v2364, %v2365
          %v2367 = vrot.slane %v2366, 1
          %v2368 = vadd.f32 %v2366, %v2367
          %s2369 = vtos %v2368
          %v2370 = vstv %s2369
          %vm2371 = vcmp.gt.f32.partialorder %v433, 1e-12
          %v2372 = vrcp.pop %v433
          %v2373 = vmul.f32 %v2370, %v2372
          %v2374 = vsel %vm2371, %v2373, 0.0
          %v2375 = vmul.f32 %v2374, %v429
          %v2376 = vmul.f32 %v2374, %v430
          %v2377 = vadd.f32 %v2346, %v2375
          %v2378 = vadd.f32 %v2347, %v2376
          %v2379 = vmul.f32 %v2374, %v431
          %v2380 = vmul.f32 %v2374, %v432
          %v2381 = vadd.f32 %v2350, %v2379
          %v2382 = vadd.f32 %v2351, %v2380
        $region57: #{modl_forward.7} parent=51 // loop_footer
          %s420 = sadd.s32 1, %s416
        $region58: #{modl_forward.7} parent=51 // loop_footer_branch
          %415 = sbr.rel target = $region54
        $region59: #{modl_forward.7} parent=51 // loop_exit
          _
        %2383 = vst.msk [vmem:[%s344] sm:$0xff] %vm401, %v421
        %2384 = vst.msk [vmem:[%s344 + $0x8] sm:$0xff] %vm401, %v422
        %s2385 = scalar_lea.vmem %s344, 16 [#allocation3]
        %2386 = vst.msk [vmem:[%s2385] sm:$0xff] %vm401, %v423
        %2387 = vst.msk [vmem:[%s2385 + $0x8] sm:$0xff] %vm401, %v424
        %s2388 = sand.u32 %s219, 1
        %s2389 = scalar_lea.sflag [#allocation4], %s2388
        %s2390 = sand.u32 %s219, 1
        %s2391 = smul.addr %s2390, 32
        %s2392 = scalar_lea.vmem [#allocation3], %s2391
        // Predicated region
        $region60: #{modl_forward.7} parent=51 // pred_check
          %p2393 = pneg %p229
        $region61: #{modl_forward.7} parent=51 // pred_check_branch
          %2395 = sbr.rel (%p2393) target = $region63
        $region62: #{modl_forward.7} parent=51 // pred_region
          %s2397 = ssub.s32 512, 512
          %2398 = vsyncadd %s2389, %s2397
          %s2399 = smul.addr %s23, 4
          %s2400 = smul.addr %s2399, 128
          %s2401 = scalar_lea.hbm %s8, %s2400
          %s2402 = sshll.u32 %s2392, 4
          %s2403 = int_to_ptr.vmem [resolvable:$true] %s2402
          %2408 = dma.vmem_to_hbm [thread:$0]  %s2403, 512, %s2401, %s2389, 128, 128, 8
        $region63: #{modl_forward.7} parent=51 // pred_fallthru
          _
      $region52: #{modl_forward.7} parent=5 // pred_fallthru
        _
      %p2409 = scmp.le.s32.totalorder 2, %s18
      // Predicated region
      $region64: #{modl_forward.7} parent=5 // pred_check
        %p2410 = pneg %p2409
      $region65: #{modl_forward.7} parent=5 // pred_check_branch
        %2412 = sbr.rel (%p2410) target = $region67
      $region66: #{modl_forward.7} parent=5 // pred_region
        %s2413 = ssub.s32 %s18, 2
        // Predicated region
        $region68: #{modl_forward.7} parent=66 // pred_check
          %p2414 = pneg %p235
        $region69: #{modl_forward.7} parent=66 // pred_check_branch
          %2416 = sbr.rel (%p2414) target = $region71
        $region70: #{modl_forward.7} parent=66 // pred_region
          %s2417 = sand.u32 %s220, 1
          %s2418 = scalar_lea.sflag [#allocation4], %s2417
          %s2419 = sand.u32 %s220, 1
          %s2420 = smul.addr %s2419, 32
          %s2421 = scalar_lea.vmem [#allocation3], %s2420
          %2422 = dma.done %s2418, 512
        $region71: #{modl_forward.7} parent=66 // pred_fallthru
          _
      $region67: #{modl_forward.7} parent=5 // pred_fallthru
        _
    $region6: #{modl_forward.7} parent=1 // loop_footer
      %s22 = sadd.s32 1, %s18
    $region7: #{modl_forward.7} parent=1 // loop_footer_branch
      %17 = sbr.rel target = $region3
    $region8: #{modl_forward.7} parent=1 // loop_exit
      _
    %2423 = vsyncpa [#allocation4], 1
    %s2424 = scalar_lea.sflag [#allocation4], 1
    %2425 = vsyncpa %s2424, 1

</llo_original>
